<compile_context>
chip_gen: v5e
topology: v5e:2x2
jax: 0.10.0
libtpu: 0.0.40
codegen_flags: <defaults>
</compile_context>

<pallas_src>
import functools

import numpy as np
import jax
import jax.numpy as jnp
from jax.experimental import pallas as pl
from jax.experimental.pallas import tpu as pltpu


LANE_BLOCK_TARGET = 512  # lane-tile target for the upsample kernels


# ----------------------------- Pallas kernels ------------------------------

def _conv_bn_act_kernel(planes_ref, w_ref, shift_ref, ho_ref, wo_ref, o_ref, *,
                        taps, out_h, out_w, num_lanes, halo, apply_relu):
    """Direct KxK conv (+ folded-BN shift, optional ReLU) for one image.

    planes_ref : (1, G, Cin, M + 2*halo) f32  phase-split, halo-padded input
    w_ref      : (KH*KW, Cout, Cin)      bf16 BN-scale-folded per-tap weights
    shift_ref  : (Cout, 1)               f32
    ho_ref/wo_ref : (1, M)               int32 per-lane output row / col index
    o_ref      : (1, Cout, M)            f32  lane-dense output
    """
    num_groups = planes_ref.shape[1]
    phases = [planes_ref[0, g] for g in range(num_groups)]      # (Cin, Mp) each
    ho = ho_ref[...]
    wo = wo_ref[...]
    acc = None
    for t, (g, d, a, b) in enumerate(taps):
        start = halo + d
        win = phases[g][:, start:start + num_lanes]              # (Cin, M)
        conds = []
        if a > 0:
            conds.append(ho < out_h - a)
        elif a < 0:
            conds.append(ho >= -a)
        if b > 0:
            conds.append(wo < out_w - b)
        elif b < 0:
            conds.append(wo >= -b)
        if conds:
            mask = conds[0]
            for c in conds[1:]:
                mask = jnp.logical_and(mask, c)
            win = jnp.where(mask, win, 0.0)
        contrib = jnp.dot(w_ref[t], win.astype(jnp.bfloat16),
                          preferred_element_type=jnp.float32)    # (Cout, M)
        acc = contrib if acc is None else acc + contrib
    y = acc + shift_ref[...]
    if apply_relu:
        y = jnp.maximum(y, 0.0)
    o_ref[0] = y


def _gap_gpb_kernel(x_ref, w_ref, shift_ref, o_ref, *, inv_hw):
    """Fused global-average-pool + 1x1 conv (+ folded BN) for one image."""
    g = jnp.sum(x_ref[0], axis=1, keepdims=True) * inv_hw        # (C, 1)
    o_ref[0] = jnp.dot(w_ref[...], g.astype(jnp.bfloat16),
                       preferred_element_type=jnp.float32) + shift_ref[...]


def _rows_matmul_kernel(a_ref, x_ref, o_ref):
    """o = A @ x  (bilinear upsample along the row dimension)."""
    o_ref[...] = jnp.dot(a_ref[...], x_ref[...].astype(jnp.bfloat16),
                         preferred_element_type=jnp.float32)


def _merge_wup_kernel(aw_mid_ref, t_ref, base_ref, aw_full_ref, o_ref):
    """o = A_w_full @ (A_w_mid @ t + base): W-upsample, residual add, W-upsample."""
    x1m = jnp.dot(aw_mid_ref[...], t_ref[...].astype(jnp.bfloat16),
                  preferred_element_type=jnp.float32) + base_ref[...]
    o_ref[...] = jnp.dot(aw_full_ref[...], x1m.astype(jnp.bfloat16),
                         preferred_element_type=jnp.float32)


def _final_hup_kernel(ah_ref, t_ref, master_ref, gpb_ref, o_ref):
    """o = master * (A_h @ t) + gpb  (gpb broadcast over rows)."""
    up = jnp.dot(ah_ref[...], t_ref[...].astype(jnp.bfloat16),
                 preferred_element_type=jnp.float32)
    o_ref[...] = master_ref[...] * up + gpb_ref[...]


# ------------------------------ wrappers ------------------------------------

def _parallel(n_axes=1):
    return pltpu.CompilerParams(dimension_semantics=("parallel",) * n_axes)


def _pick_lane_block(length, target=LANE_BLOCK_TARGET):
    if length <= target:
        return length
    bl = (target // 128) * 128
    while bl >= 128:
        if length % bl == 0:
            return bl
        bl -= 128
    return length


def conv2d_bn_act(x, w_taps, shift, ksize, stride, relu):
    """x: (N, Cin, H, W) f32; w_taps: (K*K, Cout, Cin) bf16 (BN scale folded);
    shift: (Cout, 1) f32.  Returns (N, Cout, Ho, Wo) f32."""
    N, Cin, H, W = x.shape
    T, Cout, _ = w_taps.shape
    pad = (ksize - 1) // 2
    assert H % stride == 0 and W % stride == 0
    if stride == 1:
        Ho, Wo = H, W
        G = 1
        planes = x.reshape(N, 1, Cin, H * W)
    else:
        Ho, Wo = H // stride, W // stride
        G = stride * stride
        x6 = x.reshape(N, Cin, Ho, stride, Wo, stride)
        planes = jnp.transpose(x6, (0, 3, 5, 1, 2, 4)).reshape(N, G, Cin, Ho * Wo)
    M = Ho * Wo

    taps = []
    for i in range(ksize):
        for j in range(ksize):
            di, dj = i - pad, j - pad
            if stride == 1:
                g, a, b = 0, di, dj
            else:
                ri, rj = di % stride, dj % stride
                a, b = (di - ri) // stride, (dj - rj) // stride
                g = ri * stride + rj
            taps.append((g, a * Wo + b, a, b))
    halo = max(abs(d) for (_, d, _, _) in taps)
    if halo:
        planes = jnp.pad(planes, ((0, 0), (0, 0), (0, 0), (halo, halo)))
    Mp = M + 2 * halo

    lane = np.arange(M, dtype=np.int32)
    ho_idx = jnp.asarray((lane // Wo).astype(np.int32)[None, :])
    wo_idx = jnp.asarray((lane % Wo).astype(np.int32)[None, :])

    kernel = functools.partial(_conv_bn_act_kernel, taps=tuple(taps), out_h=Ho,
                               out_w=Wo, num_lanes=M, halo=halo, apply_relu=relu)
    out = pl.pallas_call(
        kernel,
        out_shape=jax.ShapeDtypeStruct((N, Cout, M), jnp.float32),
        grid=(N,),
        in_specs=[
            pl.BlockSpec((1, G, Cin, Mp), lambda n: (n, 0, 0, 0)),
            pl.BlockSpec((T, Cout, Cin), lambda n: (0, 0, 0)),
            pl.BlockSpec((Cout, 1), lambda n: (0, 0)),
            pl.BlockSpec((1, M), lambda n: (0, 0)),
            pl.BlockSpec((1, M), lambda n: (0, 0)),
        ],
        out_specs=pl.BlockSpec((1, Cout, M), lambda n: (n, 0, 0)),
        compiler_params=_parallel(),
    )(planes, w_taps, shift, ho_idx, wo_idx)
    return out.reshape(N, Cout, Ho, Wo)


def gap_gpb(x, w_taps, shift):
    """Fused GAP -> 1x1 conv -> BN.  x: (N, C, H, W); returns (N, Cout, 1)."""
    N, C, H, W = x.shape
    w2d = w_taps.reshape(w_taps.shape[-2], w_taps.shape[-1])      # (Cout, Cin)
    xf = x.reshape(N, C, H * W)
    return pl.pallas_call(
        functools.partial(_gap_gpb_kernel, inv_hw=1.0 / float(H * W)),
        out_shape=jax.ShapeDtypeStruct((N, w2d.shape[0], 1), jnp.float32),
        grid=(N,),
        in_specs=[
            pl.BlockSpec((1, C, H * W), lambda n: (n, 0, 0)),
            pl.BlockSpec(w2d.shape, lambda n: (0, 0)),
            pl.BlockSpec((w2d.shape[0], 1), lambda n: (0, 0)),
        ],
        out_specs=pl.BlockSpec((1, w2d.shape[0], 1), lambda n: (n, 0, 0)),
        compiler_params=_parallel(),
    )(xf, w2d, shift)


def upsample_rows(a, x):
    """y = a @ x.  a: (T, S) bf16 interpolation matrix; x: (S, L) f32."""
    T, S = a.shape
    L = x.shape[1]
    bl = _pick_lane_block(L)
    return pl.pallas_call(
        _rows_matmul_kernel,
        out_shape=jax.ShapeDtypeStruct((T, L), jnp.float32),
        grid=(L // bl,),
        in_specs=[pl.BlockSpec((T, S), lambda j: (0, 0)),
                  pl.BlockSpec((S, bl), lambda j: (0, j))],
        out_specs=pl.BlockSpec((T, bl), lambda j: (0, j)),
        compiler_params=_parallel(),
    )(a, x)


def merge_and_upsample_w(aw_mid, t, base, aw_full):
    """y = aw_full @ (aw_mid @ t + base); W-major layout, lanes = C*N*h."""
    w_mid, w_small = aw_mid.shape
    w_full = aw_full.shape[0]
    L = t.shape[1]
    bl = _pick_lane_block(L)
    return pl.pallas_call(
        _merge_wup_kernel,
        out_shape=jax.ShapeDtypeStruct((w_full, L), jnp.float32),
        grid=(L // bl,),
        in_specs=[pl.BlockSpec((w_mid, w_small), lambda j: (0, 0)),
                  pl.BlockSpec((w_small, bl), lambda j: (0, j)),
                  pl.BlockSpec((w_mid, bl), lambda j: (0, j)),
                  pl.BlockSpec((w_full, w_mid), lambda j: (0, 0))],
        out_specs=pl.BlockSpec((w_full, bl), lambda j: (0, j)),
        compiler_params=_parallel(),
    )(aw_mid, t, base, aw_full)


def upsample_h_mul_add(ah, t, master, gpb_row):
    """y = master * (ah @ t) + gpb_row; H-major layout, lanes = C*N*W."""
    h_full, h_mid = ah.shape
    L = t.shape[1]
    bl = _pick_lane_block(L)
    return pl.pallas_call(
        _final_hup_kernel,
        out_shape=jax.ShapeDtypeStruct((h_full, L), jnp.float32),
        grid=(L // bl,),
        in_specs=[pl.BlockSpec((h_full, h_mid), lambda j: (0, 0)),
                  pl.BlockSpec((h_mid, bl), lambda j: (0, j)),
                  pl.BlockSpec((h_full, bl), lambda j: (0, j)),
                  pl.BlockSpec((1, bl), lambda j: (0, j))],
        out_specs=pl.BlockSpec((h_full, bl), lambda j: (0, j)),
        compiler_params=_parallel(),
    )(ah, t, master, gpb_row)


# ------------------------------ params / glue --------------------------------

def bilinear_matrix(T, S):
    """align_corners=True interpolation matrix A so that out = A @ in (1-D)."""
    A = np.zeros((T, S), dtype=np.float32)
    for i in range(T):
        src = i * (S - 1) / (T - 1) if T > 1 else 0.0
        i0 = int(np.floor(src))
        frac = src - i0
        i0 = min(i0, S - 1)
        i1 = min(i0 + 1, S - 1)
        A[i, i0] += 1.0 - frac
        A[i, i1] += frac
    return A


def make_params(key, C):
    """Deterministic synthetic parameters; BN expressed as inference-mode affine."""
    Cm = C // 4
    eps = 1e-5
    layers = [("master", 1, C, C), ("gpb", 1, C, C),
              ("7_1", 7, C, Cm), ("7_2", 7, Cm, C),
              ("5_1", 5, Cm, Cm), ("5_2", 5, Cm, C),
              ("3_1", 3, Cm, Cm), ("3_2", 3, Cm, C)]
    p = {}
    for name, k, cin, cout in layers:
        key, k1, k2, k3, k4, k5 = jax.random.split(key, 6)
        w = jax.random.normal(k1, (k, k, cin, cout), jnp.float32) / np.sqrt(k * k * cin)
        gamma = jax.random.uniform(k2, (cout,), jnp.float32, 0.5, 1.5)
        beta = jax.random.normal(k3, (cout,), jnp.float32) * 0.1
        mean = jax.random.normal(k4, (cout,), jnp.float32) * 0.1
        var = jax.random.uniform(k5, (cout,), jnp.float32, 0.5, 1.5)
        scale = gamma / jnp.sqrt(var + eps)
        shift = beta - mean * scale
        p["w_" + name] = w
        p["s_" + name] = scale
        p["b_" + name] = shift
    return p


def prepare_kernel_params(p):
    """Fold BN scale into conv weights, build per-tap (K*K, Cout, Cin) bf16
    operands; keep the shift as an f32 (Cout, 1) epilogue operand."""
    kp = {}
    for name in ("master", "gpb", "7_1", "7_2", "5_1", "5_2", "3_1", "3_2"):
        w = p["w_" + name]                                  # (K, K, Cin, Cout)
        k, _, cin, cout = w.shape
        wf = w * p["s_" + name][None, None, None, :]        # fold BN scale
        wt = jnp.transpose(wf.reshape(k * k, cin, cout), (0, 2, 1))
        kp["w_" + name] = wt.astype(jnp.bfloat16)           # (K*K, Cout, Cin)
        kp["b_" + name] = p["b_" + name].reshape(cout, 1)
    return kp


@jax.jit
def fpa_forward(x, kp):
    """Pallas FPA forward.  x: (N, C, H, W) f32 (NCHW, like the PyTorch module)."""
    N, C, H, W = x.shape
    h2, w2, h4, w4 = H // 2, W // 2, H // 4, W // 4
    Cn = C * N

    # master branch: 1x1 conv + BN (reuses the conv kernel with K=1)
    x_master = conv2d_bn_act(x, kp["w_master"], kp["b_master"], 1, 1, False)

    # global pooling branch: GAP -> 1x1 conv -> BN fused in one kernel
    x_gpb = gap_gpb(x, kp["w_gpb"], kp["b_gpb"])                       # (N, C, 1)

    # pyramid branch (conv + folded BN + ReLU fused, in-kernel tap accumulation)
    x1_1 = conv2d_bn_act(x,    kp["w_7_1"], kp["b_7_1"], 7, 2, True)   # (N,Cm,h2,w2)
    x1_2 = conv2d_bn_act(x1_1, kp["w_7_2"], kp["b_7_2"], 7, 1, True)   # (N,C ,h2,w2)
    x2_1 = conv2d_bn_act(x1_1, kp["w_5_1"], kp["b_5_1"], 5, 2, True)   # (N,Cm,h4,w4)
    x2_2 = conv2d_bn_act(x2_1, kp["w_5_2"], kp["b_5_2"], 5, 1, True)   # (N,C ,h4,w4)
    x3_1 = conv2d_bn_act(x2_1, kp["w_3_1"], kp["b_3_1"], 3, 2, True)   # (N,Cm,h8,w8)
    _x3_2 = conv2d_bn_act(x3_1, kp["w_3_2"], kp["b_3_2"], 3, 1, True)  # (N,C ,h8,w8)
    # The original module builds x2_merge = x2_2 + up(x3_2) but never uses it:
    # that branch is dead code, so we spend no upsample kernel on it and jit
    # DCEs the (otherwise unused) x3 convs above.

    # separable bilinear interpolation matrices (align_corners=True), bf16
    ah2 = jnp.asarray(bilinear_matrix(h2, h4)).astype(jnp.bfloat16)
    aw2 = jnp.asarray(bilinear_matrix(w2, w4)).astype(jnp.bfloat16)
    ah1 = jnp.asarray(bilinear_matrix(H, h2)).astype(jnp.bfloat16)
    aw1 = jnp.asarray(bilinear_matrix(W, w2)).astype(jnp.bfloat16)

    # H-upsample x2_2 (H-major layout: rows = h4, lanes = (c, n, w4))
    x22_h = jnp.transpose(x2_2, (2, 1, 0, 3)).reshape(h4, Cn * w4)
    t1 = upsample_rows(ah2, x22_h)                                     # (h2, Cn*w4)

    # W-major: fuse x1_merge = x1_2 + up_w(...) with the W-upsample to width W
    t1w = jnp.transpose(t1.reshape(h2, C, N, w4), (3, 1, 2, 0)).reshape(w4, Cn * h2)
    x12w = jnp.transpose(x1_2, (3, 1, 0, 2)).reshape(w2, Cn * h2)
    t3 = merge_and_upsample_w(aw2, t1w, x12w, aw1)                     # (W, Cn*h2)

    # back to H-major: fuse the final H-upsample with master * up + gpb
    t3h = jnp.transpose(t3.reshape(W, C, N, h2), (3, 1, 2, 0)).reshape(h2, Cn * W)
    xm_h = jnp.transpose(x_master, (2, 1, 0, 3)).reshape(H, Cn * W)
    gpb_row = jnp.broadcast_to(
        jnp.transpose(x_gpb.reshape(N, C), (1, 0))[:, :, None], (C, N, W)
    ).reshape(1, Cn * W)
    out_h = upsample_h_mul_add(ah1, t3h, xm_h, gpb_row)                # (H, Cn*W)

    return jnp.transpose(out_h.reshape(H, C, N, W), (2, 1, 0, 3))      # (N, C, H, W)


# --------------------------- pure-JAX reference ------------------------------

def ref_forward(x, p):
    """Pure-XLA reference of the PyTorch module at HIGHEST precision (NCHW)."""
    hi = jax.lax.Precision.HIGHEST

    def conv(y, w, stride, pad):
        return jax.lax.conv_general_dilated(
            y, w, (stride, stride), [(pad, pad), (pad, pad)],
            dimension_numbers=("NCHW", "HWIO", "NCHW"), precision=hi)

    def cbr(y, name, stride, pad, relu=True):
        z = conv(y, p["w_" + name], stride, pad)
        z = z * p["s_" + name][None, :, None, None] + p["b_" + name][None, :, None, None]
        return jnp.maximum(z, 0.0) if relu else z

    def up(y, size):
        ah = jnp.asarray(bilinear_matrix(size[0], y.shape[2]))
        aw = jnp.asarray(bilinear_matrix(size[1], y.shape[3]))
        return jnp.einsum("ih,jw,nchw->ncij", ah, aw, y, precision=hi)

    N, C, H, W = x.shape
    x_master = cbr(x, "master", 1, 0, relu=False)
    gp = jnp.mean(x, axis=(2, 3), keepdims=True)
    x_gpb = cbr(gp, "gpb", 1, 0, relu=False)
    x1_1 = cbr(x, "7_1", 2, 3)
    x1_2 = cbr(x1_1, "7_2", 1, 3)
    x2_1 = cbr(x1_1, "5_1", 2, 2)
    x2_2 = cbr(x2_1, "5_2", 1, 2)
    # (the x3 branch / x2_merge of the original module never affect the output)
    x1_merge = x1_2 + up(x2_2, (H // 2, W // 2))
    return x_master * up(x1_merge, (H, W)) + x_gpb


# --------------------------------- main --------------------------------------

if __name__ == "__main__":
    N, C, H, W = 2, 8, 16, 16            # channels_mid = C // 4 = 2
    key = jax.random.PRNGKey(0)
    kx, kparam = jax.random.split(key)

    x = jax.random.normal(kx, (N, C, H, W), jnp.float32)   # NCHW, like the module
    raw_params = make_params(kparam, C)
    kernel_params = prepare_kernel_params(raw_params)

    out = fpa_forward(x, kernel_params)
    out = jax.block_until_ready(out)
    assert out.shape == (N, C, H, W)

    ref = ref_forward(x, raw_params)
    # bf16 MXU operands (f32 accumulation) => slightly looser tolerance than pure f32.
    np.testing.assert_allclose(np.asarray(out), np.asarray(ref), rtol=3e-2, atol=3e-2)

    print("KERNEL_OK")
</pallas_src>

<mosaic_0001>
module attributes {stable_mosaic.version = 11 : i64} {
  func.func @_conv_bn_act_kernel(%arg0: i32, %arg1: memref<1x4x8x100xf32, #tpu.memory_space<vmem>>, %arg2: memref<49x2x8xbf16, #tpu.memory_space<vmem>>, %arg3: memref<2x1xf32, #tpu.memory_space<vmem>>, %arg4: memref<1x64xi32, #tpu.memory_space<vmem>>, %arg5: memref<1x64xi32, #tpu.memory_space<vmem>>, %arg6: memref<1x2x64xf32, #tpu.memory_space<vmem>>) attributes {dimension_semantics = [#tpu.dimension_semantics<parallel>], iteration_bounds = array<i64: 2>, scalar_prefetch = 0 : i64, scratch_operands = 0 : i64, tpu.core_type = #tpu.core_type<tc>, window_params = [{transform_indices = @transform_0, window_bounds = array<i64: 1, 4, 8, 100>}, {pipeline_mode = #tpu.pipeline_mode<synchronous>, transform_indices = @transform_1, window_bounds = array<i64: 49, 2, 8>}, {pipeline_mode = #tpu.pipeline_mode<synchronous>, transform_indices = @transform_2, window_bounds = array<i64: 2, 1>}, {pipeline_mode = #tpu.pipeline_mode<synchronous>, transform_indices = @transform_3, window_bounds = array<i64: 1, 64>}, {pipeline_mode = #tpu.pipeline_mode<synchronous>, transform_indices = @transform_4, window_bounds = array<i64: 1, 64>}, {transform_indices = @transform_5, window_bounds = array<i64: 1, 2, 64>}]} {
    %c0 = arith.constant 0 : index
    %c0_0 = arith.constant 0 : index
    %c0_1 = arith.constant 0 : index
    %c0_2 = arith.constant 0 : index
    %0 = vector.load %arg1[%c0, %c0_0, %c0_1, %c0_2] : memref<1x4x8x100xf32, #tpu.memory_space<vmem>>, vector<1x1x8x100xf32>
    %1 = vector.shape_cast %0 : vector<1x1x8x100xf32> to vector<8x100xf32>
    %c0_3 = arith.constant 0 : index
    %c1 = arith.constant 1 : index
    %c0_4 = arith.constant 0 : index
    %c0_5 = arith.constant 0 : index
    %2 = vector.load %arg1[%c0_3, %c1, %c0_4, %c0_5] : memref<1x4x8x100xf32, #tpu.memory_space<vmem>>, vector<1x1x8x100xf32>
    %3 = vector.shape_cast %2 : vector<1x1x8x100xf32> to vector<8x100xf32>
    %c0_6 = arith.constant 0 : index
    %c2 = arith.constant 2 : index
    %c0_7 = arith.constant 0 : index
    %c0_8 = arith.constant 0 : index
    %4 = vector.load %arg1[%c0_6, %c2, %c0_7, %c0_8] : memref<1x4x8x100xf32, #tpu.memory_space<vmem>>, vector<1x1x8x100xf32>
    %5 = vector.shape_cast %4 : vector<1x1x8x100xf32> to vector<8x100xf32>
    %c0_9 = arith.constant 0 : index
    %c3 = arith.constant 3 : index
    %c0_10 = arith.constant 0 : index
    %c0_11 = arith.constant 0 : index
    %6 = vector.load %arg1[%c0_9, %c3, %c0_10, %c0_11] : memref<1x4x8x100xf32, #tpu.memory_space<vmem>>, vector<1x1x8x100xf32>
    %7 = vector.shape_cast %6 : vector<1x1x8x100xf32> to vector<8x100xf32>
    %c0_12 = arith.constant 0 : index
    %c0_13 = arith.constant 0 : index
    %8 = vector.load %arg4[%c0_12, %c0_13] : memref<1x64xi32, #tpu.memory_space<vmem>>, vector<1x64xi32>
    %c0_14 = arith.constant 0 : index
    %c0_15 = arith.constant 0 : index
    %9 = vector.load %arg5[%c0_14, %c0_15] : memref<1x64xi32, #tpu.memory_space<vmem>>, vector<1x64xi32>
    %10 = vector.extract_strided_slice %7 {offsets = [0, 0], sizes = [8, 64], strides = [1, 1]} : vector<8x100xf32> to vector<8x64xf32>
    %c2_i32 = arith.constant 2 : i32
    %11 = vector.broadcast %c2_i32 : i32 to vector<1x64xi32>
    %12 = arith.cmpi sge, %8, %11 : vector<1x64xi32>
    %c2_i32_16 = arith.constant 2 : i32
    %13 = vector.broadcast %c2_i32_16 : i32 to vector<1x64xi32>
    %14 = arith.cmpi sge, %9, %13 : vector<1x64xi32>
    %15 = arith.andi %12, %14 : vector<1x64xi1>
    %cst = arith.constant 0.000000e+00 : f32
    %16 = vector.shape_cast %15 : vector<1x64xi1> to vector<1x64xi1>
    %17 = vector.broadcast %16 : vector<1x64xi1> to vector<8x64xi1>
    %18 = vector.broadcast %cst : f32 to vector<8x64xf32>
    %19 = arith.select %17, %10, %18 : vector<8x64xi1>, vector<8x64xf32>
    %c0_17 = arith.constant 0 : index
    %c0_18 = arith.constant 0 : index
    %c0_19 = arith.constant 0 : index
    %20 = vector.load %arg2[%c0_17, %c0_18, %c0_19] : memref<49x2x8xbf16, #tpu.memory_space<vmem>>, vector<1x2x8xbf16>
    %21 = vector.shape_cast %20 : vector<1x2x8xbf16> to vector<2x8xbf16>
    %22 = arith.truncf %19 : vector<8x64xf32> to vector<8x64xbf16>
    %cst_20 = arith.constant dense<0.000000e+00> : vector<2x64xf32>
    %23 = tpu.matmul %21, %22, %cst_20 {dimension_numbers = #tpu.dot_dimension_numbers<[1], [0], [0], [1], [0, 0, 1, 1], [], []>} : vector<2x8xbf16>, vector<8x64xbf16>, vector<2x64xf32> -> vector<2x64xf32>
    %24 = vector.extract_strided_slice %5 {offsets = [0, 1], sizes = [8, 64], strides = [1, 1]} : vector<8x100xf32> to vector<8x64xf32>
    %c2_i32_21 = arith.constant 2 : i32
    %25 = vector.broadcast %c2_i32_21 : i32 to vector<1x64xi32>
    %26 = arith.cmpi sge, %8, %25 : vector<1x64xi32>
    %c1_i32 = arith.constant 1 : i32
    %27 = vector.broadcast %c1_i32 : i32 to vector<1x64xi32>
    %28 = arith.cmpi sge, %9, %27 : vector<1x64xi32>
    %29 = arith.andi %26, %28 : vector<1x64xi1>
    %cst_22 = arith.constant 0.000000e+00 : f32
    %30 = vector.shape_cast %29 : vector<1x64xi1> to vector<1x64xi1>
    %31 = vector.broadcast %30 : vector<1x64xi1> to vector<8x64xi1>
    %32 = vector.broadcast %cst_22 : f32 to vector<8x64xf32>
    %33 = arith.select %31, %24, %32 : vector<8x64xi1>, vector<8x64xf32>
    %c1_23 = arith.constant 1 : index
    %c0_24 = arith.constant 0 : index
    %c0_25 = arith.constant 0 : index
    %34 = vector.load %arg2[%c1_23, %c0_24, %c0_25] : memref<49x2x8xbf16, #tpu.memory_space<vmem>>, vector<1x2x8xbf16>
    %35 = vector.shape_cast %34 : vector<1x2x8xbf16> to vector<2x8xbf16>
    %36 = arith.truncf %33 : vector<8x64xf32> to vector<8x64xbf16>
    %cst_26 = arith.constant dense<0.000000e+00> : vector<2x64xf32>
    %37 = tpu.matmul %35, %36, %cst_26 {dimension_numbers = #tpu.dot_dimension_numbers<[1], [0], [0], [1], [0, 0, 1, 1], [], []>} : vector<2x8xbf16>, vector<8x64xbf16>, vector<2x64xf32> -> vector<2x64xf32>
    %38 = arith.addf %23, %37 : vector<2x64xf32>
    %39 = vector.extract_strided_slice %7 {offsets = [0, 1], sizes = [8, 64], strides = [1, 1]} : vector<8x100xf32> to vector<8x64xf32>
    %c2_i32_27 = arith.constant 2 : i32
    %40 = vector.broadcast %c2_i32_27 : i32 to vector<1x64xi32>
    %41 = arith.cmpi sge, %8, %40 : vector<1x64xi32>
    %c1_i32_28 = arith.constant 1 : i32
    %42 = vector.broadcast %c1_i32_28 : i32 to vector<1x64xi32>
    %43 = arith.cmpi sge, %9, %42 : vector<1x64xi32>
    %44 = arith.andi %41, %43 : vector<1x64xi1>
    %cst_29 = arith.constant 0.000000e+00 : f32
    %45 = vector.shape_cast %44 : vector<1x64xi1> to vector<1x64xi1>
    %46 = vector.broadcast %45 : vector<1x64xi1> to vector<8x64xi1>
    %47 = vector.broadcast %cst_29 : f32 to vector<8x64xf32>
    %48 = arith.select %46, %39, %47 : vector<8x64xi1>, vector<8x64xf32>
    %c2_30 = arith.constant 2 : index
    %c0_31 = arith.constant 0 : index
    %c0_32 = arith.constant 0 : index
    %49 = vector.load %arg2[%c2_30, %c0_31, %c0_32] : memref<49x2x8xbf16, #tpu.memory_space<vmem>>, vector<1x2x8xbf16>
    %50 = vector.shape_cast %49 : vector<1x2x8xbf16> to vector<2x8xbf16>
    %51 = arith.truncf %48 : vector<8x64xf32> to vector<8x64xbf16>
    %cst_33 = arith.constant dense<0.000000e+00> : vector<2x64xf32>
    %52 = tpu.matmul %50, %51, %cst_33 {dimension_numbers = #tpu.dot_dimension_numbers<[1], [0], [0], [1], [0, 0, 1, 1], [], []>} : vector<2x8xbf16>, vector<8x64xbf16>, vector<2x64xf32> -> vector<2x64xf32>
    %53 = arith.addf %38, %52 : vector<2x64xf32>
    %54 = vector.extract_strided_slice %5 {offsets = [0, 2], sizes = [8, 64], strides = [1, 1]} : vector<8x100xf32> to vector<8x64xf32>
    %c2_i32_34 = arith.constant 2 : i32
    %55 = vector.broadcast %c2_i32_34 : i32 to vector<1x64xi32>
    %56 = arith.cmpi sge, %8, %55 : vector<1x64xi32>
    %cst_35 = arith.constant 0.000000e+00 : f32
    %57 = vector.shape_cast %56 : vector<1x64xi1> to vector<1x64xi1>
    %58 = vector.broadcast %57 : vector<1x64xi1> to vector<8x64xi1>
    %59 = vector.broadcast %cst_35 : f32 to vector<8x64xf32>
    %60 = arith.select %58, %54, %59 : vector<8x64xi1>, vector<8x64xf32>
    %c3_36 = arith.constant 3 : index
    %c0_37 = arith.constant 0 : index
    %c0_38 = arith.constant 0 : index
    %61 = vector.load %arg2[%c3_36, %c0_37, %c0_38] : memref<49x2x8xbf16, #tpu.memory_space<vmem>>, vector<1x2x8xbf16>
    %62 = vector.shape_cast %61 : vector<1x2x8xbf16> to vector<2x8xbf16>
    %63 = arith.truncf %60 : vector<8x64xf32> to vector<8x64xbf16>
    %cst_39 = arith.constant dense<0.000000e+00> : vector<2x64xf32>
    %64 = tpu.matmul %62, %63, %cst_39 {dimension_numbers = #tpu.dot_dimension_numbers<[1], [0], [0], [1], [0, 0, 1, 1], [], []>} : vector<2x8xbf16>, vector<8x64xbf16>, vector<2x64xf32> -> vector<2x64xf32>
    %65 = arith.addf %53, %64 : vector<2x64xf32>
    %66 = vector.extract_strided_slice %7 {offsets = [0, 2], sizes = [8, 64], strides = [1, 1]} : vector<8x100xf32> to vector<8x64xf32>
    %c2_i32_40 = arith.constant 2 : i32
    %67 = vector.broadcast %c2_i32_40 : i32 to vector<1x64xi32>
    %68 = arith.cmpi sge, %8, %67 : vector<1x64xi32>
    %cst_41 = arith.constant 0.000000e+00 : f32
    %69 = vector.shape_cast %68 : vector<1x64xi1> to vector<1x64xi1>
    %70 = vector.broadcast %69 : vector<1x64xi1> to vector<8x64xi1>
    %71 = vector.broadcast %cst_41 : f32 to vector<8x64xf32>
    %72 = arith.select %70, %66, %71 : vector<8x64xi1>, vector<8x64xf32>
    %c4 = arith.constant 4 : index
    %c0_42 = arith.constant 0 : index
    %c0_43 = arith.constant 0 : index
    %73 = vector.load %arg2[%c4, %c0_42, %c0_43] : memref<49x2x8xbf16, #tpu.memory_space<vmem>>, vector<1x2x8xbf16>
    %74 = vector.shape_cast %73 : vector<1x2x8xbf16> to vector<2x8xbf16>
    %75 = arith.truncf %72 : vector<8x64xf32> to vector<8x64xbf16>
    %cst_44 = arith.constant dense<0.000000e+00> : vector<2x64xf32>
    %76 = tpu.matmul %74, %75, %cst_44 {dimension_numbers = #tpu.dot_dimension_numbers<[1], [0], [0], [1], [0, 0, 1, 1], [], []>} : vector<2x8xbf16>, vector<8x64xbf16>, vector<2x64xf32> -> vector<2x64xf32>
    %77 = arith.addf %65, %76 : vector<2x64xf32>
    %78 = vector.extract_strided_slice %5 {offsets = [0, 3], sizes = [8, 64], strides = [1, 1]} : vector<8x100xf32> to vector<8x64xf32>
    %c2_i32_45 = arith.constant 2 : i32
    %79 = vector.broadcast %c2_i32_45 : i32 to vector<1x64xi32>
    %80 = arith.cmpi sge, %8, %79 : vector<1x64xi32>
    %c7_i32 = arith.constant 7 : i32
    %81 = vector.broadcast %c7_i32 : i32 to vector<1x64xi32>
    %82 = arith.cmpi slt, %9, %81 : vector<1x64xi32>
    %83 = arith.andi %80, %82 : vector<1x64xi1>
    %cst_46 = arith.constant 0.000000e+00 : f32
    %84 = vector.shape_cast %83 : vector<1x64xi1> to vector<1x64xi1>
    %85 = vector.broadcast %84 : vector<1x64xi1> to vector<8x64xi1>
    %86 = vector.broadcast %cst_46 : f32 to vector<8x64xf32>
    %87 = arith.select %85, %78, %86 : vector<8x64xi1>, vector<8x64xf32>
    %c5 = arith.constant 5 : index
    %c0_47 = arith.constant 0 : index
    %c0_48 = arith.constant 0 : index
    %88 = vector.load %arg2[%c5, %c0_47, %c0_48] : memref<49x2x8xbf16, #tpu.memory_space<vmem>>, vector<1x2x8xbf16>
    %89 = vector.shape_cast %88 : vector<1x2x8xbf16> to vector<2x8xbf16>
    %90 = arith.truncf %87 : vector<8x64xf32> to vector<8x64xbf16>
    %cst_49 = arith.constant dense<0.000000e+00> : vector<2x64xf32>
    %91 = tpu.matmul %89, %90, %cst_49 {dimension_numbers = #tpu.dot_dimension_numbers<[1], [0], [0], [1], [0, 0, 1, 1], [], []>} : vector<2x8xbf16>, vector<8x64xbf16>, vector<2x64xf32> -> vector<2x64xf32>
    %92 = arith.addf %77, %91 : vector<2x64xf32>
    %93 = vector.extract_strided_slice %7 {offsets = [0, 3], sizes = [8, 64], strides = [1, 1]} : vector<8x100xf32> to vector<8x64xf32>
    %c2_i32_50 = arith.constant 2 : i32
    %94 = vector.broadcast %c2_i32_50 : i32 to vector<1x64xi32>
    %95 = arith.cmpi sge, %8, %94 : vector<1x64xi32>
    %c7_i32_51 = arith.constant 7 : i32
    %96 = vector.broadcast %c7_i32_51 : i32 to vector<1x64xi32>
    %97 = arith.cmpi slt, %9, %96 : vector<1x64xi32>
    %98 = arith.andi %95, %97 : vector<1x64xi1>
    %cst_52 = arith.constant 0.000000e+00 : f32
    %99 = vector.shape_cast %98 : vector<1x64xi1> to vector<1x64xi1>
    %100 = vector.broadcast %99 : vector<1x64xi1> to vector<8x64xi1>
    %101 = vector.broadcast %cst_52 : f32 to vector<8x64xf32>
    %102 = arith.select %100, %93, %101 : vector<8x64xi1>, vector<8x64xf32>
    %c6 = arith.constant 6 : index
    %c0_53 = arith.constant 0 : index
    %c0_54 = arith.constant 0 : index
    %103 = vector.load %arg2[%c6, %c0_53, %c0_54] : memref<49x2x8xbf16, #tpu.memory_space<vmem>>, vector<1x2x8xbf16>
    %104 = vector.shape_cast %103 : vector<1x2x8xbf16> to vector<2x8xbf16>
    %105 = arith.truncf %102 : vector<8x64xf32> to vector<8x64xbf16>
    %cst_55 = arith.constant dense<0.000000e+00> : vector<2x64xf32>
    %106 = tpu.matmul %104, %105, %cst_55 {dimension_numbers = #tpu.dot_dimension_numbers<[1], [0], [0], [1], [0, 0, 1, 1], [], []>} : vector<2x8xbf16>, vector<8x64xbf16>, vector<2x64xf32> -> vector<2x64xf32>
    %107 = arith.addf %92, %106 : vector<2x64xf32>
    %108 = vector.extract_strided_slice %3 {offsets = [0, 8], sizes = [8, 64], strides = [1, 1]} : vector<8x100xf32> to vector<8x64xf32>
    %c1_i32_56 = arith.constant 1 : i32
    %109 = vector.broadcast %c1_i32_56 : i32 to vector<1x64xi32>
    %110 = arith.cmpi sge, %8, %109 : vector<1x64xi32>
    %c2_i32_57 = arith.constant 2 : i32
    %111 = vector.broadcast %c2_i32_57 : i32 to vector<1x64xi32>
    %112 = arith.cmpi sge, %9, %111 : vector<1x64xi32>
    %113 = arith.andi %110, %112 : vector<1x64xi1>
    %cst_58 = arith.constant 0.000000e+00 : f32
    %114 = vector.shape_cast %113 : vector<1x64xi1> to vector<1x64xi1>
    %115 = vector.broadcast %114 : vector<1x64xi1> to vector<8x64xi1>
    %116 = vector.broadcast %cst_58 : f32 to vector<8x64xf32>
    %117 = arith.select %115, %108, %116 : vector<8x64xi1>, vector<8x64xf32>
    %c7 = arith.constant 7 : index
    %c0_59 = arith.constant 0 : index
    %c0_60 = arith.constant 0 : index
    %118 = vector.load %arg2[%c7, %c0_59, %c0_60] : memref<49x2x8xbf16, #tpu.memory_space<vmem>>, vector<1x2x8xbf16>
    %119 = vector.shape_cast %118 : vector<1x2x8xbf16> to vector<2x8xbf16>
    %120 = arith.truncf %117 : vector<8x64xf32> to vector<8x64xbf16>
    %cst_61 = arith.constant dense<0.000000e+00> : vector<2x64xf32>
    %121 = tpu.matmul %119, %120, %cst_61 {dimension_numbers = #tpu.dot_dimension_numbers<[1], [0], [0], [1], [0, 0, 1, 1], [], []>} : vector<2x8xbf16>, vector<8x64xbf16>, vector<2x64xf32> -> vector<2x64xf32>
    %122 = arith.addf %107, %121 : vector<2x64xf32>
    %123 = vector.extract_strided_slice %1 {offsets = [0, 9], sizes = [8, 64], strides = [1, 1]} : vector<8x100xf32> to vector<8x64xf32>
    %c1_i32_62 = arith.constant 1 : i32
    %124 = vector.broadcast %c1_i32_62 : i32 to vector<1x64xi32>
    %125 = arith.cmpi sge, %8, %124 : vector<1x64xi32>
    %c1_i32_63 = arith.constant 1 : i32
    %126 = vector.broadcast %c1_i32_63 : i32 to vector<1x64xi32>
    %127 = arith.cmpi sge, %9, %126 : vector<1x64xi32>
    %128 = arith.andi %125, %127 : vector<1x64xi1>
    %cst_64 = arith.constant 0.000000e+00 : f32
    %129 = vector.shape_cast %128 : vector<1x64xi1> to vector<1x64xi1>
    %130 = vector.broadcast %129 : vector<1x64xi1> to vector<8x64xi1>
    %131 = vector.broadcast %cst_64 : f32 to vector<8x64xf32>
    %132 = arith.select %130, %123, %131 : vector<8x64xi1>, vector<8x64xf32>
    %c8 = arith.constant 8 : index
    %c0_65 = arith.constant 0 : index
    %c0_66 = arith.constant 0 : index
    %133 = vector.load %arg2[%c8, %c0_65, %c0_66] : memref<49x2x8xbf16, #tpu.memory_space<vmem>>, vector<1x2x8xbf16>
    %134 = vector.shape_cast %133 : vector<1x2x8xbf16> to vector<2x8xbf16>
    %135 = arith.truncf %132 : vector<8x64xf32> to vector<8x64xbf16>
    %cst_67 = arith.constant dense<0.000000e+00> : vector<2x64xf32>
    %136 = tpu.matmul %134, %135, %cst_67 {dimension_numbers = #tpu.dot_dimension_numbers<[1], [0], [0], [1], [0, 0, 1, 1], [], []>} : vector<2x8xbf16>, vector<8x64xbf16>, vector<2x64xf32> -> vector<2x64xf32>
    %137 = arith.addf %122, %136 : vector<2x64xf32>
    %138 = vector.extract_strided_slice %3 {offsets = [0, 9], sizes = [8, 64], strides = [1, 1]} : vector<8x100xf32> to vector<8x64xf32>
    %c1_i32_68 = arith.constant 1 : i32
    %139 = vector.broadcast %c1_i32_68 : i32 to vector<1x64xi32>
    %140 = arith.cmpi sge, %8, %139 : vector<1x64xi32>
    %c1_i32_69 = arith.constant 1 : i32
    %141 = vector.broadcast %c1_i32_69 : i32 to vector<1x64xi32>
    %142 = arith.cmpi sge, %9, %141 : vector<1x64xi32>
    %143 = arith.andi %140, %142 : vector<1x64xi1>
    %cst_70 = arith.constant 0.000000e+00 : f32
    %144 = vector.shape_cast %143 : vector<1x64xi1> to vector<1x64xi1>
    %145 = vector.broadcast %144 : vector<1x64xi1> to vector<8x64xi1>
    %146 = vector.broadcast %cst_70 : f32 to vector<8x64xf32>
    %147 = arith.select %145, %138, %146 : vector<8x64xi1>, vector<8x64xf32>
    %c9 = arith.constant 9 : index
    %c0_71 = arith.constant 0 : index
    %c0_72 = arith.constant 0 : index
    %148 = vector.load %arg2[%c9, %c0_71, %c0_72] : memref<49x2x8xbf16, #tpu.memory_space<vmem>>, vector<1x2x8xbf16>
    %149 = vector.shape_cast %148 : vector<1x2x8xbf16> to vector<2x8xbf16>
    %150 = arith.truncf %147 : vector<8x64xf32> to vector<8x64xbf16>
    %cst_73 = arith.constant dense<0.000000e+00> : vector<2x64xf32>
    %151 = tpu.matmul %149, %150, %cst_73 {dimension_numbers = #tpu.dot_dimension_numbers<[1], [0], [0], [1], [0, 0, 1, 1], [], []>} : vector<2x8xbf16>, vector<8x64xbf16>, vector<2x64xf32> -> vector<2x64xf32>
    %152 = arith.addf %137, %151 : vector<2x64xf32>
    %153 = vector.extract_strided_slice %1 {offsets = [0, 10], sizes = [8, 64], strides = [1, 1]} : vector<8x100xf32> to vector<8x64xf32>
    %c1_i32_74 = arith.constant 1 : i32
    %154 = vector.broadcast %c1_i32_74 : i32 to vector<1x64xi32>
    %155 = arith.cmpi sge, %8, %154 : vector<1x64xi32>
    %cst_75 = arith.constant 0.000000e+00 : f32
    %156 = vector.shape_cast %155 : vector<1x64xi1> to vector<1x64xi1>
    %157 = vector.broadcast %156 : vector<1x64xi1> to vector<8x64xi1>
    %158 = vector.broadcast %cst_75 : f32 to vector<8x64xf32>
    %159 = arith.select %157, %153, %158 : vector<8x64xi1>, vector<8x64xf32>
    %c10 = arith.constant 10 : index
    %c0_76 = arith.constant 0 : index
    %c0_77 = arith.constant 0 : index
    %160 = vector.load %arg2[%c10, %c0_76, %c0_77] : memref<49x2x8xbf16, #tpu.memory_space<vmem>>, vector<1x2x8xbf16>
    %161 = vector.shape_cast %160 : vector<1x2x8xbf16> to vector<2x8xbf16>
    %162 = arith.truncf %159 : vector<8x64xf32> to vector<8x64xbf16>
    %cst_78 = arith.constant dense<0.000000e+00> : vector<2x64xf32>
    %163 = tpu.matmul %161, %162, %cst_78 {dimension_numbers = #tpu.dot_dimension_numbers<[1], [0], [0], [1], [0, 0, 1, 1], [], []>} : vector<2x8xbf16>, vector<8x64xbf16>, vector<2x64xf32> -> vector<2x64xf32>
    %164 = arith.addf %152, %163 : vector<2x64xf32>
    %165 = vector.extract_strided_slice %3 {offsets = [0, 10], sizes = [8, 64], strides = [1, 1]} : vector<8x100xf32> to vector<8x64xf32>
    %c1_i32_79 = arith.constant 1 : i32
    %166 = vector.broadcast %c1_i32_79 : i32 to vector<1x64xi32>
    %167 = arith.cmpi sge, %8, %166 : vector<1x64xi32>
    %cst_80 = arith.constant 0.000000e+00 : f32
    %168 = vector.shape_cast %167 : vector<1x64xi1> to vector<1x64xi1>
    %169 = vector.broadcast %168 : vector<1x64xi1> to vector<8x64xi1>
    %170 = vector.broadcast %cst_80 : f32 to vector<8x64xf32>
    %171 = arith.select %169, %165, %170 : vector<8x64xi1>, vector<8x64xf32>
    %c11 = arith.constant 11 : index
    %c0_81 = arith.constant 0 : index
    %c0_82 = arith.constant 0 : index
    %172 = vector.load %arg2[%c11, %c0_81, %c0_82] : memref<49x2x8xbf16, #tpu.memory_space<vmem>>, vector<1x2x8xbf16>
    %173 = vector.shape_cast %172 : vector<1x2x8xbf16> to vector<2x8xbf16>
    %174 = arith.truncf %171 : vector<8x64xf32> to vector<8x64xbf16>
    %cst_83 = arith.constant dense<0.000000e+00> : vector<2x64xf32>
    %175 = tpu.matmul %173, %174, %cst_83 {dimension_numbers = #tpu.dot_dimension_numbers<[1], [0], [0], [1], [0, 0, 1, 1], [], []>} : vector<2x8xbf16>, vector<8x64xbf16>, vector<2x64xf32> -> vector<2x64xf32>
    %176 = arith.addf %164, %175 : vector<2x64xf32>
    %177 = vector.extract_strided_slice %1 {offsets = [0, 11], sizes = [8, 64], strides = [1, 1]} : vector<8x100xf32> to vector<8x64xf32>
    %c1_i32_84 = arith.constant 1 : i32
    %178 = vector.broadcast %c1_i32_84 : i32 to vector<1x64xi32>
    %179 = arith.cmpi sge, %8, %178 : vector<1x64xi32>
    %c7_i32_85 = arith.constant 7 : i32
    %180 = vector.broadcast %c7_i32_85 : i32 to vector<1x64xi32>
    %181 = arith.cmpi slt, %9, %180 : vector<1x64xi32>
    %182 = arith.andi %179, %181 : vector<1x64xi1>
    %cst_86 = arith.constant 0.000000e+00 : f32
    %183 = vector.shape_cast %182 : vector<1x64xi1> to vector<1x64xi1>
    %184 = vector.broadcast %183 : vector<1x64xi1> to vector<8x64xi1>
    %185 = vector.broadcast %cst_86 : f32 to vector<8x64xf32>
    %186 = arith.select %184, %177, %185 : vector<8x64xi1>, vector<8x64xf32>
    %c12 = arith.constant 12 : index
    %c0_87 = arith.constant 0 : index
    %c0_88 = arith.constant 0 : index
    %187 = vector.load %arg2[%c12, %c0_87, %c0_88] : memref<49x2x8xbf16, #tpu.memory_space<vmem>>, vector<1x2x8xbf16>
    %188 = vector.shape_cast %187 : vector<1x2x8xbf16> to vector<2x8xbf16>
    %189 = arith.truncf %186 : vector<8x64xf32> to vector<8x64xbf16>
    %cst_89 = arith.constant dense<0.000000e+00> : vector<2x64xf32>
    %190 = tpu.matmul %188, %189, %cst_89 {dimension_numbers = #tpu.dot_dimension_numbers<[1], [0], [0], [1], [0, 0, 1, 1], [], []>} : vector<2x8xbf16>, vector<8x64xbf16>, vector<2x64xf32> -> vector<2x64xf32>
    %191 = arith.addf %176, %190 : vector<2x64xf32>
    %192 = vector.extract_strided_slice %3 {offsets = [0, 11], sizes = [8, 64], strides = [1, 1]} : vector<8x100xf32> to vector<8x64xf32>
    %c1_i32_90 = arith.constant 1 : i32
    %193 = vector.broadcast %c1_i32_90 : i32 to vector<1x64xi32>
    %194 = arith.cmpi sge, %8, %193 : vector<1x64xi32>
    %c7_i32_91 = arith.constant 7 : i32
    %195 = vector.broadcast %c7_i32_91 : i32 to vector<1x64xi32>
    %196 = arith.cmpi slt, %9, %195 : vector<1x64xi32>
    %197 = arith.andi %194, %196 : vector<1x64xi1>
    %cst_92 = arith.constant 0.000000e+00 : f32
    %198 = vector.shape_cast %197 : vector<1x64xi1> to vector<1x64xi1>
    %199 = vector.broadcast %198 : vector<1x64xi1> to vector<8x64xi1>
    %200 = vector.broadcast %cst_92 : f32 to vector<8x64xf32>
    %201 = arith.select %199, %192, %200 : vector<8x64xi1>, vector<8x64xf32>
    %c13 = arith.constant 13 : index
    %c0_93 = arith.constant 0 : index
    %c0_94 = arith.constant 0 : index
    %202 = vector.load %arg2[%c13, %c0_93, %c0_94] : memref<49x2x8xbf16, #tpu.memory_space<vmem>>, vector<1x2x8xbf16>
    %203 = vector.shape_cast %202 : vector<1x2x8xbf16> to vector<2x8xbf16>
    %204 = arith.truncf %201 : vector<8x64xf32> to vector<8x64xbf16>
    %cst_95 = arith.constant dense<0.000000e+00> : vector<2x64xf32>
    %205 = tpu.matmul %203, %204, %cst_95 {dimension_numbers = #tpu.dot_dimension_numbers<[1], [0], [0], [1], [0, 0, 1, 1], [], []>} : vector<2x8xbf16>, vector<8x64xbf16>, vector<2x64xf32> -> vector<2x64xf32>
    %206 = arith.addf %191, %205 : vector<2x64xf32>
    %207 = vector.extract_strided_slice %7 {offsets = [0, 8], sizes = [8, 64], strides = [1, 1]} : vector<8x100xf32> to vector<8x64xf32>
    %c1_i32_96 = arith.constant 1 : i32
    %208 = vector.broadcast %c1_i32_96 : i32 to vector<1x64xi32>
    %209 = arith.cmpi sge, %8, %208 : vector<1x64xi32>
    %c2_i32_97 = arith.constant 2 : i32
    %210 = vector.broadcast %c2_i32_97 : i32 to vector<1x64xi32>
    %211 = arith.cmpi sge, %9, %210 : vector<1x64xi32>
    %212 = arith.andi %209, %211 : vector<1x64xi1>
    %cst_98 = arith.constant 0.000000e+00 : f32
    %213 = vector.shape_cast %212 : vector<1x64xi1> to vector<1x64xi1>
    %214 = vector.broadcast %213 : vector<1x64xi1> to vector<8x64xi1>
    %215 = vector.broadcast %cst_98 : f32 to vector<8x64xf32>
    %216 = arith.select %214, %207, %215 : vector<8x64xi1>, vector<8x64xf32>
    %c14 = arith.constant 14 : index
    %c0_99 = arith.constant 0 : index
    %c0_100 = arith.constant 0 : index
    %217 = vector.load %arg2[%c14, %c0_99, %c0_100] : memref<49x2x8xbf16, #tpu.memory_space<vmem>>, vector<1x2x8xbf16>
    %218 = vector.shape_cast %217 : vector<1x2x8xbf16> to vector<2x8xbf16>
    %219 = arith.truncf %216 : vector<8x64xf32> to vector<8x64xbf16>
    %cst_101 = arith.constant dense<0.000000e+00> : vector<2x64xf32>
    %220 = tpu.matmul %218, %219, %cst_101 {dimension_numbers = #tpu.dot_dimension_numbers<[1], [0], [0], [1], [0, 0, 1, 1], [], []>} : vector<2x8xbf16>, vector<8x64xbf16>, vector<2x64xf32> -> vector<2x64xf32>
    %221 = arith.addf %206, %220 : vector<2x64xf32>
    %222 = vector.extract_strided_slice %5 {offsets = [0, 9], sizes = [8, 64], strides = [1, 1]} : vector<8x100xf32> to vector<8x64xf32>
    %c1_i32_102 = arith.constant 1 : i32
    %223 = vector.broadcast %c1_i32_102 : i32 to vector<1x64xi32>
    %224 = arith.cmpi sge, %8, %223 : vector<1x64xi32>
    %c1_i32_103 = arith.constant 1 : i32
    %225 = vector.broadcast %c1_i32_103 : i32 to vector<1x64xi32>
    %226 = arith.cmpi sge, %9, %225 : vector<1x64xi32>
    %227 = arith.andi %224, %226 : vector<1x64xi1>
    %cst_104 = arith.constant 0.000000e+00 : f32
    %228 = vector.shape_cast %227 : vector<1x64xi1> to vector<1x64xi1>
    %229 = vector.broadcast %228 : vector<1x64xi1> to vector<8x64xi1>
    %230 = vector.broadcast %cst_104 : f32 to vector<8x64xf32>
    %231 = arith.select %229, %222, %230 : vector<8x64xi1>, vector<8x64xf32>
    %c15 = arith.constant 15 : index
    %c0_105 = arith.constant 0 : index
    %c0_106 = arith.constant 0 : index
    %232 = vector.load %arg2[%c15, %c0_105, %c0_106] : memref<49x2x8xbf16, #tpu.memory_space<vmem>>, vector<1x2x8xbf16>
    %233 = vector.shape_cast %232 : vector<1x2x8xbf16> to vector<2x8xbf16>
    %234 = arith.truncf %231 : vector<8x64xf32> to vector<8x64xbf16>
    %cst_107 = arith.constant dense<0.000000e+00> : vector<2x64xf32>
    %235 = tpu.matmul %233, %234, %cst_107 {dimension_numbers = #tpu.dot_dimension_numbers<[1], [0], [0], [1], [0, 0, 1, 1], [], []>} : vector<2x8xbf16>, vector<8x64xbf16>, vector<2x64xf32> -> vector<2x64xf32>
    %236 = arith.addf %221, %235 : vector<2x64xf32>
    %237 = vector.extract_strided_slice %7 {offsets = [0, 9], sizes = [8, 64], strides = [1, 1]} : vector<8x100xf32> to vector<8x64xf32>
    %c1_i32_108 = arith.constant 1 : i32
    %238 = vector.broadcast %c1_i32_108 : i32 to vector<1x64xi32>
    %239 = arith.cmpi sge, %8, %238 : vector<1x64xi32>
    %c1_i32_109 = arith.constant 1 : i32
    %240 = vector.broadcast %c1_i32_109 : i32 to vector<1x64xi32>
    %241 = arith.cmpi sge, %9, %240 : vector<1x64xi32>
    %242 = arith.andi %239, %241 : vector<1x64xi1>
    %cst_110 = arith.constant 0.000000e+00 : f32
    %243 = vector.shape_cast %242 : vector<1x64xi1> to vector<1x64xi1>
    %244 = vector.broadcast %243 : vector<1x64xi1> to vector<8x64xi1>
    %245 = vector.broadcast %cst_110 : f32 to vector<8x64xf32>
    %246 = arith.select %244, %237, %245 : vector<8x64xi1>, vector<8x64xf32>
    %c16 = arith.constant 16 : index
    %c0_111 = arith.constant 0 : index
    %c0_112 = arith.constant 0 : index
    %247 = vector.load %arg2[%c16, %c0_111, %c0_112] : memref<49x2x8xbf16, #tpu.memory_space<vmem>>, vector<1x2x8xbf16>
    %248 = vector.shape_cast %247 : vector<1x2x8xbf16> to vector<2x8xbf16>
    %249 = arith.truncf %246 : vector<8x64xf32> to vector<8x64xbf16>
    %cst_113 = arith.constant dense<0.000000e+00> : vector<2x64xf32>
    %250 = tpu.matmul %248, %249, %cst_113 {dimension_numbers = #tpu.dot_dimension_numbers<[1], [0], [0], [1], [0, 0, 1, 1], [], []>} : vector<2x8xbf16>, vector<8x64xbf16>, vector<2x64xf32> -> vector<2x64xf32>
    %251 = arith.addf %236, %250 : vector<2x64xf32>
    %252 = vector.extract_strided_slice %5 {offsets = [0, 10], sizes = [8, 64], strides = [1, 1]} : vector<8x100xf32> to vector<8x64xf32>
    %c1_i32_114 = arith.constant 1 : i32
    %253 = vector.broadcast %c1_i32_114 : i32 to vector<1x64xi32>
    %254 = arith.cmpi sge, %8, %253 : vector<1x64xi32>
    %cst_115 = arith.constant 0.000000e+00 : f32
    %255 = vector.shape_cast %254 : vector<1x64xi1> to vector<1x64xi1>
    %256 = vector.broadcast %255 : vector<1x64xi1> to vector<8x64xi1>
    %257 = vector.broadcast %cst_115 : f32 to vector<8x64xf32>
    %258 = arith.select %256, %252, %257 : vector<8x64xi1>, vector<8x64xf32>
    %c17 = arith.constant 17 : index
    %c0_116 = arith.constant 0 : index
    %c0_117 = arith.constant 0 : index
    %259 = vector.load %arg2[%c17, %c0_116, %c0_117] : memref<49x2x8xbf16, #tpu.memory_space<vmem>>, vector<1x2x8xbf16>
    %260 = vector.shape_cast %259 : vector<1x2x8xbf16> to vector<2x8xbf16>
    %261 = arith.truncf %258 : vector<8x64xf32> to vector<8x64xbf16>
    %cst_118 = arith.constant dense<0.000000e+00> : vector<2x64xf32>
    %262 = tpu.matmul %260, %261, %cst_118 {dimension_numbers = #tpu.dot_dimension_numbers<[1], [0], [0], [1], [0, 0, 1, 1], [], []>} : vector<2x8xbf16>, vector<8x64xbf16>, vector<2x64xf32> -> vector<2x64xf32>
    %263 = arith.addf %251, %262 : vector<2x64xf32>
    %264 = vector.extract_strided_slice %7 {offsets = [0, 10], sizes = [8, 64], strides = [1, 1]} : vector<8x100xf32> to vector<8x64xf32>
    %c1_i32_119 = arith.constant 1 : i32
    %265 = vector.broadcast %c1_i32_119 : i32 to vector<1x64xi32>
    %266 = arith.cmpi sge, %8, %265 : vector<1x64xi32>
    %cst_120 = arith.constant 0.000000e+00 : f32
    %267 = vector.shape_cast %266 : vector<1x64xi1> to vector<1x64xi1>
    %268 = vector.broadcast %267 : vector<1x64xi1> to vector<8x64xi1>
    %269 = vector.broadcast %cst_120 : f32 to vector<8x64xf32>
    %270 = arith.select %268, %264, %269 : vector<8x64xi1>, vector<8x64xf32>
    %c18 = arith.constant 18 : index
    %c0_121 = arith.constant 0 : index
    %c0_122 = arith.constant 0 : index
    %271 = vector.load %arg2[%c18, %c0_121, %c0_122] : memref<49x2x8xbf16, #tpu.memory_space<vmem>>, vector<1x2x8xbf16>
    %272 = vector.shape_cast %271 : vector<1x2x8xbf16> to vector<2x8xbf16>
    %273 = arith.truncf %270 : vector<8x64xf32> to vector<8x64xbf16>
    %cst_123 = arith.constant dense<0.000000e+00> : vector<2x64xf32>
    %274 = tpu.matmul %272, %273, %cst_123 {dimension_numbers = #tpu.dot_dimension_numbers<[1], [0], [0], [1], [0, 0, 1, 1], [], []>} : vector<2x8xbf16>, vector<8x64xbf16>, vector<2x64xf32> -> vector<2x64xf32>
    %275 = arith.addf %263, %274 : vector<2x64xf32>
    %276 = vector.extract_strided_slice %5 {offsets = [0, 11], sizes = [8, 64], strides = [1, 1]} : vector<8x100xf32> to vector<8x64xf32>
    %c1_i32_124 = arith.constant 1 : i32
    %277 = vector.broadcast %c1_i32_124 : i32 to vector<1x64xi32>
    %278 = arith.cmpi sge, %8, %277 : vector<1x64xi32>
    %c7_i32_125 = arith.constant 7 : i32
    %279 = vector.broadcast %c7_i32_125 : i32 to vector<1x64xi32>
    %280 = arith.cmpi slt, %9, %279 : vector<1x64xi32>
    %281 = arith.andi %278, %280 : vector<1x64xi1>
    %cst_126 = arith.constant 0.000000e+00 : f32
    %282 = vector.shape_cast %281 : vector<1x64xi1> to vector<1x64xi1>
    %283 = vector.broadcast %282 : vector<1x64xi1> to vector<8x64xi1>
    %284 = vector.broadcast %cst_126 : f32 to vector<8x64xf32>
    %285 = arith.select %283, %276, %284 : vector<8x64xi1>, vector<8x64xf32>
    %c19 = arith.constant 19 : index
    %c0_127 = arith.constant 0 : index
    %c0_128 = arith.constant 0 : index
    %286 = vector.load %arg2[%c19, %c0_127, %c0_128] : memref<49x2x8xbf16, #tpu.memory_space<vmem>>, vector<1x2x8xbf16>
    %287 = vector.shape_cast %286 : vector<1x2x8xbf16> to vector<2x8xbf16>
    %288 = arith.truncf %285 : vector<8x64xf32> to vector<8x64xbf16>
    %cst_129 = arith.constant dense<0.000000e+00> : vector<2x64xf32>
    %289 = tpu.matmul %287, %288, %cst_129 {dimension_numbers = #tpu.dot_dimension_numbers<[1], [0], [0], [1], [0, 0, 1, 1], [], []>} : vector<2x8xbf16>, vector<8x64xbf16>, vector<2x64xf32> -> vector<2x64xf32>
    %290 = arith.addf %275, %289 : vector<2x64xf32>
    %291 = vector.extract_strided_slice %7 {offsets = [0, 11], sizes = [8, 64], strides = [1, 1]} : vector<8x100xf32> to vector<8x64xf32>
    %c1_i32_130 = arith.constant 1 : i32
    %292 = vector.broadcast %c1_i32_130 : i32 to vector<1x64xi32>
    %293 = arith.cmpi sge, %8, %292 : vector<1x64xi32>
    %c7_i32_131 = arith.constant 7 : i32
    %294 = vector.broadcast %c7_i32_131 : i32 to vector<1x64xi32>
    %295 = arith.cmpi slt, %9, %294 : vector<1x64xi32>
    %296 = arith.andi %293, %295 : vector<1x64xi1>
    %cst_132 = arith.constant 0.000000e+00 : f32
    %297 = vector.shape_cast %296 : vector<1x64xi1> to vector<1x64xi1>
    %298 = vector.broadcast %297 : vector<1x64xi1> to vector<8x64xi1>
    %299 = vector.broadcast %cst_132 : f32 to vector<8x64xf32>
    %300 = arith.select %298, %291, %299 : vector<8x64xi1>, vector<8x64xf32>
    %c20 = arith.constant 20 : index
    %c0_133 = arith.constant 0 : index
    %c0_134 = arith.constant 0 : index
    %301 = vector.load %arg2[%c20, %c0_133, %c0_134] : memref<49x2x8xbf16, #tpu.memory_space<vmem>>, vector<1x2x8xbf16>
    %302 = vector.shape_cast %301 : vector<1x2x8xbf16> to vector<2x8xbf16>
    %303 = arith.truncf %300 : vector<8x64xf32> to vector<8x64xbf16>
    %cst_135 = arith.constant dense<0.000000e+00> : vector<2x64xf32>
    %304 = tpu.matmul %302, %303, %cst_135 {dimension_numbers = #tpu.dot_dimension_numbers<[1], [0], [0], [1], [0, 0, 1, 1], [], []>} : vector<2x8xbf16>, vector<8x64xbf16>, vector<2x64xf32> -> vector<2x64xf32>
    %305 = arith.addf %290, %304 : vector<2x64xf32>
    %306 = vector.extract_strided_slice %3 {offsets = [0, 16], sizes = [8, 64], strides = [1, 1]} : vector<8x100xf32> to vector<8x64xf32>
    %c2_i32_136 = arith.constant 2 : i32
    %307 = vector.broadcast %c2_i32_136 : i32 to vector<1x64xi32>
    %308 = arith.cmpi sge, %9, %307 : vector<1x64xi32>
    %cst_137 = arith.constant 0.000000e+00 : f32
    %309 = vector.shape_cast %308 : vector<1x64xi1> to vector<1x64xi1>
    %310 = vector.broadcast %309 : vector<1x64xi1> to vector<8x64xi1>
    %311 = vector.broadcast %cst_137 : f32 to vector<8x64xf32>
    %312 = arith.select %310, %306, %311 : vector<8x64xi1>, vector<8x64xf32>
    %c21 = arith.constant 21 : index
    %c0_138 = arith.constant 0 : index
    %c0_139 = arith.constant 0 : index
    %313 = vector.load %arg2[%c21, %c0_138, %c0_139] : memref<49x2x8xbf16, #tpu.memory_space<vmem>>, vector<1x2x8xbf16>
    %314 = vector.shape_cast %313 : vector<1x2x8xbf16> to vector<2x8xbf16>
    %315 = arith.truncf %312 : vector<8x64xf32> to vector<8x64xbf16>
    %cst_140 = arith.constant dense<0.000000e+00> : vector<2x64xf32>
    %316 = tpu.matmul %314, %315, %cst_140 {dimension_numbers = #tpu.dot_dimension_numbers<[1], [0], [0], [1], [0, 0, 1, 1], [], []>} : vector<2x8xbf16>, vector<8x64xbf16>, vector<2x64xf32> -> vector<2x64xf32>
    %317 = arith.addf %305, %316 : vector<2x64xf32>
    %318 = vector.extract_strided_slice %1 {offsets = [0, 17], sizes = [8, 64], strides = [1, 1]} : vector<8x100xf32> to vector<8x64xf32>
    %c1_i32_141 = arith.constant 1 : i32
    %319 = vector.broadcast %c1_i32_141 : i32 to vector<1x64xi32>
    %320 = arith.cmpi sge, %9, %319 : vector<1x64xi32>
    %cst_142 = arith.constant 0.000000e+00 : f32
    %321 = vector.shape_cast %320 : vector<1x64xi1> to vector<1x64xi1>
    %322 = vector.broadcast %321 : vector<1x64xi1> to vector<8x64xi1>
    %323 = vector.broadcast %cst_142 : f32 to vector<8x64xf32>
    %324 = arith.select %322, %318, %323 : vector<8x64xi1>, vector<8x64xf32>
    %c22 = arith.constant 22 : index
    %c0_143 = arith.constant 0 : index
    %c0_144 = arith.constant 0 : index
    %325 = vector.load %arg2[%c22, %c0_143, %c0_144] : memref<49x2x8xbf16, #tpu.memory_space<vmem>>, vector<1x2x8xbf16>
    %326 = vector.shape_cast %325 : vector<1x2x8xbf16> to vector<2x8xbf16>
    %327 = arith.truncf %324 : vector<8x64xf32> to vector<8x64xbf16>
    %cst_145 = arith.constant dense<0.000000e+00> : vector<2x64xf32>
    %328 = tpu.matmul %326, %327, %cst_145 {dimension_numbers = #tpu.dot_dimension_numbers<[1], [0], [0], [1], [0, 0, 1, 1], [], []>} : vector<2x8xbf16>, vector<8x64xbf16>, vector<2x64xf32> -> vector<2x64xf32>
    %329 = arith.addf %317, %328 : vector<2x64xf32>
    %330 = vector.extract_strided_slice %3 {offsets = [0, 17], sizes = [8, 64], strides = [1, 1]} : vector<8x100xf32> to vector<8x64xf32>
    %c1_i32_146 = arith.constant 1 : i32
    %331 = vector.broadcast %c1_i32_146 : i32 to vector<1x64xi32>
    %332 = arith.cmpi sge, %9, %331 : vector<1x64xi32>
    %cst_147 = arith.constant 0.000000e+00 : f32
    %333 = vector.shape_cast %332 : vector<1x64xi1> to vector<1x64xi1>
    %334 = vector.broadcast %333 : vector<1x64xi1> to vector<8x64xi1>
    %335 = vector.broadcast %cst_147 : f32 to vector<8x64xf32>
    %336 = arith.select %334, %330, %335 : vector<8x64xi1>, vector<8x64xf32>
    %c23 = arith.constant 23 : index
    %c0_148 = arith.constant 0 : index
    %c0_149 = arith.constant 0 : index
    %337 = vector.load %arg2[%c23, %c0_148, %c0_149] : memref<49x2x8xbf16, #tpu.memory_space<vmem>>, vector<1x2x8xbf16>
    %338 = vector.shape_cast %337 : vector<1x2x8xbf16> to vector<2x8xbf16>
    %339 = arith.truncf %336 : vector<8x64xf32> to vector<8x64xbf16>
    %cst_150 = arith.constant dense<0.000000e+00> : vector<2x64xf32>
    %340 = tpu.matmul %338, %339, %cst_150 {dimension_numbers = #tpu.dot_dimension_numbers<[1], [0], [0], [1], [0, 0, 1, 1], [], []>} : vector<2x8xbf16>, vector<8x64xbf16>, vector<2x64xf32> -> vector<2x64xf32>
    %341 = arith.addf %329, %340 : vector<2x64xf32>
    %342 = vector.extract_strided_slice %1 {offsets = [0, 18], sizes = [8, 64], strides = [1, 1]} : vector<8x100xf32> to vector<8x64xf32>
    %c24 = arith.constant 24 : index
    %c0_151 = arith.constant 0 : index
    %c0_152 = arith.constant 0 : index
    %343 = vector.load %arg2[%c24, %c0_151, %c0_152] : memref<49x2x8xbf16, #tpu.memory_space<vmem>>, vector<1x2x8xbf16>
    %344 = vector.shape_cast %343 : vector<1x2x8xbf16> to vector<2x8xbf16>
    %345 = arith.truncf %342 : vector<8x64xf32> to vector<8x64xbf16>
    %cst_153 = arith.constant dense<0.000000e+00> : vector<2x64xf32>
    %346 = tpu.matmul %344, %345, %cst_153 {dimension_numbers = #tpu.dot_dimension_numbers<[1], [0], [0], [1], [0, 0, 1, 1], [], []>} : vector<2x8xbf16>, vector<8x64xbf16>, vector<2x64xf32> -> vector<2x64xf32>
    %347 = arith.addf %341, %346 : vector<2x64xf32>
    %348 = vector.extract_strided_slice %3 {offsets = [0, 18], sizes = [8, 64], strides = [1, 1]} : vector<8x100xf32> to vector<8x64xf32>
    %c25 = arith.constant 25 : index
    %c0_154 = arith.constant 0 : index
    %c0_155 = arith.constant 0 : index
    %349 = vector.load %arg2[%c25, %c0_154, %c0_155] : memref<49x2x8xbf16, #tpu.memory_space<vmem>>, vector<1x2x8xbf16>
    %350 = vector.shape_cast %349 : vector<1x2x8xbf16> to vector<2x8xbf16>
    %351 = arith.truncf %348 : vector<8x64xf32> to vector<8x64xbf16>
    %cst_156 = arith.constant dense<0.000000e+00> : vector<2x64xf32>
    %352 = tpu.matmul %350, %351, %cst_156 {dimension_numbers = #tpu.dot_dimension_numbers<[1], [0], [0], [1], [0, 0, 1, 1], [], []>} : vector<2x8xbf16>, vector<8x64xbf16>, vector<2x64xf32> -> vector<2x64xf32>
    %353 = arith.addf %347, %352 : vector<2x64xf32>
    %354 = vector.extract_strided_slice %1 {offsets = [0, 19], sizes = [8, 64], strides = [1, 1]} : vector<8x100xf32> to vector<8x64xf32>
    %c7_i32_157 = arith.constant 7 : i32
    %355 = vector.broadcast %c7_i32_157 : i32 to vector<1x64xi32>
    %356 = arith.cmpi slt, %9, %355 : vector<1x64xi32>
    %cst_158 = arith.constant 0.000000e+00 : f32
    %357 = vector.shape_cast %356 : vector<1x64xi1> to vector<1x64xi1>
    %358 = vector.broadcast %357 : vector<1x64xi1> to vector<8x64xi1>
    %359 = vector.broadcast %cst_158 : f32 to vector<8x64xf32>
    %360 = arith.select %358, %354, %359 : vector<8x64xi1>, vector<8x64xf32>
    %c26 = arith.constant 26 : index
    %c0_159 = arith.constant 0 : index
    %c0_160 = arith.constant 0 : index
    %361 = vector.load %arg2[%c26, %c0_159, %c0_160] : memref<49x2x8xbf16, #tpu.memory_space<vmem>>, vector<1x2x8xbf16>
    %362 = vector.shape_cast %361 : vector<1x2x8xbf16> to vector<2x8xbf16>
    %363 = arith.truncf %360 : vector<8x64xf32> to vector<8x64xbf16>
    %cst_161 = arith.constant dense<0.000000e+00> : vector<2x64xf32>
    %364 = tpu.matmul %362, %363, %cst_161 {dimension_numbers = #tpu.dot_dimension_numbers<[1], [0], [0], [1], [0, 0, 1, 1], [], []>} : vector<2x8xbf16>, vector<8x64xbf16>, vector<2x64xf32> -> vector<2x64xf32>
    %365 = arith.addf %353, %364 : vector<2x64xf32>
    %366 = vector.extract_strided_slice %3 {offsets = [0, 19], sizes = [8, 64], strides = [1, 1]} : vector<8x100xf32> to vector<8x64xf32>
    %c7_i32_162 = arith.constant 7 : i32
    %367 = vector.broadcast %c7_i32_162 : i32 to vector<1x64xi32>
    %368 = arith.cmpi slt, %9, %367 : vector<1x64xi32>
    %cst_163 = arith.constant 0.000000e+00 : f32
    %369 = vector.shape_cast %368 : vector<1x64xi1> to vector<1x64xi1>
    %370 = vector.broadcast %369 : vector<1x64xi1> to vector<8x64xi1>
    %371 = vector.broadcast %cst_163 : f32 to vector<8x64xf32>
    %372 = arith.select %370, %366, %371 : vector<8x64xi1>, vector<8x64xf32>
    %c27 = arith.constant 27 : index
    %c0_164 = arith.constant 0 : index
    %c0_165 = arith.constant 0 : index
    %373 = vector.load %arg2[%c27, %c0_164, %c0_165] : memref<49x2x8xbf16, #tpu.memory_space<vmem>>, vector<1x2x8xbf16>
    %374 = vector.shape_cast %373 : vector<1x2x8xbf16> to vector<2x8xbf16>
    %375 = arith.truncf %372 : vector<8x64xf32> to vector<8x64xbf16>
    %cst_166 = arith.constant dense<0.000000e+00> : vector<2x64xf32>
    %376 = tpu.matmul %374, %375, %cst_166 {dimension_numbers = #tpu.dot_dimension_numbers<[1], [0], [0], [1], [0, 0, 1, 1], [], []>} : vector<2x8xbf16>, vector<8x64xbf16>, vector<2x64xf32> -> vector<2x64xf32>
    %377 = arith.addf %365, %376 : vector<2x64xf32>
    %378 = vector.extract_strided_slice %7 {offsets = [0, 16], sizes = [8, 64], strides = [1, 1]} : vector<8x100xf32> to vector<8x64xf32>
    %c2_i32_167 = arith.constant 2 : i32
    %379 = vector.broadcast %c2_i32_167 : i32 to vector<1x64xi32>
    %380 = arith.cmpi sge, %9, %379 : vector<1x64xi32>
    %cst_168 = arith.constant 0.000000e+00 : f32
    %381 = vector.shape_cast %380 : vector<1x64xi1> to vector<1x64xi1>
    %382 = vector.broadcast %381 : vector<1x64xi1> to vector<8x64xi1>
    %383 = vector.broadcast %cst_168 : f32 to vector<8x64xf32>
    %384 = arith.select %382, %378, %383 : vector<8x64xi1>, vector<8x64xf32>
    %c28 = arith.constant 28 : index
    %c0_169 = arith.constant 0 : index
    %c0_170 = arith.constant 0 : index
    %385 = vector.load %arg2[%c28, %c0_169, %c0_170] : memref<49x2x8xbf16, #tpu.memory_space<vmem>>, vector<1x2x8xbf16>
    %386 = vector.shape_cast %385 : vector<1x2x8xbf16> to vector<2x8xbf16>
    %387 = arith.truncf %384 : vector<8x64xf32> to vector<8x64xbf16>
    %cst_171 = arith.constant dense<0.000000e+00> : vector<2x64xf32>
    %388 = tpu.matmul %386, %387, %cst_171 {dimension_numbers = #tpu.dot_dimension_numbers<[1], [0], [0], [1], [0, 0, 1, 1], [], []>} : vector<2x8xbf16>, vector<8x64xbf16>, vector<2x64xf32> -> vector<2x64xf32>
    %389 = arith.addf %377, %388 : vector<2x64xf32>
    %390 = vector.extract_strided_slice %5 {offsets = [0, 17], sizes = [8, 64], strides = [1, 1]} : vector<8x100xf32> to vector<8x64xf32>
    %c1_i32_172 = arith.constant 1 : i32
    %391 = vector.broadcast %c1_i32_172 : i32 to vector<1x64xi32>
    %392 = arith.cmpi sge, %9, %391 : vector<1x64xi32>
    %cst_173 = arith.constant 0.000000e+00 : f32
    %393 = vector.shape_cast %392 : vector<1x64xi1> to vector<1x64xi1>
    %394 = vector.broadcast %393 : vector<1x64xi1> to vector<8x64xi1>
    %395 = vector.broadcast %cst_173 : f32 to vector<8x64xf32>
    %396 = arith.select %394, %390, %395 : vector<8x64xi1>, vector<8x64xf32>
    %c29 = arith.constant 29 : index
    %c0_174 = arith.constant 0 : index
    %c0_175 = arith.constant 0 : index
    %397 = vector.load %arg2[%c29, %c0_174, %c0_175] : memref<49x2x8xbf16, #tpu.memory_space<vmem>>, vector<1x2x8xbf16>
    %398 = vector.shape_cast %397 : vector<1x2x8xbf16> to vector<2x8xbf16>
    %399 = arith.truncf %396 : vector<8x64xf32> to vector<8x64xbf16>
    %cst_176 = arith.constant dense<0.000000e+00> : vector<2x64xf32>
    %400 = tpu.matmul %398, %399, %cst_176 {dimension_numbers = #tpu.dot_dimension_numbers<[1], [0], [0], [1], [0, 0, 1, 1], [], []>} : vector<2x8xbf16>, vector<8x64xbf16>, vector<2x64xf32> -> vector<2x64xf32>
    %401 = arith.addf %389, %400 : vector<2x64xf32>
    %402 = vector.extract_strided_slice %7 {offsets = [0, 17], sizes = [8, 64], strides = [1, 1]} : vector<8x100xf32> to vector<8x64xf32>
    %c1_i32_177 = arith.constant 1 : i32
    %403 = vector.broadcast %c1_i32_177 : i32 to vector<1x64xi32>
    %404 = arith.cmpi sge, %9, %403 : vector<1x64xi32>
    %cst_178 = arith.constant 0.000000e+00 : f32
    %405 = vector.shape_cast %404 : vector<1x64xi1> to vector<1x64xi1>
    %406 = vector.broadcast %405 : vector<1x64xi1> to vector<8x64xi1>
    %407 = vector.broadcast %cst_178 : f32 to vector<8x64xf32>
    %408 = arith.select %406, %402, %407 : vector<8x64xi1>, vector<8x64xf32>
    %c30 = arith.constant 30 : index
    %c0_179 = arith.constant 0 : index
    %c0_180 = arith.constant 0 : index
    %409 = vector.load %arg2[%c30, %c0_179, %c0_180] : memref<49x2x8xbf16, #tpu.memory_space<vmem>>, vector<1x2x8xbf16>
    %410 = vector.shape_cast %409 : vector<1x2x8xbf16> to vector<2x8xbf16>
    %411 = arith.truncf %408 : vector<8x64xf32> to vector<8x64xbf16>
    %cst_181 = arith.constant dense<0.000000e+00> : vector<2x64xf32>
    %412 = tpu.matmul %410, %411, %cst_181 {dimension_numbers = #tpu.dot_dimension_numbers<[1], [0], [0], [1], [0, 0, 1, 1], [], []>} : vector<2x8xbf16>, vector<8x64xbf16>, vector<2x64xf32> -> vector<2x64xf32>
    %413 = arith.addf %401, %412 : vector<2x64xf32>
    %414 = vector.extract_strided_slice %5 {offsets = [0, 18], sizes = [8, 64], strides = [1, 1]} : vector<8x100xf32> to vector<8x64xf32>
    %c31 = arith.constant 31 : index
    %c0_182 = arith.constant 0 : index
    %c0_183 = arith.constant 0 : index
    %415 = vector.load %arg2[%c31, %c0_182, %c0_183] : memref<49x2x8xbf16, #tpu.memory_space<vmem>>, vector<1x2x8xbf16>
    %416 = vector.shape_cast %415 : vector<1x2x8xbf16> to vector<2x8xbf16>
    %417 = arith.truncf %414 : vector<8x64xf32> to vector<8x64xbf16>
    %cst_184 = arith.constant dense<0.000000e+00> : vector<2x64xf32>
    %418 = tpu.matmul %416, %417, %cst_184 {dimension_numbers = #tpu.dot_dimension_numbers<[1], [0], [0], [1], [0, 0, 1, 1], [], []>} : vector<2x8xbf16>, vector<8x64xbf16>, vector<2x64xf32> -> vector<2x64xf32>
    %419 = arith.addf %413, %418 : vector<2x64xf32>
    %420 = vector.extract_strided_slice %7 {offsets = [0, 18], sizes = [8, 64], strides = [1, 1]} : vector<8x100xf32> to vector<8x64xf32>
    %c32 = arith.constant 32 : index
    %c0_185 = arith.constant 0 : index
    %c0_186 = arith.constant 0 : index
    %421 = vector.load %arg2[%c32, %c0_185, %c0_186] : memref<49x2x8xbf16, #tpu.memory_space<vmem>>, vector<1x2x8xbf16>
    %422 = vector.shape_cast %421 : vector<1x2x8xbf16> to vector<2x8xbf16>
    %423 = arith.truncf %420 : vector<8x64xf32> to vector<8x64xbf16>
    %cst_187 = arith.constant dense<0.000000e+00> : vector<2x64xf32>
    %424 = tpu.matmul %422, %423, %cst_187 {dimension_numbers = #tpu.dot_dimension_numbers<[1], [0], [0], [1], [0, 0, 1, 1], [], []>} : vector<2x8xbf16>, vector<8x64xbf16>, vector<2x64xf32> -> vector<2x64xf32>
    %425 = arith.addf %419, %424 : vector<2x64xf32>
    %426 = vector.extract_strided_slice %5 {offsets = [0, 19], sizes = [8, 64], strides = [1, 1]} : vector<8x100xf32> to vector<8x64xf32>
    %c7_i32_188 = arith.constant 7 : i32
    %427 = vector.broadcast %c7_i32_188 : i32 to vector<1x64xi32>
    %428 = arith.cmpi slt, %9, %427 : vector<1x64xi32>
    %cst_189 = arith.constant 0.000000e+00 : f32
    %429 = vector.shape_cast %428 : vector<1x64xi1> to vector<1x64xi1>
    %430 = vector.broadcast %429 : vector<1x64xi1> to vector<8x64xi1>
    %431 = vector.broadcast %cst_189 : f32 to vector<8x64xf32>
    %432 = arith.select %430, %426, %431 : vector<8x64xi1>, vector<8x64xf32>
    %c33 = arith.constant 33 : index
    %c0_190 = arith.constant 0 : index
    %c0_191 = arith.constant 0 : index
    %433 = vector.load %arg2[%c33, %c0_190, %c0_191] : memref<49x2x8xbf16, #tpu.memory_space<vmem>>, vector<1x2x8xbf16>
    %434 = vector.shape_cast %433 : vector<1x2x8xbf16> to vector<2x8xbf16>
    %435 = arith.truncf %432 : vector<8x64xf32> to vector<8x64xbf16>
    %cst_192 = arith.constant dense<0.000000e+00> : vector<2x64xf32>
    %436 = tpu.matmul %434, %435, %cst_192 {dimension_numbers = #tpu.dot_dimension_numbers<[1], [0], [0], [1], [0, 0, 1, 1], [], []>} : vector<2x8xbf16>, vector<8x64xbf16>, vector<2x64xf32> -> vector<2x64xf32>
    %437 = arith.addf %425, %436 : vector<2x64xf32>
    %438 = vector.extract_strided_slice %7 {offsets = [0, 19], sizes = [8, 64], strides = [1, 1]} : vector<8x100xf32> to vector<8x64xf32>
    %c7_i32_193 = arith.constant 7 : i32
    %439 = vector.broadcast %c7_i32_193 : i32 to vector<1x64xi32>
    %440 = arith.cmpi slt, %9, %439 : vector<1x64xi32>
    %cst_194 = arith.constant 0.000000e+00 : f32
    %441 = vector.shape_cast %440 : vector<1x64xi1> to vector<1x64xi1>
    %442 = vector.broadcast %441 : vector<1x64xi1> to vector<8x64xi1>
    %443 = vector.broadcast %cst_194 : f32 to vector<8x64xf32>
    %444 = arith.select %442, %438, %443 : vector<8x64xi1>, vector<8x64xf32>
    %c34 = arith.constant 34 : index
    %c0_195 = arith.constant 0 : index
    %c0_196 = arith.constant 0 : index
    %445 = vector.load %arg2[%c34, %c0_195, %c0_196] : memref<49x2x8xbf16, #tpu.memory_space<vmem>>, vector<1x2x8xbf16>
    %446 = vector.shape_cast %445 : vector<1x2x8xbf16> to vector<2x8xbf16>
    %447 = arith.truncf %444 : vector<8x64xf32> to vector<8x64xbf16>
    %cst_197 = arith.constant dense<0.000000e+00> : vector<2x64xf32>
    %448 = tpu.matmul %446, %447, %cst_197 {dimension_numbers = #tpu.dot_dimension_numbers<[1], [0], [0], [1], [0, 0, 1, 1], [], []>} : vector<2x8xbf16>, vector<8x64xbf16>, vector<2x64xf32> -> vector<2x64xf32>
    %449 = arith.addf %437, %448 : vector<2x64xf32>
    %450 = vector.extract_strided_slice %3 {offsets = [0, 24], sizes = [8, 64], strides = [1, 1]} : vector<8x100xf32> to vector<8x64xf32>
    %c7_i32_198 = arith.constant 7 : i32
    %451 = vector.broadcast %c7_i32_198 : i32 to vector<1x64xi32>
    %452 = arith.cmpi slt, %8, %451 : vector<1x64xi32>
    %c2_i32_199 = arith.constant 2 : i32
    %453 = vector.broadcast %c2_i32_199 : i32 to vector<1x64xi32>
    %454 = arith.cmpi sge, %9, %453 : vector<1x64xi32>
    %455 = arith.andi %452, %454 : vector<1x64xi1>
    %cst_200 = arith.constant 0.000000e+00 : f32
    %456 = vector.shape_cast %455 : vector<1x64xi1> to vector<1x64xi1>
    %457 = vector.broadcast %456 : vector<1x64xi1> to vector<8x64xi1>
    %458 = vector.broadcast %cst_200 : f32 to vector<8x64xf32>
    %459 = arith.select %457, %450, %458 : vector<8x64xi1>, vector<8x64xf32>
    %c35 = arith.constant 35 : index
    %c0_201 = arith.constant 0 : index
    %c0_202 = arith.constant 0 : index
    %460 = vector.load %arg2[%c35, %c0_201, %c0_202] : memref<49x2x8xbf16, #tpu.memory_space<vmem>>, vector<1x2x8xbf16>
    %461 = vector.shape_cast %460 : vector<1x2x8xbf16> to vector<2x8xbf16>
    %462 = arith.truncf %459 : vector<8x64xf32> to vector<8x64xbf16>
    %cst_203 = arith.constant dense<0.000000e+00> : vector<2x64xf32>
    %463 = tpu.matmul %461, %462, %cst_203 {dimension_numbers = #tpu.dot_dimension_numbers<[1], [0], [0], [1], [0, 0, 1, 1], [], []>} : vector<2x8xbf16>, vector<8x64xbf16>, vector<2x64xf32> -> vector<2x64xf32>
    %464 = arith.addf %449, %463 : vector<2x64xf32>
    %465 = vector.extract_strided_slice %1 {offsets = [0, 25], sizes = [8, 64], strides = [1, 1]} : vector<8x100xf32> to vector<8x64xf32>
    %c7_i32_204 = arith.constant 7 : i32
    %466 = vector.broadcast %c7_i32_204 : i32 to vector<1x64xi32>
    %467 = arith.cmpi slt, %8, %466 : vector<1x64xi32>
    %c1_i32_205 = arith.constant 1 : i32
    %468 = vector.broadcast %c1_i32_205 : i32 to vector<1x64xi32>
    %469 = arith.cmpi sge, %9, %468 : vector<1x64xi32>
    %470 = arith.andi %467, %469 : vector<1x64xi1>
    %cst_206 = arith.constant 0.000000e+00 : f32
    %471 = vector.shape_cast %470 : vector<1x64xi1> to vector<1x64xi1>
    %472 = vector.broadcast %471 : vector<1x64xi1> to vector<8x64xi1>
    %473 = vector.broadcast %cst_206 : f32 to vector<8x64xf32>
    %474 = arith.select %472, %465, %473 : vector<8x64xi1>, vector<8x64xf32>
    %c36 = arith.constant 36 : index
    %c0_207 = arith.constant 0 : index
    %c0_208 = arith.constant 0 : index
    %475 = vector.load %arg2[%c36, %c0_207, %c0_208] : memref<49x2x8xbf16, #tpu.memory_space<vmem>>, vector<1x2x8xbf16>
    %476 = vector.shape_cast %475 : vector<1x2x8xbf16> to vector<2x8xbf16>
    %477 = arith.truncf %474 : vector<8x64xf32> to vector<8x64xbf16>
    %cst_209 = arith.constant dense<0.000000e+00> : vector<2x64xf32>
    %478 = tpu.matmul %476, %477, %cst_209 {dimension_numbers = #tpu.dot_dimension_numbers<[1], [0], [0], [1], [0, 0, 1, 1], [], []>} : vector<2x8xbf16>, vector<8x64xbf16>, vector<2x64xf32> -> vector<2x64xf32>
    %479 = arith.addf %464, %478 : vector<2x64xf32>
    %480 = vector.extract_strided_slice %3 {offsets = [0, 25], sizes = [8, 64], strides = [1, 1]} : vector<8x100xf32> to vector<8x64xf32>
    %c7_i32_210 = arith.constant 7 : i32
    %481 = vector.broadcast %c7_i32_210 : i32 to vector<1x64xi32>
    %482 = arith.cmpi slt, %8, %481 : vector<1x64xi32>
    %c1_i32_211 = arith.constant 1 : i32
    %483 = vector.broadcast %c1_i32_211 : i32 to vector<1x64xi32>
    %484 = arith.cmpi sge, %9, %483 : vector<1x64xi32>
    %485 = arith.andi %482, %484 : vector<1x64xi1>
    %cst_212 = arith.constant 0.000000e+00 : f32
    %486 = vector.shape_cast %485 : vector<1x64xi1> to vector<1x64xi1>
    %487 = vector.broadcast %486 : vector<1x64xi1> to vector<8x64xi1>
    %488 = vector.broadcast %cst_212 : f32 to vector<8x64xf32>
    %489 = arith.select %487, %480, %488 : vector<8x64xi1>, vector<8x64xf32>
    %c37 = arith.constant 37 : index
    %c0_213 = arith.constant 0 : index
    %c0_214 = arith.constant 0 : index
    %490 = vector.load %arg2[%c37, %c0_213, %c0_214] : memref<49x2x8xbf16, #tpu.memory_space<vmem>>, vector<1x2x8xbf16>
    %491 = vector.shape_cast %490 : vector<1x2x8xbf16> to vector<2x8xbf16>
    %492 = arith.truncf %489 : vector<8x64xf32> to vector<8x64xbf16>
    %cst_215 = arith.constant dense<0.000000e+00> : vector<2x64xf32>
    %493 = tpu.matmul %491, %492, %cst_215 {dimension_numbers = #tpu.dot_dimension_numbers<[1], [0], [0], [1], [0, 0, 1, 1], [], []>} : vector<2x8xbf16>, vector<8x64xbf16>, vector<2x64xf32> -> vector<2x64xf32>
    %494 = arith.addf %479, %493 : vector<2x64xf32>
    %495 = vector.extract_strided_slice %1 {offsets = [0, 26], sizes = [8, 64], strides = [1, 1]} : vector<8x100xf32> to vector<8x64xf32>
    %c7_i32_216 = arith.constant 7 : i32
    %496 = vector.broadcast %c7_i32_216 : i32 to vector<1x64xi32>
    %497 = arith.cmpi slt, %8, %496 : vector<1x64xi32>
    %cst_217 = arith.constant 0.000000e+00 : f32
    %498 = vector.shape_cast %497 : vector<1x64xi1> to vector<1x64xi1>
    %499 = vector.broadcast %498 : vector<1x64xi1> to vector<8x64xi1>
    %500 = vector.broadcast %cst_217 : f32 to vector<8x64xf32>
    %501 = arith.select %499, %495, %500 : vector<8x64xi1>, vector<8x64xf32>
    %c38 = arith.constant 38 : index
    %c0_218 = arith.constant 0 : index
    %c0_219 = arith.constant 0 : index
    %502 = vector.load %arg2[%c38, %c0_218, %c0_219] : memref<49x2x8xbf16, #tpu.memory_space<vmem>>, vector<1x2x8xbf16>
    %503 = vector.shape_cast %502 : vector<1x2x8xbf16> to vector<2x8xbf16>
    %504 = arith.truncf %501 : vector<8x64xf32> to vector<8x64xbf16>
    %cst_220 = arith.constant dense<0.000000e+00> : vector<2x64xf32>
    %505 = tpu.matmul %503, %504, %cst_220 {dimension_numbers = #tpu.dot_dimension_numbers<[1], [0], [0], [1], [0, 0, 1, 1], [], []>} : vector<2x8xbf16>, vector<8x64xbf16>, vector<2x64xf32> -> vector<2x64xf32>
    %506 = arith.addf %494, %505 : vector<2x64xf32>
    %507 = vector.extract_strided_slice %3 {offsets = [0, 26], sizes = [8, 64], strides = [1, 1]} : vector<8x100xf32> to vector<8x64xf32>
    %c7_i32_221 = arith.constant 7 : i32
    %508 = vector.broadcast %c7_i32_221 : i32 to vector<1x64xi32>
    %509 = arith.cmpi slt, %8, %508 : vector<1x64xi32>
    %cst_222 = arith.constant 0.000000e+00 : f32
    %510 = vector.shape_cast %509 : vector<1x64xi1> to vector<1x64xi1>
    %511 = vector.broadcast %510 : vector<1x64xi1> to vector<8x64xi1>
    %512 = vector.broadcast %cst_222 : f32 to vector<8x64xf32>
    %513 = arith.select %511, %507, %512 : vector<8x64xi1>, vector<8x64xf32>
    %c39 = arith.constant 39 : index
    %c0_223 = arith.constant 0 : index
    %c0_224 = arith.constant 0 : index
    %514 = vector.load %arg2[%c39, %c0_223, %c0_224] : memref<49x2x8xbf16, #tpu.memory_space<vmem>>, vector<1x2x8xbf16>
    %515 = vector.shape_cast %514 : vector<1x2x8xbf16> to vector<2x8xbf16>
    %516 = arith.truncf %513 : vector<8x64xf32> to vector<8x64xbf16>
    %cst_225 = arith.constant dense<0.000000e+00> : vector<2x64xf32>
    %517 = tpu.matmul %515, %516, %cst_225 {dimension_numbers = #tpu.dot_dimension_numbers<[1], [0], [0], [1], [0, 0, 1, 1], [], []>} : vector<2x8xbf16>, vector<8x64xbf16>, vector<2x64xf32> -> vector<2x64xf32>
    %518 = arith.addf %506, %517 : vector<2x64xf32>
    %519 = vector.extract_strided_slice %1 {offsets = [0, 27], sizes = [8, 64], strides = [1, 1]} : vector<8x100xf32> to vector<8x64xf32>
    %c7_i32_226 = arith.constant 7 : i32
    %520 = vector.broadcast %c7_i32_226 : i32 to vector<1x64xi32>
    %521 = arith.cmpi slt, %8, %520 : vector<1x64xi32>
    %c7_i32_227 = arith.constant 7 : i32
    %522 = vector.broadcast %c7_i32_227 : i32 to vector<1x64xi32>
    %523 = arith.cmpi slt, %9, %522 : vector<1x64xi32>
    %524 = arith.andi %521, %523 : vector<1x64xi1>
    %cst_228 = arith.constant 0.000000e+00 : f32
    %525 = vector.shape_cast %524 : vector<1x64xi1> to vector<1x64xi1>
    %526 = vector.broadcast %525 : vector<1x64xi1> to vector<8x64xi1>
    %527 = vector.broadcast %cst_228 : f32 to vector<8x64xf32>
    %528 = arith.select %526, %519, %527 : vector<8x64xi1>, vector<8x64xf32>
    %c40 = arith.constant 40 : index
    %c0_229 = arith.constant 0 : index
    %c0_230 = arith.constant 0 : index
    %529 = vector.load %arg2[%c40, %c0_229, %c0_230] : memref<49x2x8xbf16, #tpu.memory_space<vmem>>, vector<1x2x8xbf16>
    %530 = vector.shape_cast %529 : vector<1x2x8xbf16> to vector<2x8xbf16>
    %531 = arith.truncf %528 : vector<8x64xf32> to vector<8x64xbf16>
    %cst_231 = arith.constant dense<0.000000e+00> : vector<2x64xf32>
    %532 = tpu.matmul %530, %531, %cst_231 {dimension_numbers = #tpu.dot_dimension_numbers<[1], [0], [0], [1], [0, 0, 1, 1], [], []>} : vector<2x8xbf16>, vector<8x64xbf16>, vector<2x64xf32> -> vector<2x64xf32>
    %533 = arith.addf %518, %532 : vector<2x64xf32>
    %534 = vector.extract_strided_slice %3 {offsets = [0, 27], sizes = [8, 64], strides = [1, 1]} : vector<8x100xf32> to vector<8x64xf32>
    %c7_i32_232 = arith.constant 7 : i32
    %535 = vector.broadcast %c7_i32_232 : i32 to vector<1x64xi32>
    %536 = arith.cmpi slt, %8, %535 : vector<1x64xi32>
    %c7_i32_233 = arith.constant 7 : i32
    %537 = vector.broadcast %c7_i32_233 : i32 to vector<1x64xi32>
    %538 = arith.cmpi slt, %9, %537 : vector<1x64xi32>
    %539 = arith.andi %536, %538 : vector<1x64xi1>
    %cst_234 = arith.constant 0.000000e+00 : f32
    %540 = vector.shape_cast %539 : vector<1x64xi1> to vector<1x64xi1>
    %541 = vector.broadcast %540 : vector<1x64xi1> to vector<8x64xi1>
    %542 = vector.broadcast %cst_234 : f32 to vector<8x64xf32>
    %543 = arith.select %541, %534, %542 : vector<8x64xi1>, vector<8x64xf32>
    %c41 = arith.constant 41 : index
    %c0_235 = arith.constant 0 : index
    %c0_236 = arith.constant 0 : index
    %544 = vector.load %arg2[%c41, %c0_235, %c0_236] : memref<49x2x8xbf16, #tpu.memory_space<vmem>>, vector<1x2x8xbf16>
    %545 = vector.shape_cast %544 : vector<1x2x8xbf16> to vector<2x8xbf16>
    %546 = arith.truncf %543 : vector<8x64xf32> to vector<8x64xbf16>
    %cst_237 = arith.constant dense<0.000000e+00> : vector<2x64xf32>
    %547 = tpu.matmul %545, %546, %cst_237 {dimension_numbers = #tpu.dot_dimension_numbers<[1], [0], [0], [1], [0, 0, 1, 1], [], []>} : vector<2x8xbf16>, vector<8x64xbf16>, vector<2x64xf32> -> vector<2x64xf32>
    %548 = arith.addf %533, %547 : vector<2x64xf32>
    %549 = vector.extract_strided_slice %7 {offsets = [0, 24], sizes = [8, 64], strides = [1, 1]} : vector<8x100xf32> to vector<8x64xf32>
    %c7_i32_238 = arith.constant 7 : i32
    %550 = vector.broadcast %c7_i32_238 : i32 to vector<1x64xi32>
    %551 = arith.cmpi slt, %8, %550 : vector<1x64xi32>
    %c2_i32_239 = arith.constant 2 : i32
    %552 = vector.broadcast %c2_i32_239 : i32 to vector<1x64xi32>
    %553 = arith.cmpi sge, %9, %552 : vector<1x64xi32>
    %554 = arith.andi %551, %553 : vector<1x64xi1>
    %cst_240 = arith.constant 0.000000e+00 : f32
    %555 = vector.shape_cast %554 : vector<1x64xi1> to vector<1x64xi1>
    %556 = vector.broadcast %555 : vector<1x64xi1> to vector<8x64xi1>
    %557 = vector.broadcast %cst_240 : f32 to vector<8x64xf32>
    %558 = arith.select %556, %549, %557 : vector<8x64xi1>, vector<8x64xf32>
    %c42 = arith.constant 42 : index
    %c0_241 = arith.constant 0 : index
    %c0_242 = arith.constant 0 : index
    %559 = vector.load %arg2[%c42, %c0_241, %c0_242] : memref<49x2x8xbf16, #tpu.memory_space<vmem>>, vector<1x2x8xbf16>
    %560 = vector.shape_cast %559 : vector<1x2x8xbf16> to vector<2x8xbf16>
    %561 = arith.truncf %558 : vector<8x64xf32> to vector<8x64xbf16>
    %cst_243 = arith.constant dense<0.000000e+00> : vector<2x64xf32>
    %562 = tpu.matmul %560, %561, %cst_243 {dimension_numbers = #tpu.dot_dimension_numbers<[1], [0], [0], [1], [0, 0, 1, 1], [], []>} : vector<2x8xbf16>, vector<8x64xbf16>, vector<2x64xf32> -> vector<2x64xf32>
    %563 = arith.addf %548, %562 : vector<2x64xf32>
    %564 = vector.extract_strided_slice %5 {offsets = [0, 25], sizes = [8, 64], strides = [1, 1]} : vector<8x100xf32> to vector<8x64xf32>
    %c7_i32_244 = arith.constant 7 : i32
    %565 = vector.broadcast %c7_i32_244 : i32 to vector<1x64xi32>
    %566 = arith.cmpi slt, %8, %565 : vector<1x64xi32>
    %c1_i32_245 = arith.constant 1 : i32
    %567 = vector.broadcast %c1_i32_245 : i32 to vector<1x64xi32>
    %568 = arith.cmpi sge, %9, %567 : vector<1x64xi32>
    %569 = arith.andi %566, %568 : vector<1x64xi1>
    %cst_246 = arith.constant 0.000000e+00 : f32
    %570 = vector.shape_cast %569 : vector<1x64xi1> to vector<1x64xi1>
    %571 = vector.broadcast %570 : vector<1x64xi1> to vector<8x64xi1>
    %572 = vector.broadcast %cst_246 : f32 to vector<8x64xf32>
    %573 = arith.select %571, %564, %572 : vector<8x64xi1>, vector<8x64xf32>
    %c43 = arith.constant 43 : index
    %c0_247 = arith.constant 0 : index
    %c0_248 = arith.constant 0 : index
    %574 = vector.load %arg2[%c43, %c0_247, %c0_248] : memref<49x2x8xbf16, #tpu.memory_space<vmem>>, vector<1x2x8xbf16>
    %575 = vector.shape_cast %574 : vector<1x2x8xbf16> to vector<2x8xbf16>
    %576 = arith.truncf %573 : vector<8x64xf32> to vector<8x64xbf16>
    %cst_249 = arith.constant dense<0.000000e+00> : vector<2x64xf32>
    %577 = tpu.matmul %575, %576, %cst_249 {dimension_numbers = #tpu.dot_dimension_numbers<[1], [0], [0], [1], [0, 0, 1, 1], [], []>} : vector<2x8xbf16>, vector<8x64xbf16>, vector<2x64xf32> -> vector<2x64xf32>
    %578 = arith.addf %563, %577 : vector<2x64xf32>
    %579 = vector.extract_strided_slice %7 {offsets = [0, 25], sizes = [8, 64], strides = [1, 1]} : vector<8x100xf32> to vector<8x64xf32>
    %c7_i32_250 = arith.constant 7 : i32
    %580 = vector.broadcast %c7_i32_250 : i32 to vector<1x64xi32>
    %581 = arith.cmpi slt, %8, %580 : vector<1x64xi32>
    %c1_i32_251 = arith.constant 1 : i32
    %582 = vector.broadcast %c1_i32_251 : i32 to vector<1x64xi32>
    %583 = arith.cmpi sge, %9, %582 : vector<1x64xi32>
    %584 = arith.andi %581, %583 : vector<1x64xi1>
    %cst_252 = arith.constant 0.000000e+00 : f32
    %585 = vector.shape_cast %584 : vector<1x64xi1> to vector<1x64xi1>
    %586 = vector.broadcast %585 : vector<1x64xi1> to vector<8x64xi1>
    %587 = vector.broadcast %cst_252 : f32 to vector<8x64xf32>
    %588 = arith.select %586, %579, %587 : vector<8x64xi1>, vector<8x64xf32>
    %c44 = arith.constant 44 : index
    %c0_253 = arith.constant 0 : index
    %c0_254 = arith.constant 0 : index
    %589 = vector.load %arg2[%c44, %c0_253, %c0_254] : memref<49x2x8xbf16, #tpu.memory_space<vmem>>, vector<1x2x8xbf16>
    %590 = vector.shape_cast %589 : vector<1x2x8xbf16> to vector<2x8xbf16>
    %591 = arith.truncf %588 : vector<8x64xf32> to vector<8x64xbf16>
    %cst_255 = arith.constant dense<0.000000e+00> : vector<2x64xf32>
    %592 = tpu.matmul %590, %591, %cst_255 {dimension_numbers = #tpu.dot_dimension_numbers<[1], [0], [0], [1], [0, 0, 1, 1], [], []>} : vector<2x8xbf16>, vector<8x64xbf16>, vector<2x64xf32> -> vector<2x64xf32>
    %593 = arith.addf %578, %592 : vector<2x64xf32>
    %594 = vector.extract_strided_slice %5 {offsets = [0, 26], sizes = [8, 64], strides = [1, 1]} : vector<8x100xf32> to vector<8x64xf32>
    %c7_i32_256 = arith.constant 7 : i32
    %595 = vector.broadcast %c7_i32_256 : i32 to vector<1x64xi32>
    %596 = arith.cmpi slt, %8, %595 : vector<1x64xi32>
    %cst_257 = arith.constant 0.000000e+00 : f32
    %597 = vector.shape_cast %596 : vector<1x64xi1> to vector<1x64xi1>
    %598 = vector.broadcast %597 : vector<1x64xi1> to vector<8x64xi1>
    %599 = vector.broadcast %cst_257 : f32 to vector<8x64xf32>
    %600 = arith.select %598, %594, %599 : vector<8x64xi1>, vector<8x64xf32>
    %c45 = arith.constant 45 : index
    %c0_258 = arith.constant 0 : index
    %c0_259 = arith.constant 0 : index
    %601 = vector.load %arg2[%c45, %c0_258, %c0_259] : memref<49x2x8xbf16, #tpu.memory_space<vmem>>, vector<1x2x8xbf16>
    %602 = vector.shape_cast %601 : vector<1x2x8xbf16> to vector<2x8xbf16>
    %603 = arith.truncf %600 : vector<8x64xf32> to vector<8x64xbf16>
    %cst_260 = arith.constant dense<0.000000e+00> : vector<2x64xf32>
    %604 = tpu.matmul %602, %603, %cst_260 {dimension_numbers = #tpu.dot_dimension_numbers<[1], [0], [0], [1], [0, 0, 1, 1], [], []>} : vector<2x8xbf16>, vector<8x64xbf16>, vector<2x64xf32> -> vector<2x64xf32>
    %605 = arith.addf %593, %604 : vector<2x64xf32>
    %606 = vector.extract_strided_slice %7 {offsets = [0, 26], sizes = [8, 64], strides = [1, 1]} : vector<8x100xf32> to vector<8x64xf32>
    %c7_i32_261 = arith.constant 7 : i32
    %607 = vector.broadcast %c7_i32_261 : i32 to vector<1x64xi32>
    %608 = arith.cmpi slt, %8, %607 : vector<1x64xi32>
    %cst_262 = arith.constant 0.000000e+00 : f32
    %609 = vector.shape_cast %608 : vector<1x64xi1> to vector<1x64xi1>
    %610 = vector.broadcast %609 : vector<1x64xi1> to vector<8x64xi1>
    %611 = vector.broadcast %cst_262 : f32 to vector<8x64xf32>
    %612 = arith.select %610, %606, %611 : vector<8x64xi1>, vector<8x64xf32>
    %c46 = arith.constant 46 : index
    %c0_263 = arith.constant 0 : index
    %c0_264 = arith.constant 0 : index
    %613 = vector.load %arg2[%c46, %c0_263, %c0_264] : memref<49x2x8xbf16, #tpu.memory_space<vmem>>, vector<1x2x8xbf16>
    %614 = vector.shape_cast %613 : vector<1x2x8xbf16> to vector<2x8xbf16>
    %615 = arith.truncf %612 : vector<8x64xf32> to vector<8x64xbf16>
    %cst_265 = arith.constant dense<0.000000e+00> : vector<2x64xf32>
    %616 = tpu.matmul %614, %615, %cst_265 {dimension_numbers = #tpu.dot_dimension_numbers<[1], [0], [0], [1], [0, 0, 1, 1], [], []>} : vector<2x8xbf16>, vector<8x64xbf16>, vector<2x64xf32> -> vector<2x64xf32>
    %617 = arith.addf %605, %616 : vector<2x64xf32>
    %618 = vector.extract_strided_slice %5 {offsets = [0, 27], sizes = [8, 64], strides = [1, 1]} : vector<8x100xf32> to vector<8x64xf32>
    %c7_i32_266 = arith.constant 7 : i32
    %619 = vector.broadcast %c7_i32_266 : i32 to vector<1x64xi32>
    %620 = arith.cmpi slt, %8, %619 : vector<1x64xi32>
    %c7_i32_267 = arith.constant 7 : i32
    %621 = vector.broadcast %c7_i32_267 : i32 to vector<1x64xi32>
    %622 = arith.cmpi slt, %9, %621 : vector<1x64xi32>
    %623 = arith.andi %620, %622 : vector<1x64xi1>
    %cst_268 = arith.constant 0.000000e+00 : f32
    %624 = vector.shape_cast %623 : vector<1x64xi1> to vector<1x64xi1>
    %625 = vector.broadcast %624 : vector<1x64xi1> to vector<8x64xi1>
    %626 = vector.broadcast %cst_268 : f32 to vector<8x64xf32>
    %627 = arith.select %625, %618, %626 : vector<8x64xi1>, vector<8x64xf32>
    %c47 = arith.constant 47 : index
    %c0_269 = arith.constant 0 : index
    %c0_270 = arith.constant 0 : index
    %628 = vector.load %arg2[%c47, %c0_269, %c0_270] : memref<49x2x8xbf16, #tpu.memory_space<vmem>>, vector<1x2x8xbf16>
    %629 = vector.shape_cast %628 : vector<1x2x8xbf16> to vector<2x8xbf16>
    %630 = arith.truncf %627 : vector<8x64xf32> to vector<8x64xbf16>
    %cst_271 = arith.constant dense<0.000000e+00> : vector<2x64xf32>
    %631 = tpu.matmul %629, %630, %cst_271 {dimension_numbers = #tpu.dot_dimension_numbers<[1], [0], [0], [1], [0, 0, 1, 1], [], []>} : vector<2x8xbf16>, vector<8x64xbf16>, vector<2x64xf32> -> vector<2x64xf32>
    %632 = arith.addf %617, %631 : vector<2x64xf32>
    %633 = vector.extract_strided_slice %7 {offsets = [0, 27], sizes = [8, 64], strides = [1, 1]} : vector<8x100xf32> to vector<8x64xf32>
    %c7_i32_272 = arith.constant 7 : i32
    %634 = vector.broadcast %c7_i32_272 : i32 to vector<1x64xi32>
    %635 = arith.cmpi slt, %8, %634 : vector<1x64xi32>
    %c7_i32_273 = arith.constant 7 : i32
    %636 = vector.broadcast %c7_i32_273 : i32 to vector<1x64xi32>
    %637 = arith.cmpi slt, %9, %636 : vector<1x64xi32>
    %638 = arith.andi %635, %637 : vector<1x64xi1>
    %cst_274 = arith.constant 0.000000e+00 : f32
    %639 = vector.shape_cast %638 : vector<1x64xi1> to vector<1x64xi1>
    %640 = vector.broadcast %639 : vector<1x64xi1> to vector<8x64xi1>
    %641 = vector.broadcast %cst_274 : f32 to vector<8x64xf32>
    %642 = arith.select %640, %633, %641 : vector<8x64xi1>, vector<8x64xf32>
    %c48 = arith.constant 48 : index
    %c0_275 = arith.constant 0 : index
    %c0_276 = arith.constant 0 : index
    %643 = vector.load %arg2[%c48, %c0_275, %c0_276] : memref<49x2x8xbf16, #tpu.memory_space<vmem>>, vector<1x2x8xbf16>
    %644 = vector.shape_cast %643 : vector<1x2x8xbf16> to vector<2x8xbf16>
    %645 = arith.truncf %642 : vector<8x64xf32> to vector<8x64xbf16>
    %cst_277 = arith.constant dense<0.000000e+00> : vector<2x64xf32>
    %646 = tpu.matmul %644, %645, %cst_277 {dimension_numbers = #tpu.dot_dimension_numbers<[1], [0], [0], [1], [0, 0, 1, 1], [], []>} : vector<2x8xbf16>, vector<8x64xbf16>, vector<2x64xf32> -> vector<2x64xf32>
    %647 = arith.addf %632, %646 : vector<2x64xf32>
    %c0_278 = arith.constant 0 : index
    %c0_279 = arith.constant 0 : index
    %648 = vector.load %arg3[%c0_278, %c0_279] : memref<2x1xf32, #tpu.memory_space<vmem>>, vector<2x1xf32>
    %649 = vector.broadcast %648 : vector<2x1xf32> to vector<2x64xf32>
    %650 = arith.addf %647, %649 : vector<2x64xf32>
    %cst_280 = arith.constant 0.000000e+00 : f32
    %651 = vector.broadcast %cst_280 : f32 to vector<2x64xf32>
    %652 = arith.maximumf %650, %651 : vector<2x64xf32>
    %c0_281 = arith.constant 0 : index
    %c0_282 = arith.constant 0 : index
    %c0_283 = arith.constant 0 : index
    %653 = vector.load %arg6[%c0_281, %c0_282, %c0_283] : memref<1x2x64xf32, #tpu.memory_space<vmem>>, vector<1x2x64xf32>
    %654 = vector.shape_cast %653 : vector<1x2x64xf32> to vector<2x64xf32>
    %655 = vector.shape_cast %652 : vector<2x64xf32> to vector<1x2x64xf32>
    tpu.vector_store %arg6[%c0_281, %c0_282, %c0_283], %655 {strides = array<i32>} : memref<1x2x64xf32, #tpu.memory_space<vmem>>, vector<1x2x64xf32>,
    return
  }
  func.func @transform_0(%arg0: i32) -> (i32, i32, i32, i32) {
    %c0_i32 = arith.constant 0 : i32
    %c0_i32_0 = arith.constant 0 : i32
    %c0_i32_1 = arith.constant 0 : i32
    %c0_i32_2 = arith.constant 0 : i32
    return %arg0, %c0_i32, %c0_i32_0, %c0_i32_1 : i32, i32, i32, i32
  }
  func.func @transform_1(%arg0: i32) -> (i32, i32, i32) {
    %c0_i32 = arith.constant 0 : i32
    %c0_i32_0 = arith.constant 0 : i32
    %c0_i32_1 = arith.constant 0 : i32
    %c0_i32_2 = arith.constant 0 : i32
    return %c0_i32, %c0_i32_0, %c0_i32_1 : i32, i32, i32
  }
  func.func @transform_2(%arg0: i32) -> (i32, i32) {
    %c0_i32 = arith.constant 0 : i32
    %c0_i32_0 = arith.constant 0 : i32
    %c0_i32_1 = arith.constant 0 : i32
    return %c0_i32, %c0_i32_0 : i32, i32
  }
  func.func @transform_3(%arg0: i32) -> (i32, i32) {
    %c0_i32 = arith.constant 0 : i32
    %c0_i32_0 = arith.constant 0 : i32
    %c0_i32_1 = arith.constant 0 : i32
    return %c0_i32, %c0_i32_0 : i32, i32
  }
  func.func @transform_4(%arg0: i32) -> (i32, i32) {
    %c0_i32 = arith.constant 0 : i32
    %c0_i32_0 = arith.constant 0 : i32
    %c0_i32_1 = arith.constant 0 : i32
    return %c0_i32, %c0_i32_0 : i32, i32
  }
  func.func @transform_5(%arg0: i32) -> (i32, i32, i32) {
    %c0_i32 = arith.constant 0 : i32
    %c0_i32_0 = arith.constant 0 : i32
    %c0_i32_1 = arith.constant 0 : i32
    return %arg0, %c0_i32, %c0_i32_0 : i32, i32, i32
  }
}

module attributes {stable_mosaic.version = 11 : i64} {
  func.func @_conv_bn_act_kernel(%arg0: i32, %arg1: memref<1x4x2x26xf32, #tpu.memory_space<vmem>>, %arg2: memref<25x2x2xbf16, #tpu.memory_space<vmem>>, %arg3: memref<2x1xf32, #tpu.memory_space<vmem>>, %arg4: memref<1x16xi32, #tpu.memory_space<vmem>>, %arg5: memref<1x16xi32, #tpu.memory_space<vmem>>, %arg6: memref<1x2x16xf32, #tpu.memory_space<vmem>>) attributes {dimension_semantics = [#tpu.dimension_semantics<parallel>], iteration_bounds = array<i64: 2>, scalar_prefetch = 0 : i64, scratch_operands = 0 : i64, tpu.core_type = #tpu.core_type<tc>, window_params = [{transform_indices = @transform_0, window_bounds = array<i64: 1, 4, 2, 26>}, {pipeline_mode = #tpu.pipeline_mode<synchronous>, transform_indices = @transform_1, window_bounds = array<i64: 25, 2, 2>}, {pipeline_mode = #tpu.pipeline_mode<synchronous>, transform_indices = @transform_2, window_bounds = array<i64: 2, 1>}, {pipeline_mode = #tpu.pipeline_mode<synchronous>, transform_indices = @transform_3, window_bounds = array<i64: 1, 16>}, {pipeline_mode = #tpu.pipeline_mode<synchronous>, transform_indices = @transform_4, window_bounds = array<i64: 1, 16>}, {transform_indices = @transform_5, window_bounds = array<i64: 1, 2, 16>}]} {
    %c0 = arith.constant 0 : index
    %c0_0 = arith.constant 0 : index
    %c0_1 = arith.constant 0 : index
    %c0_2 = arith.constant 0 : index
    %0 = vector.load %arg1[%c0, %c0_0, %c0_1, %c0_2] : memref<1x4x2x26xf32, #tpu.memory_space<vmem>>, vector<1x1x2x26xf32>
    %1 = vector.shape_cast %0 : vector<1x1x2x26xf32> to vector<2x26xf32>
    %c0_3 = arith.constant 0 : index
    %c1 = arith.constant 1 : index
    %c0_4 = arith.constant 0 : index
    %c0_5 = arith.constant 0 : index
    %2 = vector.load %arg1[%c0_3, %c1, %c0_4, %c0_5] : memref<1x4x2x26xf32, #tpu.memory_space<vmem>>, vector<1x1x2x26xf32>
    %3 = vector.shape_cast %2 : vector<1x1x2x26xf32> to vector<2x26xf32>
    %c0_6 = arith.constant 0 : index
    %c2 = arith.constant 2 : index
    %c0_7 = arith.constant 0 : index
    %c0_8 = arith.constant 0 : index
    %4 = vector.load %arg1[%c0_6, %c2, %c0_7, %c0_8] : memref<1x4x2x26xf32, #tpu.memory_space<vmem>>, vector<1x1x2x26xf32>
    %5 = vector.shape_cast %4 : vector<1x1x2x26xf32> to vector<2x26xf32>
    %c0_9 = arith.constant 0 : index
    %c3 = arith.constant 3 : index
    %c0_10 = arith.constant 0 : index
    %c0_11 = arith.constant 0 : index
    %6 = vector.load %arg1[%c0_9, %c3, %c0_10, %c0_11] : memref<1x4x2x26xf32, #tpu.memory_space<vmem>>, vector<1x1x2x26xf32>
    %7 = vector.shape_cast %6 : vector<1x1x2x26xf32> to vector<2x26xf32>
    %c0_12 = arith.constant 0 : index
    %c0_13 = arith.constant 0 : index
    %8 = vector.load %arg4[%c0_12, %c0_13] : memref<1x16xi32, #tpu.memory_space<vmem>>, vector<1x16xi32>
    %c0_14 = arith.constant 0 : index
    %c0_15 = arith.constant 0 : index
    %9 = vector.load %arg5[%c0_14, %c0_15] : memref<1x16xi32, #tpu.memory_space<vmem>>, vector<1x16xi32>
    %10 = vector.extract_strided_slice %1 {offsets = [0, 0], sizes = [2, 16], strides = [1, 1]} : vector<2x26xf32> to vector<2x16xf32>
    %c1_i32 = arith.constant 1 : i32
    %11 = vector.broadcast %c1_i32 : i32 to vector<1x16xi32>
    %12 = arith.cmpi sge, %8, %11 : vector<1x16xi32>
    %c1_i32_16 = arith.constant 1 : i32
    %13 = vector.broadcast %c1_i32_16 : i32 to vector<1x16xi32>
    %14 = arith.cmpi sge, %9, %13 : vector<1x16xi32>
    %15 = arith.andi %12, %14 : vector<1x16xi1>
    %cst = arith.constant 0.000000e+00 : f32
    %16 = vector.shape_cast %15 : vector<1x16xi1> to vector<1x16xi1>
    %17 = vector.broadcast %16 : vector<1x16xi1> to vector<2x16xi1>
    %18 = vector.broadcast %cst : f32 to vector<2x16xf32>
    %19 = arith.select %17, %10, %18 : vector<2x16xi1>, vector<2x16xf32>
    %c0_17 = arith.constant 0 : index
    %c0_18 = arith.constant 0 : index
    %c0_19 = arith.constant 0 : index
    %20 = vector.load %arg2[%c0_17, %c0_18, %c0_19] : memref<25x2x2xbf16, #tpu.memory_space<vmem>>, vector<1x2x2xbf16>
    %21 = vector.shape_cast %20 : vector<1x2x2xbf16> to vector<2x2xbf16>
    %22 = arith.truncf %19 : vector<2x16xf32> to vector<2x16xbf16>
    %cst_20 = arith.constant dense<0.000000e+00> : vector<2x16xf32>
    %23 = tpu.matmul %21, %22, %cst_20 {dimension_numbers = #tpu.dot_dimension_numbers<[1], [0], [0], [1], [0, 0, 1, 1], [], []>} : vector<2x2xbf16>, vector<2x16xbf16>, vector<2x16xf32> -> vector<2x16xf32>
    %24 = vector.extract_strided_slice %3 {offsets = [0, 0], sizes = [2, 16], strides = [1, 1]} : vector<2x26xf32> to vector<2x16xf32>
    %c1_i32_21 = arith.constant 1 : i32
    %25 = vector.broadcast %c1_i32_21 : i32 to vector<1x16xi32>
    %26 = arith.cmpi sge, %8, %25 : vector<1x16xi32>
    %c1_i32_22 = arith.constant 1 : i32
    %27 = vector.broadcast %c1_i32_22 : i32 to vector<1x16xi32>
    %28 = arith.cmpi sge, %9, %27 : vector<1x16xi32>
    %29 = arith.andi %26, %28 : vector<1x16xi1>
    %cst_23 = arith.constant 0.000000e+00 : f32
    %30 = vector.shape_cast %29 : vector<1x16xi1> to vector<1x16xi1>
    %31 = vector.broadcast %30 : vector<1x16xi1> to vector<2x16xi1>
    %32 = vector.broadcast %cst_23 : f32 to vector<2x16xf32>
    %33 = arith.select %31, %24, %32 : vector<2x16xi1>, vector<2x16xf32>
    %c1_24 = arith.constant 1 : index
    %c0_25 = arith.constant 0 : index
    %c0_26 = arith.constant 0 : index
    %34 = vector.load %arg2[%c1_24, %c0_25, %c0_26] : memref<25x2x2xbf16, #tpu.memory_space<vmem>>, vector<1x2x2xbf16>
    %35 = vector.shape_cast %34 : vector<1x2x2xbf16> to vector<2x2xbf16>
    %36 = arith.truncf %33 : vector<2x16xf32> to vector<2x16xbf16>
    %cst_27 = arith.constant dense<0.000000e+00> : vector<2x16xf32>
    %37 = tpu.matmul %35, %36, %cst_27 {dimension_numbers = #tpu.dot_dimension_numbers<[1], [0], [0], [1], [0, 0, 1, 1], [], []>} : vector<2x2xbf16>, vector<2x16xbf16>, vector<2x16xf32> -> vector<2x16xf32>
    %38 = arith.addf %23, %37 : vector<2x16xf32>
    %39 = vector.extract_strided_slice %1 {offsets = [0, 1], sizes = [2, 16], strides = [1, 1]} : vector<2x26xf32> to vector<2x16xf32>
    %c1_i32_28 = arith.constant 1 : i32
    %40 = vector.broadcast %c1_i32_28 : i32 to vector<1x16xi32>
    %41 = arith.cmpi sge, %8, %40 : vector<1x16xi32>
    %cst_29 = arith.constant 0.000000e+00 : f32
    %42 = vector.shape_cast %41 : vector<1x16xi1> to vector<1x16xi1>
    %43 = vector.broadcast %42 : vector<1x16xi1> to vector<2x16xi1>
    %44 = vector.broadcast %cst_29 : f32 to vector<2x16xf32>
    %45 = arith.select %43, %39, %44 : vector<2x16xi1>, vector<2x16xf32>
    %c2_30 = arith.constant 2 : index
    %c0_31 = arith.constant 0 : index
    %c0_32 = arith.constant 0 : index
    %46 = vector.load %arg2[%c2_30, %c0_31, %c0_32] : memref<25x2x2xbf16, #tpu.memory_space<vmem>>, vector<1x2x2xbf16>
    %47 = vector.shape_cast %46 : vector<1x2x2xbf16> to vector<2x2xbf16>
    %48 = arith.truncf %45 : vector<2x16xf32> to vector<2x16xbf16>
    %cst_33 = arith.constant dense<0.000000e+00> : vector<2x16xf32>
    %49 = tpu.matmul %47, %48, %cst_33 {dimension_numbers = #tpu.dot_dimension_numbers<[1], [0], [0], [1], [0, 0, 1, 1], [], []>} : vector<2x2xbf16>, vector<2x16xbf16>, vector<2x16xf32> -> vector<2x16xf32>
    %50 = arith.addf %38, %49 : vector<2x16xf32>
    %51 = vector.extract_strided_slice %3 {offsets = [0, 1], sizes = [2, 16], strides = [1, 1]} : vector<2x26xf32> to vector<2x16xf32>
    %c1_i32_34 = arith.constant 1 : i32
    %52 = vector.broadcast %c1_i32_34 : i32 to vector<1x16xi32>
    %53 = arith.cmpi sge, %8, %52 : vector<1x16xi32>
    %cst_35 = arith.constant 0.000000e+00 : f32
    %54 = vector.shape_cast %53 : vector<1x16xi1> to vector<1x16xi1>
    %55 = vector.broadcast %54 : vector<1x16xi1> to vector<2x16xi1>
    %56 = vector.broadcast %cst_35 : f32 to vector<2x16xf32>
    %57 = arith.select %55, %51, %56 : vector<2x16xi1>, vector<2x16xf32>
    %c3_36 = arith.constant 3 : index
    %c0_37 = arith.constant 0 : index
    %c0_38 = arith.constant 0 : index
    %58 = vector.load %arg2[%c3_36, %c0_37, %c0_38] : memref<25x2x2xbf16, #tpu.memory_space<vmem>>, vector<1x2x2xbf16>
    %59 = vector.shape_cast %58 : vector<1x2x2xbf16> to vector<2x2xbf16>
    %60 = arith.truncf %57 : vector<2x16xf32> to vector<2x16xbf16>
    %cst_39 = arith.constant dense<0.000000e+00> : vector<2x16xf32>
    %61 = tpu.matmul %59, %60, %cst_39 {dimension_numbers = #tpu.dot_dimension_numbers<[1], [0], [0], [1], [0, 0, 1, 1], [], []>} : vector<2x2xbf16>, vector<2x16xbf16>, vector<2x16xf32> -> vector<2x16xf32>
    %62 = arith.addf %50, %61 : vector<2x16xf32>
    %63 = vector.extract_strided_slice %1 {offsets = [0, 2], sizes = [2, 16], strides = [1, 1]} : vector<2x26xf32> to vector<2x16xf32>
    %c1_i32_40 = arith.constant 1 : i32
    %64 = vector.broadcast %c1_i32_40 : i32 to vector<1x16xi32>
    %65 = arith.cmpi sge, %8, %64 : vector<1x16xi32>
    %c3_i32 = arith.constant 3 : i32
    %66 = vector.broadcast %c3_i32 : i32 to vector<1x16xi32>
    %67 = arith.cmpi slt, %9, %66 : vector<1x16xi32>
    %68 = arith.andi %65, %67 : vector<1x16xi1>
    %cst_41 = arith.constant 0.000000e+00 : f32
    %69 = vector.shape_cast %68 : vector<1x16xi1> to vector<1x16xi1>
    %70 = vector.broadcast %69 : vector<1x16xi1> to vector<2x16xi1>
    %71 = vector.broadcast %cst_41 : f32 to vector<2x16xf32>
    %72 = arith.select %70, %63, %71 : vector<2x16xi1>, vector<2x16xf32>
    %c4 = arith.constant 4 : index
    %c0_42 = arith.constant 0 : index
    %c0_43 = arith.constant 0 : index
    %73 = vector.load %arg2[%c4, %c0_42, %c0_43] : memref<25x2x2xbf16, #tpu.memory_space<vmem>>, vector<1x2x2xbf16>
    %74 = vector.shape_cast %73 : vector<1x2x2xbf16> to vector<2x2xbf16>
    %75 = arith.truncf %72 : vector<2x16xf32> to vector<2x16xbf16>
    %cst_44 = arith.constant dense<0.000000e+00> : vector<2x16xf32>
    %76 = tpu.matmul %74, %75, %cst_44 {dimension_numbers = #tpu.dot_dimension_numbers<[1], [0], [0], [1], [0, 0, 1, 1], [], []>} : vector<2x2xbf16>, vector<2x16xbf16>, vector<2x16xf32> -> vector<2x16xf32>
    %77 = arith.addf %62, %76 : vector<2x16xf32>
    %78 = vector.extract_strided_slice %5 {offsets = [0, 0], sizes = [2, 16], strides = [1, 1]} : vector<2x26xf32> to vector<2x16xf32>
    %c1_i32_45 = arith.constant 1 : i32
    %79 = vector.broadcast %c1_i32_45 : i32 to vector<1x16xi32>
    %80 = arith.cmpi sge, %8, %79 : vector<1x16xi32>
    %c1_i32_46 = arith.constant 1 : i32
    %81 = vector.broadcast %c1_i32_46 : i32 to vector<1x16xi32>
    %82 = arith.cmpi sge, %9, %81 : vector<1x16xi32>
    %83 = arith.andi %80, %82 : vector<1x16xi1>
    %cst_47 = arith.constant 0.000000e+00 : f32
    %84 = vector.shape_cast %83 : vector<1x16xi1> to vector<1x16xi1>
    %85 = vector.broadcast %84 : vector<1x16xi1> to vector<2x16xi1>
    %86 = vector.broadcast %cst_47 : f32 to vector<2x16xf32>
    %87 = arith.select %85, %78, %86 : vector<2x16xi1>, vector<2x16xf32>
    %c5 = arith.constant 5 : index
    %c0_48 = arith.constant 0 : index
    %c0_49 = arith.constant 0 : index
    %88 = vector.load %arg2[%c5, %c0_48, %c0_49] : memref<25x2x2xbf16, #tpu.memory_space<vmem>>, vector<1x2x2xbf16>
    %89 = vector.shape_cast %88 : vector<1x2x2xbf16> to vector<2x2xbf16>
    %90 = arith.truncf %87 : vector<2x16xf32> to vector<2x16xbf16>
    %cst_50 = arith.constant dense<0.000000e+00> : vector<2x16xf32>
    %91 = tpu.matmul %89, %90, %cst_50 {dimension_numbers = #tpu.dot_dimension_numbers<[1], [0], [0], [1], [0, 0, 1, 1], [], []>} : vector<2x2xbf16>, vector<2x16xbf16>, vector<2x16xf32> -> vector<2x16xf32>
    %92 = arith.addf %77, %91 : vector<2x16xf32>
    %93 = vector.extract_strided_slice %7 {offsets = [0, 0], sizes = [2, 16], strides = [1, 1]} : vector<2x26xf32> to vector<2x16xf32>
    %c1_i32_51 = arith.constant 1 : i32
    %94 = vector.broadcast %c1_i32_51 : i32 to vector<1x16xi32>
    %95 = arith.cmpi sge, %8, %94 : vector<1x16xi32>
    %c1_i32_52 = arith.constant 1 : i32
    %96 = vector.broadcast %c1_i32_52 : i32 to vector<1x16xi32>
    %97 = arith.cmpi sge, %9, %96 : vector<1x16xi32>
    %98 = arith.andi %95, %97 : vector<1x16xi1>
    %cst_53 = arith.constant 0.000000e+00 : f32
    %99 = vector.shape_cast %98 : vector<1x16xi1> to vector<1x16xi1>
    %100 = vector.broadcast %99 : vector<1x16xi1> to vector<2x16xi1>
    %101 = vector.broadcast %cst_53 : f32 to vector<2x16xf32>
    %102 = arith.select %100, %93, %101 : vector<2x16xi1>, vector<2x16xf32>
    %c6 = arith.constant 6 : index
    %c0_54 = arith.constant 0 : index
    %c0_55 = arith.constant 0 : index
    %103 = vector.load %arg2[%c6, %c0_54, %c0_55] : memref<25x2x2xbf16, #tpu.memory_space<vmem>>, vector<1x2x2xbf16>
    %104 = vector.shape_cast %103 : vector<1x2x2xbf16> to vector<2x2xbf16>
    %105 = arith.truncf %102 : vector<2x16xf32> to vector<2x16xbf16>
    %cst_56 = arith.constant dense<0.000000e+00> : vector<2x16xf32>
    %106 = tpu.matmul %104, %105, %cst_56 {dimension_numbers = #tpu.dot_dimension_numbers<[1], [0], [0], [1], [0, 0, 1, 1], [], []>} : vector<2x2xbf16>, vector<2x16xbf16>, vector<2x16xf32> -> vector<2x16xf32>
    %107 = arith.addf %92, %106 : vector<2x16xf32>
    %108 = vector.extract_strided_slice %5 {offsets = [0, 1], sizes = [2, 16], strides = [1, 1]} : vector<2x26xf32> to vector<2x16xf32>
    %c1_i32_57 = arith.constant 1 : i32
    %109 = vector.broadcast %c1_i32_57 : i32 to vector<1x16xi32>
    %110 = arith.cmpi sge, %8, %109 : vector<1x16xi32>
    %cst_58 = arith.constant 0.000000e+00 : f32
    %111 = vector.shape_cast %110 : vector<1x16xi1> to vector<1x16xi1>
    %112 = vector.broadcast %111 : vector<1x16xi1> to vector<2x16xi1>
    %113 = vector.broadcast %cst_58 : f32 to vector<2x16xf32>
    %114 = arith.select %112, %108, %113 : vector<2x16xi1>, vector<2x16xf32>
    %c7 = arith.constant 7 : index
    %c0_59 = arith.constant 0 : index
    %c0_60 = arith.constant 0 : index
    %115 = vector.load %arg2[%c7, %c0_59, %c0_60] : memref<25x2x2xbf16, #tpu.memory_space<vmem>>, vector<1x2x2xbf16>
    %116 = vector.shape_cast %115 : vector<1x2x2xbf16> to vector<2x2xbf16>
    %117 = arith.truncf %114 : vector<2x16xf32> to vector<2x16xbf16>
    %cst_61 = arith.constant dense<0.000000e+00> : vector<2x16xf32>
    %118 = tpu.matmul %116, %117, %cst_61 {dimension_numbers = #tpu.dot_dimension_numbers<[1], [0], [0], [1], [0, 0, 1, 1], [], []>} : vector<2x2xbf16>, vector<2x16xbf16>, vector<2x16xf32> -> vector<2x16xf32>
    %119 = arith.addf %107, %118 : vector<2x16xf32>
    %120 = vector.extract_strided_slice %7 {offsets = [0, 1], sizes = [2, 16], strides = [1, 1]} : vector<2x26xf32> to vector<2x16xf32>
    %c1_i32_62 = arith.constant 1 : i32
    %121 = vector.broadcast %c1_i32_62 : i32 to vector<1x16xi32>
    %122 = arith.cmpi sge, %8, %121 : vector<1x16xi32>
    %cst_63 = arith.constant 0.000000e+00 : f32
    %123 = vector.shape_cast %122 : vector<1x16xi1> to vector<1x16xi1>
    %124 = vector.broadcast %123 : vector<1x16xi1> to vector<2x16xi1>
    %125 = vector.broadcast %cst_63 : f32 to vector<2x16xf32>
    %126 = arith.select %124, %120, %125 : vector<2x16xi1>, vector<2x16xf32>
    %c8 = arith.constant 8 : index
    %c0_64 = arith.constant 0 : index
    %c0_65 = arith.constant 0 : index
    %127 = vector.load %arg2[%c8, %c0_64, %c0_65] : memref<25x2x2xbf16, #tpu.memory_space<vmem>>, vector<1x2x2xbf16>
    %128 = vector.shape_cast %127 : vector<1x2x2xbf16> to vector<2x2xbf16>
    %129 = arith.truncf %126 : vector<2x16xf32> to vector<2x16xbf16>
    %cst_66 = arith.constant dense<0.000000e+00> : vector<2x16xf32>
    %130 = tpu.matmul %128, %129, %cst_66 {dimension_numbers = #tpu.dot_dimension_numbers<[1], [0], [0], [1], [0, 0, 1, 1], [], []>} : vector<2x2xbf16>, vector<2x16xbf16>, vector<2x16xf32> -> vector<2x16xf32>
    %131 = arith.addf %119, %130 : vector<2x16xf32>
    %132 = vector.extract_strided_slice %5 {offsets = [0, 2], sizes = [2, 16], strides = [1, 1]} : vector<2x26xf32> to vector<2x16xf32>
    %c1_i32_67 = arith.constant 1 : i32
    %133 = vector.broadcast %c1_i32_67 : i32 to vector<1x16xi32>
    %134 = arith.cmpi sge, %8, %133 : vector<1x16xi32>
    %c3_i32_68 = arith.constant 3 : i32
    %135 = vector.broadcast %c3_i32_68 : i32 to vector<1x16xi32>
    %136 = arith.cmpi slt, %9, %135 : vector<1x16xi32>
    %137 = arith.andi %134, %136 : vector<1x16xi1>
    %cst_69 = arith.constant 0.000000e+00 : f32
    %138 = vector.shape_cast %137 : vector<1x16xi1> to vector<1x16xi1>
    %139 = vector.broadcast %138 : vector<1x16xi1> to vector<2x16xi1>
    %140 = vector.broadcast %cst_69 : f32 to vector<2x16xf32>
    %141 = arith.select %139, %132, %140 : vector<2x16xi1>, vector<2x16xf32>
    %c9 = arith.constant 9 : index
    %c0_70 = arith.constant 0 : index
    %c0_71 = arith.constant 0 : index
    %142 = vector.load %arg2[%c9, %c0_70, %c0_71] : memref<25x2x2xbf16, #tpu.memory_space<vmem>>, vector<1x2x2xbf16>
    %143 = vector.shape_cast %142 : vector<1x2x2xbf16> to vector<2x2xbf16>
    %144 = arith.truncf %141 : vector<2x16xf32> to vector<2x16xbf16>
    %cst_72 = arith.constant dense<0.000000e+00> : vector<2x16xf32>
    %145 = tpu.matmul %143, %144, %cst_72 {dimension_numbers = #tpu.dot_dimension_numbers<[1], [0], [0], [1], [0, 0, 1, 1], [], []>} : vector<2x2xbf16>, vector<2x16xbf16>, vector<2x16xf32> -> vector<2x16xf32>
    %146 = arith.addf %131, %145 : vector<2x16xf32>
    %147 = vector.extract_strided_slice %1 {offsets = [0, 4], sizes = [2, 16], strides = [1, 1]} : vector<2x26xf32> to vector<2x16xf32>
    %c1_i32_73 = arith.constant 1 : i32
    %148 = vector.broadcast %c1_i32_73 : i32 to vector<1x16xi32>
    %149 = arith.cmpi sge, %9, %148 : vector<1x16xi32>
    %cst_74 = arith.constant 0.000000e+00 : f32
    %150 = vector.shape_cast %149 : vector<1x16xi1> to vector<1x16xi1>
    %151 = vector.broadcast %150 : vector<1x16xi1> to vector<2x16xi1>
    %152 = vector.broadcast %cst_74 : f32 to vector<2x16xf32>
    %153 = arith.select %151, %147, %152 : vector<2x16xi1>, vector<2x16xf32>
    %c10 = arith.constant 10 : index
    %c0_75 = arith.constant 0 : index
    %c0_76 = arith.constant 0 : index
    %154 = vector.load %arg2[%c10, %c0_75, %c0_76] : memref<25x2x2xbf16, #tpu.memory_space<vmem>>, vector<1x2x2xbf16>
    %155 = vector.shape_cast %154 : vector<1x2x2xbf16> to vector<2x2xbf16>
    %156 = arith.truncf %153 : vector<2x16xf32> to vector<2x16xbf16>
    %cst_77 = arith.constant dense<0.000000e+00> : vector<2x16xf32>
    %157 = tpu.matmul %155, %156, %cst_77 {dimension_numbers = #tpu.dot_dimension_numbers<[1], [0], [0], [1], [0, 0, 1, 1], [], []>} : vector<2x2xbf16>, vector<2x16xbf16>, vector<2x16xf32> -> vector<2x16xf32>
    %158 = arith.addf %146, %157 : vector<2x16xf32>
    %159 = vector.extract_strided_slice %3 {offsets = [0, 4], sizes = [2, 16], strides = [1, 1]} : vector<2x26xf32> to vector<2x16xf32>
    %c1_i32_78 = arith.constant 1 : i32
    %160 = vector.broadcast %c1_i32_78 : i32 to vector<1x16xi32>
    %161 = arith.cmpi sge, %9, %160 : vector<1x16xi32>
    %cst_79 = arith.constant 0.000000e+00 : f32
    %162 = vector.shape_cast %161 : vector<1x16xi1> to vector<1x16xi1>
    %163 = vector.broadcast %162 : vector<1x16xi1> to vector<2x16xi1>
    %164 = vector.broadcast %cst_79 : f32 to vector<2x16xf32>
    %165 = arith.select %163, %159, %164 : vector<2x16xi1>, vector<2x16xf32>
    %c11 = arith.constant 11 : index
    %c0_80 = arith.constant 0 : index
    %c0_81 = arith.constant 0 : index
    %166 = vector.load %arg2[%c11, %c0_80, %c0_81] : memref<25x2x2xbf16, #tpu.memory_space<vmem>>, vector<1x2x2xbf16>
    %167 = vector.shape_cast %166 : vector<1x2x2xbf16> to vector<2x2xbf16>
    %168 = arith.truncf %165 : vector<2x16xf32> to vector<2x16xbf16>
    %cst_82 = arith.constant dense<0.000000e+00> : vector<2x16xf32>
    %169 = tpu.matmul %167, %168, %cst_82 {dimension_numbers = #tpu.dot_dimension_numbers<[1], [0], [0], [1], [0, 0, 1, 1], [], []>} : vector<2x2xbf16>, vector<2x16xbf16>, vector<2x16xf32> -> vector<2x16xf32>
    %170 = arith.addf %158, %169 : vector<2x16xf32>
    %171 = vector.extract_strided_slice %1 {offsets = [0, 5], sizes = [2, 16], strides = [1, 1]} : vector<2x26xf32> to vector<2x16xf32>
    %c12 = arith.constant 12 : index
    %c0_83 = arith.constant 0 : index
    %c0_84 = arith.constant 0 : index
    %172 = vector.load %arg2[%c12, %c0_83, %c0_84] : memref<25x2x2xbf16, #tpu.memory_space<vmem>>, vector<1x2x2xbf16>
    %173 = vector.shape_cast %172 : vector<1x2x2xbf16> to vector<2x2xbf16>
    %174 = arith.truncf %171 : vector<2x16xf32> to vector<2x16xbf16>
    %cst_85 = arith.constant dense<0.000000e+00> : vector<2x16xf32>
    %175 = tpu.matmul %173, %174, %cst_85 {dimension_numbers = #tpu.dot_dimension_numbers<[1], [0], [0], [1], [0, 0, 1, 1], [], []>} : vector<2x2xbf16>, vector<2x16xbf16>, vector<2x16xf32> -> vector<2x16xf32>
    %176 = arith.addf %170, %175 : vector<2x16xf32>
    %177 = vector.extract_strided_slice %3 {offsets = [0, 5], sizes = [2, 16], strides = [1, 1]} : vector<2x26xf32> to vector<2x16xf32>
    %c13 = arith.constant 13 : index
    %c0_86 = arith.constant 0 : index
    %c0_87 = arith.constant 0 : index
    %178 = vector.load %arg2[%c13, %c0_86, %c0_87] : memref<25x2x2xbf16, #tpu.memory_space<vmem>>, vector<1x2x2xbf16>
    %179 = vector.shape_cast %178 : vector<1x2x2xbf16> to vector<2x2xbf16>
    %180 = arith.truncf %177 : vector<2x16xf32> to vector<2x16xbf16>
    %cst_88 = arith.constant dense<0.000000e+00> : vector<2x16xf32>
    %181 = tpu.matmul %179, %180, %cst_88 {dimension_numbers = #tpu.dot_dimension_numbers<[1], [0], [0], [1], [0, 0, 1, 1], [], []>} : vector<2x2xbf16>, vector<2x16xbf16>, vector<2x16xf32> -> vector<2x16xf32>
    %182 = arith.addf %176, %181 : vector<2x16xf32>
    %183 = vector.extract_strided_slice %1 {offsets = [0, 6], sizes = [2, 16], strides = [1, 1]} : vector<2x26xf32> to vector<2x16xf32>
    %c3_i32_89 = arith.constant 3 : i32
    %184 = vector.broadcast %c3_i32_89 : i32 to vector<1x16xi32>
    %185 = arith.cmpi slt, %9, %184 : vector<1x16xi32>
    %cst_90 = arith.constant 0.000000e+00 : f32
    %186 = vector.shape_cast %185 : vector<1x16xi1> to vector<1x16xi1>
    %187 = vector.broadcast %186 : vector<1x16xi1> to vector<2x16xi1>
    %188 = vector.broadcast %cst_90 : f32 to vector<2x16xf32>
    %189 = arith.select %187, %183, %188 : vector<2x16xi1>, vector<2x16xf32>
    %c14 = arith.constant 14 : index
    %c0_91 = arith.constant 0 : index
    %c0_92 = arith.constant 0 : index
    %190 = vector.load %arg2[%c14, %c0_91, %c0_92] : memref<25x2x2xbf16, #tpu.memory_space<vmem>>, vector<1x2x2xbf16>
    %191 = vector.shape_cast %190 : vector<1x2x2xbf16> to vector<2x2xbf16>
    %192 = arith.truncf %189 : vector<2x16xf32> to vector<2x16xbf16>
    %cst_93 = arith.constant dense<0.000000e+00> : vector<2x16xf32>
    %193 = tpu.matmul %191, %192, %cst_93 {dimension_numbers = #tpu.dot_dimension_numbers<[1], [0], [0], [1], [0, 0, 1, 1], [], []>} : vector<2x2xbf16>, vector<2x16xbf16>, vector<2x16xf32> -> vector<2x16xf32>
    %194 = arith.addf %182, %193 : vector<2x16xf32>
    %195 = vector.extract_strided_slice %5 {offsets = [0, 4], sizes = [2, 16], strides = [1, 1]} : vector<2x26xf32> to vector<2x16xf32>
    %c1_i32_94 = arith.constant 1 : i32
    %196 = vector.broadcast %c1_i32_94 : i32 to vector<1x16xi32>
    %197 = arith.cmpi sge, %9, %196 : vector<1x16xi32>
    %cst_95 = arith.constant 0.000000e+00 : f32
    %198 = vector.shape_cast %197 : vector<1x16xi1> to vector<1x16xi1>
    %199 = vector.broadcast %198 : vector<1x16xi1> to vector<2x16xi1>
    %200 = vector.broadcast %cst_95 : f32 to vector<2x16xf32>
    %201 = arith.select %199, %195, %200 : vector<2x16xi1>, vector<2x16xf32>
    %c15 = arith.constant 15 : index
    %c0_96 = arith.constant 0 : index
    %c0_97 = arith.constant 0 : index
    %202 = vector.load %arg2[%c15, %c0_96, %c0_97] : memref<25x2x2xbf16, #tpu.memory_space<vmem>>, vector<1x2x2xbf16>
    %203 = vector.shape_cast %202 : vector<1x2x2xbf16> to vector<2x2xbf16>
    %204 = arith.truncf %201 : vector<2x16xf32> to vector<2x16xbf16>
    %cst_98 = arith.constant dense<0.000000e+00> : vector<2x16xf32>
    %205 = tpu.matmul %203, %204, %cst_98 {dimension_numbers = #tpu.dot_dimension_numbers<[1], [0], [0], [1], [0, 0, 1, 1], [], []>} : vector<2x2xbf16>, vector<2x16xbf16>, vector<2x16xf32> -> vector<2x16xf32>
    %206 = arith.addf %194, %205 : vector<2x16xf32>
    %207 = vector.extract_strided_slice %7 {offsets = [0, 4], sizes = [2, 16], strides = [1, 1]} : vector<2x26xf32> to vector<2x16xf32>
    %c1_i32_99 = arith.constant 1 : i32
    %208 = vector.broadcast %c1_i32_99 : i32 to vector<1x16xi32>
    %209 = arith.cmpi sge, %9, %208 : vector<1x16xi32>
    %cst_100 = arith.constant 0.000000e+00 : f32
    %210 = vector.shape_cast %209 : vector<1x16xi1> to vector<1x16xi1>
    %211 = vector.broadcast %210 : vector<1x16xi1> to vector<2x16xi1>
    %212 = vector.broadcast %cst_100 : f32 to vector<2x16xf32>
    %213 = arith.select %211, %207, %212 : vector<2x16xi1>, vector<2x16xf32>
    %c16 = arith.constant 16 : index
    %c0_101 = arith.constant 0 : index
    %c0_102 = arith.constant 0 : index
    %214 = vector.load %arg2[%c16, %c0_101, %c0_102] : memref<25x2x2xbf16, #tpu.memory_space<vmem>>, vector<1x2x2xbf16>
    %215 = vector.shape_cast %214 : vector<1x2x2xbf16> to vector<2x2xbf16>
    %216 = arith.truncf %213 : vector<2x16xf32> to vector<2x16xbf16>
    %cst_103 = arith.constant dense<0.000000e+00> : vector<2x16xf32>
    %217 = tpu.matmul %215, %216, %cst_103 {dimension_numbers = #tpu.dot_dimension_numbers<[1], [0], [0], [1], [0, 0, 1, 1], [], []>} : vector<2x2xbf16>, vector<2x16xbf16>, vector<2x16xf32> -> vector<2x16xf32>
    %218 = arith.addf %206, %217 : vector<2x16xf32>
    %219 = vector.extract_strided_slice %5 {offsets = [0, 5], sizes = [2, 16], strides = [1, 1]} : vector<2x26xf32> to vector<2x16xf32>
    %c17 = arith.constant 17 : index
    %c0_104 = arith.constant 0 : index
    %c0_105 = arith.constant 0 : index
    %220 = vector.load %arg2[%c17, %c0_104, %c0_105] : memref<25x2x2xbf16, #tpu.memory_space<vmem>>, vector<1x2x2xbf16>
    %221 = vector.shape_cast %220 : vector<1x2x2xbf16> to vector<2x2xbf16>
    %222 = arith.truncf %219 : vector<2x16xf32> to vector<2x16xbf16>
    %cst_106 = arith.constant dense<0.000000e+00> : vector<2x16xf32>
    %223 = tpu.matmul %221, %222, %cst_106 {dimension_numbers = #tpu.dot_dimension_numbers<[1], [0], [0], [1], [0, 0, 1, 1], [], []>} : vector<2x2xbf16>, vector<2x16xbf16>, vector<2x16xf32> -> vector<2x16xf32>
    %224 = arith.addf %218, %223 : vector<2x16xf32>
    %225 = vector.extract_strided_slice %7 {offsets = [0, 5], sizes = [2, 16], strides = [1, 1]} : vector<2x26xf32> to vector<2x16xf32>
    %c18 = arith.constant 18 : index
    %c0_107 = arith.constant 0 : index
    %c0_108 = arith.constant 0 : index
    %226 = vector.load %arg2[%c18, %c0_107, %c0_108] : memref<25x2x2xbf16, #tpu.memory_space<vmem>>, vector<1x2x2xbf16>
    %227 = vector.shape_cast %226 : vector<1x2x2xbf16> to vector<2x2xbf16>
    %228 = arith.truncf %225 : vector<2x16xf32> to vector<2x16xbf16>
    %cst_109 = arith.constant dense<0.000000e+00> : vector<2x16xf32>
    %229 = tpu.matmul %227, %228, %cst_109 {dimension_numbers = #tpu.dot_dimension_numbers<[1], [0], [0], [1], [0, 0, 1, 1], [], []>} : vector<2x2xbf16>, vector<2x16xbf16>, vector<2x16xf32> -> vector<2x16xf32>
    %230 = arith.addf %224, %229 : vector<2x16xf32>
    %231 = vector.extract_strided_slice %5 {offsets = [0, 6], sizes = [2, 16], strides = [1, 1]} : vector<2x26xf32> to vector<2x16xf32>
    %c3_i32_110 = arith.constant 3 : i32
    %232 = vector.broadcast %c3_i32_110 : i32 to vector<1x16xi32>
    %233 = arith.cmpi slt, %9, %232 : vector<1x16xi32>
    %cst_111 = arith.constant 0.000000e+00 : f32
    %234 = vector.shape_cast %233 : vector<1x16xi1> to vector<1x16xi1>
    %235 = vector.broadcast %234 : vector<1x16xi1> to vector<2x16xi1>
    %236 = vector.broadcast %cst_111 : f32 to vector<2x16xf32>
    %237 = arith.select %235, %231, %236 : vector<2x16xi1>, vector<2x16xf32>
    %c19 = arith.constant 19 : index
    %c0_112 = arith.constant 0 : index
    %c0_113 = arith.constant 0 : index
    %238 = vector.load %arg2[%c19, %c0_112, %c0_113] : memref<25x2x2xbf16, #tpu.memory_space<vmem>>, vector<1x2x2xbf16>
    %239 = vector.shape_cast %238 : vector<1x2x2xbf16> to vector<2x2xbf16>
    %240 = arith.truncf %237 : vector<2x16xf32> to vector<2x16xbf16>
    %cst_114 = arith.constant dense<0.000000e+00> : vector<2x16xf32>
    %241 = tpu.matmul %239, %240, %cst_114 {dimension_numbers = #tpu.dot_dimension_numbers<[1], [0], [0], [1], [0, 0, 1, 1], [], []>} : vector<2x2xbf16>, vector<2x16xbf16>, vector<2x16xf32> -> vector<2x16xf32>
    %242 = arith.addf %230, %241 : vector<2x16xf32>
    %243 = vector.extract_strided_slice %1 {offsets = [0, 8], sizes = [2, 16], strides = [1, 1]} : vector<2x26xf32> to vector<2x16xf32>
    %c3_i32_115 = arith.constant 3 : i32
    %244 = vector.broadcast %c3_i32_115 : i32 to vector<1x16xi32>
    %245 = arith.cmpi slt, %8, %244 : vector<1x16xi32>
    %c1_i32_116 = arith.constant 1 : i32
    %246 = vector.broadcast %c1_i32_116 : i32 to vector<1x16xi32>
    %247 = arith.cmpi sge, %9, %246 : vector<1x16xi32>
    %248 = arith.andi %245, %247 : vector<1x16xi1>
    %cst_117 = arith.constant 0.000000e+00 : f32
    %249 = vector.shape_cast %248 : vector<1x16xi1> to vector<1x16xi1>
    %250 = vector.broadcast %249 : vector<1x16xi1> to vector<2x16xi1>
    %251 = vector.broadcast %cst_117 : f32 to vector<2x16xf32>
    %252 = arith.select %250, %243, %251 : vector<2x16xi1>, vector<2x16xf32>
    %c20 = arith.constant 20 : index
    %c0_118 = arith.constant 0 : index
    %c0_119 = arith.constant 0 : index
    %253 = vector.load %arg2[%c20, %c0_118, %c0_119] : memref<25x2x2xbf16, #tpu.memory_space<vmem>>, vector<1x2x2xbf16>
    %254 = vector.shape_cast %253 : vector<1x2x2xbf16> to vector<2x2xbf16>
    %255 = arith.truncf %252 : vector<2x16xf32> to vector<2x16xbf16>
    %cst_120 = arith.constant dense<0.000000e+00> : vector<2x16xf32>
    %256 = tpu.matmul %254, %255, %cst_120 {dimension_numbers = #tpu.dot_dimension_numbers<[1], [0], [0], [1], [0, 0, 1, 1], [], []>} : vector<2x2xbf16>, vector<2x16xbf16>, vector<2x16xf32> -> vector<2x16xf32>
    %257 = arith.addf %242, %256 : vector<2x16xf32>
    %258 = vector.extract_strided_slice %3 {offsets = [0, 8], sizes = [2, 16], strides = [1, 1]} : vector<2x26xf32> to vector<2x16xf32>
    %c3_i32_121 = arith.constant 3 : i32
    %259 = vector.broadcast %c3_i32_121 : i32 to vector<1x16xi32>
    %260 = arith.cmpi slt, %8, %259 : vector<1x16xi32>
    %c1_i32_122 = arith.constant 1 : i32
    %261 = vector.broadcast %c1_i32_122 : i32 to vector<1x16xi32>
    %262 = arith.cmpi sge, %9, %261 : vector<1x16xi32>
    %263 = arith.andi %260, %262 : vector<1x16xi1>
    %cst_123 = arith.constant 0.000000e+00 : f32
    %264 = vector.shape_cast %263 : vector<1x16xi1> to vector<1x16xi1>
    %265 = vector.broadcast %264 : vector<1x16xi1> to vector<2x16xi1>
    %266 = vector.broadcast %cst_123 : f32 to vector<2x16xf32>
    %267 = arith.select %265, %258, %266 : vector<2x16xi1>, vector<2x16xf32>
    %c21 = arith.constant 21 : index
    %c0_124 = arith.constant 0 : index
    %c0_125 = arith.constant 0 : index
    %268 = vector.load %arg2[%c21, %c0_124, %c0_125] : memref<25x2x2xbf16, #tpu.memory_space<vmem>>, vector<1x2x2xbf16>
    %269 = vector.shape_cast %268 : vector<1x2x2xbf16> to vector<2x2xbf16>
    %270 = arith.truncf %267 : vector<2x16xf32> to vector<2x16xbf16>
    %cst_126 = arith.constant dense<0.000000e+00> : vector<2x16xf32>
    %271 = tpu.matmul %269, %270, %cst_126 {dimension_numbers = #tpu.dot_dimension_numbers<[1], [0], [0], [1], [0, 0, 1, 1], [], []>} : vector<2x2xbf16>, vector<2x16xbf16>, vector<2x16xf32> -> vector<2x16xf32>
    %272 = arith.addf %257, %271 : vector<2x16xf32>
    %273 = vector.extract_strided_slice %1 {offsets = [0, 9], sizes = [2, 16], strides = [1, 1]} : vector<2x26xf32> to vector<2x16xf32>
    %c3_i32_127 = arith.constant 3 : i32
    %274 = vector.broadcast %c3_i32_127 : i32 to vector<1x16xi32>
    %275 = arith.cmpi slt, %8, %274 : vector<1x16xi32>
    %cst_128 = arith.constant 0.000000e+00 : f32
    %276 = vector.shape_cast %275 : vector<1x16xi1> to vector<1x16xi1>
    %277 = vector.broadcast %276 : vector<1x16xi1> to vector<2x16xi1>
    %278 = vector.broadcast %cst_128 : f32 to vector<2x16xf32>
    %279 = arith.select %277, %273, %278 : vector<2x16xi1>, vector<2x16xf32>
    %c22 = arith.constant 22 : index
    %c0_129 = arith.constant 0 : index
    %c0_130 = arith.constant 0 : index
    %280 = vector.load %arg2[%c22, %c0_129, %c0_130] : memref<25x2x2xbf16, #tpu.memory_space<vmem>>, vector<1x2x2xbf16>
    %281 = vector.shape_cast %280 : vector<1x2x2xbf16> to vector<2x2xbf16>
    %282 = arith.truncf %279 : vector<2x16xf32> to vector<2x16xbf16>
    %cst_131 = arith.constant dense<0.000000e+00> : vector<2x16xf32>
    %283 = tpu.matmul %281, %282, %cst_131 {dimension_numbers = #tpu.dot_dimension_numbers<[1], [0], [0], [1], [0, 0, 1, 1], [], []>} : vector<2x2xbf16>, vector<2x16xbf16>, vector<2x16xf32> -> vector<2x16xf32>
    %284 = arith.addf %272, %283 : vector<2x16xf32>
    %285 = vector.extract_strided_slice %3 {offsets = [0, 9], sizes = [2, 16], strides = [1, 1]} : vector<2x26xf32> to vector<2x16xf32>
    %c3_i32_132 = arith.constant 3 : i32
    %286 = vector.broadcast %c3_i32_132 : i32 to vector<1x16xi32>
    %287 = arith.cmpi slt, %8, %286 : vector<1x16xi32>
    %cst_133 = arith.constant 0.000000e+00 : f32
    %288 = vector.shape_cast %287 : vector<1x16xi1> to vector<1x16xi1>
    %289 = vector.broadcast %288 : vector<1x16xi1> to vector<2x16xi1>
    %290 = vector.broadcast %cst_133 : f32 to vector<2x16xf32>
    %291 = arith.select %289, %285, %290 : vector<2x16xi1>, vector<2x16xf32>
    %c23 = arith.constant 23 : index
    %c0_134 = arith.constant 0 : index
    %c0_135 = arith.constant 0 : index
    %292 = vector.load %arg2[%c23, %c0_134, %c0_135] : memref<25x2x2xbf16, #tpu.memory_space<vmem>>, vector<1x2x2xbf16>
    %293 = vector.shape_cast %292 : vector<1x2x2xbf16> to vector<2x2xbf16>
    %294 = arith.truncf %291 : vector<2x16xf32> to vector<2x16xbf16>
    %cst_136 = arith.constant dense<0.000000e+00> : vector<2x16xf32>
    %295 = tpu.matmul %293, %294, %cst_136 {dimension_numbers = #tpu.dot_dimension_numbers<[1], [0], [0], [1], [0, 0, 1, 1], [], []>} : vector<2x2xbf16>, vector<2x16xbf16>, vector<2x16xf32> -> vector<2x16xf32>
    %296 = arith.addf %284, %295 : vector<2x16xf32>
    %297 = vector.extract_strided_slice %1 {offsets = [0, 10], sizes = [2, 16], strides = [1, 1]} : vector<2x26xf32> to vector<2x16xf32>
    %c3_i32_137 = arith.constant 3 : i32
    %298 = vector.broadcast %c3_i32_137 : i32 to vector<1x16xi32>
    %299 = arith.cmpi slt, %8, %298 : vector<1x16xi32>
    %c3_i32_138 = arith.constant 3 : i32
    %300 = vector.broadcast %c3_i32_138 : i32 to vector<1x16xi32>
    %301 = arith.cmpi slt, %9, %300 : vector<1x16xi32>
    %302 = arith.andi %299, %301 : vector<1x16xi1>
    %cst_139 = arith.constant 0.000000e+00 : f32
    %303 = vector.shape_cast %302 : vector<1x16xi1> to vector<1x16xi1>
    %304 = vector.broadcast %303 : vector<1x16xi1> to vector<2x16xi1>
    %305 = vector.broadcast %cst_139 : f32 to vector<2x16xf32>
    %306 = arith.select %304, %297, %305 : vector<2x16xi1>, vector<2x16xf32>
    %c24 = arith.constant 24 : index
    %c0_140 = arith.constant 0 : index
    %c0_141 = arith.constant 0 : index
    %307 = vector.load %arg2[%c24, %c0_140, %c0_141] : memref<25x2x2xbf16, #tpu.memory_space<vmem>>, vector<1x2x2xbf16>
    %308 = vector.shape_cast %307 : vector<1x2x2xbf16> to vector<2x2xbf16>
    %309 = arith.truncf %306 : vector<2x16xf32> to vector<2x16xbf16>
    %cst_142 = arith.constant dense<0.000000e+00> : vector<2x16xf32>
    %310 = tpu.matmul %308, %309, %cst_142 {dimension_numbers = #tpu.dot_dimension_numbers<[1], [0], [0], [1], [0, 0, 1, 1], [], []>} : vector<2x2xbf16>, vector<2x16xbf16>, vector<2x16xf32> -> vector<2x16xf32>
    %311 = arith.addf %296, %310 : vector<2x16xf32>
    %c0_143 = arith.constant 0 : index
    %c0_144 = arith.constant 0 : index
    %312 = vector.load %arg3[%c0_143, %c0_144] : memref<2x1xf32, #tpu.memory_space<vmem>>, vector<2x1xf32>
    %313 = vector.broadcast %312 : vector<2x1xf32> to vector<2x16xf32>
    %314 = arith.addf %311, %313 : vector<2x16xf32>
    %cst_145 = arith.constant 0.000000e+00 : f32
    %315 = vector.broadcast %cst_145 : f32 to vector<2x16xf32>
    %316 = arith.maximumf %314, %315 : vector<2x16xf32>
    %c0_146 = arith.constant 0 : index
    %c0_147 = arith.constant 0 : index
    %c0_148 = arith.constant 0 : index
    %317 = vector.load %arg6[%c0_146, %c0_147, %c0_148] : memref<1x2x16xf32, #tpu.memory_space<vmem>>, vector<1x2x16xf32>
    %318 = vector.shape_cast %317 : vector<1x2x16xf32> to vector<2x16xf32>
    %319 = vector.shape_cast %316 : vector<2x16xf32> to vector<1x2x16xf32>
    tpu.vector_store %arg6[%c0_146, %c0_147, %c0_148], %319 {strides = array<i32>} : memref<1x2x16xf32, #tpu.memory_space<vmem>>, vector<1x2x16xf32>,
    return
  }
  func.func @transform_0(%arg0: i32) -> (i32, i32, i32, i32) {
    %c0_i32 = arith.constant 0 : i32
    %c0_i32_0 = arith.constant 0 : i32
    %c0_i32_1 = arith.constant 0 : i32
    %c0_i32_2 = arith.constant 0 : i32
    return %arg0, %c0_i32, %c0_i32_0, %c0_i32_1 : i32, i32, i32, i32
  }
  func.func @transform_1(%arg0: i32) -> (i32, i32, i32) {
    %c0_i32 = arith.constant 0 : i32
    %c0_i32_0 = arith.constant 0 : i32
    %c0_i32_1 = arith.constant 0 : i32
    %c0_i32_2 = arith.constant 0 : i32
    return %c0_i32, %c0_i32_0, %c0_i32_1 : i32, i32, i32
  }
  func.func @transform_2(%arg0: i32) -> (i32, i32) {
    %c0_i32 = arith.constant 0 : i32
    %c0_i32_0 = arith.constant 0 : i32
    %c0_i32_1 = arith.constant 0 : i32
    return %c0_i32, %c0_i32_0 : i32, i32
  }
  func.func @transform_3(%arg0: i32) -> (i32, i32) {
    %c0_i32 = arith.constant 0 : i32
    %c0_i32_0 = arith.constant 0 : i32
    %c0_i32_1 = arith.constant 0 : i32
    return %c0_i32, %c0_i32_0 : i32, i32
  }
  func.func @transform_4(%arg0: i32) -> (i32, i32) {
    %c0_i32 = arith.constant 0 : i32
    %c0_i32_0 = arith.constant 0 : i32
    %c0_i32_1 = arith.constant 0 : i32
    return %c0_i32, %c0_i32_0 : i32, i32
  }
  func.func @transform_5(%arg0: i32) -> (i32, i32, i32) {
    %c0_i32 = arith.constant 0 : i32
    %c0_i32_0 = arith.constant 0 : i32
    %c0_i32_1 = arith.constant 0 : i32
    return %arg0, %c0_i32, %c0_i32_0 : i32, i32, i32
  }
}

module attributes {stable_mosaic.version = 11 : i64} {
  func.func @_conv_bn_act_kernel(%arg0: i32, %arg1: memref<1x1x2x36xf32, #tpu.memory_space<vmem>>, %arg2: memref<25x8x2xbf16, #tpu.memory_space<vmem>>, %arg3: memref<8x1xf32, #tpu.memory_space<vmem>>, %arg4: memref<1x16xi32, #tpu.memory_space<vmem>>, %arg5: memref<1x16xi32, #tpu.memory_space<vmem>>, %arg6: memref<1x8x16xf32, #tpu.memory_space<vmem>>) attributes {dimension_semantics = [#tpu.dimension_semantics<parallel>], iteration_bounds = array<i64: 2>, scalar_prefetch = 0 : i64, scratch_operands = 0 : i64, tpu.core_type = #tpu.core_type<tc>, window_params = [{transform_indices = @transform_0, window_bounds = array<i64: 1, 1, 2, 36>}, {pipeline_mode = #tpu.pipeline_mode<synchronous>, transform_indices = @transform_1, window_bounds = array<i64: 25, 8, 2>}, {pipeline_mode = #tpu.pipeline_mode<synchronous>, transform_indices = @transform_2, window_bounds = array<i64: 8, 1>}, {pipeline_mode = #tpu.pipeline_mode<synchronous>, transform_indices = @transform_3, window_bounds = array<i64: 1, 16>}, {pipeline_mode = #tpu.pipeline_mode<synchronous>, transform_indices = @transform_4, window_bounds = array<i64: 1, 16>}, {transform_indices = @transform_5, window_bounds = array<i64: 1, 8, 16>}]} {
    %c0 = arith.constant 0 : index
    %c0_0 = arith.constant 0 : index
    %c0_1 = arith.constant 0 : index
    %c0_2 = arith.constant 0 : index
    %0 = vector.load %arg1[%c0, %c0_0, %c0_1, %c0_2] : memref<1x1x2x36xf32, #tpu.memory_space<vmem>>, vector<1x1x2x36xf32>
    %1 = vector.shape_cast %0 : vector<1x1x2x36xf32> to vector<2x36xf32>
    %c0_3 = arith.constant 0 : index
    %c0_4 = arith.constant 0 : index
    %2 = vector.load %arg4[%c0_3, %c0_4] : memref<1x16xi32, #tpu.memory_space<vmem>>, vector<1x16xi32>
    %c0_5 = arith.constant 0 : index
    %c0_6 = arith.constant 0 : index
    %3 = vector.load %arg5[%c0_5, %c0_6] : memref<1x16xi32, #tpu.memory_space<vmem>>, vector<1x16xi32>
    %4 = vector.extract_strided_slice %1 {offsets = [0, 0], sizes = [2, 16], strides = [1, 1]} : vector<2x36xf32> to vector<2x16xf32>
    %c2_i32 = arith.constant 2 : i32
    %5 = vector.broadcast %c2_i32 : i32 to vector<1x16xi32>
    %6 = arith.cmpi sge, %2, %5 : vector<1x16xi32>
    %c2_i32_7 = arith.constant 2 : i32
    %7 = vector.broadcast %c2_i32_7 : i32 to vector<1x16xi32>
    %8 = arith.cmpi sge, %3, %7 : vector<1x16xi32>
    %9 = arith.andi %6, %8 : vector<1x16xi1>
    %cst = arith.constant 0.000000e+00 : f32
    %10 = vector.shape_cast %9 : vector<1x16xi1> to vector<1x16xi1>
    %11 = vector.broadcast %10 : vector<1x16xi1> to vector<2x16xi1>
    %12 = vector.broadcast %cst : f32 to vector<2x16xf32>
    %13 = arith.select %11, %4, %12 : vector<2x16xi1>, vector<2x16xf32>
    %c0_8 = arith.constant 0 : index
    %c0_9 = arith.constant 0 : index
    %c0_10 = arith.constant 0 : index
    %14 = vector.load %arg2[%c0_8, %c0_9, %c0_10] : memref<25x8x2xbf16, #tpu.memory_space<vmem>>, vector<1x8x2xbf16>
    %15 = vector.shape_cast %14 : vector<1x8x2xbf16> to vector<8x2xbf16>
    %16 = arith.truncf %13 : vector<2x16xf32> to vector<2x16xbf16>
    %cst_11 = arith.constant dense<0.000000e+00> : vector<8x16xf32>
    %17 = tpu.matmul %15, %16, %cst_11 {dimension_numbers = #tpu.dot_dimension_numbers<[1], [0], [0], [1], [0, 0, 1, 1], [], []>} : vector<8x2xbf16>, vector<2x16xbf16>, vector<8x16xf32> -> vector<8x16xf32>
    %18 = vector.extract_strided_slice %1 {offsets = [0, 1], sizes = [2, 16], strides = [1, 1]} : vector<2x36xf32> to vector<2x16xf32>
    %c2_i32_12 = arith.constant 2 : i32
    %19 = vector.broadcast %c2_i32_12 : i32 to vector<1x16xi32>
    %20 = arith.cmpi sge, %2, %19 : vector<1x16xi32>
    %c1_i32 = arith.constant 1 : i32
    %21 = vector.broadcast %c1_i32 : i32 to vector<1x16xi32>
    %22 = arith.cmpi sge, %3, %21 : vector<1x16xi32>
    %23 = arith.andi %20, %22 : vector<1x16xi1>
    %cst_13 = arith.constant 0.000000e+00 : f32
    %24 = vector.shape_cast %23 : vector<1x16xi1> to vector<1x16xi1>
    %25 = vector.broadcast %24 : vector<1x16xi1> to vector<2x16xi1>
    %26 = vector.broadcast %cst_13 : f32 to vector<2x16xf32>
    %27 = arith.select %25, %18, %26 : vector<2x16xi1>, vector<2x16xf32>
    %c1 = arith.constant 1 : index
    %c0_14 = arith.constant 0 : index
    %c0_15 = arith.constant 0 : index
    %28 = vector.load %arg2[%c1, %c0_14, %c0_15] : memref<25x8x2xbf16, #tpu.memory_space<vmem>>, vector<1x8x2xbf16>
    %29 = vector.shape_cast %28 : vector<1x8x2xbf16> to vector<8x2xbf16>
    %30 = arith.truncf %27 : vector<2x16xf32> to vector<2x16xbf16>
    %cst_16 = arith.constant dense<0.000000e+00> : vector<8x16xf32>
    %31 = tpu.matmul %29, %30, %cst_16 {dimension_numbers = #tpu.dot_dimension_numbers<[1], [0], [0], [1], [0, 0, 1, 1], [], []>} : vector<8x2xbf16>, vector<2x16xbf16>, vector<8x16xf32> -> vector<8x16xf32>
    %32 = arith.addf %17, %31 : vector<8x16xf32>
    %33 = vector.extract_strided_slice %1 {offsets = [0, 2], sizes = [2, 16], strides = [1, 1]} : vector<2x36xf32> to vector<2x16xf32>
    %c2_i32_17 = arith.constant 2 : i32
    %34 = vector.broadcast %c2_i32_17 : i32 to vector<1x16xi32>
    %35 = arith.cmpi sge, %2, %34 : vector<1x16xi32>
    %cst_18 = arith.constant 0.000000e+00 : f32
    %36 = vector.shape_cast %35 : vector<1x16xi1> to vector<1x16xi1>
    %37 = vector.broadcast %36 : vector<1x16xi1> to vector<2x16xi1>
    %38 = vector.broadcast %cst_18 : f32 to vector<2x16xf32>
    %39 = arith.select %37, %33, %38 : vector<2x16xi1>, vector<2x16xf32>
    %c2 = arith.constant 2 : index
    %c0_19 = arith.constant 0 : index
    %c0_20 = arith.constant 0 : index
    %40 = vector.load %arg2[%c2, %c0_19, %c0_20] : memref<25x8x2xbf16, #tpu.memory_space<vmem>>, vector<1x8x2xbf16>
    %41 = vector.shape_cast %40 : vector<1x8x2xbf16> to vector<8x2xbf16>
    %42 = arith.truncf %39 : vector<2x16xf32> to vector<2x16xbf16>
    %cst_21 = arith.constant dense<0.000000e+00> : vector<8x16xf32>
    %43 = tpu.matmul %41, %42, %cst_21 {dimension_numbers = #tpu.dot_dimension_numbers<[1], [0], [0], [1], [0, 0, 1, 1], [], []>} : vector<8x2xbf16>, vector<2x16xbf16>, vector<8x16xf32> -> vector<8x16xf32>
    %44 = arith.addf %32, %43 : vector<8x16xf32>
    %45 = vector.extract_strided_slice %1 {offsets = [0, 3], sizes = [2, 16], strides = [1, 1]} : vector<2x36xf32> to vector<2x16xf32>
    %c2_i32_22 = arith.constant 2 : i32
    %46 = vector.broadcast %c2_i32_22 : i32 to vector<1x16xi32>
    %47 = arith.cmpi sge, %2, %46 : vector<1x16xi32>
    %c3_i32 = arith.constant 3 : i32
    %48 = vector.broadcast %c3_i32 : i32 to vector<1x16xi32>
    %49 = arith.cmpi slt, %3, %48 : vector<1x16xi32>
    %50 = arith.andi %47, %49 : vector<1x16xi1>
    %cst_23 = arith.constant 0.000000e+00 : f32
    %51 = vector.shape_cast %50 : vector<1x16xi1> to vector<1x16xi1>
    %52 = vector.broadcast %51 : vector<1x16xi1> to vector<2x16xi1>
    %53 = vector.broadcast %cst_23 : f32 to vector<2x16xf32>
    %54 = arith.select %52, %45, %53 : vector<2x16xi1>, vector<2x16xf32>
    %c3 = arith.constant 3 : index
    %c0_24 = arith.constant 0 : index
    %c0_25 = arith.constant 0 : index
    %55 = vector.load %arg2[%c3, %c0_24, %c0_25] : memref<25x8x2xbf16, #tpu.memory_space<vmem>>, vector<1x8x2xbf16>
    %56 = vector.shape_cast %55 : vector<1x8x2xbf16> to vector<8x2xbf16>
    %57 = arith.truncf %54 : vector<2x16xf32> to vector<2x16xbf16>
    %cst_26 = arith.constant dense<0.000000e+00> : vector<8x16xf32>
    %58 = tpu.matmul %56, %57, %cst_26 {dimension_numbers = #tpu.dot_dimension_numbers<[1], [0], [0], [1], [0, 0, 1, 1], [], []>} : vector<8x2xbf16>, vector<2x16xbf16>, vector<8x16xf32> -> vector<8x16xf32>
    %59 = arith.addf %44, %58 : vector<8x16xf32>
    %60 = vector.extract_strided_slice %1 {offsets = [0, 4], sizes = [2, 16], strides = [1, 1]} : vector<2x36xf32> to vector<2x16xf32>
    %c2_i32_27 = arith.constant 2 : i32
    %61 = vector.broadcast %c2_i32_27 : i32 to vector<1x16xi32>
    %62 = arith.cmpi sge, %2, %61 : vector<1x16xi32>
    %c2_i32_28 = arith.constant 2 : i32
    %63 = vector.broadcast %c2_i32_28 : i32 to vector<1x16xi32>
    %64 = arith.cmpi slt, %3, %63 : vector<1x16xi32>
    %65 = arith.andi %62, %64 : vector<1x16xi1>
    %cst_29 = arith.constant 0.000000e+00 : f32
    %66 = vector.shape_cast %65 : vector<1x16xi1> to vector<1x16xi1>
    %67 = vector.broadcast %66 : vector<1x16xi1> to vector<2x16xi1>
    %68 = vector.broadcast %cst_29 : f32 to vector<2x16xf32>
    %69 = arith.select %67, %60, %68 : vector<2x16xi1>, vector<2x16xf32>
    %c4 = arith.constant 4 : index
    %c0_30 = arith.constant 0 : index
    %c0_31 = arith.constant 0 : index
    %70 = vector.load %arg2[%c4, %c0_30, %c0_31] : memref<25x8x2xbf16, #tpu.memory_space<vmem>>, vector<1x8x2xbf16>
    %71 = vector.shape_cast %70 : vector<1x8x2xbf16> to vector<8x2xbf16>
    %72 = arith.truncf %69 : vector<2x16xf32> to vector<2x16xbf16>
    %cst_32 = arith.constant dense<0.000000e+00> : vector<8x16xf32>
    %73 = tpu.matmul %71, %72, %cst_32 {dimension_numbers = #tpu.dot_dimension_numbers<[1], [0], [0], [1], [0, 0, 1, 1], [], []>} : vector<8x2xbf16>, vector<2x16xbf16>, vector<8x16xf32> -> vector<8x16xf32>
    %74 = arith.addf %59, %73 : vector<8x16xf32>
    %75 = vector.extract_strided_slice %1 {offsets = [0, 4], sizes = [2, 16], strides = [1, 1]} : vector<2x36xf32> to vector<2x16xf32>
    %c1_i32_33 = arith.constant 1 : i32
    %76 = vector.broadcast %c1_i32_33 : i32 to vector<1x16xi32>
    %77 = arith.cmpi sge, %2, %76 : vector<1x16xi32>
    %c2_i32_34 = arith.constant 2 : i32
    %78 = vector.broadcast %c2_i32_34 : i32 to vector<1x16xi32>
    %79 = arith.cmpi sge, %3, %78 : vector<1x16xi32>
    %80 = arith.andi %77, %79 : vector<1x16xi1>
    %cst_35 = arith.constant 0.000000e+00 : f32
    %81 = vector.shape_cast %80 : vector<1x16xi1> to vector<1x16xi1>
    %82 = vector.broadcast %81 : vector<1x16xi1> to vector<2x16xi1>
    %83 = vector.broadcast %cst_35 : f32 to vector<2x16xf32>
    %84 = arith.select %82, %75, %83 : vector<2x16xi1>, vector<2x16xf32>
    %c5 = arith.constant 5 : index
    %c0_36 = arith.constant 0 : index
    %c0_37 = arith.constant 0 : index
    %85 = vector.load %arg2[%c5, %c0_36, %c0_37] : memref<25x8x2xbf16, #tpu.memory_space<vmem>>, vector<1x8x2xbf16>
    %86 = vector.shape_cast %85 : vector<1x8x2xbf16> to vector<8x2xbf16>
    %87 = arith.truncf %84 : vector<2x16xf32> to vector<2x16xbf16>
    %cst_38 = arith.constant dense<0.000000e+00> : vector<8x16xf32>
    %88 = tpu.matmul %86, %87, %cst_38 {dimension_numbers = #tpu.dot_dimension_numbers<[1], [0], [0], [1], [0, 0, 1, 1], [], []>} : vector<8x2xbf16>, vector<2x16xbf16>, vector<8x16xf32> -> vector<8x16xf32>
    %89 = arith.addf %74, %88 : vector<8x16xf32>
    %90 = vector.extract_strided_slice %1 {offsets = [0, 5], sizes = [2, 16], strides = [1, 1]} : vector<2x36xf32> to vector<2x16xf32>
    %c1_i32_39 = arith.constant 1 : i32
    %91 = vector.broadcast %c1_i32_39 : i32 to vector<1x16xi32>
    %92 = arith.cmpi sge, %2, %91 : vector<1x16xi32>
    %c1_i32_40 = arith.constant 1 : i32
    %93 = vector.broadcast %c1_i32_40 : i32 to vector<1x16xi32>
    %94 = arith.cmpi sge, %3, %93 : vector<1x16xi32>
    %95 = arith.andi %92, %94 : vector<1x16xi1>
    %cst_41 = arith.constant 0.000000e+00 : f32
    %96 = vector.shape_cast %95 : vector<1x16xi1> to vector<1x16xi1>
    %97 = vector.broadcast %96 : vector<1x16xi1> to vector<2x16xi1>
    %98 = vector.broadcast %cst_41 : f32 to vector<2x16xf32>
    %99 = arith.select %97, %90, %98 : vector<2x16xi1>, vector<2x16xf32>
    %c6 = arith.constant 6 : index
    %c0_42 = arith.constant 0 : index
    %c0_43 = arith.constant 0 : index
    %100 = vector.load %arg2[%c6, %c0_42, %c0_43] : memref<25x8x2xbf16, #tpu.memory_space<vmem>>, vector<1x8x2xbf16>
    %101 = vector.shape_cast %100 : vector<1x8x2xbf16> to vector<8x2xbf16>
    %102 = arith.truncf %99 : vector<2x16xf32> to vector<2x16xbf16>
    %cst_44 = arith.constant dense<0.000000e+00> : vector<8x16xf32>
    %103 = tpu.matmul %101, %102, %cst_44 {dimension_numbers = #tpu.dot_dimension_numbers<[1], [0], [0], [1], [0, 0, 1, 1], [], []>} : vector<8x2xbf16>, vector<2x16xbf16>, vector<8x16xf32> -> vector<8x16xf32>
    %104 = arith.addf %89, %103 : vector<8x16xf32>
    %105 = vector.extract_strided_slice %1 {offsets = [0, 6], sizes = [2, 16], strides = [1, 1]} : vector<2x36xf32> to vector<2x16xf32>
    %c1_i32_45 = arith.constant 1 : i32
    %106 = vector.broadcast %c1_i32_45 : i32 to vector<1x16xi32>
    %107 = arith.cmpi sge, %2, %106 : vector<1x16xi32>
    %cst_46 = arith.constant 0.000000e+00 : f32
    %108 = vector.shape_cast %107 : vector<1x16xi1> to vector<1x16xi1>
    %109 = vector.broadcast %108 : vector<1x16xi1> to vector<2x16xi1>
    %110 = vector.broadcast %cst_46 : f32 to vector<2x16xf32>
    %111 = arith.select %109, %105, %110 : vector<2x16xi1>, vector<2x16xf32>
    %c7 = arith.constant 7 : index
    %c0_47 = arith.constant 0 : index
    %c0_48 = arith.constant 0 : index
    %112 = vector.load %arg2[%c7, %c0_47, %c0_48] : memref<25x8x2xbf16, #tpu.memory_space<vmem>>, vector<1x8x2xbf16>
    %113 = vector.shape_cast %112 : vector<1x8x2xbf16> to vector<8x2xbf16>
    %114 = arith.truncf %111 : vector<2x16xf32> to vector<2x16xbf16>
    %cst_49 = arith.constant dense<0.000000e+00> : vector<8x16xf32>
    %115 = tpu.matmul %113, %114, %cst_49 {dimension_numbers = #tpu.dot_dimension_numbers<[1], [0], [0], [1], [0, 0, 1, 1], [], []>} : vector<8x2xbf16>, vector<2x16xbf16>, vector<8x16xf32> -> vector<8x16xf32>
    %116 = arith.addf %104, %115 : vector<8x16xf32>
    %117 = vector.extract_strided_slice %1 {offsets = [0, 7], sizes = [2, 16], strides = [1, 1]} : vector<2x36xf32> to vector<2x16xf32>
    %c1_i32_50 = arith.constant 1 : i32
    %118 = vector.broadcast %c1_i32_50 : i32 to vector<1x16xi32>
    %119 = arith.cmpi sge, %2, %118 : vector<1x16xi32>
    %c3_i32_51 = arith.constant 3 : i32
    %120 = vector.broadcast %c3_i32_51 : i32 to vector<1x16xi32>
    %121 = arith.cmpi slt, %3, %120 : vector<1x16xi32>
    %122 = arith.andi %119, %121 : vector<1x16xi1>
    %cst_52 = arith.constant 0.000000e+00 : f32
    %123 = vector.shape_cast %122 : vector<1x16xi1> to vector<1x16xi1>
    %124 = vector.broadcast %123 : vector<1x16xi1> to vector<2x16xi1>
    %125 = vector.broadcast %cst_52 : f32 to vector<2x16xf32>
    %126 = arith.select %124, %117, %125 : vector<2x16xi1>, vector<2x16xf32>
    %c8 = arith.constant 8 : index
    %c0_53 = arith.constant 0 : index
    %c0_54 = arith.constant 0 : index
    %127 = vector.load %arg2[%c8, %c0_53, %c0_54] : memref<25x8x2xbf16, #tpu.memory_space<vmem>>, vector<1x8x2xbf16>
    %128 = vector.shape_cast %127 : vector<1x8x2xbf16> to vector<8x2xbf16>
    %129 = arith.truncf %126 : vector<2x16xf32> to vector<2x16xbf16>
    %cst_55 = arith.constant dense<0.000000e+00> : vector<8x16xf32>
    %130 = tpu.matmul %128, %129, %cst_55 {dimension_numbers = #tpu.dot_dimension_numbers<[1], [0], [0], [1], [0, 0, 1, 1], [], []>} : vector<8x2xbf16>, vector<2x16xbf16>, vector<8x16xf32> -> vector<8x16xf32>
    %131 = arith.addf %116, %130 : vector<8x16xf32>
    %132 = vector.extract_strided_slice %1 {offsets = [0, 8], sizes = [2, 16], strides = [1, 1]} : vector<2x36xf32> to vector<2x16xf32>
    %c1_i32_56 = arith.constant 1 : i32
    %133 = vector.broadcast %c1_i32_56 : i32 to vector<1x16xi32>
    %134 = arith.cmpi sge, %2, %133 : vector<1x16xi32>
    %c2_i32_57 = arith.constant 2 : i32
    %135 = vector.broadcast %c2_i32_57 : i32 to vector<1x16xi32>
    %136 = arith.cmpi slt, %3, %135 : vector<1x16xi32>
    %137 = arith.andi %134, %136 : vector<1x16xi1>
    %cst_58 = arith.constant 0.000000e+00 : f32
    %138 = vector.shape_cast %137 : vector<1x16xi1> to vector<1x16xi1>
    %139 = vector.broadcast %138 : vector<1x16xi1> to vector<2x16xi1>
    %140 = vector.broadcast %cst_58 : f32 to vector<2x16xf32>
    %141 = arith.select %139, %132, %140 : vector<2x16xi1>, vector<2x16xf32>
    %c9 = arith.constant 9 : index
    %c0_59 = arith.constant 0 : index
    %c0_60 = arith.constant 0 : index
    %142 = vector.load %arg2[%c9, %c0_59, %c0_60] : memref<25x8x2xbf16, #tpu.memory_space<vmem>>, vector<1x8x2xbf16>
    %143 = vector.shape_cast %142 : vector<1x8x2xbf16> to vector<8x2xbf16>
    %144 = arith.truncf %141 : vector<2x16xf32> to vector<2x16xbf16>
    %cst_61 = arith.constant dense<0.000000e+00> : vector<8x16xf32>
    %145 = tpu.matmul %143, %144, %cst_61 {dimension_numbers = #tpu.dot_dimension_numbers<[1], [0], [0], [1], [0, 0, 1, 1], [], []>} : vector<8x2xbf16>, vector<2x16xbf16>, vector<8x16xf32> -> vector<8x16xf32>
    %146 = arith.addf %131, %145 : vector<8x16xf32>
    %147 = vector.extract_strided_slice %1 {offsets = [0, 8], sizes = [2, 16], strides = [1, 1]} : vector<2x36xf32> to vector<2x16xf32>
    %c2_i32_62 = arith.constant 2 : i32
    %148 = vector.broadcast %c2_i32_62 : i32 to vector<1x16xi32>
    %149 = arith.cmpi sge, %3, %148 : vector<1x16xi32>
    %cst_63 = arith.constant 0.000000e+00 : f32
    %150 = vector.shape_cast %149 : vector<1x16xi1> to vector<1x16xi1>
    %151 = vector.broadcast %150 : vector<1x16xi1> to vector<2x16xi1>
    %152 = vector.broadcast %cst_63 : f32 to vector<2x16xf32>
    %153 = arith.select %151, %147, %152 : vector<2x16xi1>, vector<2x16xf32>
    %c10 = arith.constant 10 : index
    %c0_64 = arith.constant 0 : index
    %c0_65 = arith.constant 0 : index
    %154 = vector.load %arg2[%c10, %c0_64, %c0_65] : memref<25x8x2xbf16, #tpu.memory_space<vmem>>, vector<1x8x2xbf16>
    %155 = vector.shape_cast %154 : vector<1x8x2xbf16> to vector<8x2xbf16>
    %156 = arith.truncf %153 : vector<2x16xf32> to vector<2x16xbf16>
    %cst_66 = arith.constant dense<0.000000e+00> : vector<8x16xf32>
    %157 = tpu.matmul %155, %156, %cst_66 {dimension_numbers = #tpu.dot_dimension_numbers<[1], [0], [0], [1], [0, 0, 1, 1], [], []>} : vector<8x2xbf16>, vector<2x16xbf16>, vector<8x16xf32> -> vector<8x16xf32>
    %158 = arith.addf %146, %157 : vector<8x16xf32>
    %159 = vector.extract_strided_slice %1 {offsets = [0, 9], sizes = [2, 16], strides = [1, 1]} : vector<2x36xf32> to vector<2x16xf32>
    %c1_i32_67 = arith.constant 1 : i32
    %160 = vector.broadcast %c1_i32_67 : i32 to vector<1x16xi32>
    %161 = arith.cmpi sge, %3, %160 : vector<1x16xi32>
    %cst_68 = arith.constant 0.000000e+00 : f32
    %162 = vector.shape_cast %161 : vector<1x16xi1> to vector<1x16xi1>
    %163 = vector.broadcast %162 : vector<1x16xi1> to vector<2x16xi1>
    %164 = vector.broadcast %cst_68 : f32 to vector<2x16xf32>
    %165 = arith.select %163, %159, %164 : vector<2x16xi1>, vector<2x16xf32>
    %c11 = arith.constant 11 : index
    %c0_69 = arith.constant 0 : index
    %c0_70 = arith.constant 0 : index
    %166 = vector.load %arg2[%c11, %c0_69, %c0_70] : memref<25x8x2xbf16, #tpu.memory_space<vmem>>, vector<1x8x2xbf16>
    %167 = vector.shape_cast %166 : vector<1x8x2xbf16> to vector<8x2xbf16>
    %168 = arith.truncf %165 : vector<2x16xf32> to vector<2x16xbf16>
    %cst_71 = arith.constant dense<0.000000e+00> : vector<8x16xf32>
    %169 = tpu.matmul %167, %168, %cst_71 {dimension_numbers = #tpu.dot_dimension_numbers<[1], [0], [0], [1], [0, 0, 1, 1], [], []>} : vector<8x2xbf16>, vector<2x16xbf16>, vector<8x16xf32> -> vector<8x16xf32>
    %170 = arith.addf %158, %169 : vector<8x16xf32>
    %171 = vector.extract_strided_slice %1 {offsets = [0, 10], sizes = [2, 16], strides = [1, 1]} : vector<2x36xf32> to vector<2x16xf32>
    %c12 = arith.constant 12 : index
    %c0_72 = arith.constant 0 : index
    %c0_73 = arith.constant 0 : index
    %172 = vector.load %arg2[%c12, %c0_72, %c0_73] : memref<25x8x2xbf16, #tpu.memory_space<vmem>>, vector<1x8x2xbf16>
    %173 = vector.shape_cast %172 : vector<1x8x2xbf16> to vector<8x2xbf16>
    %174 = arith.truncf %171 : vector<2x16xf32> to vector<2x16xbf16>
    %cst_74 = arith.constant dense<0.000000e+00> : vector<8x16xf32>
    %175 = tpu.matmul %173, %174, %cst_74 {dimension_numbers = #tpu.dot_dimension_numbers<[1], [0], [0], [1], [0, 0, 1, 1], [], []>} : vector<8x2xbf16>, vector<2x16xbf16>, vector<8x16xf32> -> vector<8x16xf32>
    %176 = arith.addf %170, %175 : vector<8x16xf32>
    %177 = vector.extract_strided_slice %1 {offsets = [0, 11], sizes = [2, 16], strides = [1, 1]} : vector<2x36xf32> to vector<2x16xf32>
    %c3_i32_75 = arith.constant 3 : i32
    %178 = vector.broadcast %c3_i32_75 : i32 to vector<1x16xi32>
    %179 = arith.cmpi slt, %3, %178 : vector<1x16xi32>
    %cst_76 = arith.constant 0.000000e+00 : f32
    %180 = vector.shape_cast %179 : vector<1x16xi1> to vector<1x16xi1>
    %181 = vector.broadcast %180 : vector<1x16xi1> to vector<2x16xi1>
    %182 = vector.broadcast %cst_76 : f32 to vector<2x16xf32>
    %183 = arith.select %181, %177, %182 : vector<2x16xi1>, vector<2x16xf32>
    %c13 = arith.constant 13 : index
    %c0_77 = arith.constant 0 : index
    %c0_78 = arith.constant 0 : index
    %184 = vector.load %arg2[%c13, %c0_77, %c0_78] : memref<25x8x2xbf16, #tpu.memory_space<vmem>>, vector<1x8x2xbf16>
    %185 = vector.shape_cast %184 : vector<1x8x2xbf16> to vector<8x2xbf16>
    %186 = arith.truncf %183 : vector<2x16xf32> to vector<2x16xbf16>
    %cst_79 = arith.constant dense<0.000000e+00> : vector<8x16xf32>
    %187 = tpu.matmul %185, %186, %cst_79 {dimension_numbers = #tpu.dot_dimension_numbers<[1], [0], [0], [1], [0, 0, 1, 1], [], []>} : vector<8x2xbf16>, vector<2x16xbf16>, vector<8x16xf32> -> vector<8x16xf32>
    %188 = arith.addf %176, %187 : vector<8x16xf32>
    %189 = vector.extract_strided_slice %1 {offsets = [0, 12], sizes = [2, 16], strides = [1, 1]} : vector<2x36xf32> to vector<2x16xf32>
    %c2_i32_80 = arith.constant 2 : i32
    %190 = vector.broadcast %c2_i32_80 : i32 to vector<1x16xi32>
    %191 = arith.cmpi slt, %3, %190 : vector<1x16xi32>
    %cst_81 = arith.constant 0.000000e+00 : f32
    %192 = vector.shape_cast %191 : vector<1x16xi1> to vector<1x16xi1>
    %193 = vector.broadcast %192 : vector<1x16xi1> to vector<2x16xi1>
    %194 = vector.broadcast %cst_81 : f32 to vector<2x16xf32>
    %195 = arith.select %193, %189, %194 : vector<2x16xi1>, vector<2x16xf32>
    %c14 = arith.constant 14 : index
    %c0_82 = arith.constant 0 : index
    %c0_83 = arith.constant 0 : index
    %196 = vector.load %arg2[%c14, %c0_82, %c0_83] : memref<25x8x2xbf16, #tpu.memory_space<vmem>>, vector<1x8x2xbf16>
    %197 = vector.shape_cast %196 : vector<1x8x2xbf16> to vector<8x2xbf16>
    %198 = arith.truncf %195 : vector<2x16xf32> to vector<2x16xbf16>
    %cst_84 = arith.constant dense<0.000000e+00> : vector<8x16xf32>
    %199 = tpu.matmul %197, %198, %cst_84 {dimension_numbers = #tpu.dot_dimension_numbers<[1], [0], [0], [1], [0, 0, 1, 1], [], []>} : vector<8x2xbf16>, vector<2x16xbf16>, vector<8x16xf32> -> vector<8x16xf32>
    %200 = arith.addf %188, %199 : vector<8x16xf32>
    %201 = vector.extract_strided_slice %1 {offsets = [0, 12], sizes = [2, 16], strides = [1, 1]} : vector<2x36xf32> to vector<2x16xf32>
    %c3_i32_85 = arith.constant 3 : i32
    %202 = vector.broadcast %c3_i32_85 : i32 to vector<1x16xi32>
    %203 = arith.cmpi slt, %2, %202 : vector<1x16xi32>
    %c2_i32_86 = arith.constant 2 : i32
    %204 = vector.broadcast %c2_i32_86 : i32 to vector<1x16xi32>
    %205 = arith.cmpi sge, %3, %204 : vector<1x16xi32>
    %206 = arith.andi %203, %205 : vector<1x16xi1>
    %cst_87 = arith.constant 0.000000e+00 : f32
    %207 = vector.shape_cast %206 : vector<1x16xi1> to vector<1x16xi1>
    %208 = vector.broadcast %207 : vector<1x16xi1> to vector<2x16xi1>
    %209 = vector.broadcast %cst_87 : f32 to vector<2x16xf32>
    %210 = arith.select %208, %201, %209 : vector<2x16xi1>, vector<2x16xf32>
    %c15 = arith.constant 15 : index
    %c0_88 = arith.constant 0 : index
    %c0_89 = arith.constant 0 : index
    %211 = vector.load %arg2[%c15, %c0_88, %c0_89] : memref<25x8x2xbf16, #tpu.memory_space<vmem>>, vector<1x8x2xbf16>
    %212 = vector.shape_cast %211 : vector<1x8x2xbf16> to vector<8x2xbf16>
    %213 = arith.truncf %210 : vector<2x16xf32> to vector<2x16xbf16>
    %cst_90 = arith.constant dense<0.000000e+00> : vector<8x16xf32>
    %214 = tpu.matmul %212, %213, %cst_90 {dimension_numbers = #tpu.dot_dimension_numbers<[1], [0], [0], [1], [0, 0, 1, 1], [], []>} : vector<8x2xbf16>, vector<2x16xbf16>, vector<8x16xf32> -> vector<8x16xf32>
    %215 = arith.addf %200, %214 : vector<8x16xf32>
    %216 = vector.extract_strided_slice %1 {offsets = [0, 13], sizes = [2, 16], strides = [1, 1]} : vector<2x36xf32> to vector<2x16xf32>
    %c3_i32_91 = arith.constant 3 : i32
    %217 = vector.broadcast %c3_i32_91 : i32 to vector<1x16xi32>
    %218 = arith.cmpi slt, %2, %217 : vector<1x16xi32>
    %c1_i32_92 = arith.constant 1 : i32
    %219 = vector.broadcast %c1_i32_92 : i32 to vector<1x16xi32>
    %220 = arith.cmpi sge, %3, %219 : vector<1x16xi32>
    %221 = arith.andi %218, %220 : vector<1x16xi1>
    %cst_93 = arith.constant 0.000000e+00 : f32
    %222 = vector.shape_cast %221 : vector<1x16xi1> to vector<1x16xi1>
    %223 = vector.broadcast %222 : vector<1x16xi1> to vector<2x16xi1>
    %224 = vector.broadcast %cst_93 : f32 to vector<2x16xf32>
    %225 = arith.select %223, %216, %224 : vector<2x16xi1>, vector<2x16xf32>
    %c16 = arith.constant 16 : index
    %c0_94 = arith.constant 0 : index
    %c0_95 = arith.constant 0 : index
    %226 = vector.load %arg2[%c16, %c0_94, %c0_95] : memref<25x8x2xbf16, #tpu.memory_space<vmem>>, vector<1x8x2xbf16>
    %227 = vector.shape_cast %226 : vector<1x8x2xbf16> to vector<8x2xbf16>
    %228 = arith.truncf %225 : vector<2x16xf32> to vector<2x16xbf16>
    %cst_96 = arith.constant dense<0.000000e+00> : vector<8x16xf32>
    %229 = tpu.matmul %227, %228, %cst_96 {dimension_numbers = #tpu.dot_dimension_numbers<[1], [0], [0], [1], [0, 0, 1, 1], [], []>} : vector<8x2xbf16>, vector<2x16xbf16>, vector<8x16xf32> -> vector<8x16xf32>
    %230 = arith.addf %215, %229 : vector<8x16xf32>
    %231 = vector.extract_strided_slice %1 {offsets = [0, 14], sizes = [2, 16], strides = [1, 1]} : vector<2x36xf32> to vector<2x16xf32>
    %c3_i32_97 = arith.constant 3 : i32
    %232 = vector.broadcast %c3_i32_97 : i32 to vector<1x16xi32>
    %233 = arith.cmpi slt, %2, %232 : vector<1x16xi32>
    %cst_98 = arith.constant 0.000000e+00 : f32
    %234 = vector.shape_cast %233 : vector<1x16xi1> to vector<1x16xi1>
    %235 = vector.broadcast %234 : vector<1x16xi1> to vector<2x16xi1>
    %236 = vector.broadcast %cst_98 : f32 to vector<2x16xf32>
    %237 = arith.select %235, %231, %236 : vector<2x16xi1>, vector<2x16xf32>
    %c17 = arith.constant 17 : index
    %c0_99 = arith.constant 0 : index
    %c0_100 = arith.constant 0 : index
    %238 = vector.load %arg2[%c17, %c0_99, %c0_100] : memref<25x8x2xbf16, #tpu.memory_space<vmem>>, vector<1x8x2xbf16>
    %239 = vector.shape_cast %238 : vector<1x8x2xbf16> to vector<8x2xbf16>
    %240 = arith.truncf %237 : vector<2x16xf32> to vector<2x16xbf16>
    %cst_101 = arith.constant dense<0.000000e+00> : vector<8x16xf32>
    %241 = tpu.matmul %239, %240, %cst_101 {dimension_numbers = #tpu.dot_dimension_numbers<[1], [0], [0], [1], [0, 0, 1, 1], [], []>} : vector<8x2xbf16>, vector<2x16xbf16>, vector<8x16xf32> -> vector<8x16xf32>
    %242 = arith.addf %230, %241 : vector<8x16xf32>
    %243 = vector.extract_strided_slice %1 {offsets = [0, 15], sizes = [2, 16], strides = [1, 1]} : vector<2x36xf32> to vector<2x16xf32>
    %c3_i32_102 = arith.constant 3 : i32
    %244 = vector.broadcast %c3_i32_102 : i32 to vector<1x16xi32>
    %245 = arith.cmpi slt, %2, %244 : vector<1x16xi32>
    %c3_i32_103 = arith.constant 3 : i32
    %246 = vector.broadcast %c3_i32_103 : i32 to vector<1x16xi32>
    %247 = arith.cmpi slt, %3, %246 : vector<1x16xi32>
    %248 = arith.andi %245, %247 : vector<1x16xi1>
    %cst_104 = arith.constant 0.000000e+00 : f32
    %249 = vector.shape_cast %248 : vector<1x16xi1> to vector<1x16xi1>
    %250 = vector.broadcast %249 : vector<1x16xi1> to vector<2x16xi1>
    %251 = vector.broadcast %cst_104 : f32 to vector<2x16xf32>
    %252 = arith.select %250, %243, %251 : vector<2x16xi1>, vector<2x16xf32>
    %c18 = arith.constant 18 : index
    %c0_105 = arith.constant 0 : index
    %c0_106 = arith.constant 0 : index
    %253 = vector.load %arg2[%c18, %c0_105, %c0_106] : memref<25x8x2xbf16, #tpu.memory_space<vmem>>, vector<1x8x2xbf16>
    %254 = vector.shape_cast %253 : vector<1x8x2xbf16> to vector<8x2xbf16>
    %255 = arith.truncf %252 : vector<2x16xf32> to vector<2x16xbf16>
    %cst_107 = arith.constant dense<0.000000e+00> : vector<8x16xf32>
    %256 = tpu.matmul %254, %255, %cst_107 {dimension_numbers = #tpu.dot_dimension_numbers<[1], [0], [0], [1], [0, 0, 1, 1], [], []>} : vector<8x2xbf16>, vector<2x16xbf16>, vector<8x16xf32> -> vector<8x16xf32>
    %257 = arith.addf %242, %256 : vector<8x16xf32>
    %258 = vector.extract_strided_slice %1 {offsets = [0, 16], sizes = [2, 16], strides = [1, 1]} : vector<2x36xf32> to vector<2x16xf32>
    %c3_i32_108 = arith.constant 3 : i32
    %259 = vector.broadcast %c3_i32_108 : i32 to vector<1x16xi32>
    %260 = arith.cmpi slt, %2, %259 : vector<1x16xi32>
    %c2_i32_109 = arith.constant 2 : i32
    %261 = vector.broadcast %c2_i32_109 : i32 to vector<1x16xi32>
    %262 = arith.cmpi slt, %3, %261 : vector<1x16xi32>
    %263 = arith.andi %260, %262 : vector<1x16xi1>
    %cst_110 = arith.constant 0.000000e+00 : f32
    %264 = vector.shape_cast %263 : vector<1x16xi1> to vector<1x16xi1>
    %265 = vector.broadcast %264 : vector<1x16xi1> to vector<2x16xi1>
    %266 = vector.broadcast %cst_110 : f32 to vector<2x16xf32>
    %267 = arith.select %265, %258, %266 : vector<2x16xi1>, vector<2x16xf32>
    %c19 = arith.constant 19 : index
    %c0_111 = arith.constant 0 : index
    %c0_112 = arith.constant 0 : index
    %268 = vector.load %arg2[%c19, %c0_111, %c0_112] : memref<25x8x2xbf16, #tpu.memory_space<vmem>>, vector<1x8x2xbf16>
    %269 = vector.shape_cast %268 : vector<1x8x2xbf16> to vector<8x2xbf16>
    %270 = arith.truncf %267 : vector<2x16xf32> to vector<2x16xbf16>
    %cst_113 = arith.constant dense<0.000000e+00> : vector<8x16xf32>
    %271 = tpu.matmul %269, %270, %cst_113 {dimension_numbers = #tpu.dot_dimension_numbers<[1], [0], [0], [1], [0, 0, 1, 1], [], []>} : vector<8x2xbf16>, vector<2x16xbf16>, vector<8x16xf32> -> vector<8x16xf32>
    %272 = arith.addf %257, %271 : vector<8x16xf32>
    %273 = vector.extract_strided_slice %1 {offsets = [0, 16], sizes = [2, 16], strides = [1, 1]} : vector<2x36xf32> to vector<2x16xf32>
    %c2_i32_114 = arith.constant 2 : i32
    %274 = vector.broadcast %c2_i32_114 : i32 to vector<1x16xi32>
    %275 = arith.cmpi slt, %2, %274 : vector<1x16xi32>
    %c2_i32_115 = arith.constant 2 : i32
    %276 = vector.broadcast %c2_i32_115 : i32 to vector<1x16xi32>
    %277 = arith.cmpi sge, %3, %276 : vector<1x16xi32>
    %278 = arith.andi %275, %277 : vector<1x16xi1>
    %cst_116 = arith.constant 0.000000e+00 : f32
    %279 = vector.shape_cast %278 : vector<1x16xi1> to vector<1x16xi1>
    %280 = vector.broadcast %279 : vector<1x16xi1> to vector<2x16xi1>
    %281 = vector.broadcast %cst_116 : f32 to vector<2x16xf32>
    %282 = arith.select %280, %273, %281 : vector<2x16xi1>, vector<2x16xf32>
    %c20 = arith.constant 20 : index
    %c0_117 = arith.constant 0 : index
    %c0_118 = arith.constant 0 : index
    %283 = vector.load %arg2[%c20, %c0_117, %c0_118] : memref<25x8x2xbf16, #tpu.memory_space<vmem>>, vector<1x8x2xbf16>
    %284 = vector.shape_cast %283 : vector<1x8x2xbf16> to vector<8x2xbf16>
    %285 = arith.truncf %282 : vector<2x16xf32> to vector<2x16xbf16>
    %cst_119 = arith.constant dense<0.000000e+00> : vector<8x16xf32>
    %286 = tpu.matmul %284, %285, %cst_119 {dimension_numbers = #tpu.dot_dimension_numbers<[1], [0], [0], [1], [0, 0, 1, 1], [], []>} : vector<8x2xbf16>, vector<2x16xbf16>, vector<8x16xf32> -> vector<8x16xf32>
    %287 = arith.addf %272, %286 : vector<8x16xf32>
    %288 = vector.extract_strided_slice %1 {offsets = [0, 17], sizes = [2, 16], strides = [1, 1]} : vector<2x36xf32> to vector<2x16xf32>
    %c2_i32_120 = arith.constant 2 : i32
    %289 = vector.broadcast %c2_i32_120 : i32 to vector<1x16xi32>
    %290 = arith.cmpi slt, %2, %289 : vector<1x16xi32>
    %c1_i32_121 = arith.constant 1 : i32
    %291 = vector.broadcast %c1_i32_121 : i32 to vector<1x16xi32>
    %292 = arith.cmpi sge, %3, %291 : vector<1x16xi32>
    %293 = arith.andi %290, %292 : vector<1x16xi1>
    %cst_122 = arith.constant 0.000000e+00 : f32
    %294 = vector.shape_cast %293 : vector<1x16xi1> to vector<1x16xi1>
    %295 = vector.broadcast %294 : vector<1x16xi1> to vector<2x16xi1>
    %296 = vector.broadcast %cst_122 : f32 to vector<2x16xf32>
    %297 = arith.select %295, %288, %296 : vector<2x16xi1>, vector<2x16xf32>
    %c21 = arith.constant 21 : index
    %c0_123 = arith.constant 0 : index
    %c0_124 = arith.constant 0 : index
    %298 = vector.load %arg2[%c21, %c0_123, %c0_124] : memref<25x8x2xbf16, #tpu.memory_space<vmem>>, vector<1x8x2xbf16>
    %299 = vector.shape_cast %298 : vector<1x8x2xbf16> to vector<8x2xbf16>
    %300 = arith.truncf %297 : vector<2x16xf32> to vector<2x16xbf16>
    %cst_125 = arith.constant dense<0.000000e+00> : vector<8x16xf32>
    %301 = tpu.matmul %299, %300, %cst_125 {dimension_numbers = #tpu.dot_dimension_numbers<[1], [0], [0], [1], [0, 0, 1, 1], [], []>} : vector<8x2xbf16>, vector<2x16xbf16>, vector<8x16xf32> -> vector<8x16xf32>
    %302 = arith.addf %287, %301 : vector<8x16xf32>
    %303 = vector.extract_strided_slice %1 {offsets = [0, 18], sizes = [2, 16], strides = [1, 1]} : vector<2x36xf32> to vector<2x16xf32>
    %c2_i32_126 = arith.constant 2 : i32
    %304 = vector.broadcast %c2_i32_126 : i32 to vector<1x16xi32>
    %305 = arith.cmpi slt, %2, %304 : vector<1x16xi32>
    %cst_127 = arith.constant 0.000000e+00 : f32
    %306 = vector.shape_cast %305 : vector<1x16xi1> to vector<1x16xi1>
    %307 = vector.broadcast %306 : vector<1x16xi1> to vector<2x16xi1>
    %308 = vector.broadcast %cst_127 : f32 to vector<2x16xf32>
    %309 = arith.select %307, %303, %308 : vector<2x16xi1>, vector<2x16xf32>
    %c22 = arith.constant 22 : index
    %c0_128 = arith.constant 0 : index
    %c0_129 = arith.constant 0 : index
    %310 = vector.load %arg2[%c22, %c0_128, %c0_129] : memref<25x8x2xbf16, #tpu.memory_space<vmem>>, vector<1x8x2xbf16>
    %311 = vector.shape_cast %310 : vector<1x8x2xbf16> to vector<8x2xbf16>
    %312 = arith.truncf %309 : vector<2x16xf32> to vector<2x16xbf16>
    %cst_130 = arith.constant dense<0.000000e+00> : vector<8x16xf32>
    %313 = tpu.matmul %311, %312, %cst_130 {dimension_numbers = #tpu.dot_dimension_numbers<[1], [0], [0], [1], [0, 0, 1, 1], [], []>} : vector<8x2xbf16>, vector<2x16xbf16>, vector<8x16xf32> -> vector<8x16xf32>
    %314 = arith.addf %302, %313 : vector<8x16xf32>
    %315 = vector.extract_strided_slice %1 {offsets = [0, 19], sizes = [2, 16], strides = [1, 1]} : vector<2x36xf32> to vector<2x16xf32>
    %c2_i32_131 = arith.constant 2 : i32
    %316 = vector.broadcast %c2_i32_131 : i32 to vector<1x16xi32>
    %317 = arith.cmpi slt, %2, %316 : vector<1x16xi32>
    %c3_i32_132 = arith.constant 3 : i32
    %318 = vector.broadcast %c3_i32_132 : i32 to vector<1x16xi32>
    %319 = arith.cmpi slt, %3, %318 : vector<1x16xi32>
    %320 = arith.andi %317, %319 : vector<1x16xi1>
    %cst_133 = arith.constant 0.000000e+00 : f32
    %321 = vector.shape_cast %320 : vector<1x16xi1> to vector<1x16xi1>
    %322 = vector.broadcast %321 : vector<1x16xi1> to vector<2x16xi1>
    %323 = vector.broadcast %cst_133 : f32 to vector<2x16xf32>
    %324 = arith.select %322, %315, %323 : vector<2x16xi1>, vector<2x16xf32>
    %c23 = arith.constant 23 : index
    %c0_134 = arith.constant 0 : index
    %c0_135 = arith.constant 0 : index
    %325 = vector.load %arg2[%c23, %c0_134, %c0_135] : memref<25x8x2xbf16, #tpu.memory_space<vmem>>, vector<1x8x2xbf16>
    %326 = vector.shape_cast %325 : vector<1x8x2xbf16> to vector<8x2xbf16>
    %327 = arith.truncf %324 : vector<2x16xf32> to vector<2x16xbf16>
    %cst_136 = arith.constant dense<0.000000e+00> : vector<8x16xf32>
    %328 = tpu.matmul %326, %327, %cst_136 {dimension_numbers = #tpu.dot_dimension_numbers<[1], [0], [0], [1], [0, 0, 1, 1], [], []>} : vector<8x2xbf16>, vector<2x16xbf16>, vector<8x16xf32> -> vector<8x16xf32>
    %329 = arith.addf %314, %328 : vector<8x16xf32>
    %330 = vector.extract_strided_slice %1 {offsets = [0, 20], sizes = [2, 16], strides = [1, 1]} : vector<2x36xf32> to vector<2x16xf32>
    %c2_i32_137 = arith.constant 2 : i32
    %331 = vector.broadcast %c2_i32_137 : i32 to vector<1x16xi32>
    %332 = arith.cmpi slt, %2, %331 : vector<1x16xi32>
    %c2_i32_138 = arith.constant 2 : i32
    %333 = vector.broadcast %c2_i32_138 : i32 to vector<1x16xi32>
    %334 = arith.cmpi slt, %3, %333 : vector<1x16xi32>
    %335 = arith.andi %332, %334 : vector<1x16xi1>
    %cst_139 = arith.constant 0.000000e+00 : f32
    %336 = vector.shape_cast %335 : vector<1x16xi1> to vector<1x16xi1>
    %337 = vector.broadcast %336 : vector<1x16xi1> to vector<2x16xi1>
    %338 = vector.broadcast %cst_139 : f32 to vector<2x16xf32>
    %339 = arith.select %337, %330, %338 : vector<2x16xi1>, vector<2x16xf32>
    %c24 = arith.constant 24 : index
    %c0_140 = arith.constant 0 : index
    %c0_141 = arith.constant 0 : index
    %340 = vector.load %arg2[%c24, %c0_140, %c0_141] : memref<25x8x2xbf16, #tpu.memory_space<vmem>>, vector<1x8x2xbf16>
    %341 = vector.shape_cast %340 : vector<1x8x2xbf16> to vector<8x2xbf16>
    %342 = arith.truncf %339 : vector<2x16xf32> to vector<2x16xbf16>
    %cst_142 = arith.constant dense<0.000000e+00> : vector<8x16xf32>
    %343 = tpu.matmul %341, %342, %cst_142 {dimension_numbers = #tpu.dot_dimension_numbers<[1], [0], [0], [1], [0, 0, 1, 1], [], []>} : vector<8x2xbf16>, vector<2x16xbf16>, vector<8x16xf32> -> vector<8x16xf32>
    %344 = arith.addf %329, %343 : vector<8x16xf32>
    %c0_143 = arith.constant 0 : index
    %c0_144 = arith.constant 0 : index
    %345 = vector.load %arg3[%c0_143, %c0_144] : memref<8x1xf32, #tpu.memory_space<vmem>>, vector<8x1xf32>
    %346 = vector.broadcast %345 : vector<8x1xf32> to vector<8x16xf32>
    %347 = arith.addf %344, %346 : vector<8x16xf32>
    %cst_145 = arith.constant 0.000000e+00 : f32
    %348 = vector.broadcast %cst_145 : f32 to vector<8x16xf32>
    %349 = arith.maximumf %347, %348 : vector<8x16xf32>
    %c0_146 = arith.constant 0 : index
    %c0_147 = arith.constant 0 : index
    %c0_148 = arith.constant 0 : index
    %350 = vector.load %arg6[%c0_146, %c0_147, %c0_148] : memref<1x8x16xf32, #tpu.memory_space<vmem>>, vector<1x8x16xf32>
    %351 = vector.shape_cast %350 : vector<1x8x16xf32> to vector<8x16xf32>
    %352 = vector.shape_cast %349 : vector<8x16xf32> to vector<1x8x16xf32>
    tpu.vector_store %arg6[%c0_146, %c0_147, %c0_148], %352 {strides = array<i32>} : memref<1x8x16xf32, #tpu.memory_space<vmem>>, vector<1x8x16xf32>,
    return
  }
  func.func @transform_0(%arg0: i32) -> (i32, i32, i32, i32) {
    %c0_i32 = arith.constant 0 : i32
    %c0_i32_0 = arith.constant 0 : i32
    %c0_i32_1 = arith.constant 0 : i32
    %c0_i32_2 = arith.constant 0 : i32
    return %arg0, %c0_i32, %c0_i32_0, %c0_i32_1 : i32, i32, i32, i32
  }
  func.func @transform_1(%arg0: i32) -> (i32, i32, i32) {
    %c0_i32 = arith.constant 0 : i32
    %c0_i32_0 = arith.constant 0 : i32
    %c0_i32_1 = arith.constant 0 : i32
    %c0_i32_2 = arith.constant 0 : i32
    return %c0_i32, %c0_i32_0, %c0_i32_1 : i32, i32, i32
  }
  func.func @transform_2(%arg0: i32) -> (i32, i32) {
    %c0_i32 = arith.constant 0 : i32
    %c0_i32_0 = arith.constant 0 : i32
    %c0_i32_1 = arith.constant 0 : i32
    return %c0_i32, %c0_i32_0 : i32, i32
  }
  func.func @transform_3(%arg0: i32) -> (i32, i32) {
    %c0_i32 = arith.constant 0 : i32
    %c0_i32_0 = arith.constant 0 : i32
    %c0_i32_1 = arith.constant 0 : i32
    return %c0_i32, %c0_i32_0 : i32, i32
  }
  func.func @transform_4(%arg0: i32) -> (i32, i32) {
    %c0_i32 = arith.constant 0 : i32
    %c0_i32_0 = arith.constant 0 : i32
    %c0_i32_1 = arith.constant 0 : i32
    return %c0_i32, %c0_i32_0 : i32, i32
  }
  func.func @transform_5(%arg0: i32) -> (i32, i32, i32) {
    %c0_i32 = arith.constant 0 : i32
    %c0_i32_0 = arith.constant 0 : i32
    %c0_i32_1 = arith.constant 0 : i32
    return %arg0, %c0_i32, %c0_i32_0 : i32, i32, i32
  }
}

module attributes {stable_mosaic.version = 11 : i64} {
  func.func @_rows_matmul_kernel(%arg0: i32, %arg1: memref<8x4xbf16, #tpu.memory_space<vmem>>, %arg2: memref<4x64xf32, #tpu.memory_space<vmem>>, %arg3: memref<8x64xf32, #tpu.memory_space<vmem>>) attributes {dimension_semantics = [#tpu.dimension_semantics<parallel>], iteration_bounds = array<i64: 1>, scalar_prefetch = 0 : i64, scratch_operands = 0 : i64, tpu.core_type = #tpu.core_type<tc>, window_params = [{pipeline_mode = #tpu.pipeline_mode<synchronous>, transform_indices = @transform_0, window_bounds = array<i64: 8, 4>}, {transform_indices = @transform_1, window_bounds = array<i64: 4, 64>}, {transform_indices = @transform_2, window_bounds = array<i64: 8, 64>}]} {
    %c0 = arith.constant 0 : index
    %c0_0 = arith.constant 0 : index
    %0 = vector.load %arg1[%c0, %c0_0] : memref<8x4xbf16, #tpu.memory_space<vmem>>, vector<8x4xbf16>
    %c0_1 = arith.constant 0 : index
    %c0_2 = arith.constant 0 : index
    %1 = vector.load %arg2[%c0_1, %c0_2] : memref<4x64xf32, #tpu.memory_space<vmem>>, vector<4x64xf32>
    %2 = arith.truncf %1 : vector<4x64xf32> to vector<4x64xbf16>
    %cst = arith.constant dense<0.000000e+00> : vector<8x64xf32>
    %3 = tpu.matmul %0, %2, %cst {dimension_numbers = #tpu.dot_dimension_numbers<[1], [0], [0], [1], [0, 0, 1, 1], [], []>} : vector<8x4xbf16>, vector<4x64xbf16>, vector<8x64xf32> -> vector<8x64xf32>
    %c0_3 = arith.constant 0 : index
    %c0_4 = arith.constant 0 : index
    %4 = vector.load %arg3[%c0_3, %c0_4] : memref<8x64xf32, #tpu.memory_space<vmem>>, vector<8x64xf32>
    tpu.vector_store %arg3[%c0_3, %c0_4], %3 {strides = array<i32>} : memref<8x64xf32, #tpu.memory_space<vmem>>, vector<8x64xf32>,
    return
  }
  func.func @transform_0(%arg0: i32) -> (i32, i32) {
    %c0_i32 = arith.constant 0 : i32
    %c0_i32_0 = arith.constant 0 : i32
    %c0_i32_1 = arith.constant 0 : i32
    return %c0_i32, %c0_i32_0 : i32, i32
  }
  func.func @transform_1(%arg0: i32) -> (i32, i32) {
    %c0_i32 = arith.constant 0 : i32
    %c0_i32_0 = arith.constant 0 : i32
    return %c0_i32, %arg0 : i32, i32
  }
  func.func @transform_2(%arg0: i32) -> (i32, i32) {
    %c0_i32 = arith.constant 0 : i32
    %c0_i32_0 = arith.constant 0 : i32
    return %c0_i32, %arg0 : i32, i32
  }
}

module attributes {stable_mosaic.version = 11 : i64} {
  func.func @_merge_wup_kernel(%arg0: i32, %arg1: memref<8x4xbf16, #tpu.memory_space<vmem>>, %arg2: memref<4x128xf32, #tpu.memory_space<vmem>>, %arg3: memref<8x128xf32, #tpu.memory_space<vmem>>, %arg4: memref<16x8xbf16, #tpu.memory_space<vmem>>, %arg5: memref<16x128xf32, #tpu.memory_space<vmem>>) attributes {dimension_semantics = [#tpu.dimension_semantics<parallel>], iteration_bounds = array<i64: 1>, scalar_prefetch = 0 : i64, scratch_operands = 0 : i64, tpu.core_type = #tpu.core_type<tc>, window_params = [{pipeline_mode = #tpu.pipeline_mode<synchronous>, transform_indices = @transform_0, window_bounds = array<i64: 8, 4>}, {transform_indices = @transform_1, window_bounds = array<i64: 4, 128>}, {transform_indices = @transform_2, window_bounds = array<i64: 8, 128>}, {pipeline_mode = #tpu.pipeline_mode<synchronous>, transform_indices = @transform_3, window_bounds = array<i64: 16, 8>}, {transform_indices = @transform_4, window_bounds = array<i64: 16, 128>}]} {
    %c0 = arith.constant 0 : index
    %c0_0 = arith.constant 0 : index
    %0 = vector.load %arg1[%c0, %c0_0] : memref<8x4xbf16, #tpu.memory_space<vmem>>, vector<8x4xbf16>
    %c0_1 = arith.constant 0 : index
    %c0_2 = arith.constant 0 : index
    %1 = vector.load %arg2[%c0_1, %c0_2] : memref<4x128xf32, #tpu.memory_space<vmem>>, vector<4x128xf32>
    %2 = arith.truncf %1 : vector<4x128xf32> to vector<4x128xbf16>
    %cst = arith.constant dense<0.000000e+00> : vector<8x128xf32>
    %3 = tpu.matmul %0, %2, %cst {dimension_numbers = #tpu.dot_dimension_numbers<[1], [0], [0], [1], [0, 0, 1, 1], [], []>} : vector<8x4xbf16>, vector<4x128xbf16>, vector<8x128xf32> -> vector<8x128xf32>
    %c0_3 = arith.constant 0 : index
    %c0_4 = arith.constant 0 : index
    %4 = vector.load %arg3[%c0_3, %c0_4] : memref<8x128xf32, #tpu.memory_space<vmem>>, vector<8x128xf32>
    %5 = arith.addf %3, %4 : vector<8x128xf32>
    %c0_5 = arith.constant 0 : index
    %c0_6 = arith.constant 0 : index
    %6 = vector.load %arg4[%c0_5, %c0_6] : memref<16x8xbf16, #tpu.memory_space<vmem>>, vector<16x8xbf16>
    %7 = arith.truncf %5 : vector<8x128xf32> to vector<8x128xbf16>
    %cst_7 = arith.constant dense<0.000000e+00> : vector<16x128xf32>
    %8 = tpu.matmul %6, %7, %cst_7 {dimension_numbers = #tpu.dot_dimension_numbers<[1], [0], [0], [1], [0, 0, 1, 1], [], []>} : vector<16x8xbf16>, vector<8x128xbf16>, vector<16x128xf32> -> vector<16x128xf32>
    %c0_8 = arith.constant 0 : index
    %c0_9 = arith.constant 0 : index
    %9 = vector.load %arg5[%c0_8, %c0_9] : memref<16x128xf32, #tpu.memory_space<vmem>>, vector<16x128xf32>
    tpu.vector_store %arg5[%c0_8, %c0_9], %8 {strides = array<i32>} : memref<16x128xf32, #tpu.memory_space<vmem>>, vector<16x128xf32>,
    return
  }
  func.func @transform_0(%arg0: i32) -> (i32, i32) {
    %c0_i32 = arith.constant 0 : i32
    %c0_i32_0 = arith.constant 0 : i32
    %c0_i32_1 = arith.constant 0 : i32
    return %c0_i32, %c0_i32_0 : i32, i32
  }
  func.func @transform_1(%arg0: i32) -> (i32, i32) {
    %c0_i32 = arith.constant 0 : i32
    %c0_i32_0 = arith.constant 0 : i32
    return %c0_i32, %arg0 : i32, i32
  }
  func.func @transform_2(%arg0: i32) -> (i32, i32) {
    %c0_i32 = arith.constant 0 : i32
    %c0_i32_0 = arith.constant 0 : i32
    return %c0_i32, %arg0 : i32, i32
  }
  func.func @transform_3(%arg0: i32) -> (i32, i32) {
    %c0_i32 = arith.constant 0 : i32
    %c0_i32_0 = arith.constant 0 : i32
    %c0_i32_1 = arith.constant 0 : i32
    return %c0_i32, %c0_i32_0 : i32, i32
  }
  func.func @transform_4(%arg0: i32) -> (i32, i32) {
    %c0_i32 = arith.constant 0 : i32
    %c0_i32_0 = arith.constant 0 : i32
    return %c0_i32, %arg0 : i32, i32
  }
}

module attributes {stable_mosaic.version = 11 : i64} {
  func.func @_conv_bn_act_kernel(%arg0: i32, %arg1: memref<1x1x2x118xf32, #tpu.memory_space<vmem>>, %arg2: memref<49x8x2xbf16, #tpu.memory_space<vmem>>, %arg3: memref<8x1xf32, #tpu.memory_space<vmem>>, %arg4: memref<1x64xi32, #tpu.memory_space<vmem>>, %arg5: memref<1x64xi32, #tpu.memory_space<vmem>>, %arg6: memref<1x8x64xf32, #tpu.memory_space<vmem>>) attributes {dimension_semantics = [#tpu.dimension_semantics<parallel>], iteration_bounds = array<i64: 2>, scalar_prefetch = 0 : i64, scratch_operands = 0 : i64, tpu.core_type = #tpu.core_type<tc>, window_params = [{transform_indices = @transform_0, window_bounds = array<i64: 1, 1, 2, 118>}, {pipeline_mode = #tpu.pipeline_mode<synchronous>, transform_indices = @transform_1, window_bounds = array<i64: 49, 8, 2>}, {pipeline_mode = #tpu.pipeline_mode<synchronous>, transform_indices = @transform_2, window_bounds = array<i64: 8, 1>}, {pipeline_mode = #tpu.pipeline_mode<synchronous>, transform_indices = @transform_3, window_bounds = array<i64: 1, 64>}, {pipeline_mode = #tpu.pipeline_mode<synchronous>, transform_indices = @transform_4, window_bounds = array<i64: 1, 64>}, {transform_indices = @transform_5, window_bounds = array<i64: 1, 8, 64>}]} {
    %c0 = arith.constant 0 : index
    %c0_0 = arith.constant 0 : index
    %c0_1 = arith.constant 0 : index
    %c0_2 = arith.constant 0 : index
    %0 = vector.load %arg1[%c0, %c0_0, %c0_1, %c0_2] : memref<1x1x2x118xf32, #tpu.memory_space<vmem>>, vector<1x1x2x118xf32>
    %1 = vector.shape_cast %0 : vector<1x1x2x118xf32> to vector<2x118xf32>
    %c0_3 = arith.constant 0 : index
    %c0_4 = arith.constant 0 : index
    %2 = vector.load %arg4[%c0_3, %c0_4] : memref<1x64xi32, #tpu.memory_space<vmem>>, vector<1x64xi32>
    %c0_5 = arith.constant 0 : index
    %c0_6 = arith.constant 0 : index
    %3 = vector.load %arg5[%c0_5, %c0_6] : memref<1x64xi32, #tpu.memory_space<vmem>>, vector<1x64xi32>
    %4 = vector.extract_strided_slice %1 {offsets = [0, 0], sizes = [2, 64], strides = [1, 1]} : vector<2x118xf32> to vector<2x64xf32>
    %c3_i32 = arith.constant 3 : i32
    %5 = vector.broadcast %c3_i32 : i32 to vector<1x64xi32>
    %6 = arith.cmpi sge, %2, %5 : vector<1x64xi32>
    %c3_i32_7 = arith.constant 3 : i32
    %7 = vector.broadcast %c3_i32_7 : i32 to vector<1x64xi32>
    %8 = arith.cmpi sge, %3, %7 : vector<1x64xi32>
    %9 = arith.andi %6, %8 : vector<1x64xi1>
    %cst = arith.constant 0.000000e+00 : f32
    %10 = vector.shape_cast %9 : vector<1x64xi1> to vector<1x64xi1>
    %11 = vector.broadcast %10 : vector<1x64xi1> to vector<2x64xi1>
    %12 = vector.broadcast %cst : f32 to vector<2x64xf32>
    %13 = arith.select %11, %4, %12 : vector<2x64xi1>, vector<2x64xf32>
    %c0_8 = arith.constant 0 : index
    %c0_9 = arith.constant 0 : index
    %c0_10 = arith.constant 0 : index
    %14 = vector.load %arg2[%c0_8, %c0_9, %c0_10] : memref<49x8x2xbf16, #tpu.memory_space<vmem>>, vector<1x8x2xbf16>
    %15 = vector.shape_cast %14 : vector<1x8x2xbf16> to vector<8x2xbf16>
    %16 = arith.truncf %13 : vector<2x64xf32> to vector<2x64xbf16>
    %cst_11 = arith.constant dense<0.000000e+00> : vector<8x64xf32>
    %17 = tpu.matmul %15, %16, %cst_11 {dimension_numbers = #tpu.dot_dimension_numbers<[1], [0], [0], [1], [0, 0, 1, 1], [], []>} : vector<8x2xbf16>, vector<2x64xbf16>, vector<8x64xf32> -> vector<8x64xf32>
    %18 = vector.extract_strided_slice %1 {offsets = [0, 1], sizes = [2, 64], strides = [1, 1]} : vector<2x118xf32> to vector<2x64xf32>
    %c3_i32_12 = arith.constant 3 : i32
    %19 = vector.broadcast %c3_i32_12 : i32 to vector<1x64xi32>
    %20 = arith.cmpi sge, %2, %19 : vector<1x64xi32>
    %c2_i32 = arith.constant 2 : i32
    %21 = vector.broadcast %c2_i32 : i32 to vector<1x64xi32>
    %22 = arith.cmpi sge, %3, %21 : vector<1x64xi32>
    %23 = arith.andi %20, %22 : vector<1x64xi1>
    %cst_13 = arith.constant 0.000000e+00 : f32
    %24 = vector.shape_cast %23 : vector<1x64xi1> to vector<1x64xi1>
    %25 = vector.broadcast %24 : vector<1x64xi1> to vector<2x64xi1>
    %26 = vector.broadcast %cst_13 : f32 to vector<2x64xf32>
    %27 = arith.select %25, %18, %26 : vector<2x64xi1>, vector<2x64xf32>
    %c1 = arith.constant 1 : index
    %c0_14 = arith.constant 0 : index
    %c0_15 = arith.constant 0 : index
    %28 = vector.load %arg2[%c1, %c0_14, %c0_15] : memref<49x8x2xbf16, #tpu.memory_space<vmem>>, vector<1x8x2xbf16>
    %29 = vector.shape_cast %28 : vector<1x8x2xbf16> to vector<8x2xbf16>
    %30 = arith.truncf %27 : vector<2x64xf32> to vector<2x64xbf16>
    %cst_16 = arith.constant dense<0.000000e+00> : vector<8x64xf32>
    %31 = tpu.matmul %29, %30, %cst_16 {dimension_numbers = #tpu.dot_dimension_numbers<[1], [0], [0], [1], [0, 0, 1, 1], [], []>} : vector<8x2xbf16>, vector<2x64xbf16>, vector<8x64xf32> -> vector<8x64xf32>
    %32 = arith.addf %17, %31 : vector<8x64xf32>
    %33 = vector.extract_strided_slice %1 {offsets = [0, 2], sizes = [2, 64], strides = [1, 1]} : vector<2x118xf32> to vector<2x64xf32>
    %c3_i32_17 = arith.constant 3 : i32
    %34 = vector.broadcast %c3_i32_17 : i32 to vector<1x64xi32>
    %35 = arith.cmpi sge, %2, %34 : vector<1x64xi32>
    %c1_i32 = arith.constant 1 : i32
    %36 = vector.broadcast %c1_i32 : i32 to vector<1x64xi32>
    %37 = arith.cmpi sge, %3, %36 : vector<1x64xi32>
    %38 = arith.andi %35, %37 : vector<1x64xi1>
    %cst_18 = arith.constant 0.000000e+00 : f32
    %39 = vector.shape_cast %38 : vector<1x64xi1> to vector<1x64xi1>
    %40 = vector.broadcast %39 : vector<1x64xi1> to vector<2x64xi1>
    %41 = vector.broadcast %cst_18 : f32 to vector<2x64xf32>
    %42 = arith.select %40, %33, %41 : vector<2x64xi1>, vector<2x64xf32>
    %c2 = arith.constant 2 : index
    %c0_19 = arith.constant 0 : index
    %c0_20 = arith.constant 0 : index
    %43 = vector.load %arg2[%c2, %c0_19, %c0_20] : memref<49x8x2xbf16, #tpu.memory_space<vmem>>, vector<1x8x2xbf16>
    %44 = vector.shape_cast %43 : vector<1x8x2xbf16> to vector<8x2xbf16>
    %45 = arith.truncf %42 : vector<2x64xf32> to vector<2x64xbf16>
    %cst_21 = arith.constant dense<0.000000e+00> : vector<8x64xf32>
    %46 = tpu.matmul %44, %45, %cst_21 {dimension_numbers = #tpu.dot_dimension_numbers<[1], [0], [0], [1], [0, 0, 1, 1], [], []>} : vector<8x2xbf16>, vector<2x64xbf16>, vector<8x64xf32> -> vector<8x64xf32>
    %47 = arith.addf %32, %46 : vector<8x64xf32>
    %48 = vector.extract_strided_slice %1 {offsets = [0, 3], sizes = [2, 64], strides = [1, 1]} : vector<2x118xf32> to vector<2x64xf32>
    %c3_i32_22 = arith.constant 3 : i32
    %49 = vector.broadcast %c3_i32_22 : i32 to vector<1x64xi32>
    %50 = arith.cmpi sge, %2, %49 : vector<1x64xi32>
    %cst_23 = arith.constant 0.000000e+00 : f32
    %51 = vector.shape_cast %50 : vector<1x64xi1> to vector<1x64xi1>
    %52 = vector.broadcast %51 : vector<1x64xi1> to vector<2x64xi1>
    %53 = vector.broadcast %cst_23 : f32 to vector<2x64xf32>
    %54 = arith.select %52, %48, %53 : vector<2x64xi1>, vector<2x64xf32>
    %c3 = arith.constant 3 : index
    %c0_24 = arith.constant 0 : index
    %c0_25 = arith.constant 0 : index
    %55 = vector.load %arg2[%c3, %c0_24, %c0_25] : memref<49x8x2xbf16, #tpu.memory_space<vmem>>, vector<1x8x2xbf16>
    %56 = vector.shape_cast %55 : vector<1x8x2xbf16> to vector<8x2xbf16>
    %57 = arith.truncf %54 : vector<2x64xf32> to vector<2x64xbf16>
    %cst_26 = arith.constant dense<0.000000e+00> : vector<8x64xf32>
    %58 = tpu.matmul %56, %57, %cst_26 {dimension_numbers = #tpu.dot_dimension_numbers<[1], [0], [0], [1], [0, 0, 1, 1], [], []>} : vector<8x2xbf16>, vector<2x64xbf16>, vector<8x64xf32> -> vector<8x64xf32>
    %59 = arith.addf %47, %58 : vector<8x64xf32>
    %60 = vector.extract_strided_slice %1 {offsets = [0, 4], sizes = [2, 64], strides = [1, 1]} : vector<2x118xf32> to vector<2x64xf32>
    %c3_i32_27 = arith.constant 3 : i32
    %61 = vector.broadcast %c3_i32_27 : i32 to vector<1x64xi32>
    %62 = arith.cmpi sge, %2, %61 : vector<1x64xi32>
    %c7_i32 = arith.constant 7 : i32
    %63 = vector.broadcast %c7_i32 : i32 to vector<1x64xi32>
    %64 = arith.cmpi slt, %3, %63 : vector<1x64xi32>
    %65 = arith.andi %62, %64 : vector<1x64xi1>
    %cst_28 = arith.constant 0.000000e+00 : f32
    %66 = vector.shape_cast %65 : vector<1x64xi1> to vector<1x64xi1>
    %67 = vector.broadcast %66 : vector<1x64xi1> to vector<2x64xi1>
    %68 = vector.broadcast %cst_28 : f32 to vector<2x64xf32>
    %69 = arith.select %67, %60, %68 : vector<2x64xi1>, vector<2x64xf32>
    %c4 = arith.constant 4 : index
    %c0_29 = arith.constant 0 : index
    %c0_30 = arith.constant 0 : index
    %70 = vector.load %arg2[%c4, %c0_29, %c0_30] : memref<49x8x2xbf16, #tpu.memory_space<vmem>>, vector<1x8x2xbf16>
    %71 = vector.shape_cast %70 : vector<1x8x2xbf16> to vector<8x2xbf16>
    %72 = arith.truncf %69 : vector<2x64xf32> to vector<2x64xbf16>
    %cst_31 = arith.constant dense<0.000000e+00> : vector<8x64xf32>
    %73 = tpu.matmul %71, %72, %cst_31 {dimension_numbers = #tpu.dot_dimension_numbers<[1], [0], [0], [1], [0, 0, 1, 1], [], []>} : vector<8x2xbf16>, vector<2x64xbf16>, vector<8x64xf32> -> vector<8x64xf32>
    %74 = arith.addf %59, %73 : vector<8x64xf32>
    %75 = vector.extract_strided_slice %1 {offsets = [0, 5], sizes = [2, 64], strides = [1, 1]} : vector<2x118xf32> to vector<2x64xf32>
    %c3_i32_32 = arith.constant 3 : i32
    %76 = vector.broadcast %c3_i32_32 : i32 to vector<1x64xi32>
    %77 = arith.cmpi sge, %2, %76 : vector<1x64xi32>
    %c6_i32 = arith.constant 6 : i32
    %78 = vector.broadcast %c6_i32 : i32 to vector<1x64xi32>
    %79 = arith.cmpi slt, %3, %78 : vector<1x64xi32>
    %80 = arith.andi %77, %79 : vector<1x64xi1>
    %cst_33 = arith.constant 0.000000e+00 : f32
    %81 = vector.shape_cast %80 : vector<1x64xi1> to vector<1x64xi1>
    %82 = vector.broadcast %81 : vector<1x64xi1> to vector<2x64xi1>
    %83 = vector.broadcast %cst_33 : f32 to vector<2x64xf32>
    %84 = arith.select %82, %75, %83 : vector<2x64xi1>, vector<2x64xf32>
    %c5 = arith.constant 5 : index
    %c0_34 = arith.constant 0 : index
    %c0_35 = arith.constant 0 : index
    %85 = vector.load %arg2[%c5, %c0_34, %c0_35] : memref<49x8x2xbf16, #tpu.memory_space<vmem>>, vector<1x8x2xbf16>
    %86 = vector.shape_cast %85 : vector<1x8x2xbf16> to vector<8x2xbf16>
    %87 = arith.truncf %84 : vector<2x64xf32> to vector<2x64xbf16>
    %cst_36 = arith.constant dense<0.000000e+00> : vector<8x64xf32>
    %88 = tpu.matmul %86, %87, %cst_36 {dimension_numbers = #tpu.dot_dimension_numbers<[1], [0], [0], [1], [0, 0, 1, 1], [], []>} : vector<8x2xbf16>, vector<2x64xbf16>, vector<8x64xf32> -> vector<8x64xf32>
    %89 = arith.addf %74, %88 : vector<8x64xf32>
    %90 = vector.extract_strided_slice %1 {offsets = [0, 6], sizes = [2, 64], strides = [1, 1]} : vector<2x118xf32> to vector<2x64xf32>
    %c3_i32_37 = arith.constant 3 : i32
    %91 = vector.broadcast %c3_i32_37 : i32 to vector<1x64xi32>
    %92 = arith.cmpi sge, %2, %91 : vector<1x64xi32>
    %c5_i32 = arith.constant 5 : i32
    %93 = vector.broadcast %c5_i32 : i32 to vector<1x64xi32>
    %94 = arith.cmpi slt, %3, %93 : vector<1x64xi32>
    %95 = arith.andi %92, %94 : vector<1x64xi1>
    %cst_38 = arith.constant 0.000000e+00 : f32
    %96 = vector.shape_cast %95 : vector<1x64xi1> to vector<1x64xi1>
    %97 = vector.broadcast %96 : vector<1x64xi1> to vector<2x64xi1>
    %98 = vector.broadcast %cst_38 : f32 to vector<2x64xf32>
    %99 = arith.select %97, %90, %98 : vector<2x64xi1>, vector<2x64xf32>
    %c6 = arith.constant 6 : index
    %c0_39 = arith.constant 0 : index
    %c0_40 = arith.constant 0 : index
    %100 = vector.load %arg2[%c6, %c0_39, %c0_40] : memref<49x8x2xbf16, #tpu.memory_space<vmem>>, vector<1x8x2xbf16>
    %101 = vector.shape_cast %100 : vector<1x8x2xbf16> to vector<8x2xbf16>
    %102 = arith.truncf %99 : vector<2x64xf32> to vector<2x64xbf16>
    %cst_41 = arith.constant dense<0.000000e+00> : vector<8x64xf32>
    %103 = tpu.matmul %101, %102, %cst_41 {dimension_numbers = #tpu.dot_dimension_numbers<[1], [0], [0], [1], [0, 0, 1, 1], [], []>} : vector<8x2xbf16>, vector<2x64xbf16>, vector<8x64xf32> -> vector<8x64xf32>
    %104 = arith.addf %89, %103 : vector<8x64xf32>
    %105 = vector.extract_strided_slice %1 {offsets = [0, 8], sizes = [2, 64], strides = [1, 1]} : vector<2x118xf32> to vector<2x64xf32>
    %c2_i32_42 = arith.constant 2 : i32
    %106 = vector.broadcast %c2_i32_42 : i32 to vector<1x64xi32>
    %107 = arith.cmpi sge, %2, %106 : vector<1x64xi32>
    %c3_i32_43 = arith.constant 3 : i32
    %108 = vector.broadcast %c3_i32_43 : i32 to vector<1x64xi32>
    %109 = arith.cmpi sge, %3, %108 : vector<1x64xi32>
    %110 = arith.andi %107, %109 : vector<1x64xi1>
    %cst_44 = arith.constant 0.000000e+00 : f32
    %111 = vector.shape_cast %110 : vector<1x64xi1> to vector<1x64xi1>
    %112 = vector.broadcast %111 : vector<1x64xi1> to vector<2x64xi1>
    %113 = vector.broadcast %cst_44 : f32 to vector<2x64xf32>
    %114 = arith.select %112, %105, %113 : vector<2x64xi1>, vector<2x64xf32>
    %c7 = arith.constant 7 : index
    %c0_45 = arith.constant 0 : index
    %c0_46 = arith.constant 0 : index
    %115 = vector.load %arg2[%c7, %c0_45, %c0_46] : memref<49x8x2xbf16, #tpu.memory_space<vmem>>, vector<1x8x2xbf16>
    %116 = vector.shape_cast %115 : vector<1x8x2xbf16> to vector<8x2xbf16>
    %117 = arith.truncf %114 : vector<2x64xf32> to vector<2x64xbf16>
    %cst_47 = arith.constant dense<0.000000e+00> : vector<8x64xf32>
    %118 = tpu.matmul %116, %117, %cst_47 {dimension_numbers = #tpu.dot_dimension_numbers<[1], [0], [0], [1], [0, 0, 1, 1], [], []>} : vector<8x2xbf16>, vector<2x64xbf16>, vector<8x64xf32> -> vector<8x64xf32>
    %119 = arith.addf %104, %118 : vector<8x64xf32>
    %120 = vector.extract_strided_slice %1 {offsets = [0, 9], sizes = [2, 64], strides = [1, 1]} : vector<2x118xf32> to vector<2x64xf32>
    %c2_i32_48 = arith.constant 2 : i32
    %121 = vector.broadcast %c2_i32_48 : i32 to vector<1x64xi32>
    %122 = arith.cmpi sge, %2, %121 : vector<1x64xi32>
    %c2_i32_49 = arith.constant 2 : i32
    %123 = vector.broadcast %c2_i32_49 : i32 to vector<1x64xi32>
    %124 = arith.cmpi sge, %3, %123 : vector<1x64xi32>
    %125 = arith.andi %122, %124 : vector<1x64xi1>
    %cst_50 = arith.constant 0.000000e+00 : f32
    %126 = vector.shape_cast %125 : vector<1x64xi1> to vector<1x64xi1>
    %127 = vector.broadcast %126 : vector<1x64xi1> to vector<2x64xi1>
    %128 = vector.broadcast %cst_50 : f32 to vector<2x64xf32>
    %129 = arith.select %127, %120, %128 : vector<2x64xi1>, vector<2x64xf32>
    %c8 = arith.constant 8 : index
    %c0_51 = arith.constant 0 : index
    %c0_52 = arith.constant 0 : index
    %130 = vector.load %arg2[%c8, %c0_51, %c0_52] : memref<49x8x2xbf16, #tpu.memory_space<vmem>>, vector<1x8x2xbf16>
    %131 = vector.shape_cast %130 : vector<1x8x2xbf16> to vector<8x2xbf16>
    %132 = arith.truncf %129 : vector<2x64xf32> to vector<2x64xbf16>
    %cst_53 = arith.constant dense<0.000000e+00> : vector<8x64xf32>
    %133 = tpu.matmul %131, %132, %cst_53 {dimension_numbers = #tpu.dot_dimension_numbers<[1], [0], [0], [1], [0, 0, 1, 1], [], []>} : vector<8x2xbf16>, vector<2x64xbf16>, vector<8x64xf32> -> vector<8x64xf32>
    %134 = arith.addf %119, %133 : vector<8x64xf32>
    %135 = vector.extract_strided_slice %1 {offsets = [0, 10], sizes = [2, 64], strides = [1, 1]} : vector<2x118xf32> to vector<2x64xf32>
    %c2_i32_54 = arith.constant 2 : i32
    %136 = vector.broadcast %c2_i32_54 : i32 to vector<1x64xi32>
    %137 = arith.cmpi sge, %2, %136 : vector<1x64xi32>
    %c1_i32_55 = arith.constant 1 : i32
    %138 = vector.broadcast %c1_i32_55 : i32 to vector<1x64xi32>
    %139 = arith.cmpi sge, %3, %138 : vector<1x64xi32>
    %140 = arith.andi %137, %139 : vector<1x64xi1>
    %cst_56 = arith.constant 0.000000e+00 : f32
    %141 = vector.shape_cast %140 : vector<1x64xi1> to vector<1x64xi1>
    %142 = vector.broadcast %141 : vector<1x64xi1> to vector<2x64xi1>
    %143 = vector.broadcast %cst_56 : f32 to vector<2x64xf32>
    %144 = arith.select %142, %135, %143 : vector<2x64xi1>, vector<2x64xf32>
    %c9 = arith.constant 9 : index
    %c0_57 = arith.constant 0 : index
    %c0_58 = arith.constant 0 : index
    %145 = vector.load %arg2[%c9, %c0_57, %c0_58] : memref<49x8x2xbf16, #tpu.memory_space<vmem>>, vector<1x8x2xbf16>
    %146 = vector.shape_cast %145 : vector<1x8x2xbf16> to vector<8x2xbf16>
    %147 = arith.truncf %144 : vector<2x64xf32> to vector<2x64xbf16>
    %cst_59 = arith.constant dense<0.000000e+00> : vector<8x64xf32>
    %148 = tpu.matmul %146, %147, %cst_59 {dimension_numbers = #tpu.dot_dimension_numbers<[1], [0], [0], [1], [0, 0, 1, 1], [], []>} : vector<8x2xbf16>, vector<2x64xbf16>, vector<8x64xf32> -> vector<8x64xf32>
    %149 = arith.addf %134, %148 : vector<8x64xf32>
    %150 = vector.extract_strided_slice %1 {offsets = [0, 11], sizes = [2, 64], strides = [1, 1]} : vector<2x118xf32> to vector<2x64xf32>
    %c2_i32_60 = arith.constant 2 : i32
    %151 = vector.broadcast %c2_i32_60 : i32 to vector<1x64xi32>
    %152 = arith.cmpi sge, %2, %151 : vector<1x64xi32>
    %cst_61 = arith.constant 0.000000e+00 : f32
    %153 = vector.shape_cast %152 : vector<1x64xi1> to vector<1x64xi1>
    %154 = vector.broadcast %153 : vector<1x64xi1> to vector<2x64xi1>
    %155 = vector.broadcast %cst_61 : f32 to vector<2x64xf32>
    %156 = arith.select %154, %150, %155 : vector<2x64xi1>, vector<2x64xf32>
    %c10 = arith.constant 10 : index
    %c0_62 = arith.constant 0 : index
    %c0_63 = arith.constant 0 : index
    %157 = vector.load %arg2[%c10, %c0_62, %c0_63] : memref<49x8x2xbf16, #tpu.memory_space<vmem>>, vector<1x8x2xbf16>
    %158 = vector.shape_cast %157 : vector<1x8x2xbf16> to vector<8x2xbf16>
    %159 = arith.truncf %156 : vector<2x64xf32> to vector<2x64xbf16>
    %cst_64 = arith.constant dense<0.000000e+00> : vector<8x64xf32>
    %160 = tpu.matmul %158, %159, %cst_64 {dimension_numbers = #tpu.dot_dimension_numbers<[1], [0], [0], [1], [0, 0, 1, 1], [], []>} : vector<8x2xbf16>, vector<2x64xbf16>, vector<8x64xf32> -> vector<8x64xf32>
    %161 = arith.addf %149, %160 : vector<8x64xf32>
    %162 = vector.extract_strided_slice %1 {offsets = [0, 12], sizes = [2, 64], strides = [1, 1]} : vector<2x118xf32> to vector<2x64xf32>
    %c2_i32_65 = arith.constant 2 : i32
    %163 = vector.broadcast %c2_i32_65 : i32 to vector<1x64xi32>
    %164 = arith.cmpi sge, %2, %163 : vector<1x64xi32>
    %c7_i32_66 = arith.constant 7 : i32
    %165 = vector.broadcast %c7_i32_66 : i32 to vector<1x64xi32>
    %166 = arith.cmpi slt, %3, %165 : vector<1x64xi32>
    %167 = arith.andi %164, %166 : vector<1x64xi1>
    %cst_67 = arith.constant 0.000000e+00 : f32
    %168 = vector.shape_cast %167 : vector<1x64xi1> to vector<1x64xi1>
    %169 = vector.broadcast %168 : vector<1x64xi1> to vector<2x64xi1>
    %170 = vector.broadcast %cst_67 : f32 to vector<2x64xf32>
    %171 = arith.select %169, %162, %170 : vector<2x64xi1>, vector<2x64xf32>
    %c11 = arith.constant 11 : index
    %c0_68 = arith.constant 0 : index
    %c0_69 = arith.constant 0 : index
    %172 = vector.load %arg2[%c11, %c0_68, %c0_69] : memref<49x8x2xbf16, #tpu.memory_space<vmem>>, vector<1x8x2xbf16>
    %173 = vector.shape_cast %172 : vector<1x8x2xbf16> to vector<8x2xbf16>
    %174 = arith.truncf %171 : vector<2x64xf32> to vector<2x64xbf16>
    %cst_70 = arith.constant dense<0.000000e+00> : vector<8x64xf32>
    %175 = tpu.matmul %173, %174, %cst_70 {dimension_numbers = #tpu.dot_dimension_numbers<[1], [0], [0], [1], [0, 0, 1, 1], [], []>} : vector<8x2xbf16>, vector<2x64xbf16>, vector<8x64xf32> -> vector<8x64xf32>
    %176 = arith.addf %161, %175 : vector<8x64xf32>
    %177 = vector.extract_strided_slice %1 {offsets = [0, 13], sizes = [2, 64], strides = [1, 1]} : vector<2x118xf32> to vector<2x64xf32>
    %c2_i32_71 = arith.constant 2 : i32
    %178 = vector.broadcast %c2_i32_71 : i32 to vector<1x64xi32>
    %179 = arith.cmpi sge, %2, %178 : vector<1x64xi32>
    %c6_i32_72 = arith.constant 6 : i32
    %180 = vector.broadcast %c6_i32_72 : i32 to vector<1x64xi32>
    %181 = arith.cmpi slt, %3, %180 : vector<1x64xi32>
    %182 = arith.andi %179, %181 : vector<1x64xi1>
    %cst_73 = arith.constant 0.000000e+00 : f32
    %183 = vector.shape_cast %182 : vector<1x64xi1> to vector<1x64xi1>
    %184 = vector.broadcast %183 : vector<1x64xi1> to vector<2x64xi1>
    %185 = vector.broadcast %cst_73 : f32 to vector<2x64xf32>
    %186 = arith.select %184, %177, %185 : vector<2x64xi1>, vector<2x64xf32>
    %c12 = arith.constant 12 : index
    %c0_74 = arith.constant 0 : index
    %c0_75 = arith.constant 0 : index
    %187 = vector.load %arg2[%c12, %c0_74, %c0_75] : memref<49x8x2xbf16, #tpu.memory_space<vmem>>, vector<1x8x2xbf16>
    %188 = vector.shape_cast %187 : vector<1x8x2xbf16> to vector<8x2xbf16>
    %189 = arith.truncf %186 : vector<2x64xf32> to vector<2x64xbf16>
    %cst_76 = arith.constant dense<0.000000e+00> : vector<8x64xf32>
    %190 = tpu.matmul %188, %189, %cst_76 {dimension_numbers = #tpu.dot_dimension_numbers<[1], [0], [0], [1], [0, 0, 1, 1], [], []>} : vector<8x2xbf16>, vector<2x64xbf16>, vector<8x64xf32> -> vector<8x64xf32>
    %191 = arith.addf %176, %190 : vector<8x64xf32>
    %192 = vector.extract_strided_slice %1 {offsets = [0, 14], sizes = [2, 64], strides = [1, 1]} : vector<2x118xf32> to vector<2x64xf32>
    %c2_i32_77 = arith.constant 2 : i32
    %193 = vector.broadcast %c2_i32_77 : i32 to vector<1x64xi32>
    %194 = arith.cmpi sge, %2, %193 : vector<1x64xi32>
    %c5_i32_78 = arith.constant 5 : i32
    %195 = vector.broadcast %c5_i32_78 : i32 to vector<1x64xi32>
    %196 = arith.cmpi slt, %3, %195 : vector<1x64xi32>
    %197 = arith.andi %194, %196 : vector<1x64xi1>
    %cst_79 = arith.constant 0.000000e+00 : f32
    %198 = vector.shape_cast %197 : vector<1x64xi1> to vector<1x64xi1>
    %199 = vector.broadcast %198 : vector<1x64xi1> to vector<2x64xi1>
    %200 = vector.broadcast %cst_79 : f32 to vector<2x64xf32>
    %201 = arith.select %199, %192, %200 : vector<2x64xi1>, vector<2x64xf32>
    %c13 = arith.constant 13 : index
    %c0_80 = arith.constant 0 : index
    %c0_81 = arith.constant 0 : index
    %202 = vector.load %arg2[%c13, %c0_80, %c0_81] : memref<49x8x2xbf16, #tpu.memory_space<vmem>>, vector<1x8x2xbf16>
    %203 = vector.shape_cast %202 : vector<1x8x2xbf16> to vector<8x2xbf16>
    %204 = arith.truncf %201 : vector<2x64xf32> to vector<2x64xbf16>
    %cst_82 = arith.constant dense<0.000000e+00> : vector<8x64xf32>
    %205 = tpu.matmul %203, %204, %cst_82 {dimension_numbers = #tpu.dot_dimension_numbers<[1], [0], [0], [1], [0, 0, 1, 1], [], []>} : vector<8x2xbf16>, vector<2x64xbf16>, vector<8x64xf32> -> vector<8x64xf32>
    %206 = arith.addf %191, %205 : vector<8x64xf32>
    %207 = vector.extract_strided_slice %1 {offsets = [0, 16], sizes = [2, 64], strides = [1, 1]} : vector<2x118xf32> to vector<2x64xf32>
    %c1_i32_83 = arith.constant 1 : i32
    %208 = vector.broadcast %c1_i32_83 : i32 to vector<1x64xi32>
    %209 = arith.cmpi sge, %2, %208 : vector<1x64xi32>
    %c3_i32_84 = arith.constant 3 : i32
    %210 = vector.broadcast %c3_i32_84 : i32 to vector<1x64xi32>
    %211 = arith.cmpi sge, %3, %210 : vector<1x64xi32>
    %212 = arith.andi %209, %211 : vector<1x64xi1>
    %cst_85 = arith.constant 0.000000e+00 : f32
    %213 = vector.shape_cast %212 : vector<1x64xi1> to vector<1x64xi1>
    %214 = vector.broadcast %213 : vector<1x64xi1> to vector<2x64xi1>
    %215 = vector.broadcast %cst_85 : f32 to vector<2x64xf32>
    %216 = arith.select %214, %207, %215 : vector<2x64xi1>, vector<2x64xf32>
    %c14 = arith.constant 14 : index
    %c0_86 = arith.constant 0 : index
    %c0_87 = arith.constant 0 : index
    %217 = vector.load %arg2[%c14, %c0_86, %c0_87] : memref<49x8x2xbf16, #tpu.memory_space<vmem>>, vector<1x8x2xbf16>
    %218 = vector.shape_cast %217 : vector<1x8x2xbf16> to vector<8x2xbf16>
    %219 = arith.truncf %216 : vector<2x64xf32> to vector<2x64xbf16>
    %cst_88 = arith.constant dense<0.000000e+00> : vector<8x64xf32>
    %220 = tpu.matmul %218, %219, %cst_88 {dimension_numbers = #tpu.dot_dimension_numbers<[1], [0], [0], [1], [0, 0, 1, 1], [], []>} : vector<8x2xbf16>, vector<2x64xbf16>, vector<8x64xf32> -> vector<8x64xf32>
    %221 = arith.addf %206, %220 : vector<8x64xf32>
    %222 = vector.extract_strided_slice %1 {offsets = [0, 17], sizes = [2, 64], strides = [1, 1]} : vector<2x118xf32> to vector<2x64xf32>
    %c1_i32_89 = arith.constant 1 : i32
    %223 = vector.broadcast %c1_i32_89 : i32 to vector<1x64xi32>
    %224 = arith.cmpi sge, %2, %223 : vector<1x64xi32>
    %c2_i32_90 = arith.constant 2 : i32
    %225 = vector.broadcast %c2_i32_90 : i32 to vector<1x64xi32>
    %226 = arith.cmpi sge, %3, %225 : vector<1x64xi32>
    %227 = arith.andi %224, %226 : vector<1x64xi1>
    %cst_91 = arith.constant 0.000000e+00 : f32
    %228 = vector.shape_cast %227 : vector<1x64xi1> to vector<1x64xi1>
    %229 = vector.broadcast %228 : vector<1x64xi1> to vector<2x64xi1>
    %230 = vector.broadcast %cst_91 : f32 to vector<2x64xf32>
    %231 = arith.select %229, %222, %230 : vector<2x64xi1>, vector<2x64xf32>
    %c15 = arith.constant 15 : index
    %c0_92 = arith.constant 0 : index
    %c0_93 = arith.constant 0 : index
    %232 = vector.load %arg2[%c15, %c0_92, %c0_93] : memref<49x8x2xbf16, #tpu.memory_space<vmem>>, vector<1x8x2xbf16>
    %233 = vector.shape_cast %232 : vector<1x8x2xbf16> to vector<8x2xbf16>
    %234 = arith.truncf %231 : vector<2x64xf32> to vector<2x64xbf16>
    %cst_94 = arith.constant dense<0.000000e+00> : vector<8x64xf32>
    %235 = tpu.matmul %233, %234, %cst_94 {dimension_numbers = #tpu.dot_dimension_numbers<[1], [0], [0], [1], [0, 0, 1, 1], [], []>} : vector<8x2xbf16>, vector<2x64xbf16>, vector<8x64xf32> -> vector<8x64xf32>
    %236 = arith.addf %221, %235 : vector<8x64xf32>
    %237 = vector.extract_strided_slice %1 {offsets = [0, 18], sizes = [2, 64], strides = [1, 1]} : vector<2x118xf32> to vector<2x64xf32>
    %c1_i32_95 = arith.constant 1 : i32
    %238 = vector.broadcast %c1_i32_95 : i32 to vector<1x64xi32>
    %239 = arith.cmpi sge, %2, %238 : vector<1x64xi32>
    %c1_i32_96 = arith.constant 1 : i32
    %240 = vector.broadcast %c1_i32_96 : i32 to vector<1x64xi32>
    %241 = arith.cmpi sge, %3, %240 : vector<1x64xi32>
    %242 = arith.andi %239, %241 : vector<1x64xi1>
    %cst_97 = arith.constant 0.000000e+00 : f32
    %243 = vector.shape_cast %242 : vector<1x64xi1> to vector<1x64xi1>
    %244 = vector.broadcast %243 : vector<1x64xi1> to vector<2x64xi1>
    %245 = vector.broadcast %cst_97 : f32 to vector<2x64xf32>
    %246 = arith.select %244, %237, %245 : vector<2x64xi1>, vector<2x64xf32>
    %c16 = arith.constant 16 : index
    %c0_98 = arith.constant 0 : index
    %c0_99 = arith.constant 0 : index
    %247 = vector.load %arg2[%c16, %c0_98, %c0_99] : memref<49x8x2xbf16, #tpu.memory_space<vmem>>, vector<1x8x2xbf16>
    %248 = vector.shape_cast %247 : vector<1x8x2xbf16> to vector<8x2xbf16>
    %249 = arith.truncf %246 : vector<2x64xf32> to vector<2x64xbf16>
    %cst_100 = arith.constant dense<0.000000e+00> : vector<8x64xf32>
    %250 = tpu.matmul %248, %249, %cst_100 {dimension_numbers = #tpu.dot_dimension_numbers<[1], [0], [0], [1], [0, 0, 1, 1], [], []>} : vector<8x2xbf16>, vector<2x64xbf16>, vector<8x64xf32> -> vector<8x64xf32>
    %251 = arith.addf %236, %250 : vector<8x64xf32>
    %252 = vector.extract_strided_slice %1 {offsets = [0, 19], sizes = [2, 64], strides = [1, 1]} : vector<2x118xf32> to vector<2x64xf32>
    %c1_i32_101 = arith.constant 1 : i32
    %253 = vector.broadcast %c1_i32_101 : i32 to vector<1x64xi32>
    %254 = arith.cmpi sge, %2, %253 : vector<1x64xi32>
    %cst_102 = arith.constant 0.000000e+00 : f32
    %255 = vector.shape_cast %254 : vector<1x64xi1> to vector<1x64xi1>
    %256 = vector.broadcast %255 : vector<1x64xi1> to vector<2x64xi1>
    %257 = vector.broadcast %cst_102 : f32 to vector<2x64xf32>
    %258 = arith.select %256, %252, %257 : vector<2x64xi1>, vector<2x64xf32>
    %c17 = arith.constant 17 : index
    %c0_103 = arith.constant 0 : index
    %c0_104 = arith.constant 0 : index
    %259 = vector.load %arg2[%c17, %c0_103, %c0_104] : memref<49x8x2xbf16, #tpu.memory_space<vmem>>, vector<1x8x2xbf16>
    %260 = vector.shape_cast %259 : vector<1x8x2xbf16> to vector<8x2xbf16>
    %261 = arith.truncf %258 : vector<2x64xf32> to vector<2x64xbf16>
    %cst_105 = arith.constant dense<0.000000e+00> : vector<8x64xf32>
    %262 = tpu.matmul %260, %261, %cst_105 {dimension_numbers = #tpu.dot_dimension_numbers<[1], [0], [0], [1], [0, 0, 1, 1], [], []>} : vector<8x2xbf16>, vector<2x64xbf16>, vector<8x64xf32> -> vector<8x64xf32>
    %263 = arith.addf %251, %262 : vector<8x64xf32>
    %264 = vector.extract_strided_slice %1 {offsets = [0, 20], sizes = [2, 64], strides = [1, 1]} : vector<2x118xf32> to vector<2x64xf32>
    %c1_i32_106 = arith.constant 1 : i32
    %265 = vector.broadcast %c1_i32_106 : i32 to vector<1x64xi32>
    %266 = arith.cmpi sge, %2, %265 : vector<1x64xi32>
    %c7_i32_107 = arith.constant 7 : i32
    %267 = vector.broadcast %c7_i32_107 : i32 to vector<1x64xi32>
    %268 = arith.cmpi slt, %3, %267 : vector<1x64xi32>
    %269 = arith.andi %266, %268 : vector<1x64xi1>
    %cst_108 = arith.constant 0.000000e+00 : f32
    %270 = vector.shape_cast %269 : vector<1x64xi1> to vector<1x64xi1>
    %271 = vector.broadcast %270 : vector<1x64xi1> to vector<2x64xi1>
    %272 = vector.broadcast %cst_108 : f32 to vector<2x64xf32>
    %273 = arith.select %271, %264, %272 : vector<2x64xi1>, vector<2x64xf32>
    %c18 = arith.constant 18 : index
    %c0_109 = arith.constant 0 : index
    %c0_110 = arith.constant 0 : index
    %274 = vector.load %arg2[%c18, %c0_109, %c0_110] : memref<49x8x2xbf16, #tpu.memory_space<vmem>>, vector<1x8x2xbf16>
    %275 = vector.shape_cast %274 : vector<1x8x2xbf16> to vector<8x2xbf16>
    %276 = arith.truncf %273 : vector<2x64xf32> to vector<2x64xbf16>
    %cst_111 = arith.constant dense<0.000000e+00> : vector<8x64xf32>
    %277 = tpu.matmul %275, %276, %cst_111 {dimension_numbers = #tpu.dot_dimension_numbers<[1], [0], [0], [1], [0, 0, 1, 1], [], []>} : vector<8x2xbf16>, vector<2x64xbf16>, vector<8x64xf32> -> vector<8x64xf32>
    %278 = arith.addf %263, %277 : vector<8x64xf32>
    %279 = vector.extract_strided_slice %1 {offsets = [0, 21], sizes = [2, 64], strides = [1, 1]} : vector<2x118xf32> to vector<2x64xf32>
    %c1_i32_112 = arith.constant 1 : i32
    %280 = vector.broadcast %c1_i32_112 : i32 to vector<1x64xi32>
    %281 = arith.cmpi sge, %2, %280 : vector<1x64xi32>
    %c6_i32_113 = arith.constant 6 : i32
    %282 = vector.broadcast %c6_i32_113 : i32 to vector<1x64xi32>
    %283 = arith.cmpi slt, %3, %282 : vector<1x64xi32>
    %284 = arith.andi %281, %283 : vector<1x64xi1>
    %cst_114 = arith.constant 0.000000e+00 : f32
    %285 = vector.shape_cast %284 : vector<1x64xi1> to vector<1x64xi1>
    %286 = vector.broadcast %285 : vector<1x64xi1> to vector<2x64xi1>
    %287 = vector.broadcast %cst_114 : f32 to vector<2x64xf32>
    %288 = arith.select %286, %279, %287 : vector<2x64xi1>, vector<2x64xf32>
    %c19 = arith.constant 19 : index
    %c0_115 = arith.constant 0 : index
    %c0_116 = arith.constant 0 : index
    %289 = vector.load %arg2[%c19, %c0_115, %c0_116] : memref<49x8x2xbf16, #tpu.memory_space<vmem>>, vector<1x8x2xbf16>
    %290 = vector.shape_cast %289 : vector<1x8x2xbf16> to vector<8x2xbf16>
    %291 = arith.truncf %288 : vector<2x64xf32> to vector<2x64xbf16>
    %cst_117 = arith.constant dense<0.000000e+00> : vector<8x64xf32>
    %292 = tpu.matmul %290, %291, %cst_117 {dimension_numbers = #tpu.dot_dimension_numbers<[1], [0], [0], [1], [0, 0, 1, 1], [], []>} : vector<8x2xbf16>, vector<2x64xbf16>, vector<8x64xf32> -> vector<8x64xf32>
    %293 = arith.addf %278, %292 : vector<8x64xf32>
    %294 = vector.extract_strided_slice %1 {offsets = [0, 22], sizes = [2, 64], strides = [1, 1]} : vector<2x118xf32> to vector<2x64xf32>
    %c1_i32_118 = arith.constant 1 : i32
    %295 = vector.broadcast %c1_i32_118 : i32 to vector<1x64xi32>
    %296 = arith.cmpi sge, %2, %295 : vector<1x64xi32>
    %c5_i32_119 = arith.constant 5 : i32
    %297 = vector.broadcast %c5_i32_119 : i32 to vector<1x64xi32>
    %298 = arith.cmpi slt, %3, %297 : vector<1x64xi32>
    %299 = arith.andi %296, %298 : vector<1x64xi1>
    %cst_120 = arith.constant 0.000000e+00 : f32
    %300 = vector.shape_cast %299 : vector<1x64xi1> to vector<1x64xi1>
    %301 = vector.broadcast %300 : vector<1x64xi1> to vector<2x64xi1>
    %302 = vector.broadcast %cst_120 : f32 to vector<2x64xf32>
    %303 = arith.select %301, %294, %302 : vector<2x64xi1>, vector<2x64xf32>
    %c20 = arith.constant 20 : index
    %c0_121 = arith.constant 0 : index
    %c0_122 = arith.constant 0 : index
    %304 = vector.load %arg2[%c20, %c0_121, %c0_122] : memref<49x8x2xbf16, #tpu.memory_space<vmem>>, vector<1x8x2xbf16>
    %305 = vector.shape_cast %304 : vector<1x8x2xbf16> to vector<8x2xbf16>
    %306 = arith.truncf %303 : vector<2x64xf32> to vector<2x64xbf16>
    %cst_123 = arith.constant dense<0.000000e+00> : vector<8x64xf32>
    %307 = tpu.matmul %305, %306, %cst_123 {dimension_numbers = #tpu.dot_dimension_numbers<[1], [0], [0], [1], [0, 0, 1, 1], [], []>} : vector<8x2xbf16>, vector<2x64xbf16>, vector<8x64xf32> -> vector<8x64xf32>
    %308 = arith.addf %293, %307 : vector<8x64xf32>
    %309 = vector.extract_strided_slice %1 {offsets = [0, 24], sizes = [2, 64], strides = [1, 1]} : vector<2x118xf32> to vector<2x64xf32>
    %c3_i32_124 = arith.constant 3 : i32
    %310 = vector.broadcast %c3_i32_124 : i32 to vector<1x64xi32>
    %311 = arith.cmpi sge, %3, %310 : vector<1x64xi32>
    %cst_125 = arith.constant 0.000000e+00 : f32
    %312 = vector.shape_cast %311 : vector<1x64xi1> to vector<1x64xi1>
    %313 = vector.broadcast %312 : vector<1x64xi1> to vector<2x64xi1>
    %314 = vector.broadcast %cst_125 : f32 to vector<2x64xf32>
    %315 = arith.select %313, %309, %314 : vector<2x64xi1>, vector<2x64xf32>
    %c21 = arith.constant 21 : index
    %c0_126 = arith.constant 0 : index
    %c0_127 = arith.constant 0 : index
    %316 = vector.load %arg2[%c21, %c0_126, %c0_127] : memref<49x8x2xbf16, #tpu.memory_space<vmem>>, vector<1x8x2xbf16>
    %317 = vector.shape_cast %316 : vector<1x8x2xbf16> to vector<8x2xbf16>
    %318 = arith.truncf %315 : vector<2x64xf32> to vector<2x64xbf16>
    %cst_128 = arith.constant dense<0.000000e+00> : vector<8x64xf32>
    %319 = tpu.matmul %317, %318, %cst_128 {dimension_numbers = #tpu.dot_dimension_numbers<[1], [0], [0], [1], [0, 0, 1, 1], [], []>} : vector<8x2xbf16>, vector<2x64xbf16>, vector<8x64xf32> -> vector<8x64xf32>
    %320 = arith.addf %308, %319 : vector<8x64xf32>
    %321 = vector.extract_strided_slice %1 {offsets = [0, 25], sizes = [2, 64], strides = [1, 1]} : vector<2x118xf32> to vector<2x64xf32>
    %c2_i32_129 = arith.constant 2 : i32
    %322 = vector.broadcast %c2_i32_129 : i32 to vector<1x64xi32>
    %323 = arith.cmpi sge, %3, %322 : vector<1x64xi32>
    %cst_130 = arith.constant 0.000000e+00 : f32
    %324 = vector.shape_cast %323 : vector<1x64xi1> to vector<1x64xi1>
    %325 = vector.broadcast %324 : vector<1x64xi1> to vector<2x64xi1>
    %326 = vector.broadcast %cst_130 : f32 to vector<2x64xf32>
    %327 = arith.select %325, %321, %326 : vector<2x64xi1>, vector<2x64xf32>
    %c22 = arith.constant 22 : index
    %c0_131 = arith.constant 0 : index
    %c0_132 = arith.constant 0 : index
    %328 = vector.load %arg2[%c22, %c0_131, %c0_132] : memref<49x8x2xbf16, #tpu.memory_space<vmem>>, vector<1x8x2xbf16>
    %329 = vector.shape_cast %328 : vector<1x8x2xbf16> to vector<8x2xbf16>
    %330 = arith.truncf %327 : vector<2x64xf32> to vector<2x64xbf16>
    %cst_133 = arith.constant dense<0.000000e+00> : vector<8x64xf32>
    %331 = tpu.matmul %329, %330, %cst_133 {dimension_numbers = #tpu.dot_dimension_numbers<[1], [0], [0], [1], [0, 0, 1, 1], [], []>} : vector<8x2xbf16>, vector<2x64xbf16>, vector<8x64xf32> -> vector<8x64xf32>
    %332 = arith.addf %320, %331 : vector<8x64xf32>
    %333 = vector.extract_strided_slice %1 {offsets = [0, 26], sizes = [2, 64], strides = [1, 1]} : vector<2x118xf32> to vector<2x64xf32>
    %c1_i32_134 = arith.constant 1 : i32
    %334 = vector.broadcast %c1_i32_134 : i32 to vector<1x64xi32>
    %335 = arith.cmpi sge, %3, %334 : vector<1x64xi32>
    %cst_135 = arith.constant 0.000000e+00 : f32
    %336 = vector.shape_cast %335 : vector<1x64xi1> to vector<1x64xi1>
    %337 = vector.broadcast %336 : vector<1x64xi1> to vector<2x64xi1>
    %338 = vector.broadcast %cst_135 : f32 to vector<2x64xf32>
    %339 = arith.select %337, %333, %338 : vector<2x64xi1>, vector<2x64xf32>
    %c23 = arith.constant 23 : index
    %c0_136 = arith.constant 0 : index
    %c0_137 = arith.constant 0 : index
    %340 = vector.load %arg2[%c23, %c0_136, %c0_137] : memref<49x8x2xbf16, #tpu.memory_space<vmem>>, vector<1x8x2xbf16>
    %341 = vector.shape_cast %340 : vector<1x8x2xbf16> to vector<8x2xbf16>
    %342 = arith.truncf %339 : vector<2x64xf32> to vector<2x64xbf16>
    %cst_138 = arith.constant dense<0.000000e+00> : vector<8x64xf32>
    %343 = tpu.matmul %341, %342, %cst_138 {dimension_numbers = #tpu.dot_dimension_numbers<[1], [0], [0], [1], [0, 0, 1, 1], [], []>} : vector<8x2xbf16>, vector<2x64xbf16>, vector<8x64xf32> -> vector<8x64xf32>
    %344 = arith.addf %332, %343 : vector<8x64xf32>
    %345 = vector.extract_strided_slice %1 {offsets = [0, 27], sizes = [2, 64], strides = [1, 1]} : vector<2x118xf32> to vector<2x64xf32>
    %c24 = arith.constant 24 : index
    %c0_139 = arith.constant 0 : index
    %c0_140 = arith.constant 0 : index
    %346 = vector.load %arg2[%c24, %c0_139, %c0_140] : memref<49x8x2xbf16, #tpu.memory_space<vmem>>, vector<1x8x2xbf16>
    %347 = vector.shape_cast %346 : vector<1x8x2xbf16> to vector<8x2xbf16>
    %348 = arith.truncf %345 : vector<2x64xf32> to vector<2x64xbf16>
    %cst_141 = arith.constant dense<0.000000e+00> : vector<8x64xf32>
    %349 = tpu.matmul %347, %348, %cst_141 {dimension_numbers = #tpu.dot_dimension_numbers<[1], [0], [0], [1], [0, 0, 1, 1], [], []>} : vector<8x2xbf16>, vector<2x64xbf16>, vector<8x64xf32> -> vector<8x64xf32>
    %350 = arith.addf %344, %349 : vector<8x64xf32>
    %351 = vector.extract_strided_slice %1 {offsets = [0, 28], sizes = [2, 64], strides = [1, 1]} : vector<2x118xf32> to vector<2x64xf32>
    %c7_i32_142 = arith.constant 7 : i32
    %352 = vector.broadcast %c7_i32_142 : i32 to vector<1x64xi32>
    %353 = arith.cmpi slt, %3, %352 : vector<1x64xi32>
    %cst_143 = arith.constant 0.000000e+00 : f32
    %354 = vector.shape_cast %353 : vector<1x64xi1> to vector<1x64xi1>
    %355 = vector.broadcast %354 : vector<1x64xi1> to vector<2x64xi1>
    %356 = vector.broadcast %cst_143 : f32 to vector<2x64xf32>
    %357 = arith.select %355, %351, %356 : vector<2x64xi1>, vector<2x64xf32>
    %c25 = arith.constant 25 : index
    %c0_144 = arith.constant 0 : index
    %c0_145 = arith.constant 0 : index
    %358 = vector.load %arg2[%c25, %c0_144, %c0_145] : memref<49x8x2xbf16, #tpu.memory_space<vmem>>, vector<1x8x2xbf16>
    %359 = vector.shape_cast %358 : vector<1x8x2xbf16> to vector<8x2xbf16>
    %360 = arith.truncf %357 : vector<2x64xf32> to vector<2x64xbf16>
    %cst_146 = arith.constant dense<0.000000e+00> : vector<8x64xf32>
    %361 = tpu.matmul %359, %360, %cst_146 {dimension_numbers = #tpu.dot_dimension_numbers<[1], [0], [0], [1], [0, 0, 1, 1], [], []>} : vector<8x2xbf16>, vector<2x64xbf16>, vector<8x64xf32> -> vector<8x64xf32>
    %362 = arith.addf %350, %361 : vector<8x64xf32>
    %363 = vector.extract_strided_slice %1 {offsets = [0, 29], sizes = [2, 64], strides = [1, 1]} : vector<2x118xf32> to vector<2x64xf32>
    %c6_i32_147 = arith.constant 6 : i32
    %364 = vector.broadcast %c6_i32_147 : i32 to vector<1x64xi32>
    %365 = arith.cmpi slt, %3, %364 : vector<1x64xi32>
    %cst_148 = arith.constant 0.000000e+00 : f32
    %366 = vector.shape_cast %365 : vector<1x64xi1> to vector<1x64xi1>
    %367 = vector.broadcast %366 : vector<1x64xi1> to vector<2x64xi1>
    %368 = vector.broadcast %cst_148 : f32 to vector<2x64xf32>
    %369 = arith.select %367, %363, %368 : vector<2x64xi1>, vector<2x64xf32>
    %c26 = arith.constant 26 : index
    %c0_149 = arith.constant 0 : index
    %c0_150 = arith.constant 0 : index
    %370 = vector.load %arg2[%c26, %c0_149, %c0_150] : memref<49x8x2xbf16, #tpu.memory_space<vmem>>, vector<1x8x2xbf16>
    %371 = vector.shape_cast %370 : vector<1x8x2xbf16> to vector<8x2xbf16>
    %372 = arith.truncf %369 : vector<2x64xf32> to vector<2x64xbf16>
    %cst_151 = arith.constant dense<0.000000e+00> : vector<8x64xf32>
    %373 = tpu.matmul %371, %372, %cst_151 {dimension_numbers = #tpu.dot_dimension_numbers<[1], [0], [0], [1], [0, 0, 1, 1], [], []>} : vector<8x2xbf16>, vector<2x64xbf16>, vector<8x64xf32> -> vector<8x64xf32>
    %374 = arith.addf %362, %373 : vector<8x64xf32>
    %375 = vector.extract_strided_slice %1 {offsets = [0, 30], sizes = [2, 64], strides = [1, 1]} : vector<2x118xf32> to vector<2x64xf32>
    %c5_i32_152 = arith.constant 5 : i32
    %376 = vector.broadcast %c5_i32_152 : i32 to vector<1x64xi32>
    %377 = arith.cmpi slt, %3, %376 : vector<1x64xi32>
    %cst_153 = arith.constant 0.000000e+00 : f32
    %378 = vector.shape_cast %377 : vector<1x64xi1> to vector<1x64xi1>
    %379 = vector.broadcast %378 : vector<1x64xi1> to vector<2x64xi1>
    %380 = vector.broadcast %cst_153 : f32 to vector<2x64xf32>
    %381 = arith.select %379, %375, %380 : vector<2x64xi1>, vector<2x64xf32>
    %c27 = arith.constant 27 : index
    %c0_154 = arith.constant 0 : index
    %c0_155 = arith.constant 0 : index
    %382 = vector.load %arg2[%c27, %c0_154, %c0_155] : memref<49x8x2xbf16, #tpu.memory_space<vmem>>, vector<1x8x2xbf16>
    %383 = vector.shape_cast %382 : vector<1x8x2xbf16> to vector<8x2xbf16>
    %384 = arith.truncf %381 : vector<2x64xf32> to vector<2x64xbf16>
    %cst_156 = arith.constant dense<0.000000e+00> : vector<8x64xf32>
    %385 = tpu.matmul %383, %384, %cst_156 {dimension_numbers = #tpu.dot_dimension_numbers<[1], [0], [0], [1], [0, 0, 1, 1], [], []>} : vector<8x2xbf16>, vector<2x64xbf16>, vector<8x64xf32> -> vector<8x64xf32>
    %386 = arith.addf %374, %385 : vector<8x64xf32>
    %387 = vector.extract_strided_slice %1 {offsets = [0, 32], sizes = [2, 64], strides = [1, 1]} : vector<2x118xf32> to vector<2x64xf32>
    %c7_i32_157 = arith.constant 7 : i32
    %388 = vector.broadcast %c7_i32_157 : i32 to vector<1x64xi32>
    %389 = arith.cmpi slt, %2, %388 : vector<1x64xi32>
    %c3_i32_158 = arith.constant 3 : i32
    %390 = vector.broadcast %c3_i32_158 : i32 to vector<1x64xi32>
    %391 = arith.cmpi sge, %3, %390 : vector<1x64xi32>
    %392 = arith.andi %389, %391 : vector<1x64xi1>
    %cst_159 = arith.constant 0.000000e+00 : f32
    %393 = vector.shape_cast %392 : vector<1x64xi1> to vector<1x64xi1>
    %394 = vector.broadcast %393 : vector<1x64xi1> to vector<2x64xi1>
    %395 = vector.broadcast %cst_159 : f32 to vector<2x64xf32>
    %396 = arith.select %394, %387, %395 : vector<2x64xi1>, vector<2x64xf32>
    %c28 = arith.constant 28 : index
    %c0_160 = arith.constant 0 : index
    %c0_161 = arith.constant 0 : index
    %397 = vector.load %arg2[%c28, %c0_160, %c0_161] : memref<49x8x2xbf16, #tpu.memory_space<vmem>>, vector<1x8x2xbf16>
    %398 = vector.shape_cast %397 : vector<1x8x2xbf16> to vector<8x2xbf16>
    %399 = arith.truncf %396 : vector<2x64xf32> to vector<2x64xbf16>
    %cst_162 = arith.constant dense<0.000000e+00> : vector<8x64xf32>
    %400 = tpu.matmul %398, %399, %cst_162 {dimension_numbers = #tpu.dot_dimension_numbers<[1], [0], [0], [1], [0, 0, 1, 1], [], []>} : vector<8x2xbf16>, vector<2x64xbf16>, vector<8x64xf32> -> vector<8x64xf32>
    %401 = arith.addf %386, %400 : vector<8x64xf32>
    %402 = vector.extract_strided_slice %1 {offsets = [0, 33], sizes = [2, 64], strides = [1, 1]} : vector<2x118xf32> to vector<2x64xf32>
    %c7_i32_163 = arith.constant 7 : i32
    %403 = vector.broadcast %c7_i32_163 : i32 to vector<1x64xi32>
    %404 = arith.cmpi slt, %2, %403 : vector<1x64xi32>
    %c2_i32_164 = arith.constant 2 : i32
    %405 = vector.broadcast %c2_i32_164 : i32 to vector<1x64xi32>
    %406 = arith.cmpi sge, %3, %405 : vector<1x64xi32>
    %407 = arith.andi %404, %406 : vector<1x64xi1>
    %cst_165 = arith.constant 0.000000e+00 : f32
    %408 = vector.shape_cast %407 : vector<1x64xi1> to vector<1x64xi1>
    %409 = vector.broadcast %408 : vector<1x64xi1> to vector<2x64xi1>
    %410 = vector.broadcast %cst_165 : f32 to vector<2x64xf32>
    %411 = arith.select %409, %402, %410 : vector<2x64xi1>, vector<2x64xf32>
    %c29 = arith.constant 29 : index
    %c0_166 = arith.constant 0 : index
    %c0_167 = arith.constant 0 : index
    %412 = vector.load %arg2[%c29, %c0_166, %c0_167] : memref<49x8x2xbf16, #tpu.memory_space<vmem>>, vector<1x8x2xbf16>
    %413 = vector.shape_cast %412 : vector<1x8x2xbf16> to vector<8x2xbf16>
    %414 = arith.truncf %411 : vector<2x64xf32> to vector<2x64xbf16>
    %cst_168 = arith.constant dense<0.000000e+00> : vector<8x64xf32>
    %415 = tpu.matmul %413, %414, %cst_168 {dimension_numbers = #tpu.dot_dimension_numbers<[1], [0], [0], [1], [0, 0, 1, 1], [], []>} : vector<8x2xbf16>, vector<2x64xbf16>, vector<8x64xf32> -> vector<8x64xf32>
    %416 = arith.addf %401, %415 : vector<8x64xf32>
    %417 = vector.extract_strided_slice %1 {offsets = [0, 34], sizes = [2, 64], strides = [1, 1]} : vector<2x118xf32> to vector<2x64xf32>
    %c7_i32_169 = arith.constant 7 : i32
    %418 = vector.broadcast %c7_i32_169 : i32 to vector<1x64xi32>
    %419 = arith.cmpi slt, %2, %418 : vector<1x64xi32>
    %c1_i32_170 = arith.constant 1 : i32
    %420 = vector.broadcast %c1_i32_170 : i32 to vector<1x64xi32>
    %421 = arith.cmpi sge, %3, %420 : vector<1x64xi32>
    %422 = arith.andi %419, %421 : vector<1x64xi1>
    %cst_171 = arith.constant 0.000000e+00 : f32
    %423 = vector.shape_cast %422 : vector<1x64xi1> to vector<1x64xi1>
    %424 = vector.broadcast %423 : vector<1x64xi1> to vector<2x64xi1>
    %425 = vector.broadcast %cst_171 : f32 to vector<2x64xf32>
    %426 = arith.select %424, %417, %425 : vector<2x64xi1>, vector<2x64xf32>
    %c30 = arith.constant 30 : index
    %c0_172 = arith.constant 0 : index
    %c0_173 = arith.constant 0 : index
    %427 = vector.load %arg2[%c30, %c0_172, %c0_173] : memref<49x8x2xbf16, #tpu.memory_space<vmem>>, vector<1x8x2xbf16>
    %428 = vector.shape_cast %427 : vector<1x8x2xbf16> to vector<8x2xbf16>
    %429 = arith.truncf %426 : vector<2x64xf32> to vector<2x64xbf16>
    %cst_174 = arith.constant dense<0.000000e+00> : vector<8x64xf32>
    %430 = tpu.matmul %428, %429, %cst_174 {dimension_numbers = #tpu.dot_dimension_numbers<[1], [0], [0], [1], [0, 0, 1, 1], [], []>} : vector<8x2xbf16>, vector<2x64xbf16>, vector<8x64xf32> -> vector<8x64xf32>
    %431 = arith.addf %416, %430 : vector<8x64xf32>
    %432 = vector.extract_strided_slice %1 {offsets = [0, 35], sizes = [2, 64], strides = [1, 1]} : vector<2x118xf32> to vector<2x64xf32>
    %c7_i32_175 = arith.constant 7 : i32
    %433 = vector.broadcast %c7_i32_175 : i32 to vector<1x64xi32>
    %434 = arith.cmpi slt, %2, %433 : vector<1x64xi32>
    %cst_176 = arith.constant 0.000000e+00 : f32
    %435 = vector.shape_cast %434 : vector<1x64xi1> to vector<1x64xi1>
    %436 = vector.broadcast %435 : vector<1x64xi1> to vector<2x64xi1>
    %437 = vector.broadcast %cst_176 : f32 to vector<2x64xf32>
    %438 = arith.select %436, %432, %437 : vector<2x64xi1>, vector<2x64xf32>
    %c31 = arith.constant 31 : index
    %c0_177 = arith.constant 0 : index
    %c0_178 = arith.constant 0 : index
    %439 = vector.load %arg2[%c31, %c0_177, %c0_178] : memref<49x8x2xbf16, #tpu.memory_space<vmem>>, vector<1x8x2xbf16>
    %440 = vector.shape_cast %439 : vector<1x8x2xbf16> to vector<8x2xbf16>
    %441 = arith.truncf %438 : vector<2x64xf32> to vector<2x64xbf16>
    %cst_179 = arith.constant dense<0.000000e+00> : vector<8x64xf32>
    %442 = tpu.matmul %440, %441, %cst_179 {dimension_numbers = #tpu.dot_dimension_numbers<[1], [0], [0], [1], [0, 0, 1, 1], [], []>} : vector<8x2xbf16>, vector<2x64xbf16>, vector<8x64xf32> -> vector<8x64xf32>
    %443 = arith.addf %431, %442 : vector<8x64xf32>
    %444 = vector.extract_strided_slice %1 {offsets = [0, 36], sizes = [2, 64], strides = [1, 1]} : vector<2x118xf32> to vector<2x64xf32>
    %c7_i32_180 = arith.constant 7 : i32
    %445 = vector.broadcast %c7_i32_180 : i32 to vector<1x64xi32>
    %446 = arith.cmpi slt, %2, %445 : vector<1x64xi32>
    %c7_i32_181 = arith.constant 7 : i32
    %447 = vector.broadcast %c7_i32_181 : i32 to vector<1x64xi32>
    %448 = arith.cmpi slt, %3, %447 : vector<1x64xi32>
    %449 = arith.andi %446, %448 : vector<1x64xi1>
    %cst_182 = arith.constant 0.000000e+00 : f32
    %450 = vector.shape_cast %449 : vector<1x64xi1> to vector<1x64xi1>
    %451 = vector.broadcast %450 : vector<1x64xi1> to vector<2x64xi1>
    %452 = vector.broadcast %cst_182 : f32 to vector<2x64xf32>
    %453 = arith.select %451, %444, %452 : vector<2x64xi1>, vector<2x64xf32>
    %c32 = arith.constant 32 : index
    %c0_183 = arith.constant 0 : index
    %c0_184 = arith.constant 0 : index
    %454 = vector.load %arg2[%c32, %c0_183, %c0_184] : memref<49x8x2xbf16, #tpu.memory_space<vmem>>, vector<1x8x2xbf16>
    %455 = vector.shape_cast %454 : vector<1x8x2xbf16> to vector<8x2xbf16>
    %456 = arith.truncf %453 : vector<2x64xf32> to vector<2x64xbf16>
    %cst_185 = arith.constant dense<0.000000e+00> : vector<8x64xf32>
    %457 = tpu.matmul %455, %456, %cst_185 {dimension_numbers = #tpu.dot_dimension_numbers<[1], [0], [0], [1], [0, 0, 1, 1], [], []>} : vector<8x2xbf16>, vector<2x64xbf16>, vector<8x64xf32> -> vector<8x64xf32>
    %458 = arith.addf %443, %457 : vector<8x64xf32>
    %459 = vector.extract_strided_slice %1 {offsets = [0, 37], sizes = [2, 64], strides = [1, 1]} : vector<2x118xf32> to vector<2x64xf32>
    %c7_i32_186 = arith.constant 7 : i32
    %460 = vector.broadcast %c7_i32_186 : i32 to vector<1x64xi32>
    %461 = arith.cmpi slt, %2, %460 : vector<1x64xi32>
    %c6_i32_187 = arith.constant 6 : i32
    %462 = vector.broadcast %c6_i32_187 : i32 to vector<1x64xi32>
    %463 = arith.cmpi slt, %3, %462 : vector<1x64xi32>
    %464 = arith.andi %461, %463 : vector<1x64xi1>
    %cst_188 = arith.constant 0.000000e+00 : f32
    %465 = vector.shape_cast %464 : vector<1x64xi1> to vector<1x64xi1>
    %466 = vector.broadcast %465 : vector<1x64xi1> to vector<2x64xi1>
    %467 = vector.broadcast %cst_188 : f32 to vector<2x64xf32>
    %468 = arith.select %466, %459, %467 : vector<2x64xi1>, vector<2x64xf32>
    %c33 = arith.constant 33 : index
    %c0_189 = arith.constant 0 : index
    %c0_190 = arith.constant 0 : index
    %469 = vector.load %arg2[%c33, %c0_189, %c0_190] : memref<49x8x2xbf16, #tpu.memory_space<vmem>>, vector<1x8x2xbf16>
    %470 = vector.shape_cast %469 : vector<1x8x2xbf16> to vector<8x2xbf16>
    %471 = arith.truncf %468 : vector<2x64xf32> to vector<2x64xbf16>
    %cst_191 = arith.constant dense<0.000000e+00> : vector<8x64xf32>
    %472 = tpu.matmul %470, %471, %cst_191 {dimension_numbers = #tpu.dot_dimension_numbers<[1], [0], [0], [1], [0, 0, 1, 1], [], []>} : vector<8x2xbf16>, vector<2x64xbf16>, vector<8x64xf32> -> vector<8x64xf32>
    %473 = arith.addf %458, %472 : vector<8x64xf32>
    %474 = vector.extract_strided_slice %1 {offsets = [0, 38], sizes = [2, 64], strides = [1, 1]} : vector<2x118xf32> to vector<2x64xf32>
    %c7_i32_192 = arith.constant 7 : i32
    %475 = vector.broadcast %c7_i32_192 : i32 to vector<1x64xi32>
    %476 = arith.cmpi slt, %2, %475 : vector<1x64xi32>
    %c5_i32_193 = arith.constant 5 : i32
    %477 = vector.broadcast %c5_i32_193 : i32 to vector<1x64xi32>
    %478 = arith.cmpi slt, %3, %477 : vector<1x64xi32>
    %479 = arith.andi %476, %478 : vector<1x64xi1>
    %cst_194 = arith.constant 0.000000e+00 : f32
    %480 = vector.shape_cast %479 : vector<1x64xi1> to vector<1x64xi1>
    %481 = vector.broadcast %480 : vector<1x64xi1> to vector<2x64xi1>
    %482 = vector.broadcast %cst_194 : f32 to vector<2x64xf32>
    %483 = arith.select %481, %474, %482 : vector<2x64xi1>, vector<2x64xf32>
    %c34 = arith.constant 34 : index
    %c0_195 = arith.constant 0 : index
    %c0_196 = arith.constant 0 : index
    %484 = vector.load %arg2[%c34, %c0_195, %c0_196] : memref<49x8x2xbf16, #tpu.memory_space<vmem>>, vector<1x8x2xbf16>
    %485 = vector.shape_cast %484 : vector<1x8x2xbf16> to vector<8x2xbf16>
    %486 = arith.truncf %483 : vector<2x64xf32> to vector<2x64xbf16>
    %cst_197 = arith.constant dense<0.000000e+00> : vector<8x64xf32>
    %487 = tpu.matmul %485, %486, %cst_197 {dimension_numbers = #tpu.dot_dimension_numbers<[1], [0], [0], [1], [0, 0, 1, 1], [], []>} : vector<8x2xbf16>, vector<2x64xbf16>, vector<8x64xf32> -> vector<8x64xf32>
    %488 = arith.addf %473, %487 : vector<8x64xf32>
    %489 = vector.extract_strided_slice %1 {offsets = [0, 40], sizes = [2, 64], strides = [1, 1]} : vector<2x118xf32> to vector<2x64xf32>
    %c6_i32_198 = arith.constant 6 : i32
    %490 = vector.broadcast %c6_i32_198 : i32 to vector<1x64xi32>
    %491 = arith.cmpi slt, %2, %490 : vector<1x64xi32>
    %c3_i32_199 = arith.constant 3 : i32
    %492 = vector.broadcast %c3_i32_199 : i32 to vector<1x64xi32>
    %493 = arith.cmpi sge, %3, %492 : vector<1x64xi32>
    %494 = arith.andi %491, %493 : vector<1x64xi1>
    %cst_200 = arith.constant 0.000000e+00 : f32
    %495 = vector.shape_cast %494 : vector<1x64xi1> to vector<1x64xi1>
    %496 = vector.broadcast %495 : vector<1x64xi1> to vector<2x64xi1>
    %497 = vector.broadcast %cst_200 : f32 to vector<2x64xf32>
    %498 = arith.select %496, %489, %497 : vector<2x64xi1>, vector<2x64xf32>
    %c35 = arith.constant 35 : index
    %c0_201 = arith.constant 0 : index
    %c0_202 = arith.constant 0 : index
    %499 = vector.load %arg2[%c35, %c0_201, %c0_202] : memref<49x8x2xbf16, #tpu.memory_space<vmem>>, vector<1x8x2xbf16>
    %500 = vector.shape_cast %499 : vector<1x8x2xbf16> to vector<8x2xbf16>
    %501 = arith.truncf %498 : vector<2x64xf32> to vector<2x64xbf16>
    %cst_203 = arith.constant dense<0.000000e+00> : vector<8x64xf32>
    %502 = tpu.matmul %500, %501, %cst_203 {dimension_numbers = #tpu.dot_dimension_numbers<[1], [0], [0], [1], [0, 0, 1, 1], [], []>} : vector<8x2xbf16>, vector<2x64xbf16>, vector<8x64xf32> -> vector<8x64xf32>
    %503 = arith.addf %488, %502 : vector<8x64xf32>
    %504 = vector.extract_strided_slice %1 {offsets = [0, 41], sizes = [2, 64], strides = [1, 1]} : vector<2x118xf32> to vector<2x64xf32>
    %c6_i32_204 = arith.constant 6 : i32
    %505 = vector.broadcast %c6_i32_204 : i32 to vector<1x64xi32>
    %506 = arith.cmpi slt, %2, %505 : vector<1x64xi32>
    %c2_i32_205 = arith.constant 2 : i32
    %507 = vector.broadcast %c2_i32_205 : i32 to vector<1x64xi32>
    %508 = arith.cmpi sge, %3, %507 : vector<1x64xi32>
    %509 = arith.andi %506, %508 : vector<1x64xi1>
    %cst_206 = arith.constant 0.000000e+00 : f32
    %510 = vector.shape_cast %509 : vector<1x64xi1> to vector<1x64xi1>
    %511 = vector.broadcast %510 : vector<1x64xi1> to vector<2x64xi1>
    %512 = vector.broadcast %cst_206 : f32 to vector<2x64xf32>
    %513 = arith.select %511, %504, %512 : vector<2x64xi1>, vector<2x64xf32>
    %c36 = arith.constant 36 : index
    %c0_207 = arith.constant 0 : index
    %c0_208 = arith.constant 0 : index
    %514 = vector.load %arg2[%c36, %c0_207, %c0_208] : memref<49x8x2xbf16, #tpu.memory_space<vmem>>, vector<1x8x2xbf16>
    %515 = vector.shape_cast %514 : vector<1x8x2xbf16> to vector<8x2xbf16>
    %516 = arith.truncf %513 : vector<2x64xf32> to vector<2x64xbf16>
    %cst_209 = arith.constant dense<0.000000e+00> : vector<8x64xf32>
    %517 = tpu.matmul %515, %516, %cst_209 {dimension_numbers = #tpu.dot_dimension_numbers<[1], [0], [0], [1], [0, 0, 1, 1], [], []>} : vector<8x2xbf16>, vector<2x64xbf16>, vector<8x64xf32> -> vector<8x64xf32>
    %518 = arith.addf %503, %517 : vector<8x64xf32>
    %519 = vector.extract_strided_slice %1 {offsets = [0, 42], sizes = [2, 64], strides = [1, 1]} : vector<2x118xf32> to vector<2x64xf32>
    %c6_i32_210 = arith.constant 6 : i32
    %520 = vector.broadcast %c6_i32_210 : i32 to vector<1x64xi32>
    %521 = arith.cmpi slt, %2, %520 : vector<1x64xi32>
    %c1_i32_211 = arith.constant 1 : i32
    %522 = vector.broadcast %c1_i32_211 : i32 to vector<1x64xi32>
    %523 = arith.cmpi sge, %3, %522 : vector<1x64xi32>
    %524 = arith.andi %521, %523 : vector<1x64xi1>
    %cst_212 = arith.constant 0.000000e+00 : f32
    %525 = vector.shape_cast %524 : vector<1x64xi1> to vector<1x64xi1>
    %526 = vector.broadcast %525 : vector<1x64xi1> to vector<2x64xi1>
    %527 = vector.broadcast %cst_212 : f32 to vector<2x64xf32>
    %528 = arith.select %526, %519, %527 : vector<2x64xi1>, vector<2x64xf32>
    %c37 = arith.constant 37 : index
    %c0_213 = arith.constant 0 : index
    %c0_214 = arith.constant 0 : index
    %529 = vector.load %arg2[%c37, %c0_213, %c0_214] : memref<49x8x2xbf16, #tpu.memory_space<vmem>>, vector<1x8x2xbf16>
    %530 = vector.shape_cast %529 : vector<1x8x2xbf16> to vector<8x2xbf16>
    %531 = arith.truncf %528 : vector<2x64xf32> to vector<2x64xbf16>
    %cst_215 = arith.constant dense<0.000000e+00> : vector<8x64xf32>
    %532 = tpu.matmul %530, %531, %cst_215 {dimension_numbers = #tpu.dot_dimension_numbers<[1], [0], [0], [1], [0, 0, 1, 1], [], []>} : vector<8x2xbf16>, vector<2x64xbf16>, vector<8x64xf32> -> vector<8x64xf32>
    %533 = arith.addf %518, %532 : vector<8x64xf32>
    %534 = vector.extract_strided_slice %1 {offsets = [0, 43], sizes = [2, 64], strides = [1, 1]} : vector<2x118xf32> to vector<2x64xf32>
    %c6_i32_216 = arith.constant 6 : i32
    %535 = vector.broadcast %c6_i32_216 : i32 to vector<1x64xi32>
    %536 = arith.cmpi slt, %2, %535 : vector<1x64xi32>
    %cst_217 = arith.constant 0.000000e+00 : f32
    %537 = vector.shape_cast %536 : vector<1x64xi1> to vector<1x64xi1>
    %538 = vector.broadcast %537 : vector<1x64xi1> to vector<2x64xi1>
    %539 = vector.broadcast %cst_217 : f32 to vector<2x64xf32>
    %540 = arith.select %538, %534, %539 : vector<2x64xi1>, vector<2x64xf32>
    %c38 = arith.constant 38 : index
    %c0_218 = arith.constant 0 : index
    %c0_219 = arith.constant 0 : index
    %541 = vector.load %arg2[%c38, %c0_218, %c0_219] : memref<49x8x2xbf16, #tpu.memory_space<vmem>>, vector<1x8x2xbf16>
    %542 = vector.shape_cast %541 : vector<1x8x2xbf16> to vector<8x2xbf16>
    %543 = arith.truncf %540 : vector<2x64xf32> to vector<2x64xbf16>
    %cst_220 = arith.constant dense<0.000000e+00> : vector<8x64xf32>
    %544 = tpu.matmul %542, %543, %cst_220 {dimension_numbers = #tpu.dot_dimension_numbers<[1], [0], [0], [1], [0, 0, 1, 1], [], []>} : vector<8x2xbf16>, vector<2x64xbf16>, vector<8x64xf32> -> vector<8x64xf32>
    %545 = arith.addf %533, %544 : vector<8x64xf32>
    %546 = vector.extract_strided_slice %1 {offsets = [0, 44], sizes = [2, 64], strides = [1, 1]} : vector<2x118xf32> to vector<2x64xf32>
    %c6_i32_221 = arith.constant 6 : i32
    %547 = vector.broadcast %c6_i32_221 : i32 to vector<1x64xi32>
    %548 = arith.cmpi slt, %2, %547 : vector<1x64xi32>
    %c7_i32_222 = arith.constant 7 : i32
    %549 = vector.broadcast %c7_i32_222 : i32 to vector<1x64xi32>
    %550 = arith.cmpi slt, %3, %549 : vector<1x64xi32>
    %551 = arith.andi %548, %550 : vector<1x64xi1>
    %cst_223 = arith.constant 0.000000e+00 : f32
    %552 = vector.shape_cast %551 : vector<1x64xi1> to vector<1x64xi1>
    %553 = vector.broadcast %552 : vector<1x64xi1> to vector<2x64xi1>
    %554 = vector.broadcast %cst_223 : f32 to vector<2x64xf32>
    %555 = arith.select %553, %546, %554 : vector<2x64xi1>, vector<2x64xf32>
    %c39 = arith.constant 39 : index
    %c0_224 = arith.constant 0 : index
    %c0_225 = arith.constant 0 : index
    %556 = vector.load %arg2[%c39, %c0_224, %c0_225] : memref<49x8x2xbf16, #tpu.memory_space<vmem>>, vector<1x8x2xbf16>
    %557 = vector.shape_cast %556 : vector<1x8x2xbf16> to vector<8x2xbf16>
    %558 = arith.truncf %555 : vector<2x64xf32> to vector<2x64xbf16>
    %cst_226 = arith.constant dense<0.000000e+00> : vector<8x64xf32>
    %559 = tpu.matmul %557, %558, %cst_226 {dimension_numbers = #tpu.dot_dimension_numbers<[1], [0], [0], [1], [0, 0, 1, 1], [], []>} : vector<8x2xbf16>, vector<2x64xbf16>, vector<8x64xf32> -> vector<8x64xf32>
    %560 = arith.addf %545, %559 : vector<8x64xf32>
    %561 = vector.extract_strided_slice %1 {offsets = [0, 45], sizes = [2, 64], strides = [1, 1]} : vector<2x118xf32> to vector<2x64xf32>
    %c6_i32_227 = arith.constant 6 : i32
    %562 = vector.broadcast %c6_i32_227 : i32 to vector<1x64xi32>
    %563 = arith.cmpi slt, %2, %562 : vector<1x64xi32>
    %c6_i32_228 = arith.constant 6 : i32
    %564 = vector.broadcast %c6_i32_228 : i32 to vector<1x64xi32>
    %565 = arith.cmpi slt, %3, %564 : vector<1x64xi32>
    %566 = arith.andi %563, %565 : vector<1x64xi1>
    %cst_229 = arith.constant 0.000000e+00 : f32
    %567 = vector.shape_cast %566 : vector<1x64xi1> to vector<1x64xi1>
    %568 = vector.broadcast %567 : vector<1x64xi1> to vector<2x64xi1>
    %569 = vector.broadcast %cst_229 : f32 to vector<2x64xf32>
    %570 = arith.select %568, %561, %569 : vector<2x64xi1>, vector<2x64xf32>
    %c40 = arith.constant 40 : index
    %c0_230 = arith.constant 0 : index
    %c0_231 = arith.constant 0 : index
    %571 = vector.load %arg2[%c40, %c0_230, %c0_231] : memref<49x8x2xbf16, #tpu.memory_space<vmem>>, vector<1x8x2xbf16>
    %572 = vector.shape_cast %571 : vector<1x8x2xbf16> to vector<8x2xbf16>
    %573 = arith.truncf %570 : vector<2x64xf32> to vector<2x64xbf16>
    %cst_232 = arith.constant dense<0.000000e+00> : vector<8x64xf32>
    %574 = tpu.matmul %572, %573, %cst_232 {dimension_numbers = #tpu.dot_dimension_numbers<[1], [0], [0], [1], [0, 0, 1, 1], [], []>} : vector<8x2xbf16>, vector<2x64xbf16>, vector<8x64xf32> -> vector<8x64xf32>
    %575 = arith.addf %560, %574 : vector<8x64xf32>
    %576 = vector.extract_strided_slice %1 {offsets = [0, 46], sizes = [2, 64], strides = [1, 1]} : vector<2x118xf32> to vector<2x64xf32>
    %c6_i32_233 = arith.constant 6 : i32
    %577 = vector.broadcast %c6_i32_233 : i32 to vector<1x64xi32>
    %578 = arith.cmpi slt, %2, %577 : vector<1x64xi32>
    %c5_i32_234 = arith.constant 5 : i32
    %579 = vector.broadcast %c5_i32_234 : i32 to vector<1x64xi32>
    %580 = arith.cmpi slt, %3, %579 : vector<1x64xi32>
    %581 = arith.andi %578, %580 : vector<1x64xi1>
    %cst_235 = arith.constant 0.000000e+00 : f32
    %582 = vector.shape_cast %581 : vector<1x64xi1> to vector<1x64xi1>
    %583 = vector.broadcast %582 : vector<1x64xi1> to vector<2x64xi1>
    %584 = vector.broadcast %cst_235 : f32 to vector<2x64xf32>
    %585 = arith.select %583, %576, %584 : vector<2x64xi1>, vector<2x64xf32>
    %c41 = arith.constant 41 : index
    %c0_236 = arith.constant 0 : index
    %c0_237 = arith.constant 0 : index
    %586 = vector.load %arg2[%c41, %c0_236, %c0_237] : memref<49x8x2xbf16, #tpu.memory_space<vmem>>, vector<1x8x2xbf16>
    %587 = vector.shape_cast %586 : vector<1x8x2xbf16> to vector<8x2xbf16>
    %588 = arith.truncf %585 : vector<2x64xf32> to vector<2x64xbf16>
    %cst_238 = arith.constant dense<0.000000e+00> : vector<8x64xf32>
    %589 = tpu.matmul %587, %588, %cst_238 {dimension_numbers = #tpu.dot_dimension_numbers<[1], [0], [0], [1], [0, 0, 1, 1], [], []>} : vector<8x2xbf16>, vector<2x64xbf16>, vector<8x64xf32> -> vector<8x64xf32>
    %590 = arith.addf %575, %589 : vector<8x64xf32>
    %591 = vector.extract_strided_slice %1 {offsets = [0, 48], sizes = [2, 64], strides = [1, 1]} : vector<2x118xf32> to vector<2x64xf32>
    %c5_i32_239 = arith.constant 5 : i32
    %592 = vector.broadcast %c5_i32_239 : i32 to vector<1x64xi32>
    %593 = arith.cmpi slt, %2, %592 : vector<1x64xi32>
    %c3_i32_240 = arith.constant 3 : i32
    %594 = vector.broadcast %c3_i32_240 : i32 to vector<1x64xi32>
    %595 = arith.cmpi sge, %3, %594 : vector<1x64xi32>
    %596 = arith.andi %593, %595 : vector<1x64xi1>
    %cst_241 = arith.constant 0.000000e+00 : f32
    %597 = vector.shape_cast %596 : vector<1x64xi1> to vector<1x64xi1>
    %598 = vector.broadcast %597 : vector<1x64xi1> to vector<2x64xi1>
    %599 = vector.broadcast %cst_241 : f32 to vector<2x64xf32>
    %600 = arith.select %598, %591, %599 : vector<2x64xi1>, vector<2x64xf32>
    %c42 = arith.constant 42 : index
    %c0_242 = arith.constant 0 : index
    %c0_243 = arith.constant 0 : index
    %601 = vector.load %arg2[%c42, %c0_242, %c0_243] : memref<49x8x2xbf16, #tpu.memory_space<vmem>>, vector<1x8x2xbf16>
    %602 = vector.shape_cast %601 : vector<1x8x2xbf16> to vector<8x2xbf16>
    %603 = arith.truncf %600 : vector<2x64xf32> to vector<2x64xbf16>
    %cst_244 = arith.constant dense<0.000000e+00> : vector<8x64xf32>
    %604 = tpu.matmul %602, %603, %cst_244 {dimension_numbers = #tpu.dot_dimension_numbers<[1], [0], [0], [1], [0, 0, 1, 1], [], []>} : vector<8x2xbf16>, vector<2x64xbf16>, vector<8x64xf32> -> vector<8x64xf32>
    %605 = arith.addf %590, %604 : vector<8x64xf32>
    %606 = vector.extract_strided_slice %1 {offsets = [0, 49], sizes = [2, 64], strides = [1, 1]} : vector<2x118xf32> to vector<2x64xf32>
    %c5_i32_245 = arith.constant 5 : i32
    %607 = vector.broadcast %c5_i32_245 : i32 to vector<1x64xi32>
    %608 = arith.cmpi slt, %2, %607 : vector<1x64xi32>
    %c2_i32_246 = arith.constant 2 : i32
    %609 = vector.broadcast %c2_i32_246 : i32 to vector<1x64xi32>
    %610 = arith.cmpi sge, %3, %609 : vector<1x64xi32>
    %611 = arith.andi %608, %610 : vector<1x64xi1>
    %cst_247 = arith.constant 0.000000e+00 : f32
    %612 = vector.shape_cast %611 : vector<1x64xi1> to vector<1x64xi1>
    %613 = vector.broadcast %612 : vector<1x64xi1> to vector<2x64xi1>
    %614 = vector.broadcast %cst_247 : f32 to vector<2x64xf32>
    %615 = arith.select %613, %606, %614 : vector<2x64xi1>, vector<2x64xf32>
    %c43 = arith.constant 43 : index
    %c0_248 = arith.constant 0 : index
    %c0_249 = arith.constant 0 : index
    %616 = vector.load %arg2[%c43, %c0_248, %c0_249] : memref<49x8x2xbf16, #tpu.memory_space<vmem>>, vector<1x8x2xbf16>
    %617 = vector.shape_cast %616 : vector<1x8x2xbf16> to vector<8x2xbf16>
    %618 = arith.truncf %615 : vector<2x64xf32> to vector<2x64xbf16>
    %cst_250 = arith.constant dense<0.000000e+00> : vector<8x64xf32>
    %619 = tpu.matmul %617, %618, %cst_250 {dimension_numbers = #tpu.dot_dimension_numbers<[1], [0], [0], [1], [0, 0, 1, 1], [], []>} : vector<8x2xbf16>, vector<2x64xbf16>, vector<8x64xf32> -> vector<8x64xf32>
    %620 = arith.addf %605, %619 : vector<8x64xf32>
    %621 = vector.extract_strided_slice %1 {offsets = [0, 50], sizes = [2, 64], strides = [1, 1]} : vector<2x118xf32> to vector<2x64xf32>
    %c5_i32_251 = arith.constant 5 : i32
    %622 = vector.broadcast %c5_i32_251 : i32 to vector<1x64xi32>
    %623 = arith.cmpi slt, %2, %622 : vector<1x64xi32>
    %c1_i32_252 = arith.constant 1 : i32
    %624 = vector.broadcast %c1_i32_252 : i32 to vector<1x64xi32>
    %625 = arith.cmpi sge, %3, %624 : vector<1x64xi32>
    %626 = arith.andi %623, %625 : vector<1x64xi1>
    %cst_253 = arith.constant 0.000000e+00 : f32
    %627 = vector.shape_cast %626 : vector<1x64xi1> to vector<1x64xi1>
    %628 = vector.broadcast %627 : vector<1x64xi1> to vector<2x64xi1>
    %629 = vector.broadcast %cst_253 : f32 to vector<2x64xf32>
    %630 = arith.select %628, %621, %629 : vector<2x64xi1>, vector<2x64xf32>
    %c44 = arith.constant 44 : index
    %c0_254 = arith.constant 0 : index
    %c0_255 = arith.constant 0 : index
    %631 = vector.load %arg2[%c44, %c0_254, %c0_255] : memref<49x8x2xbf16, #tpu.memory_space<vmem>>, vector<1x8x2xbf16>
    %632 = vector.shape_cast %631 : vector<1x8x2xbf16> to vector<8x2xbf16>
    %633 = arith.truncf %630 : vector<2x64xf32> to vector<2x64xbf16>
    %cst_256 = arith.constant dense<0.000000e+00> : vector<8x64xf32>
    %634 = tpu.matmul %632, %633, %cst_256 {dimension_numbers = #tpu.dot_dimension_numbers<[1], [0], [0], [1], [0, 0, 1, 1], [], []>} : vector<8x2xbf16>, vector<2x64xbf16>, vector<8x64xf32> -> vector<8x64xf32>
    %635 = arith.addf %620, %634 : vector<8x64xf32>
    %636 = vector.extract_strided_slice %1 {offsets = [0, 51], sizes = [2, 64], strides = [1, 1]} : vector<2x118xf32> to vector<2x64xf32>
    %c5_i32_257 = arith.constant 5 : i32
    %637 = vector.broadcast %c5_i32_257 : i32 to vector<1x64xi32>
    %638 = arith.cmpi slt, %2, %637 : vector<1x64xi32>
    %cst_258 = arith.constant 0.000000e+00 : f32
    %639 = vector.shape_cast %638 : vector<1x64xi1> to vector<1x64xi1>
    %640 = vector.broadcast %639 : vector<1x64xi1> to vector<2x64xi1>
    %641 = vector.broadcast %cst_258 : f32 to vector<2x64xf32>
    %642 = arith.select %640, %636, %641 : vector<2x64xi1>, vector<2x64xf32>
    %c45 = arith.constant 45 : index
    %c0_259 = arith.constant 0 : index
    %c0_260 = arith.constant 0 : index
    %643 = vector.load %arg2[%c45, %c0_259, %c0_260] : memref<49x8x2xbf16, #tpu.memory_space<vmem>>, vector<1x8x2xbf16>
    %644 = vector.shape_cast %643 : vector<1x8x2xbf16> to vector<8x2xbf16>
    %645 = arith.truncf %642 : vector<2x64xf32> to vector<2x64xbf16>
    %cst_261 = arith.constant dense<0.000000e+00> : vector<8x64xf32>
    %646 = tpu.matmul %644, %645, %cst_261 {dimension_numbers = #tpu.dot_dimension_numbers<[1], [0], [0], [1], [0, 0, 1, 1], [], []>} : vector<8x2xbf16>, vector<2x64xbf16>, vector<8x64xf32> -> vector<8x64xf32>
    %647 = arith.addf %635, %646 : vector<8x64xf32>
    %648 = vector.extract_strided_slice %1 {offsets = [0, 52], sizes = [2, 64], strides = [1, 1]} : vector<2x118xf32> to vector<2x64xf32>
    %c5_i32_262 = arith.constant 5 : i32
    %649 = vector.broadcast %c5_i32_262 : i32 to vector<1x64xi32>
    %650 = arith.cmpi slt, %2, %649 : vector<1x64xi32>
    %c7_i32_263 = arith.constant 7 : i32
    %651 = vector.broadcast %c7_i32_263 : i32 to vector<1x64xi32>
    %652 = arith.cmpi slt, %3, %651 : vector<1x64xi32>
    %653 = arith.andi %650, %652 : vector<1x64xi1>
    %cst_264 = arith.constant 0.000000e+00 : f32
    %654 = vector.shape_cast %653 : vector<1x64xi1> to vector<1x64xi1>
    %655 = vector.broadcast %654 : vector<1x64xi1> to vector<2x64xi1>
    %656 = vector.broadcast %cst_264 : f32 to vector<2x64xf32>
    %657 = arith.select %655, %648, %656 : vector<2x64xi1>, vector<2x64xf32>
    %c46 = arith.constant 46 : index
    %c0_265 = arith.constant 0 : index
    %c0_266 = arith.constant 0 : index
    %658 = vector.load %arg2[%c46, %c0_265, %c0_266] : memref<49x8x2xbf16, #tpu.memory_space<vmem>>, vector<1x8x2xbf16>
    %659 = vector.shape_cast %658 : vector<1x8x2xbf16> to vector<8x2xbf16>
    %660 = arith.truncf %657 : vector<2x64xf32> to vector<2x64xbf16>
    %cst_267 = arith.constant dense<0.000000e+00> : vector<8x64xf32>
    %661 = tpu.matmul %659, %660, %cst_267 {dimension_numbers = #tpu.dot_dimension_numbers<[1], [0], [0], [1], [0, 0, 1, 1], [], []>} : vector<8x2xbf16>, vector<2x64xbf16>, vector<8x64xf32> -> vector<8x64xf32>
    %662 = arith.addf %647, %661 : vector<8x64xf32>
    %663 = vector.extract_strided_slice %1 {offsets = [0, 53], sizes = [2, 64], strides = [1, 1]} : vector<2x118xf32> to vector<2x64xf32>
    %c5_i32_268 = arith.constant 5 : i32
    %664 = vector.broadcast %c5_i32_268 : i32 to vector<1x64xi32>
    %665 = arith.cmpi slt, %2, %664 : vector<1x64xi32>
    %c6_i32_269 = arith.constant 6 : i32
    %666 = vector.broadcast %c6_i32_269 : i32 to vector<1x64xi32>
    %667 = arith.cmpi slt, %3, %666 : vector<1x64xi32>
    %668 = arith.andi %665, %667 : vector<1x64xi1>
    %cst_270 = arith.constant 0.000000e+00 : f32
    %669 = vector.shape_cast %668 : vector<1x64xi1> to vector<1x64xi1>
    %670 = vector.broadcast %669 : vector<1x64xi1> to vector<2x64xi1>
    %671 = vector.broadcast %cst_270 : f32 to vector<2x64xf32>
    %672 = arith.select %670, %663, %671 : vector<2x64xi1>, vector<2x64xf32>
    %c47 = arith.constant 47 : index
    %c0_271 = arith.constant 0 : index
    %c0_272 = arith.constant 0 : index
    %673 = vector.load %arg2[%c47, %c0_271, %c0_272] : memref<49x8x2xbf16, #tpu.memory_space<vmem>>, vector<1x8x2xbf16>
    %674 = vector.shape_cast %673 : vector<1x8x2xbf16> to vector<8x2xbf16>
    %675 = arith.truncf %672 : vector<2x64xf32> to vector<2x64xbf16>
    %cst_273 = arith.constant dense<0.000000e+00> : vector<8x64xf32>
    %676 = tpu.matmul %674, %675, %cst_273 {dimension_numbers = #tpu.dot_dimension_numbers<[1], [0], [0], [1], [0, 0, 1, 1], [], []>} : vector<8x2xbf16>, vector<2x64xbf16>, vector<8x64xf32> -> vector<8x64xf32>
    %677 = arith.addf %662, %676 : vector<8x64xf32>
    %678 = vector.extract_strided_slice %1 {offsets = [0, 54], sizes = [2, 64], strides = [1, 1]} : vector<2x118xf32> to vector<2x64xf32>
    %c5_i32_274 = arith.constant 5 : i32
    %679 = vector.broadcast %c5_i32_274 : i32 to vector<1x64xi32>
    %680 = arith.cmpi slt, %2, %679 : vector<1x64xi32>
    %c5_i32_275 = arith.constant 5 : i32
    %681 = vector.broadcast %c5_i32_275 : i32 to vector<1x64xi32>
    %682 = arith.cmpi slt, %3, %681 : vector<1x64xi32>
    %683 = arith.andi %680, %682 : vector<1x64xi1>
    %cst_276 = arith.constant 0.000000e+00 : f32
    %684 = vector.shape_cast %683 : vector<1x64xi1> to vector<1x64xi1>
    %685 = vector.broadcast %684 : vector<1x64xi1> to vector<2x64xi1>
    %686 = vector.broadcast %cst_276 : f32 to vector<2x64xf32>
    %687 = arith.select %685, %678, %686 : vector<2x64xi1>, vector<2x64xf32>
    %c48 = arith.constant 48 : index
    %c0_277 = arith.constant 0 : index
    %c0_278 = arith.constant 0 : index
    %688 = vector.load %arg2[%c48, %c0_277, %c0_278] : memref<49x8x2xbf16, #tpu.memory_space<vmem>>, vector<1x8x2xbf16>
    %689 = vector.shape_cast %688 : vector<1x8x2xbf16> to vector<8x2xbf16>
    %690 = arith.truncf %687 : vector<2x64xf32> to vector<2x64xbf16>
    %cst_279 = arith.constant dense<0.000000e+00> : vector<8x64xf32>
    %691 = tpu.matmul %689, %690, %cst_279 {dimension_numbers = #tpu.dot_dimension_numbers<[1], [0], [0], [1], [0, 0, 1, 1], [], []>} : vector<8x2xbf16>, vector<2x64xbf16>, vector<8x64xf32> -> vector<8x64xf32>
    %692 = arith.addf %677, %691 : vector<8x64xf32>
    %c0_280 = arith.constant 0 : index
    %c0_281 = arith.constant 0 : index
    %693 = vector.load %arg3[%c0_280, %c0_281] : memref<8x1xf32, #tpu.memory_space<vmem>>, vector<8x1xf32>
    %694 = vector.broadcast %693 : vector<8x1xf32> to vector<8x64xf32>
    %695 = arith.addf %692, %694 : vector<8x64xf32>
    %cst_282 = arith.constant 0.000000e+00 : f32
    %696 = vector.broadcast %cst_282 : f32 to vector<8x64xf32>
    %697 = arith.maximumf %695, %696 : vector<8x64xf32>
    %c0_283 = arith.constant 0 : index
    %c0_284 = arith.constant 0 : index
    %c0_285 = arith.constant 0 : index
    %698 = vector.load %arg6[%c0_283, %c0_284, %c0_285] : memref<1x8x64xf32, #tpu.memory_space<vmem>>, vector<1x8x64xf32>
    %699 = vector.shape_cast %698 : vector<1x8x64xf32> to vector<8x64xf32>
    %700 = vector.shape_cast %697 : vector<8x64xf32> to vector<1x8x64xf32>
    tpu.vector_store %arg6[%c0_283, %c0_284, %c0_285], %700 {strides = array<i32>} : memref<1x8x64xf32, #tpu.memory_space<vmem>>, vector<1x8x64xf32>,
    return
  }
  func.func @transform_0(%arg0: i32) -> (i32, i32, i32, i32) {
    %c0_i32 = arith.constant 0 : i32
    %c0_i32_0 = arith.constant 0 : i32
    %c0_i32_1 = arith.constant 0 : i32
    %c0_i32_2 = arith.constant 0 : i32
    return %arg0, %c0_i32, %c0_i32_0, %c0_i32_1 : i32, i32, i32, i32
  }
  func.func @transform_1(%arg0: i32) -> (i32, i32, i32) {
    %c0_i32 = arith.constant 0 : i32
    %c0_i32_0 = arith.constant 0 : i32
    %c0_i32_1 = arith.constant 0 : i32
    %c0_i32_2 = arith.constant 0 : i32
    return %c0_i32, %c0_i32_0, %c0_i32_1 : i32, i32, i32
  }
  func.func @transform_2(%arg0: i32) -> (i32, i32) {
    %c0_i32 = arith.constant 0 : i32
    %c0_i32_0 = arith.constant 0 : i32
    %c0_i32_1 = arith.constant 0 : i32
    return %c0_i32, %c0_i32_0 : i32, i32
  }
  func.func @transform_3(%arg0: i32) -> (i32, i32) {
    %c0_i32 = arith.constant 0 : i32
    %c0_i32_0 = arith.constant 0 : i32
    %c0_i32_1 = arith.constant 0 : i32
    return %c0_i32, %c0_i32_0 : i32, i32
  }
  func.func @transform_4(%arg0: i32) -> (i32, i32) {
    %c0_i32 = arith.constant 0 : i32
    %c0_i32_0 = arith.constant 0 : i32
    %c0_i32_1 = arith.constant 0 : i32
    return %c0_i32, %c0_i32_0 : i32, i32
  }
  func.func @transform_5(%arg0: i32) -> (i32, i32, i32) {
    %c0_i32 = arith.constant 0 : i32
    %c0_i32_0 = arith.constant 0 : i32
    %c0_i32_1 = arith.constant 0 : i32
    return %arg0, %c0_i32, %c0_i32_0 : i32, i32, i32
  }
}

module attributes {stable_mosaic.version = 11 : i64} {
  func.func @_conv_bn_act_kernel(%arg0: i32, %arg1: memref<1x1x8x256xf32, #tpu.memory_space<vmem>>, %arg2: memref<1x8x8xbf16, #tpu.memory_space<vmem>>, %arg3: memref<8x1xf32, #tpu.memory_space<vmem>>, %arg4: memref<1x256xi32, #tpu.memory_space<vmem>>, %arg5: memref<1x256xi32, #tpu.memory_space<vmem>>, %arg6: memref<1x8x256xf32, #tpu.memory_space<vmem>>) attributes {dimension_semantics = [#tpu.dimension_semantics<parallel>], iteration_bounds = array<i64: 2>, scalar_prefetch = 0 : i64, scratch_operands = 0 : i64, tpu.core_type = #tpu.core_type<tc>, window_params = [{transform_indices = @transform_0, window_bounds = array<i64: 1, 1, 8, 256>}, {pipeline_mode = #tpu.pipeline_mode<synchronous>, transform_indices = @transform_1, window_bounds = array<i64: 1, 8, 8>}, {pipeline_mode = #tpu.pipeline_mode<synchronous>, transform_indices = @transform_2, window_bounds = array<i64: 8, 1>}, {pipeline_mode = #tpu.pipeline_mode<synchronous>, transform_indices = @transform_3, window_bounds = array<i64: 1, 256>}, {pipeline_mode = #tpu.pipeline_mode<synchronous>, transform_indices = @transform_4, window_bounds = array<i64: 1, 256>}, {transform_indices = @transform_5, window_bounds = array<i64: 1, 8, 256>}]} {
    %c0 = arith.constant 0 : index
    %c0_0 = arith.constant 0 : index
    %c0_1 = arith.constant 0 : index
    %c0_2 = arith.constant 0 : index
    %0 = vector.load %arg1[%c0, %c0_0, %c0_1, %c0_2] : memref<1x1x8x256xf32, #tpu.memory_space<vmem>>, vector<1x1x8x256xf32>
    %1 = vector.shape_cast %0 : vector<1x1x8x256xf32> to vector<8x256xf32>
    %c0_3 = arith.constant 0 : index
    %c0_4 = arith.constant 0 : index
    %c0_5 = arith.constant 0 : index
    %2 = vector.load %arg2[%c0_3, %c0_4, %c0_5] : memref<1x8x8xbf16, #tpu.memory_space<vmem>>, vector<1x8x8xbf16>
    %3 = vector.shape_cast %2 : vector<1x8x8xbf16> to vector<8x8xbf16>
    %4 = arith.truncf %1 : vector<8x256xf32> to vector<8x256xbf16>
    %cst = arith.constant dense<0.000000e+00> : vector<8x256xf32>
    %5 = tpu.matmul %3, %4, %cst {dimension_numbers = #tpu.dot_dimension_numbers<[1], [0], [0], [1], [0, 0, 1, 1], [], []>} : vector<8x8xbf16>, vector<8x256xbf16>, vector<8x256xf32> -> vector<8x256xf32>
    %c0_6 = arith.constant 0 : index
    %c0_7 = arith.constant 0 : index
    %6 = vector.load %arg3[%c0_6, %c0_7] : memref<8x1xf32, #tpu.memory_space<vmem>>, vector<8x1xf32>
    %7 = vector.broadcast %6 : vector<8x1xf32> to vector<8x256xf32>
    %8 = arith.addf %5, %7 : vector<8x256xf32>
    %c0_8 = arith.constant 0 : index
    %c0_9 = arith.constant 0 : index
    %c0_10 = arith.constant 0 : index
    %9 = vector.load %arg6[%c0_8, %c0_9, %c0_10] : memref<1x8x256xf32, #tpu.memory_space<vmem>>, vector<1x8x256xf32>
    %10 = vector.shape_cast %9 : vector<1x8x256xf32> to vector<8x256xf32>
    %11 = vector.shape_cast %8 : vector<8x256xf32> to vector<1x8x256xf32>
    tpu.vector_store %arg6[%c0_8, %c0_9, %c0_10], %11 {strides = array<i32>} : memref<1x8x256xf32, #tpu.memory_space<vmem>>, vector<1x8x256xf32>,
    return
  }
  func.func @transform_0(%arg0: i32) -> (i32, i32, i32, i32) {
    %c0_i32 = arith.constant 0 : i32
    %c0_i32_0 = arith.constant 0 : i32
    %c0_i32_1 = arith.constant 0 : i32
    %c0_i32_2 = arith.constant 0 : i32
    return %arg0, %c0_i32, %c0_i32_0, %c0_i32_1 : i32, i32, i32, i32
  }
  func.func @transform_1(%arg0: i32) -> (i32, i32, i32) {
    %c0_i32 = arith.constant 0 : i32
    %c0_i32_0 = arith.constant 0 : i32
    %c0_i32_1 = arith.constant 0 : i32
    %c0_i32_2 = arith.constant 0 : i32
    return %c0_i32, %c0_i32_0, %c0_i32_1 : i32, i32, i32
  }
  func.func @transform_2(%arg0: i32) -> (i32, i32) {
    %c0_i32 = arith.constant 0 : i32
    %c0_i32_0 = arith.constant 0 : i32
    %c0_i32_1 = arith.constant 0 : i32
    return %c0_i32, %c0_i32_0 : i32, i32
  }
  func.func @transform_3(%arg0: i32) -> (i32, i32) {
    %c0_i32 = arith.constant 0 : i32
    %c0_i32_0 = arith.constant 0 : i32
    %c0_i32_1 = arith.constant 0 : i32
    return %c0_i32, %c0_i32_0 : i32, i32
  }
  func.func @transform_4(%arg0: i32) -> (i32, i32) {
    %c0_i32 = arith.constant 0 : i32
    %c0_i32_0 = arith.constant 0 : i32
    %c0_i32_1 = arith.constant 0 : i32
    return %c0_i32, %c0_i32_0 : i32, i32
  }
  func.func @transform_5(%arg0: i32) -> (i32, i32, i32) {
    %c0_i32 = arith.constant 0 : i32
    %c0_i32_0 = arith.constant 0 : i32
    %c0_i32_1 = arith.constant 0 : i32
    return %arg0, %c0_i32, %c0_i32_0 : i32, i32, i32
  }
}

module attributes {stable_mosaic.version = 11 : i64} {
  func.func @_gap_gpb_kernel(%arg0: i32, %arg1: memref<1x8x256xf32, #tpu.memory_space<vmem>>, %arg2: memref<8x8xbf16, #tpu.memory_space<vmem>>, %arg3: memref<8x1xf32, #tpu.memory_space<vmem>>, %arg4: memref<1x8x1xf32, #tpu.memory_space<vmem>>) attributes {dimension_semantics = [#tpu.dimension_semantics<parallel>], iteration_bounds = array<i64: 2>, scalar_prefetch = 0 : i64, scratch_operands = 0 : i64, tpu.core_type = #tpu.core_type<tc>, window_params = [{transform_indices = @transform_0, window_bounds = array<i64: 1, 8, 256>}, {pipeline_mode = #tpu.pipeline_mode<synchronous>, transform_indices = @transform_1, window_bounds = array<i64: 8, 8>}, {pipeline_mode = #tpu.pipeline_mode<synchronous>, transform_indices = @transform_2, window_bounds = array<i64: 8, 1>}, {transform_indices = @transform_3, window_bounds = array<i64: 1, 8, 1>}]} {
    %c0 = arith.constant 0 : index
    %c0_0 = arith.constant 0 : index
    %c0_1 = arith.constant 0 : index
    %0 = vector.load %arg1[%c0, %c0_0, %c0_1] : memref<1x8x256xf32, #tpu.memory_space<vmem>>, vector<1x8x256xf32>
    %1 = vector.shape_cast %0 : vector<1x8x256xf32> to vector<8x256xf32>
    %cst = arith.constant dense<0.000000e+00> : vector<8xf32>
    %2 = vector.multi_reduction <add>, %1, %cst [1] : vector<8x256xf32> to vector<8xf32>
    %3 = vector.shape_cast %2 : vector<8xf32> to vector<8x1xf32>
    %cst_2 = arith.constant 3.906250e-03 : f32
    %4 = vector.broadcast %cst_2 : f32 to vector<8x1xf32>
    %5 = arith.mulf %3, %4 : vector<8x1xf32>
    %c0_3 = arith.constant 0 : index
    %c0_4 = arith.constant 0 : index
    %6 = vector.load %arg2[%c0_3, %c0_4] : memref<8x8xbf16, #tpu.memory_space<vmem>>, vector<8x8xbf16>
    %7 = arith.truncf %5 : vector<8x1xf32> to vector<8x1xbf16>
    %cst_5 = arith.constant dense<0.000000e+00> : vector<8x1xf32>
    %8 = tpu.matmul %6, %7, %cst_5 {dimension_numbers = #tpu.dot_dimension_numbers<[1], [0], [0], [1], [0, 0, 1, 1], [], []>} : vector<8x8xbf16>, vector<8x1xbf16>, vector<8x1xf32> -> vector<8x1xf32>
    %c0_6 = arith.constant 0 : index
    %c0_7 = arith.constant 0 : index
    %9 = vector.load %arg3[%c0_6, %c0_7] : memref<8x1xf32, #tpu.memory_space<vmem>>, vector<8x1xf32>
    %10 = arith.addf %8, %9 : vector<8x1xf32>
    %c0_8 = arith.constant 0 : index
    %c0_9 = arith.constant 0 : index
    %c0_10 = arith.constant 0 : index
    %11 = vector.load %arg4[%c0_8, %c0_9, %c0_10] : memref<1x8x1xf32, #tpu.memory_space<vmem>>, vector<1x8x1xf32>
    %12 = vector.shape_cast %11 : vector<1x8x1xf32> to vector<8x1xf32>
    %13 = vector.shape_cast %10 : vector<8x1xf32> to vector<1x8x1xf32>
    tpu.vector_store %arg4[%c0_8, %c0_9, %c0_10], %13 {strides = array<i32>} : memref<1x8x1xf32, #tpu.memory_space<vmem>>, vector<1x8x1xf32>,
    return
  }
  func.func @transform_0(%arg0: i32) -> (i32, i32, i32) {
    %c0_i32 = arith.constant 0 : i32
    %c0_i32_0 = arith.constant 0 : i32
    %c0_i32_1 = arith.constant 0 : i32
    return %arg0, %c0_i32, %c0_i32_0 : i32, i32, i32
  }
  func.func @transform_1(%arg0: i32) -> (i32, i32) {
    %c0_i32 = arith.constant 0 : i32
    %c0_i32_0 = arith.constant 0 : i32
    %c0_i32_1 = arith.constant 0 : i32
    return %c0_i32, %c0_i32_0 : i32, i32
  }
  func.func @transform_2(%arg0: i32) -> (i32, i32) {
    %c0_i32 = arith.constant 0 : i32
    %c0_i32_0 = arith.constant 0 : i32
    %c0_i32_1 = arith.constant 0 : i32
    return %c0_i32, %c0_i32_0 : i32, i32
  }
  func.func @transform_3(%arg0: i32) -> (i32, i32, i32) {
    %c0_i32 = arith.constant 0 : i32
    %c0_i32_0 = arith.constant 0 : i32
    %c0_i32_1 = arith.constant 0 : i32
    return %arg0, %c0_i32, %c0_i32_0 : i32, i32, i32
  }
}

module attributes {stable_mosaic.version = 11 : i64} {
  func.func @_final_hup_kernel(%arg0: i32, %arg1: memref<16x8xbf16, #tpu.memory_space<vmem>>, %arg2: memref<8x256xf32, #tpu.memory_space<vmem>>, %arg3: memref<16x256xf32, #tpu.memory_space<vmem>>, %arg4: memref<1x256xf32, #tpu.memory_space<vmem>>, %arg5: memref<16x256xf32, #tpu.memory_space<vmem>>) attributes {dimension_semantics = [#tpu.dimension_semantics<parallel>], iteration_bounds = array<i64: 1>, scalar_prefetch = 0 : i64, scratch_operands = 0 : i64, tpu.core_type = #tpu.core_type<tc>, window_params = [{pipeline_mode = #tpu.pipeline_mode<synchronous>, transform_indices = @transform_0, window_bounds = array<i64: 16, 8>}, {transform_indices = @transform_1, window_bounds = array<i64: 8, 256>}, {transform_indices = @transform_2, window_bounds = array<i64: 16, 256>}, {transform_indices = @transform_3, window_bounds = array<i64: 1, 256>}, {transform_indices = @transform_4, window_bounds = array<i64: 16, 256>}]} {
    %c0 = arith.constant 0 : index
    %c0_0 = arith.constant 0 : index
    %0 = vector.load %arg1[%c0, %c0_0] : memref<16x8xbf16, #tpu.memory_space<vmem>>, vector<16x8xbf16>
    %c0_1 = arith.constant 0 : index
    %c0_2 = arith.constant 0 : index
    %1 = vector.load %arg2[%c0_1, %c0_2] : memref<8x256xf32, #tpu.memory_space<vmem>>, vector<8x256xf32>
    %2 = arith.truncf %1 : vector<8x256xf32> to vector<8x256xbf16>
    %cst = arith.constant dense<0.000000e+00> : vector<16x256xf32>
    %3 = tpu.matmul %0, %2, %cst {dimension_numbers = #tpu.dot_dimension_numbers<[1], [0], [0], [1], [0, 0, 1, 1], [], []>} : vector<16x8xbf16>, vector<8x256xbf16>, vector<16x256xf32> -> vector<16x256xf32>
    %c0_3 = arith.constant 0 : index
    %c0_4 = arith.constant 0 : index
    %4 = vector.load %arg3[%c0_3, %c0_4] : memref<16x256xf32, #tpu.memory_space<vmem>>, vector<16x256xf32>
    %5 = arith.mulf %4, %3 : vector<16x256xf32>
    %c0_5 = arith.constant 0 : index
    %c0_6 = arith.constant 0 : index
    %6 = vector.load %arg4[%c0_5, %c0_6] : memref<1x256xf32, #tpu.memory_space<vmem>>, vector<1x256xf32>
    %7 = vector.broadcast %6 : vector<1x256xf32> to vector<16x256xf32>
    %8 = arith.addf %5, %7 : vector<16x256xf32>
    %c0_7 = arith.constant 0 : index
    %c0_8 = arith.constant 0 : index
    %9 = vector.load %arg5[%c0_7, %c0_8] : memref<16x256xf32, #tpu.memory_space<vmem>>, vector<16x256xf32>
    tpu.vector_store %arg5[%c0_7, %c0_8], %8 {strides = array<i32>} : memref<16x256xf32, #tpu.memory_space<vmem>>, vector<16x256xf32>,
    return
  }
  func.func @transform_0(%arg0: i32) -> (i32, i32) {
    %c0_i32 = arith.constant 0 : i32
    %c0_i32_0 = arith.constant 0 : i32
    %c0_i32_1 = arith.constant 0 : i32
    return %c0_i32, %c0_i32_0 : i32, i32
  }
  func.func @transform_1(%arg0: i32) -> (i32, i32) {
    %c0_i32 = arith.constant 0 : i32
    %c0_i32_0 = arith.constant 0 : i32
    return %c0_i32, %arg0 : i32, i32
  }
  func.func @transform_2(%arg0: i32) -> (i32, i32) {
    %c0_i32 = arith.constant 0 : i32
    %c0_i32_0 = arith.constant 0 : i32
    return %c0_i32, %arg0 : i32, i32
  }
  func.func @transform_3(%arg0: i32) -> (i32, i32) {
    %c0_i32 = arith.constant 0 : i32
    %c0_i32_0 = arith.constant 0 : i32
    return %c0_i32, %arg0 : i32, i32
  }
  func.func @transform_4(%arg0: i32) -> (i32, i32) {
    %c0_i32 = arith.constant 0 : i32
    %c0_i32_0 = arith.constant 0 : i32
    return %c0_i32, %arg0 : i32, i32
  }
}

</mosaic_0001>

<llo_original>
// kernel: fpa_forward.15
$region0: #{fpa_forward.15}
  #allocation0 [shape = 'u32[]', space=smem, size = 0x4, offset = 0x4, fixed_abs, tag = 'smem constant byte address 0x4 - core index']
  #allocation1 [shape = 'u32[72,128]{1,0:T(1,128)}', space=vmem, size = 0x9000, scoped, tag = 'internal scratch']
  %s0 = inlined_call_operand.vmem [shape: bf16[8,4], index: 0, kind: input, shape index: {}]
  %s1 = inlined_call_operand.vmem [shape: f32[4,64], index: 1, kind: input, shape index: {}]
  %s2 = inlined_call_operand.vmem [shape: f32[8,64], index: 2, kind: output, shape index: {}]
  %s3 = sld [smem:[#allocation0]]
  $region18: #{fpa_forward.15} parent=0
    _
  %s5 = ssub.s32 1, %s3
  %s6 = scalar_select 0, %s5, %s3
  // Predicated region
  $region2: #{fpa_forward.15} parent=0 // pred_check
    _
  $region3: #{fpa_forward.15} parent=0 // pred_check_branch
    %8 = sbr.rel (0) target = $region5
  $region4: #{fpa_forward.15} parent=0 // pred_region
    _
  $region5: #{fpa_forward.15} parent=0 // pred_fallthru
    _
  // Predicated region
  $region6: #{fpa_forward.15} parent=0 // pred_check
    _
  $region7: #{fpa_forward.15} parent=0 // pred_check_branch
    %10 = sbr.rel (0) target = $region9
  $region8: #{fpa_forward.15} parent=0 // pred_region
    _
  $region9: #{fpa_forward.15} parent=0 // pred_fallthru
    _
  %v12 = vld [vmem:[%s0] sm:$0xf]
  %v13 = vld [vmem:[%s1] sm:$0xf]
  %v14 = vpack.c.bf16 %v13, %v13
  %vm15 = vcmask 31744
  %v17 = vsel %vm15, %v12, 0
  %vm19 = vcmask 1041408
  %v21 = vsel %vm19, %v14, 0
  %23 = vmatpush.bf16.msra.mxu0 0
  %24 = vmatpush.bf16.msra.mxu0 0
  %25 = vmatpush.bf16.msra.mxu0 0
  %26 = vmatpush.bf16.msra.mxu0 0
  %27 = vmatpush.bf16.msra.mxu0 0
  %28 = vmatpush.bf16.msra.mxu0 0
  %29 = vmatpush.bf16.msra.mxu0 0
  %30 = vmatpush.bf16.msra.mxu0 %v21
  %31 = vmatmul.bf16.gmra.mxu0 %v17
  %v32 = vpop.f32.mrf.mxu0
  %v33 = vadd.f32 0.0, %v32
  %v34 = vpop.f32.mrf.mxu0
  %35 = vdwg.mxu0
  %vm36 = vcmask 523264
  %37 = vst.msk [vmem:[%s2] sm:$0xff] %vm36, %v33
  // Predicated region
  $region10: #{fpa_forward.15} parent=0 // pred_check
    _
  $region11: #{fpa_forward.15} parent=0 // pred_check_branch
    %39 = sbr.rel (0) target = $region13
  $region12: #{fpa_forward.15} parent=0 // pred_region
    _
  $region13: #{fpa_forward.15} parent=0 // pred_fallthru
    _
  // Predicated region
  $region14: #{fpa_forward.15} parent=0 // pred_check
    _
  $region15: #{fpa_forward.15} parent=0 // pred_check_branch
    %41 = sbr.rel (0) target = $region17
  $region16: #{fpa_forward.15} parent=0 // pred_region
    _
  $region17: #{fpa_forward.15} parent=0 // pred_fallthru
    _

// kernel: fpa_forward.13
$region0: #{fpa_forward.13}
  #allocation0 [shape = 'u32[]', space=smem, size = 0x4, offset = 0x4, fixed_abs, tag = 'smem constant byte address 0x4 - core index']
  #allocation1 [shape = 'u32[72,128]{1,0:T(1,128)}', space=vmem, size = 0x9000, scoped, tag = 'internal scratch']
  %s0 = inlined_call_operand.vmem [shape: f32[2,4,2,26], index: 0, kind: input, shape index: {}]
  %s1 = inlined_call_operand.vmem [shape: bf16[25,2,2], index: 1, kind: input, shape index: {}]
  %s2 = inlined_call_operand.vmem [shape: f32[2,1], index: 2, kind: input, shape index: {}]
  %s3 = inlined_call_operand.vmem [shape: s32[1,16], index: 3, kind: input, shape index: {}]
  %s4 = inlined_call_operand.vmem [shape: s32[1,16], index: 4, kind: input, shape index: {}]
  %s5 = inlined_call_operand.vmem [shape: f32[2,2,16], index: 5, kind: output, shape index: {}]
  %s6 = sld [smem:[#allocation0]]
  $region53: #{fpa_forward.13} parent=0
    _
  %s8 = ssub.s32 1, %s6
  %s9 = scalar_select 0, %s8, %s6
  loop: start=0, step=1, limit=4
  $region2: #{fpa_forward.13} parent=0 // loop_pre_header
    _
  $region3: #{fpa_forward.13} parent=0 // loop_header
    %s11 = sphi 0, %s15
    %p12 = scmp.ge.s32.totalorder %s11, 4
    %s21 = sphi 0, %s23
    %s24 = sphi 0, %s21
    %s25 = sphi 0, %s24
    %s41 = sphi 0, %s25
    %s45 = sphi 0, %s45
    %s47 = sphi 0, %s45
    %s48 = sphi 0, %s47
    %s62 = sphi 0, %s48
    %s66 = sphi 0, %s66
    %s68 = sphi 0, %s66
    %s69 = sphi 0, %s68
    %s83 = sphi 0, %s69
    %s87 = sphi 0, %s87
    %s89 = sphi 0, %s87
    %s90 = sphi 0, %s89
    %s104 = sphi 0, %s90
    %s108 = sphi 0, %s108
    %s110 = sphi 0, %s108
    %s111 = sphi 0, %s110
    %s125 = sphi 0, %s111
    %s131 = sphi 0, %s133
    %s134 = sphi 0, %s131
    %s135 = sphi 0, %s134
    %s151 = sphi 0, %s135
  $region4: #{fpa_forward.13} parent=0 // loop_header_branch
    %14 = sbr.rel (%p12) target = $region8
  $region5: #{fpa_forward.13} parent=0 // loop_body
    %s16 = ssub.s32 %s11, 1
    %s17 = ssub.s32 %s11, 2
    %s18 = sadd.s32 %s11, 1
    %s19 = ssub.s32 %s11, %s18
    %p20 = scmp.eq.s32.totalorder %s19, 0
    %s22 = sadd.s32 %s21, 1
    %s23 = scalar_select %p20, %s21, %s22
    %p26 = pneg %p20
    %p27 = scmp.eq.s32.totalorder %s11, 1
    %p28 = por %p26, %p27
    %p29 = scmp.ne.s32.totalorder %s21, %s24
    %p30 = scmp.eq.s32.totalorder %s11, 0
    %p31 = por %p29, %p30
    %p32 = scmp.ne.s32.totalorder %s21, %s24
    %p33 = scmp.eq.s32.totalorder %s16, 1
    %p34 = por %p32, %p33
    %p35 = scmp.ne.s32.totalorder %s24, %s25
    %p36 = scmp.eq.s32.totalorder %s16, 0
    %p37 = por %p35, %p36
    %p38 = scmp.ne.s32.totalorder %s24, %s25
    %p39 = scmp.eq.s32.totalorder %s17, 1
    %p40 = por %p38, %p39
    %p42 = scmp.ne.s32.totalorder %s25, %s41
    %p43 = scmp.eq.s32.totalorder %s17, 0
    %p44 = por %p42, %p43
    %s46 = sadd.s32 %s45, 1
    %p49 = scmp.eq.s32.totalorder %s11, 1
    %p50 = scmp.ne.s32.totalorder %s45, %s47
    %p51 = scmp.eq.s32.totalorder %s11, 0
    %p52 = por %p50, %p51
    %p53 = scmp.ne.s32.totalorder %s45, %s47
    %p54 = scmp.eq.s32.totalorder %s16, 1
    %p55 = por %p53, %p54
    %p56 = scmp.ne.s32.totalorder %s47, %s48
    %p57 = scmp.eq.s32.totalorder %s16, 0
    %p58 = por %p56, %p57
    %p59 = scmp.ne.s32.totalorder %s47, %s48
    %p60 = scmp.eq.s32.totalorder %s17, 1
    %p61 = por %p59, %p60
    %p63 = scmp.ne.s32.totalorder %s48, %s62
    %p64 = scmp.eq.s32.totalorder %s17, 0
    %p65 = por %p63, %p64
    %s67 = sadd.s32 %s66, 1
    %p70 = scmp.eq.s32.totalorder %s11, 1
    %p71 = scmp.ne.s32.totalorder %s66, %s68
    %p72 = scmp.eq.s32.totalorder %s11, 0
    %p73 = por %p71, %p72
    %p74 = scmp.ne.s32.totalorder %s66, %s68
    %p75 = scmp.eq.s32.totalorder %s16, 1
    %p76 = por %p74, %p75
    %p77 = scmp.ne.s32.totalorder %s68, %s69
    %p78 = scmp.eq.s32.totalorder %s16, 0
    %p79 = por %p77, %p78
    %p80 = scmp.ne.s32.totalorder %s68, %s69
    %p81 = scmp.eq.s32.totalorder %s17, 1
    %p82 = por %p80, %p81
    %p84 = scmp.ne.s32.totalorder %s69, %s83
    %p85 = scmp.eq.s32.totalorder %s17, 0
    %p86 = por %p84, %p85
    %s88 = sadd.s32 %s87, 1
    %p91 = scmp.eq.s32.totalorder %s11, 1
    %p92 = scmp.ne.s32.totalorder %s87, %s89
    %p93 = scmp.eq.s32.totalorder %s11, 0
    %p94 = por %p92, %p93
    %p95 = scmp.ne.s32.totalorder %s87, %s89
    %p96 = scmp.eq.s32.totalorder %s16, 1
    %p97 = por %p95, %p96
    %p98 = scmp.ne.s32.totalorder %s89, %s90
    %p99 = scmp.eq.s32.totalorder %s16, 0
    %p100 = por %p98, %p99
    %p101 = scmp.ne.s32.totalorder %s89, %s90
    %p102 = scmp.eq.s32.totalorder %s17, 1
    %p103 = por %p101, %p102
    %p105 = scmp.ne.s32.totalorder %s90, %s104
    %p106 = scmp.eq.s32.totalorder %s17, 0
    %p107 = por %p105, %p106
    %s109 = sadd.s32 %s108, 1
    %p112 = scmp.eq.s32.totalorder %s11, 1
    %p113 = scmp.ne.s32.totalorder %s108, %s110
    %p114 = scmp.eq.s32.totalorder %s11, 0
    %p115 = por %p113, %p114
    %p116 = scmp.ne.s32.totalorder %s108, %s110
    %p117 = scmp.eq.s32.totalorder %s16, 1
    %p118 = por %p116, %p117
    %p119 = scmp.ne.s32.totalorder %s110, %s111
    %p120 = scmp.eq.s32.totalorder %s16, 0
    %p121 = por %p119, %p120
    %p122 = scmp.ne.s32.totalorder %s110, %s111
    %p123 = scmp.eq.s32.totalorder %s17, 1
    %p124 = por %p122, %p123
    %p126 = scmp.ne.s32.totalorder %s111, %s125
    %p127 = scmp.eq.s32.totalorder %s17, 0
    %p128 = por %p126, %p127
    %s129 = ssub.s32 %s11, %s18
    %p130 = scmp.eq.s32.totalorder %s129, 0
    %s132 = sadd.s32 %s131, 1
    %s133 = scalar_select %p130, %s131, %s132
    %p136 = pneg %p130
    %p137 = scmp.eq.s32.totalorder %s11, 1
    %p138 = por %p136, %p137
    %p139 = scmp.ne.s32.totalorder %s131, %s134
    %p140 = scmp.eq.s32.totalorder %s11, 0
    %p141 = por %p139, %p140
    %p142 = scmp.ne.s32.totalorder %s131, %s134
    %p143 = scmp.eq.s32.totalorder %s16, 1
    %p144 = por %p142, %p143
    %p145 = scmp.ne.s32.totalorder %s134, %s135
    %p146 = scmp.eq.s32.totalorder %s16, 0
    %p147 = por %p145, %p146
    %p148 = scmp.ne.s32.totalorder %s134, %s135
    %p149 = scmp.eq.s32.totalorder %s17, 1
    %p150 = por %p148, %p149
    %p152 = scmp.ne.s32.totalorder %s135, %s151
    %p153 = scmp.eq.s32.totalorder %s17, 0
    %p154 = por %p152, %p153
    %p155 = scmp.le.s32.totalorder 1, %s11
    %p156 = scmp.lt.s32.totalorder %s11, 3
    %p157 = pnand %p155, %p156
    %p158 = pneg %p157
    // Predicated region
    $region9: #{fpa_forward.13} parent=5 // pred_check
      _
    $region10: #{fpa_forward.13} parent=5 // pred_check_branch
      %160 = sbr.rel (%p157) target = $region12
    $region11: #{fpa_forward.13} parent=5 // pred_region
      %s161 = ssub.s32 %s11, 1
      // Predicated region
      $region13: #{fpa_forward.13} parent=11 // pred_check
        %p162 = pneg %p58
      $region14: #{fpa_forward.13} parent=11 // pred_check_branch
        %164 = sbr.rel (%p162) target = $region16
      $region15: #{fpa_forward.13} parent=11 // pred_region
        _
      $region16: #{fpa_forward.13} parent=11 // pred_fallthru
        _
      // Predicated region
      $region17: #{fpa_forward.13} parent=11 // pred_check
        %p165 = pneg %p79
      $region18: #{fpa_forward.13} parent=11 // pred_check_branch
        %167 = sbr.rel (%p165) target = $region20
      $region19: #{fpa_forward.13} parent=11 // pred_region
        _
      $region20: #{fpa_forward.13} parent=11 // pred_fallthru
        _
      // Predicated region
      $region21: #{fpa_forward.13} parent=11 // pred_check
        %p168 = pneg %p100
      $region22: #{fpa_forward.13} parent=11 // pred_check_branch
        %170 = sbr.rel (%p168) target = $region24
      $region23: #{fpa_forward.13} parent=11 // pred_region
        _
      $region24: #{fpa_forward.13} parent=11 // pred_fallthru
        _
      // Predicated region
      $region25: #{fpa_forward.13} parent=11 // pred_check
        %p171 = pneg %p121
      $region26: #{fpa_forward.13} parent=11 // pred_check_branch
        %173 = sbr.rel (%p171) target = $region28
      $region27: #{fpa_forward.13} parent=11 // pred_region
        _
      $region28: #{fpa_forward.13} parent=11 // pred_fallthru
        _
    $region12: #{fpa_forward.13} parent=5 // pred_fallthru
      _
    %p174 = scmp.lt.s32.totalorder %s11, 2
    // Predicated region
    $region29: #{fpa_forward.13} parent=5 // pred_check
      %p175 = pneg %p174
    $region30: #{fpa_forward.13} parent=5 // pred_check_branch
      %177 = sbr.rel (%p175) target = $region32
    $region31: #{fpa_forward.13} parent=5 // pred_region
      // Predicated region
      $region33: #{fpa_forward.13} parent=31 // pred_check
        %p178 = pneg %p31
      $region34: #{fpa_forward.13} parent=31 // pred_check_branch
        %180 = sbr.rel (%p178) target = $region36
      $region35: #{fpa_forward.13} parent=31 // pred_region
        %p181 = scmp.lt.s32.totalorder %s11, 1
        %s182 = scalar_select %p181, %s11, 1
        %s183 = smul.addr %s182, 4
        %s184 = smul.addr %s183, 2
        %s185 = scalar_lea.vmem %s0, %s184
      $region36: #{fpa_forward.13} parent=31 // pred_fallthru
        _
    $region32: #{fpa_forward.13} parent=5 // pred_fallthru
      _
    %p186 = scmp.le.s32.totalorder 1, %s11
    %p187 = scmp.lt.s32.totalorder %s11, 3
    %p188 = pnand %p186, %p187
    %p189 = pneg %p188
    // Predicated region
    $region37: #{fpa_forward.13} parent=5 // pred_check
      _
    $region38: #{fpa_forward.13} parent=5 // pred_check_branch
      %191 = sbr.rel (%p188) target = $region40
    $region39: #{fpa_forward.13} parent=5 // pred_region
      %s192 = ssub.s32 %s11, 1
      %p193 = scmp.lt.s32.totalorder %s16, 1
      %s194 = scalar_select %p193, %s16, 1
      %s195 = smul.addr %s194, 4
      %s196 = smul.addr %s195, 2
      %s197 = scalar_lea.vmem %s0, %s196
      %p198 = pneg %p37
      %p199 = pneg %p34
      %p200 = pneg %p58
      %p201 = pneg %p55
      %p202 = pneg %p79
      %p203 = pneg %p76
      %p204 = pneg %p100
      %p205 = pneg %p97
      %p206 = pneg %p121
      %p207 = pneg %p118
      %p208 = pneg %p147
      %p209 = pneg %p144
      %p210 = scmp.lt.s32.totalorder %s16, 1
      %s211 = scalar_select %p210, %s16, 1
      %s212 = smul.addr %s211, 2
      %s213 = scalar_lea.vmem %s5, %s212
      %p214 = scmp.lt.s32.totalorder %s16, 1
      %s215 = scalar_select %p214, %s16, 1
      %s216 = smul.addr %s215, 4
      %s217 = smul.addr %s216, 2
      %s218 = scalar_lea.vmem %s0, %s217
      %p219 = scmp.lt.s32.totalorder %s16, 1
      %s220 = scalar_select %p219, %s16, 1
      %s221 = smul.addr %s220, 2
      %s222 = scalar_lea.vmem %s5, %s221
      %v224 = vld [vmem:[%s218] sm:$0x3]
      %s225 = scalar_lea.vmem %s218, 2
      %v226 = vld [vmem:[%s225] sm:$0x3]
      %s227 = scalar_lea.vmem %s218, 4
      %v228 = vld [vmem:[%s227] sm:$0x3]
      %s229 = scalar_lea.vmem %s218, 6
      %v230 = vld [vmem:[%s229] sm:$0x3]
      %v231 = vld [vmem:[%s3] sm:$0x1]
      %v232 = vld [vmem:[%s4] sm:$0x1]
      %vm233 = vcmp.ge.s32.totalorder %v231, 1
      %vm234 = vcmp.ge.s32.totalorder %v232, 1
      %vm235 = vmand %vm233, %vm234
      %v236 = vsel %vm235, 1, 0
      %v237 = vperm.slane %v236, 0
      %vm238 = vcmp.eq.s32.totalorder %v237, 1
      %v239 = vsel %vm238, %v224, 0.0
      %v240 = vld [vmem:[%s1] sm:$0x1]
      %v241 = vpack.c.bf16 %v239, %v239
      %v242 = vsel %vm238, %v226, 0.0
      %s243 = scalar_lea.vmem %s1, 1
      %v244 = vld [vmem:[%s243] sm:$0x1]
      %v245 = vpack.c.bf16 %v242, %v242
      %vm246 = vcmask 15360
      %v248 = vsel %vm246, %v244, 0
      %vm250 = vcmask 1040384
      %v252 = vsel %vm250, %v245, 0
      %254 = vmatpush.bf16.msra.mxu0 0
      %255 = vmatpush.bf16.msra.mxu0 0
      %256 = vmatpush.bf16.msra.mxu0 0
      %257 = vmatpush.bf16.msra.mxu0 0
      %258 = vmatpush.bf16.msra.mxu0 0
      %259 = vmatpush.bf16.msra.mxu0 0
      %260 = vmatpush.bf16.msra.mxu0 0
      %261 = vmatpush.bf16.msra.mxu0 %v252
      %262 = vmatmul.bf16.gmra.mxu0 %v248
      %v263 = vpop.f32.mrf.mxu0
      %v264 = vadd.f32 0.0, %v263
      %v265 = vpop.f32.mrf.mxu0
      %266 = vdwg.mxu0
      %v268 = vsel %vm246, %v240, 0
      %v271 = vsel %vm250, %v241, 0
      %273 = vmatpush.bf16.msra.mxu0 0
      %274 = vmatpush.bf16.msra.mxu0 0
      %275 = vmatpush.bf16.msra.mxu0 0
      %276 = vmatpush.bf16.msra.mxu0 0
      %277 = vmatpush.bf16.msra.mxu0 0
      %278 = vmatpush.bf16.msra.mxu0 0
      %279 = vmatpush.bf16.msra.mxu0 0
      %280 = vmatpush.bf16.msra.mxu0 %v271
      %281 = vmatmul.bf16.gmra.mxu0 %v268
      %v282 = vpop.f32.mrf.mxu0
      %v283 = vadd.f32 %v264, %v282
      %v284 = vpop.f32.mrf.mxu0
      %285 = vdwg.mxu0
      %v286 = vsel %vm233, 1, 0
      %v287 = vperm.slane %v286, 0
      %vm288 = vcmp.eq.s32.totalorder %v287, 1
      %290 = vrot.lane.b32.xlu0 %v224, 127
      %v291 = vpop.permute.xlu0 %290
      %v293 = vsel %vm288, %v291, 0.0
      %s294 = scalar_lea.vmem %s1, 2
      %v295 = vld [vmem:[%s294] sm:$0x1]
      %v296 = vpack.c.bf16 %v293, %v293
      %v298 = vsel %vm246, %v295, 0
      %v301 = vsel %vm250, %v296, 0
      %303 = vmatpush.bf16.msra.mxu0 0
      %304 = vmatpush.bf16.msra.mxu0 0
      %305 = vmatpush.bf16.msra.mxu0 0
      %306 = vmatpush.bf16.msra.mxu0 0
      %307 = vmatpush.bf16.msra.mxu0 0
      %308 = vmatpush.bf16.msra.mxu0 0
      %309 = vmatpush.bf16.msra.mxu0 0
      %310 = vmatpush.bf16.msra.mxu0 %v301
      %311 = vmatmul.bf16.gmra.mxu0 %v298
      %v312 = vpop.f32.mrf.mxu0
      %v313 = vadd.f32 0.0, %v312
      %v314 = vpop.f32.mrf.mxu0
      %315 = vdwg.mxu0
      %v316 = vadd.f32 %v283, %v313
      %318 = vrot.lane.b32.xlu0 %v226, 127
      %v319 = vpop.permute.xlu0 %318
      %v321 = vsel %vm288, %v319, 0.0
      %s322 = scalar_lea.vmem %s1, 3
      %v323 = vld [vmem:[%s322] sm:$0x1]
      %v324 = vpack.c.bf16 %v321, %v321
      %v326 = vsel %vm246, %v323, 0
      %v329 = vsel %vm250, %v324, 0
      %331 = vmatpush.bf16.msra.mxu0 0
      %332 = vmatpush.bf16.msra.mxu0 0
      %333 = vmatpush.bf16.msra.mxu0 0
      %334 = vmatpush.bf16.msra.mxu0 0
      %335 = vmatpush.bf16.msra.mxu0 0
      %336 = vmatpush.bf16.msra.mxu0 0
      %337 = vmatpush.bf16.msra.mxu0 0
      %338 = vmatpush.bf16.msra.mxu0 %v329
      %339 = vmatmul.bf16.gmra.mxu0 %v326
      %v340 = vpop.f32.mrf.mxu0
      %v341 = vadd.f32 0.0, %v340
      %v342 = vpop.f32.mrf.mxu0
      %343 = vdwg.mxu0
      %v344 = vadd.f32 %v316, %v341
      %vm345 = vcmp.lt.s32.totalorder %v232, 3
      %vm346 = vmand %vm233, %vm345
      %v347 = vsel %vm346, 1, 0
      %v348 = vperm.slane %v347, 0
      %vm349 = vcmp.eq.s32.totalorder %v348, 1
      %350 = vrot.lane.b32.xlu0 %v224, 126
      %v351 = vpop.permute.xlu0 %350
      %v353 = vsel %vm349, %v351, 0.0
      %s354 = scalar_lea.vmem %s1, 4
      %v355 = vld [vmem:[%s354] sm:$0x1]
      %v356 = vpack.c.bf16 %v353, %v353
      %v358 = vsel %vm246, %v355, 0
      %v361 = vsel %vm250, %v356, 0
      %363 = vmatpush.bf16.msra.mxu0 0
      %364 = vmatpush.bf16.msra.mxu0 0
      %365 = vmatpush.bf16.msra.mxu0 0
      %366 = vmatpush.bf16.msra.mxu0 0
      %367 = vmatpush.bf16.msra.mxu0 0
      %368 = vmatpush.bf16.msra.mxu0 0
      %369 = vmatpush.bf16.msra.mxu0 0
      %370 = vmatpush.bf16.msra.mxu0 %v361
      %371 = vmatmul.bf16.gmra.mxu0 %v358
      %v372 = vpop.f32.mrf.mxu0
      %v373 = vadd.f32 0.0, %v372
      %v374 = vpop.f32.mrf.mxu0
      %375 = vdwg.mxu0
      %v376 = vadd.f32 %v344, %v373
      %v377 = vsel %vm238, %v228, 0.0
      %s378 = scalar_lea.vmem %s1, 5
      %v379 = vld [vmem:[%s378] sm:$0x1]
      %v380 = vpack.c.bf16 %v377, %v377
      %v382 = vsel %vm246, %v379, 0
      %v385 = vsel %vm250, %v380, 0
      %387 = vmatpush.bf16.msra.mxu0 0
      %388 = vmatpush.bf16.msra.mxu0 0
      %389 = vmatpush.bf16.msra.mxu0 0
      %390 = vmatpush.bf16.msra.mxu0 0
      %391 = vmatpush.bf16.msra.mxu0 0
      %392 = vmatpush.bf16.msra.mxu0 0
      %393 = vmatpush.bf16.msra.mxu0 0
      %394 = vmatpush.bf16.msra.mxu0 %v385
      %395 = vmatmul.bf16.gmra.mxu0 %v382
      %v396 = vpop.f32.mrf.mxu0
      %v397 = vadd.f32 0.0, %v396
      %v398 = vpop.f32.mrf.mxu0
      %399 = vdwg.mxu0
      %v400 = vadd.f32 %v376, %v397
      %v401 = vsel %vm238, %v230, 0.0
      %s402 = scalar_lea.vmem %s1, 6
      %v403 = vld [vmem:[%s402] sm:$0x1]
      %v404 = vpack.c.bf16 %v401, %v401
      %v406 = vsel %vm246, %v403, 0
      %v409 = vsel %vm250, %v404, 0
      %411 = vmatpush.bf16.msra.mxu0 0
      %412 = vmatpush.bf16.msra.mxu0 0
      %413 = vmatpush.bf16.msra.mxu0 0
      %414 = vmatpush.bf16.msra.mxu0 0
      %415 = vmatpush.bf16.msra.mxu0 0
      %416 = vmatpush.bf16.msra.mxu0 0
      %417 = vmatpush.bf16.msra.mxu0 0
      %418 = vmatpush.bf16.msra.mxu0 %v409
      %419 = vmatmul.bf16.gmra.mxu0 %v406
      %v420 = vpop.f32.mrf.mxu0
      %v421 = vadd.f32 0.0, %v420
      %v422 = vpop.f32.mrf.mxu0
      %423 = vdwg.mxu0
      %v424 = vadd.f32 %v400, %v421
      %426 = vrot.lane.b32.xlu0 %v228, 127
      %v427 = vpop.permute.xlu0 %426
      %v429 = vsel %vm288, %v427, 0.0
      %s430 = scalar_lea.vmem %s1, 7
      %v431 = vld [vmem:[%s430] sm:$0x1]
      %v432 = vpack.c.bf16 %v429, %v429
      %v434 = vsel %vm246, %v431, 0
      %v437 = vsel %vm250, %v432, 0
      %439 = vmatpush.bf16.msra.mxu0 0
      %440 = vmatpush.bf16.msra.mxu0 0
      %441 = vmatpush.bf16.msra.mxu0 0
      %442 = vmatpush.bf16.msra.mxu0 0
      %443 = vmatpush.bf16.msra.mxu0 0
      %444 = vmatpush.bf16.msra.mxu0 0
      %445 = vmatpush.bf16.msra.mxu0 0
      %446 = vmatpush.bf16.msra.mxu0 %v437
      %447 = vmatmul.bf16.gmra.mxu0 %v434
      %v448 = vpop.f32.mrf.mxu0
      %v449 = vadd.f32 0.0, %v448
      %v450 = vpop.f32.mrf.mxu0
      %451 = vdwg.mxu0
      %v452 = vadd.f32 %v424, %v449
      %454 = vrot.lane.b32.xlu0 %v230, 127
      %v455 = vpop.permute.xlu0 %454
      %v457 = vsel %vm288, %v455, 0.0
      %s458 = scalar_lea.vmem %s1, 8
      %v459 = vld [vmem:[%s458] sm:$0x1]
      %v460 = vpack.c.bf16 %v457, %v457
      %v462 = vsel %vm246, %v459, 0
      %v465 = vsel %vm250, %v460, 0
      %467 = vmatpush.bf16.msra.mxu0 0
      %468 = vmatpush.bf16.msra.mxu0 0
      %469 = vmatpush.bf16.msra.mxu0 0
      %470 = vmatpush.bf16.msra.mxu0 0
      %471 = vmatpush.bf16.msra.mxu0 0
      %472 = vmatpush.bf16.msra.mxu0 0
      %473 = vmatpush.bf16.msra.mxu0 0
      %474 = vmatpush.bf16.msra.mxu0 %v465
      %475 = vmatmul.bf16.gmra.mxu0 %v462
      %v476 = vpop.f32.mrf.mxu0
      %v477 = vadd.f32 0.0, %v476
      %v478 = vpop.f32.mrf.mxu0
      %479 = vdwg.mxu0
      %v480 = vadd.f32 %v452, %v477
      %481 = vrot.lane.b32.xlu0 %v228, 126
      %v482 = vpop.permute.xlu0 %481
      %v484 = vsel %vm349, %v482, 0.0
      %s485 = scalar_lea.vmem %s1, 9
      %v486 = vld [vmem:[%s485] sm:$0x1]
      %v487 = vpack.c.bf16 %v484, %v484
      %v489 = vsel %vm246, %v486, 0
      %v492 = vsel %vm250, %v487, 0
      %494 = vmatpush.bf16.msra.mxu0 0
      %495 = vmatpush.bf16.msra.mxu0 0
      %496 = vmatpush.bf16.msra.mxu0 0
      %497 = vmatpush.bf16.msra.mxu0 0
      %498 = vmatpush.bf16.msra.mxu0 0
      %499 = vmatpush.bf16.msra.mxu0 0
      %500 = vmatpush.bf16.msra.mxu0 0
      %501 = vmatpush.bf16.msra.mxu0 %v492
      %502 = vmatmul.bf16.gmra.mxu0 %v489
      %v503 = vpop.f32.mrf.mxu0
      %v504 = vadd.f32 0.0, %v503
      %v505 = vpop.f32.mrf.mxu0
      %506 = vdwg.mxu0
      %v507 = vadd.f32 %v480, %v504
      %v508 = vsel %vm234, 1, 0
      %v509 = vperm.slane %v508, 0
      %vm510 = vcmp.eq.s32.totalorder %v509, 1
      %511 = vrot.lane.b32.xlu0 %v224, 124
      %v512 = vpop.permute.xlu0 %511
      %v514 = vsel %vm510, %v512, 0.0
      %s515 = scalar_lea.vmem %s1, 10
      %v516 = vld [vmem:[%s515] sm:$0x1]
      %v517 = vpack.c.bf16 %v514, %v514
      %v519 = vsel %vm246, %v516, 0
      %v522 = vsel %vm250, %v517, 0
      %524 = vmatpush.bf16.msra.mxu0 0
      %525 = vmatpush.bf16.msra.mxu0 0
      %526 = vmatpush.bf16.msra.mxu0 0
      %527 = vmatpush.bf16.msra.mxu0 0
      %528 = vmatpush.bf16.msra.mxu0 0
      %529 = vmatpush.bf16.msra.mxu0 0
      %530 = vmatpush.bf16.msra.mxu0 0
      %531 = vmatpush.bf16.msra.mxu0 %v522
      %532 = vmatmul.bf16.gmra.mxu0 %v519
      %v533 = vpop.f32.mrf.mxu0
      %v534 = vadd.f32 0.0, %v533
      %v535 = vpop.f32.mrf.mxu0
      %536 = vdwg.mxu0
      %v537 = vadd.f32 %v507, %v534
      %538 = vrot.lane.b32.xlu0 %v226, 124
      %v539 = vpop.permute.xlu0 %538
      %v541 = vsel %vm510, %v539, 0.0
      %s542 = scalar_lea.vmem %s1, 11
      %v543 = vld [vmem:[%s542] sm:$0x1]
      %v544 = vpack.c.bf16 %v541, %v541
      %v546 = vsel %vm246, %v543, 0
      %v549 = vsel %vm250, %v544, 0
      %551 = vmatpush.bf16.msra.mxu0 0
      %552 = vmatpush.bf16.msra.mxu0 0
      %553 = vmatpush.bf16.msra.mxu0 0
      %554 = vmatpush.bf16.msra.mxu0 0
      %555 = vmatpush.bf16.msra.mxu0 0
      %556 = vmatpush.bf16.msra.mxu0 0
      %557 = vmatpush.bf16.msra.mxu0 0
      %558 = vmatpush.bf16.msra.mxu0 %v549
      %559 = vmatmul.bf16.gmra.mxu0 %v546
      %v560 = vpop.f32.mrf.mxu0
      %v561 = vadd.f32 0.0, %v560
      %v562 = vpop.f32.mrf.mxu0
      %563 = vdwg.mxu0
      %v564 = vadd.f32 %v537, %v561
      %s565 = scalar_lea.vmem %s1, 12
      %v566 = vld [vmem:[%s565] sm:$0x1]
      %v567 = vpack.c.bf16 %v224, %v224
      %569 = vrot.lane.b32.xlu0 %v567, 123
      %v570 = vpop.permute.xlu0 %569
      %v572 = vsel %vm246, %v566, 0
      %v575 = vsel %vm250, %v570, 0
      %577 = vmatpush.bf16.msra.mxu0 0
      %578 = vmatpush.bf16.msra.mxu0 0
      %579 = vmatpush.bf16.msra.mxu0 0
      %580 = vmatpush.bf16.msra.mxu0 0
      %581 = vmatpush.bf16.msra.mxu0 0
      %582 = vmatpush.bf16.msra.mxu0 0
      %583 = vmatpush.bf16.msra.mxu0 0
      %584 = vmatpush.bf16.msra.mxu0 %v575
      %585 = vmatmul.bf16.gmra.mxu0 %v572
      %v586 = vpop.f32.mrf.mxu0
      %v587 = vadd.f32 0.0, %v586
      %v588 = vpop.f32.mrf.mxu0
      %589 = vdwg.mxu0
      %v590 = vadd.f32 %v564, %v587
      %s591 = scalar_lea.vmem %s1, 13
      %v592 = vld [vmem:[%s591] sm:$0x1]
      %v593 = vpack.c.bf16 %v226, %v226
      %595 = vrot.lane.b32.xlu0 %v593, 123
      %v596 = vpop.permute.xlu0 %595
      %v598 = vsel %vm246, %v592, 0
      %v601 = vsel %vm250, %v596, 0
      %603 = vmatpush.bf16.msra.mxu0 0
      %604 = vmatpush.bf16.msra.mxu0 0
      %605 = vmatpush.bf16.msra.mxu0 0
      %606 = vmatpush.bf16.msra.mxu0 0
      %607 = vmatpush.bf16.msra.mxu0 0
      %608 = vmatpush.bf16.msra.mxu0 0
      %609 = vmatpush.bf16.msra.mxu0 0
      %610 = vmatpush.bf16.msra.mxu0 %v601
      %611 = vmatmul.bf16.gmra.mxu0 %v598
      %v612 = vpop.f32.mrf.mxu0
      %v613 = vadd.f32 0.0, %v612
      %v614 = vpop.f32.mrf.mxu0
      %615 = vdwg.mxu0
      %v616 = vadd.f32 %v590, %v613
      %v617 = vsel %vm345, 1, 0
      %v618 = vperm.slane %v617, 0
      %vm619 = vcmp.eq.s32.totalorder %v618, 1
      %620 = vrot.lane.b32.xlu0 %v224, 122
      %v621 = vpop.permute.xlu0 %620
      %v623 = vsel %vm619, %v621, 0.0
      %s624 = scalar_lea.vmem %s1, 14
      %v625 = vld [vmem:[%s624] sm:$0x1]
      %v626 = vpack.c.bf16 %v623, %v623
      %v628 = vsel %vm246, %v625, 0
      %v631 = vsel %vm250, %v626, 0
      %633 = vmatpush.bf16.msra.mxu0 0
      %634 = vmatpush.bf16.msra.mxu0 0
      %635 = vmatpush.bf16.msra.mxu0 0
      %636 = vmatpush.bf16.msra.mxu0 0
      %637 = vmatpush.bf16.msra.mxu0 0
      %638 = vmatpush.bf16.msra.mxu0 0
      %639 = vmatpush.bf16.msra.mxu0 0
      %640 = vmatpush.bf16.msra.mxu0 %v631
      %641 = vmatmul.bf16.gmra.mxu0 %v628
      %v642 = vpop.f32.mrf.mxu0
      %v643 = vadd.f32 0.0, %v642
      %v644 = vpop.f32.mrf.mxu0
      %645 = vdwg.mxu0
      %v646 = vadd.f32 %v616, %v643
      %647 = vrot.lane.b32.xlu0 %v228, 124
      %v648 = vpop.permute.xlu0 %647
      %v650 = vsel %vm510, %v648, 0.0
      %s651 = scalar_lea.vmem %s1, 15
      %v652 = vld [vmem:[%s651] sm:$0x1]
      %v653 = vpack.c.bf16 %v650, %v650
      %v655 = vsel %vm246, %v652, 0
      %v658 = vsel %vm250, %v653, 0
      %660 = vmatpush.bf16.msra.mxu0 0
      %661 = vmatpush.bf16.msra.mxu0 0
      %662 = vmatpush.bf16.msra.mxu0 0
      %663 = vmatpush.bf16.msra.mxu0 0
      %664 = vmatpush.bf16.msra.mxu0 0
      %665 = vmatpush.bf16.msra.mxu0 0
      %666 = vmatpush.bf16.msra.mxu0 0
      %667 = vmatpush.bf16.msra.mxu0 %v658
      %668 = vmatmul.bf16.gmra.mxu0 %v655
      %v669 = vpop.f32.mrf.mxu0
      %v670 = vadd.f32 0.0, %v669
      %v671 = vpop.f32.mrf.mxu0
      %672 = vdwg.mxu0
      %v673 = vadd.f32 %v646, %v670
      %674 = vrot.lane.b32.xlu0 %v230, 124
      %v675 = vpop.permute.xlu0 %674
      %v677 = vsel %vm510, %v675, 0.0
      %s678 = scalar_lea.vmem %s1, 16
      %v679 = vld [vmem:[%s678] sm:$0x1]
      %v680 = vpack.c.bf16 %v677, %v677
      %v682 = vsel %vm246, %v679, 0
      %v685 = vsel %vm250, %v680, 0
      %687 = vmatpush.bf16.msra.mxu0 0
      %688 = vmatpush.bf16.msra.mxu0 0
      %689 = vmatpush.bf16.msra.mxu0 0
      %690 = vmatpush.bf16.msra.mxu0 0
      %691 = vmatpush.bf16.msra.mxu0 0
      %692 = vmatpush.bf16.msra.mxu0 0
      %693 = vmatpush.bf16.msra.mxu0 0
      %694 = vmatpush.bf16.msra.mxu0 %v685
      %695 = vmatmul.bf16.gmra.mxu0 %v682
      %v696 = vpop.f32.mrf.mxu0
      %v697 = vadd.f32 0.0, %v696
      %v698 = vpop.f32.mrf.mxu0
      %699 = vdwg.mxu0
      %v700 = vadd.f32 %v673, %v697
      %s701 = scalar_lea.vmem %s1, 17
      %v702 = vld [vmem:[%s701] sm:$0x1]
      %v703 = vpack.c.bf16 %v228, %v228
      %705 = vrot.lane.b32.xlu0 %v703, 123
      %v706 = vpop.permute.xlu0 %705
      %v708 = vsel %vm246, %v702, 0
      %v711 = vsel %vm250, %v706, 0
      %713 = vmatpush.bf16.msra.mxu0 0
      %714 = vmatpush.bf16.msra.mxu0 0
      %715 = vmatpush.bf16.msra.mxu0 0
      %716 = vmatpush.bf16.msra.mxu0 0
      %717 = vmatpush.bf16.msra.mxu0 0
      %718 = vmatpush.bf16.msra.mxu0 0
      %719 = vmatpush.bf16.msra.mxu0 0
      %720 = vmatpush.bf16.msra.mxu0 %v711
      %721 = vmatmul.bf16.gmra.mxu0 %v708
      %v722 = vpop.f32.mrf.mxu0
      %v723 = vadd.f32 0.0, %v722
      %v724 = vpop.f32.mrf.mxu0
      %725 = vdwg.mxu0
      %v726 = vadd.f32 %v700, %v723
      %s727 = scalar_lea.vmem %s1, 18
      %v728 = vld [vmem:[%s727] sm:$0x1]
      %v729 = vpack.c.bf16 %v230, %v230
      %731 = vrot.lane.b32.xlu0 %v729, 123
      %v732 = vpop.permute.xlu0 %731
      %v734 = vsel %vm246, %v728, 0
      %v737 = vsel %vm250, %v732, 0
      %739 = vmatpush.bf16.msra.mxu0 0
      %740 = vmatpush.bf16.msra.mxu0 0
      %741 = vmatpush.bf16.msra.mxu0 0
      %742 = vmatpush.bf16.msra.mxu0 0
      %743 = vmatpush.bf16.msra.mxu0 0
      %744 = vmatpush.bf16.msra.mxu0 0
      %745 = vmatpush.bf16.msra.mxu0 0
      %746 = vmatpush.bf16.msra.mxu0 %v737
      %747 = vmatmul.bf16.gmra.mxu0 %v734
      %v748 = vpop.f32.mrf.mxu0
      %v749 = vadd.f32 0.0, %v748
      %v750 = vpop.f32.mrf.mxu0
      %751 = vdwg.mxu0
      %v752 = vadd.f32 %v726, %v749
      %753 = vrot.lane.b32.xlu0 %v228, 122
      %v754 = vpop.permute.xlu0 %753
      %v756 = vsel %vm619, %v754, 0.0
      %s757 = scalar_lea.vmem %s1, 19
      %v758 = vld [vmem:[%s757] sm:$0x1]
      %v759 = vpack.c.bf16 %v756, %v756
      %v761 = vsel %vm246, %v758, 0
      %v764 = vsel %vm250, %v759, 0
      %766 = vmatpush.bf16.msra.mxu0 0
      %767 = vmatpush.bf16.msra.mxu0 0
      %768 = vmatpush.bf16.msra.mxu0 0
      %769 = vmatpush.bf16.msra.mxu0 0
      %770 = vmatpush.bf16.msra.mxu0 0
      %771 = vmatpush.bf16.msra.mxu0 0
      %772 = vmatpush.bf16.msra.mxu0 0
      %773 = vmatpush.bf16.msra.mxu0 %v764
      %774 = vmatmul.bf16.gmra.mxu0 %v761
      %v775 = vpop.f32.mrf.mxu0
      %v776 = vadd.f32 0.0, %v775
      %v777 = vpop.f32.mrf.mxu0
      %778 = vdwg.mxu0
      %v779 = vadd.f32 %v752, %v776
      %vm780 = vcmp.lt.s32.totalorder %v231, 3
      %vm781 = vmand %vm780, %vm234
      %v782 = vsel %vm781, 1, 0
      %v783 = vperm.slane %v782, 0
      %vm784 = vcmp.eq.s32.totalorder %v783, 1
      %785 = vrot.lane.b32.xlu0 %v224, 120
      %v786 = vpop.permute.xlu0 %785
      %v788 = vsel %vm784, %v786, 0.0
      %s789 = scalar_lea.vmem %s1, 20
      %v790 = vld [vmem:[%s789] sm:$0x1]
      %v791 = vpack.c.bf16 %v788, %v788
      %v793 = vsel %vm246, %v790, 0
      %v796 = vsel %vm250, %v791, 0
      %798 = vmatpush.bf16.msra.mxu0 0
      %799 = vmatpush.bf16.msra.mxu0 0
      %800 = vmatpush.bf16.msra.mxu0 0
      %801 = vmatpush.bf16.msra.mxu0 0
      %802 = vmatpush.bf16.msra.mxu0 0
      %803 = vmatpush.bf16.msra.mxu0 0
      %804 = vmatpush.bf16.msra.mxu0 0
      %805 = vmatpush.bf16.msra.mxu0 %v796
      %806 = vmatmul.bf16.gmra.mxu0 %v793
      %v807 = vpop.f32.mrf.mxu0
      %v808 = vadd.f32 0.0, %v807
      %v809 = vpop.f32.mrf.mxu0
      %810 = vdwg.mxu0
      %v811 = vadd.f32 %v779, %v808
      %812 = vrot.lane.b32.xlu0 %v226, 120
      %v813 = vpop.permute.xlu0 %812
      %v815 = vsel %vm784, %v813, 0.0
      %s816 = scalar_lea.vmem %s1, 21
      %v817 = vld [vmem:[%s816] sm:$0x1]
      %v818 = vpack.c.bf16 %v815, %v815
      %v820 = vsel %vm246, %v817, 0
      %v823 = vsel %vm250, %v818, 0
      %825 = vmatpush.bf16.msra.mxu0 0
      %826 = vmatpush.bf16.msra.mxu0 0
      %827 = vmatpush.bf16.msra.mxu0 0
      %828 = vmatpush.bf16.msra.mxu0 0
      %829 = vmatpush.bf16.msra.mxu0 0
      %830 = vmatpush.bf16.msra.mxu0 0
      %831 = vmatpush.bf16.msra.mxu0 0
      %832 = vmatpush.bf16.msra.mxu0 %v823
      %833 = vmatmul.bf16.gmra.mxu0 %v820
      %v834 = vpop.f32.mrf.mxu0
      %v835 = vadd.f32 0.0, %v834
      %v836 = vpop.f32.mrf.mxu0
      %837 = vdwg.mxu0
      %v838 = vadd.f32 %v811, %v835
      %v839 = vsel %vm780, 1, 0
      %v840 = vperm.slane %v839, 0
      %vm841 = vcmp.eq.s32.totalorder %v840, 1
      %842 = vrot.lane.b32.xlu0 %v224, 119
      %v843 = vpop.permute.xlu0 %842
      %v845 = vsel %vm841, %v843, 0.0
      %s846 = scalar_lea.vmem %s1, 22
      %v847 = vld [vmem:[%s846] sm:$0x1]
      %v848 = vpack.c.bf16 %v845, %v845
      %v850 = vsel %vm246, %v847, 0
      %v853 = vsel %vm250, %v848, 0
      %855 = vmatpush.bf16.msra.mxu0 0
      %856 = vmatpush.bf16.msra.mxu0 0
      %857 = vmatpush.bf16.msra.mxu0 0
      %858 = vmatpush.bf16.msra.mxu0 0
      %859 = vmatpush.bf16.msra.mxu0 0
      %860 = vmatpush.bf16.msra.mxu0 0
      %861 = vmatpush.bf16.msra.mxu0 0
      %862 = vmatpush.bf16.msra.mxu0 %v853
      %863 = vmatmul.bf16.gmra.mxu0 %v850
      %v864 = vpop.f32.mrf.mxu0
      %v865 = vadd.f32 0.0, %v864
      %v866 = vpop.f32.mrf.mxu0
      %867 = vdwg.mxu0
      %v868 = vadd.f32 %v838, %v865
      %869 = vrot.lane.b32.xlu0 %v226, 119
      %v870 = vpop.permute.xlu0 %869
      %v872 = vsel %vm841, %v870, 0.0
      %s873 = scalar_lea.vmem %s1, 23
      %v874 = vld [vmem:[%s873] sm:$0x1]
      %v875 = vpack.c.bf16 %v872, %v872
      %v877 = vsel %vm246, %v874, 0
      %v880 = vsel %vm250, %v875, 0
      %882 = vmatpush.bf16.msra.mxu0 0
      %883 = vmatpush.bf16.msra.mxu0 0
      %884 = vmatpush.bf16.msra.mxu0 0
      %885 = vmatpush.bf16.msra.mxu0 0
      %886 = vmatpush.bf16.msra.mxu0 0
      %887 = vmatpush.bf16.msra.mxu0 0
      %888 = vmatpush.bf16.msra.mxu0 0
      %889 = vmatpush.bf16.msra.mxu0 %v880
      %890 = vmatmul.bf16.gmra.mxu0 %v877
      %v891 = vpop.f32.mrf.mxu0
      %v892 = vadd.f32 0.0, %v891
      %v893 = vpop.f32.mrf.mxu0
      %894 = vdwg.mxu0
      %v895 = vadd.f32 %v868, %v892
      %vm896 = vmand %vm780, %vm345
      %v897 = vsel %vm896, 1, 0
      %v898 = vperm.slane %v897, 0
      %vm899 = vcmp.eq.s32.totalorder %v898, 1
      %900 = vrot.lane.b32.xlu0 %v224, 118
      %v901 = vpop.permute.xlu0 %900
      %v903 = vsel %vm899, %v901, 0.0
      %s904 = scalar_lea.vmem %s1, 24
      %v905 = vld [vmem:[%s904] sm:$0x1]
      %v906 = vpack.c.bf16 %v903, %v903
      %v908 = vsel %vm246, %v905, 0
      %v911 = vsel %vm250, %v906, 0
      %913 = vmatpush.bf16.msra.mxu0 0
      %914 = vmatpush.bf16.msra.mxu0 0
      %915 = vmatpush.bf16.msra.mxu0 0
      %916 = vmatpush.bf16.msra.mxu0 0
      %917 = vmatpush.bf16.msra.mxu0 0
      %918 = vmatpush.bf16.msra.mxu0 0
      %919 = vmatpush.bf16.msra.mxu0 0
      %920 = vmatpush.bf16.msra.mxu0 %v911
      %921 = vmatmul.bf16.gmra.mxu0 %v908
      %v922 = vpop.f32.mrf.mxu0
      %v923 = vadd.f32 0.0, %v922
      %v924 = vpop.f32.mrf.mxu0
      %925 = vdwg.mxu0
      %v926 = vadd.f32 %v895, %v923
      %v927 = vld [vmem:[%s2] sm:$0x3]
      %929 = vset.pattern.permute.xlu0 0
      %930 = vperm.xlu0 %929, %v927
      %v931 = vpop.permute.xlu0 %930
      %v933 = vadd.f32 %v926, %v931
      %v934 = vmax.f32 %v933, 0.0
      %vm935 = vcmask 123904
      %936 = vst.msk [vmem:[%s222] sm:$0x3] %vm935, %v934
      %p937 = scmp.lt.s32.totalorder %s16, 1
      %s938 = scalar_select %p937, %s16, 1
      %s939 = smul.addr %s938, 2
      %s940 = scalar_lea.vmem %s5, %s939
      // Predicated region
      $region41: #{fpa_forward.13} parent=39 // pred_check
        %p941 = pneg %p144
      $region42: #{fpa_forward.13} parent=39 // pred_check_branch
        %943 = sbr.rel (%p941) target = $region44
      $region43: #{fpa_forward.13} parent=39 // pred_region
        _
      $region44: #{fpa_forward.13} parent=39 // pred_fallthru
        _
    $region40: #{fpa_forward.13} parent=5 // pred_fallthru
      _
    %p944 = scmp.le.s32.totalorder 2, %s11
    // Predicated region
    $region45: #{fpa_forward.13} parent=5 // pred_check
      %p945 = pneg %p944
    $region46: #{fpa_forward.13} parent=5 // pred_check_branch
      %947 = sbr.rel (%p945) target = $region48
    $region47: #{fpa_forward.13} parent=5 // pred_region
      %s948 = ssub.s32 %s11, 2
      // Predicated region
      $region49: #{fpa_forward.13} parent=47 // pred_check
        %p949 = pneg %p150
      $region50: #{fpa_forward.13} parent=47 // pred_check_branch
        %951 = sbr.rel (%p949) target = $region52
      $region51: #{fpa_forward.13} parent=47 // pred_region
        %p952 = scmp.lt.s32.totalorder %s17, 1
        %s953 = scalar_select %p952, %s17, 1
        %s954 = smul.addr %s953, 2
        %s955 = scalar_lea.vmem %s5, %s954
      $region52: #{fpa_forward.13} parent=47 // pred_fallthru
        _
    $region48: #{fpa_forward.13} parent=5 // pred_fallthru
      _
  $region6: #{fpa_forward.13} parent=0 // loop_footer
    %s15 = sadd.s32 1, %s11
  $region7: #{fpa_forward.13} parent=0 // loop_footer_branch
    %10 = sbr.rel target = $region3
  $region8: #{fpa_forward.13} parent=0 // loop_exit
    _

// kernel: fpa_forward.14
$region0: #{fpa_forward.14}
  #allocation0 [shape = 'u32[]', space=smem, size = 0x4, offset = 0x4, fixed_abs, tag = 'smem constant byte address 0x4 - core index']
  #allocation1 [shape = 'u32[72,128]{1,0:T(1,128)}', space=vmem, size = 0x9000, scoped, tag = 'internal scratch']
  %s0 = inlined_call_operand.vmem [shape: f32[2,1,2,36], index: 0, kind: input, shape index: {}]
  %s1 = inlined_call_operand.vmem [shape: bf16[25,8,2], index: 1, kind: input, shape index: {}]
  %s2 = inlined_call_operand.vmem [shape: f32[8,1], index: 2, kind: input, shape index: {}]
  %s3 = inlined_call_operand.vmem [shape: s32[1,16], index: 3, kind: input, shape index: {}]
  %s4 = inlined_call_operand.vmem [shape: s32[1,16], index: 4, kind: input, shape index: {}]
  %s5 = inlined_call_operand.vmem [shape: f32[2,8,16], index: 5, kind: output, shape index: {}]
  %s6 = sld [smem:[#allocation0]]
  $region53: #{fpa_forward.14} parent=0
    _
  %s8 = ssub.s32 1, %s6
  %s9 = scalar_select 0, %s8, %s6
  loop: start=0, step=1, limit=4
  $region2: #{fpa_forward.14} parent=0 // loop_pre_header
    _
  $region3: #{fpa_forward.14} parent=0 // loop_header
    %s11 = sphi 0, %s15
    %p12 = scmp.ge.s32.totalorder %s11, 4
    %s21 = sphi 0, %s23
    %s24 = sphi 0, %s21
    %s25 = sphi 0, %s24
    %s41 = sphi 0, %s25
    %s45 = sphi 0, %s45
    %s47 = sphi 0, %s45
    %s48 = sphi 0, %s47
    %s62 = sphi 0, %s48
    %s66 = sphi 0, %s66
    %s68 = sphi 0, %s66
    %s69 = sphi 0, %s68
    %s83 = sphi 0, %s69
    %s87 = sphi 0, %s87
    %s89 = sphi 0, %s87
    %s90 = sphi 0, %s89
    %s104 = sphi 0, %s90
    %s108 = sphi 0, %s108
    %s110 = sphi 0, %s108
    %s111 = sphi 0, %s110
    %s125 = sphi 0, %s111
    %s131 = sphi 0, %s133
    %s134 = sphi 0, %s131
    %s135 = sphi 0, %s134
    %s151 = sphi 0, %s135
  $region4: #{fpa_forward.14} parent=0 // loop_header_branch
    %14 = sbr.rel (%p12) target = $region8
  $region5: #{fpa_forward.14} parent=0 // loop_body
    %s16 = ssub.s32 %s11, 1
    %s17 = ssub.s32 %s11, 2
    %s18 = sadd.s32 %s11, 1
    %s19 = ssub.s32 %s11, %s18
    %p20 = scmp.eq.s32.totalorder %s19, 0
    %s22 = sadd.s32 %s21, 1
    %s23 = scalar_select %p20, %s21, %s22
    %p26 = pneg %p20
    %p27 = scmp.eq.s32.totalorder %s11, 1
    %p28 = por %p26, %p27
    %p29 = scmp.ne.s32.totalorder %s21, %s24
    %p30 = scmp.eq.s32.totalorder %s11, 0
    %p31 = por %p29, %p30
    %p32 = scmp.ne.s32.totalorder %s21, %s24
    %p33 = scmp.eq.s32.totalorder %s16, 1
    %p34 = por %p32, %p33
    %p35 = scmp.ne.s32.totalorder %s24, %s25
    %p36 = scmp.eq.s32.totalorder %s16, 0
    %p37 = por %p35, %p36
    %p38 = scmp.ne.s32.totalorder %s24, %s25
    %p39 = scmp.eq.s32.totalorder %s17, 1
    %p40 = por %p38, %p39
    %p42 = scmp.ne.s32.totalorder %s25, %s41
    %p43 = scmp.eq.s32.totalorder %s17, 0
    %p44 = por %p42, %p43
    %s46 = sadd.s32 %s45, 1
    %p49 = scmp.eq.s32.totalorder %s11, 1
    %p50 = scmp.ne.s32.totalorder %s45, %s47
    %p51 = scmp.eq.s32.totalorder %s11, 0
    %p52 = por %p50, %p51
    %p53 = scmp.ne.s32.totalorder %s45, %s47
    %p54 = scmp.eq.s32.totalorder %s16, 1
    %p55 = por %p53, %p54
    %p56 = scmp.ne.s32.totalorder %s47, %s48
    %p57 = scmp.eq.s32.totalorder %s16, 0
    %p58 = por %p56, %p57
    %p59 = scmp.ne.s32.totalorder %s47, %s48
    %p60 = scmp.eq.s32.totalorder %s17, 1
    %p61 = por %p59, %p60
    %p63 = scmp.ne.s32.totalorder %s48, %s62
    %p64 = scmp.eq.s32.totalorder %s17, 0
    %p65 = por %p63, %p64
    %s67 = sadd.s32 %s66, 1
    %p70 = scmp.eq.s32.totalorder %s11, 1
    %p71 = scmp.ne.s32.totalorder %s66, %s68
    %p72 = scmp.eq.s32.totalorder %s11, 0
    %p73 = por %p71, %p72
    %p74 = scmp.ne.s32.totalorder %s66, %s68
    %p75 = scmp.eq.s32.totalorder %s16, 1
    %p76 = por %p74, %p75
    %p77 = scmp.ne.s32.totalorder %s68, %s69
    %p78 = scmp.eq.s32.totalorder %s16, 0
    %p79 = por %p77, %p78
    %p80 = scmp.ne.s32.totalorder %s68, %s69
    %p81 = scmp.eq.s32.totalorder %s17, 1
    %p82 = por %p80, %p81
    %p84 = scmp.ne.s32.totalorder %s69, %s83
    %p85 = scmp.eq.s32.totalorder %s17, 0
    %p86 = por %p84, %p85
    %s88 = sadd.s32 %s87, 1
    %p91 = scmp.eq.s32.totalorder %s11, 1
    %p92 = scmp.ne.s32.totalorder %s87, %s89
    %p93 = scmp.eq.s32.totalorder %s11, 0
    %p94 = por %p92, %p93
    %p95 = scmp.ne.s32.totalorder %s87, %s89
    %p96 = scmp.eq.s32.totalorder %s16, 1
    %p97 = por %p95, %p96
    %p98 = scmp.ne.s32.totalorder %s89, %s90
    %p99 = scmp.eq.s32.totalorder %s16, 0
    %p100 = por %p98, %p99
    %p101 = scmp.ne.s32.totalorder %s89, %s90
    %p102 = scmp.eq.s32.totalorder %s17, 1
    %p103 = por %p101, %p102
    %p105 = scmp.ne.s32.totalorder %s90, %s104
    %p106 = scmp.eq.s32.totalorder %s17, 0
    %p107 = por %p105, %p106
    %s109 = sadd.s32 %s108, 1
    %p112 = scmp.eq.s32.totalorder %s11, 1
    %p113 = scmp.ne.s32.totalorder %s108, %s110
    %p114 = scmp.eq.s32.totalorder %s11, 0
    %p115 = por %p113, %p114
    %p116 = scmp.ne.s32.totalorder %s108, %s110
    %p117 = scmp.eq.s32.totalorder %s16, 1
    %p118 = por %p116, %p117
    %p119 = scmp.ne.s32.totalorder %s110, %s111
    %p120 = scmp.eq.s32.totalorder %s16, 0
    %p121 = por %p119, %p120
    %p122 = scmp.ne.s32.totalorder %s110, %s111
    %p123 = scmp.eq.s32.totalorder %s17, 1
    %p124 = por %p122, %p123
    %p126 = scmp.ne.s32.totalorder %s111, %s125
    %p127 = scmp.eq.s32.totalorder %s17, 0
    %p128 = por %p126, %p127
    %s129 = ssub.s32 %s11, %s18
    %p130 = scmp.eq.s32.totalorder %s129, 0
    %s132 = sadd.s32 %s131, 1
    %s133 = scalar_select %p130, %s131, %s132
    %p136 = pneg %p130
    %p137 = scmp.eq.s32.totalorder %s11, 1
    %p138 = por %p136, %p137
    %p139 = scmp.ne.s32.totalorder %s131, %s134
    %p140 = scmp.eq.s32.totalorder %s11, 0
    %p141 = por %p139, %p140
    %p142 = scmp.ne.s32.totalorder %s131, %s134
    %p143 = scmp.eq.s32.totalorder %s16, 1
    %p144 = por %p142, %p143
    %p145 = scmp.ne.s32.totalorder %s134, %s135
    %p146 = scmp.eq.s32.totalorder %s16, 0
    %p147 = por %p145, %p146
    %p148 = scmp.ne.s32.totalorder %s134, %s135
    %p149 = scmp.eq.s32.totalorder %s17, 1
    %p150 = por %p148, %p149
    %p152 = scmp.ne.s32.totalorder %s135, %s151
    %p153 = scmp.eq.s32.totalorder %s17, 0
    %p154 = por %p152, %p153
    %p155 = scmp.le.s32.totalorder 1, %s11
    %p156 = scmp.lt.s32.totalorder %s11, 3
    %p157 = pnand %p155, %p156
    %p158 = pneg %p157
    // Predicated region
    $region9: #{fpa_forward.14} parent=5 // pred_check
      _
    $region10: #{fpa_forward.14} parent=5 // pred_check_branch
      %160 = sbr.rel (%p157) target = $region12
    $region11: #{fpa_forward.14} parent=5 // pred_region
      %s161 = ssub.s32 %s11, 1
      // Predicated region
      $region13: #{fpa_forward.14} parent=11 // pred_check
        %p162 = pneg %p58
      $region14: #{fpa_forward.14} parent=11 // pred_check_branch
        %164 = sbr.rel (%p162) target = $region16
      $region15: #{fpa_forward.14} parent=11 // pred_region
        _
      $region16: #{fpa_forward.14} parent=11 // pred_fallthru
        _
      // Predicated region
      $region17: #{fpa_forward.14} parent=11 // pred_check
        %p165 = pneg %p79
      $region18: #{fpa_forward.14} parent=11 // pred_check_branch
        %167 = sbr.rel (%p165) target = $region20
      $region19: #{fpa_forward.14} parent=11 // pred_region
        _
      $region20: #{fpa_forward.14} parent=11 // pred_fallthru
        _
      // Predicated region
      $region21: #{fpa_forward.14} parent=11 // pred_check
        %p168 = pneg %p100
      $region22: #{fpa_forward.14} parent=11 // pred_check_branch
        %170 = sbr.rel (%p168) target = $region24
      $region23: #{fpa_forward.14} parent=11 // pred_region
        _
      $region24: #{fpa_forward.14} parent=11 // pred_fallthru
        _
      // Predicated region
      $region25: #{fpa_forward.14} parent=11 // pred_check
        %p171 = pneg %p121
      $region26: #{fpa_forward.14} parent=11 // pred_check_branch
        %173 = sbr.rel (%p171) target = $region28
      $region27: #{fpa_forward.14} parent=11 // pred_region
        _
      $region28: #{fpa_forward.14} parent=11 // pred_fallthru
        _
    $region12: #{fpa_forward.14} parent=5 // pred_fallthru
      _
    %p174 = scmp.lt.s32.totalorder %s11, 2
    // Predicated region
    $region29: #{fpa_forward.14} parent=5 // pred_check
      %p175 = pneg %p174
    $region30: #{fpa_forward.14} parent=5 // pred_check_branch
      %177 = sbr.rel (%p175) target = $region32
    $region31: #{fpa_forward.14} parent=5 // pred_region
      // Predicated region
      $region33: #{fpa_forward.14} parent=31 // pred_check
        %p178 = pneg %p31
      $region34: #{fpa_forward.14} parent=31 // pred_check_branch
        %180 = sbr.rel (%p178) target = $region36
      $region35: #{fpa_forward.14} parent=31 // pred_region
        %p181 = scmp.lt.s32.totalorder %s11, 1
        %s182 = scalar_select %p181, %s11, 1
        %s183 = smul.addr %s182, 2
        %s184 = scalar_lea.vmem %s0, %s183
      $region36: #{fpa_forward.14} parent=31 // pred_fallthru
        _
    $region32: #{fpa_forward.14} parent=5 // pred_fallthru
      _
    %p185 = scmp.le.s32.totalorder 1, %s11
    %p186 = scmp.lt.s32.totalorder %s11, 3
    %p187 = pnand %p185, %p186
    %p188 = pneg %p187
    // Predicated region
    $region37: #{fpa_forward.14} parent=5 // pred_check
      _
    $region38: #{fpa_forward.14} parent=5 // pred_check_branch
      %190 = sbr.rel (%p187) target = $region40
    $region39: #{fpa_forward.14} parent=5 // pred_region
      %s191 = ssub.s32 %s11, 1
      %p192 = scmp.lt.s32.totalorder %s16, 1
      %s193 = scalar_select %p192, %s16, 1
      %s194 = smul.addr %s193, 2
      %s195 = scalar_lea.vmem %s0, %s194
      %p196 = pneg %p37
      %p197 = pneg %p34
      %p198 = pneg %p58
      %p199 = pneg %p55
      %p200 = pneg %p79
      %p201 = pneg %p76
      %p202 = pneg %p100
      %p203 = pneg %p97
      %p204 = pneg %p121
      %p205 = pneg %p118
      %p206 = pneg %p147
      %p207 = pneg %p144
      %p208 = scmp.lt.s32.totalorder %s16, 1
      %s209 = scalar_select %p208, %s16, 1
      %s210 = smul.addr %s209, 8
      %s211 = scalar_lea.vmem %s5, %s210
      %p212 = scmp.lt.s32.totalorder %s16, 1
      %s213 = scalar_select %p212, %s16, 1
      %s214 = smul.addr %s213, 2
      %s215 = scalar_lea.vmem %s0, %s214
      %p216 = scmp.lt.s32.totalorder %s16, 1
      %s217 = scalar_select %p216, %s16, 1
      %s218 = smul.addr %s217, 8
      %s219 = scalar_lea.vmem %s5, %s218
      %v221 = vld [vmem:[%s215] sm:$0x3]
      %v222 = vld [vmem:[%s3] sm:$0x1]
      %v223 = vld [vmem:[%s4] sm:$0x1]
      %vm224 = vcmp.ge.s32.totalorder %v222, 2
      %vm225 = vcmp.ge.s32.totalorder %v223, 2
      %vm226 = vmand %vm224, %vm225
      %v227 = vsel %vm226, 1, 0
      %v228 = vperm.slane %v227, 0
      %vm229 = vcmp.eq.s32.totalorder %v228, 1
      %v230 = vsel %vm229, %v221, 0.0
      %v231 = vld [vmem:[%s1] sm:$0xf]
      %v232 = vpack.c.bf16 %v230, %v230
      %vm233 = vcmp.ge.s32.totalorder %v223, 1
      %vm234 = vmand %vm224, %vm233
      %v235 = vsel %vm234, 1, 0
      %v236 = vperm.slane %v235, 0
      %vm237 = vcmp.eq.s32.totalorder %v236, 1
      %239 = vrot.lane.b32.xlu0 %v221, 127
      %v240 = vpop.permute.xlu0 %239
      %v242 = vsel %vm237, %v240, 0.0
      %s243 = scalar_lea.vmem %s1, 4
      %v244 = vld [vmem:[%s243] sm:$0xf]
      %v245 = vpack.c.bf16 %v242, %v242
      %vm246 = vcmask 15360
      %v248 = vsel %vm246, %v244, 0
      %vm250 = vcmask 1040384
      %v252 = vsel %vm250, %v245, 0
      %254 = vmatpush.bf16.msra.mxu0 0
      %255 = vmatpush.bf16.msra.mxu0 0
      %256 = vmatpush.bf16.msra.mxu0 0
      %257 = vmatpush.bf16.msra.mxu0 0
      %258 = vmatpush.bf16.msra.mxu0 0
      %259 = vmatpush.bf16.msra.mxu0 0
      %260 = vmatpush.bf16.msra.mxu0 0
      %261 = vmatpush.bf16.msra.mxu0 %v252
      %262 = vmatmul.bf16.gmra.mxu0 %v248
      %v263 = vpop.f32.mrf.mxu0
      %v264 = vadd.f32 0.0, %v263
      %v265 = vpop.f32.mrf.mxu0
      %266 = vdwg.mxu0
      %v268 = vsel %vm246, %v231, 0
      %v271 = vsel %vm250, %v232, 0
      %273 = vmatpush.bf16.msra.mxu0 0
      %274 = vmatpush.bf16.msra.mxu0 0
      %275 = vmatpush.bf16.msra.mxu0 0
      %276 = vmatpush.bf16.msra.mxu0 0
      %277 = vmatpush.bf16.msra.mxu0 0
      %278 = vmatpush.bf16.msra.mxu0 0
      %279 = vmatpush.bf16.msra.mxu0 0
      %280 = vmatpush.bf16.msra.mxu0 %v271
      %281 = vmatmul.bf16.gmra.mxu0 %v268
      %v282 = vpop.f32.mrf.mxu0
      %v283 = vadd.f32 %v264, %v282
      %v284 = vpop.f32.mrf.mxu0
      %285 = vdwg.mxu0
      %v286 = vsel %vm224, 1, 0
      %v287 = vperm.slane %v286, 0
      %vm288 = vcmp.eq.s32.totalorder %v287, 1
      %289 = vrot.lane.b32.xlu0 %v221, 126
      %v290 = vpop.permute.xlu0 %289
      %v292 = vsel %vm288, %v290, 0.0
      %s293 = scalar_lea.vmem %s1, 8
      %v294 = vld [vmem:[%s293] sm:$0xf]
      %v295 = vpack.c.bf16 %v292, %v292
      %v297 = vsel %vm246, %v294, 0
      %v300 = vsel %vm250, %v295, 0
      %302 = vmatpush.bf16.msra.mxu0 0
      %303 = vmatpush.bf16.msra.mxu0 0
      %304 = vmatpush.bf16.msra.mxu0 0
      %305 = vmatpush.bf16.msra.mxu0 0
      %306 = vmatpush.bf16.msra.mxu0 0
      %307 = vmatpush.bf16.msra.mxu0 0
      %308 = vmatpush.bf16.msra.mxu0 0
      %309 = vmatpush.bf16.msra.mxu0 %v300
      %310 = vmatmul.bf16.gmra.mxu0 %v297
      %v311 = vpop.f32.mrf.mxu0
      %v312 = vadd.f32 0.0, %v311
      %v313 = vpop.f32.mrf.mxu0
      %314 = vdwg.mxu0
      %v315 = vadd.f32 %v283, %v312
      %vm316 = vcmp.lt.s32.totalorder %v223, 3
      %vm317 = vmand %vm224, %vm316
      %v318 = vsel %vm317, 1, 0
      %v319 = vperm.slane %v318, 0
      %vm320 = vcmp.eq.s32.totalorder %v319, 1
      %321 = vrot.lane.b32.xlu0 %v221, 125
      %v322 = vpop.permute.xlu0 %321
      %v324 = vsel %vm320, %v322, 0.0
      %s325 = scalar_lea.vmem %s1, 12
      %v326 = vld [vmem:[%s325] sm:$0xf]
      %v327 = vpack.c.bf16 %v324, %v324
      %v329 = vsel %vm246, %v326, 0
      %v332 = vsel %vm250, %v327, 0
      %334 = vmatpush.bf16.msra.mxu0 0
      %335 = vmatpush.bf16.msra.mxu0 0
      %336 = vmatpush.bf16.msra.mxu0 0
      %337 = vmatpush.bf16.msra.mxu0 0
      %338 = vmatpush.bf16.msra.mxu0 0
      %339 = vmatpush.bf16.msra.mxu0 0
      %340 = vmatpush.bf16.msra.mxu0 0
      %341 = vmatpush.bf16.msra.mxu0 %v332
      %342 = vmatmul.bf16.gmra.mxu0 %v329
      %v343 = vpop.f32.mrf.mxu0
      %v344 = vadd.f32 0.0, %v343
      %v345 = vpop.f32.mrf.mxu0
      %346 = vdwg.mxu0
      %v347 = vadd.f32 %v315, %v344
      %vm348 = vcmp.lt.s32.totalorder %v223, 2
      %vm349 = vmand %vm224, %vm348
      %v350 = vsel %vm349, 1, 0
      %v351 = vperm.slane %v350, 0
      %vm352 = vcmp.eq.s32.totalorder %v351, 1
      %353 = vrot.lane.b32.xlu0 %v221, 124
      %v354 = vpop.permute.xlu0 %353
      %v356 = vsel %vm352, %v354, 0.0
      %s357 = scalar_lea.vmem %s1, 16
      %v358 = vld [vmem:[%s357] sm:$0xf]
      %v359 = vpack.c.bf16 %v356, %v356
      %v361 = vsel %vm246, %v358, 0
      %v364 = vsel %vm250, %v359, 0
      %366 = vmatpush.bf16.msra.mxu0 0
      %367 = vmatpush.bf16.msra.mxu0 0
      %368 = vmatpush.bf16.msra.mxu0 0
      %369 = vmatpush.bf16.msra.mxu0 0
      %370 = vmatpush.bf16.msra.mxu0 0
      %371 = vmatpush.bf16.msra.mxu0 0
      %372 = vmatpush.bf16.msra.mxu0 0
      %373 = vmatpush.bf16.msra.mxu0 %v364
      %374 = vmatmul.bf16.gmra.mxu0 %v361
      %v375 = vpop.f32.mrf.mxu0
      %v376 = vadd.f32 0.0, %v375
      %v377 = vpop.f32.mrf.mxu0
      %378 = vdwg.mxu0
      %v379 = vadd.f32 %v347, %v376
      %vm380 = vcmp.ge.s32.totalorder %v222, 1
      %vm381 = vmand %vm380, %vm225
      %v382 = vsel %vm381, 1, 0
      %v383 = vperm.slane %v382, 0
      %vm384 = vcmp.eq.s32.totalorder %v383, 1
      %v385 = vsel %vm384, %v354, 0.0
      %s386 = scalar_lea.vmem %s1, 20
      %v387 = vld [vmem:[%s386] sm:$0xf]
      %v388 = vpack.c.bf16 %v385, %v385
      %v390 = vsel %vm246, %v387, 0
      %v393 = vsel %vm250, %v388, 0
      %395 = vmatpush.bf16.msra.mxu0 0
      %396 = vmatpush.bf16.msra.mxu0 0
      %397 = vmatpush.bf16.msra.mxu0 0
      %398 = vmatpush.bf16.msra.mxu0 0
      %399 = vmatpush.bf16.msra.mxu0 0
      %400 = vmatpush.bf16.msra.mxu0 0
      %401 = vmatpush.bf16.msra.mxu0 0
      %402 = vmatpush.bf16.msra.mxu0 %v393
      %403 = vmatmul.bf16.gmra.mxu0 %v390
      %v404 = vpop.f32.mrf.mxu0
      %v405 = vadd.f32 0.0, %v404
      %v406 = vpop.f32.mrf.mxu0
      %407 = vdwg.mxu0
      %v408 = vadd.f32 %v379, %v405
      %vm409 = vmand %vm380, %vm233
      %v410 = vsel %vm409, 1, 0
      %v411 = vperm.slane %v410, 0
      %vm412 = vcmp.eq.s32.totalorder %v411, 1
      %413 = vrot.lane.b32.xlu0 %v221, 123
      %v414 = vpop.permute.xlu0 %413
      %v416 = vsel %vm412, %v414, 0.0
      %s417 = scalar_lea.vmem %s1, 24
      %v418 = vld [vmem:[%s417] sm:$0xf]
      %v419 = vpack.c.bf16 %v416, %v416
      %v421 = vsel %vm246, %v418, 0
      %v424 = vsel %vm250, %v419, 0
      %426 = vmatpush.bf16.msra.mxu0 0
      %427 = vmatpush.bf16.msra.mxu0 0
      %428 = vmatpush.bf16.msra.mxu0 0
      %429 = vmatpush.bf16.msra.mxu0 0
      %430 = vmatpush.bf16.msra.mxu0 0
      %431 = vmatpush.bf16.msra.mxu0 0
      %432 = vmatpush.bf16.msra.mxu0 0
      %433 = vmatpush.bf16.msra.mxu0 %v424
      %434 = vmatmul.bf16.gmra.mxu0 %v421
      %v435 = vpop.f32.mrf.mxu0
      %v436 = vadd.f32 0.0, %v435
      %v437 = vpop.f32.mrf.mxu0
      %438 = vdwg.mxu0
      %v439 = vadd.f32 %v408, %v436
      %v440 = vsel %vm380, 1, 0
      %v441 = vperm.slane %v440, 0
      %vm442 = vcmp.eq.s32.totalorder %v441, 1
      %443 = vrot.lane.b32.xlu0 %v221, 122
      %v444 = vpop.permute.xlu0 %443
      %v446 = vsel %vm442, %v444, 0.0
      %s447 = scalar_lea.vmem %s1, 28
      %v448 = vld [vmem:[%s447] sm:$0xf]
      %v449 = vpack.c.bf16 %v446, %v446
      %v451 = vsel %vm246, %v448, 0
      %v454 = vsel %vm250, %v449, 0
      %456 = vmatpush.bf16.msra.mxu0 0
      %457 = vmatpush.bf16.msra.mxu0 0
      %458 = vmatpush.bf16.msra.mxu0 0
      %459 = vmatpush.bf16.msra.mxu0 0
      %460 = vmatpush.bf16.msra.mxu0 0
      %461 = vmatpush.bf16.msra.mxu0 0
      %462 = vmatpush.bf16.msra.mxu0 0
      %463 = vmatpush.bf16.msra.mxu0 %v454
      %464 = vmatmul.bf16.gmra.mxu0 %v451
      %v465 = vpop.f32.mrf.mxu0
      %v466 = vadd.f32 0.0, %v465
      %v467 = vpop.f32.mrf.mxu0
      %468 = vdwg.mxu0
      %v469 = vadd.f32 %v439, %v466
      %vm470 = vmand %vm380, %vm316
      %v471 = vsel %vm470, 1, 0
      %v472 = vperm.slane %v471, 0
      %vm473 = vcmp.eq.s32.totalorder %v472, 1
      %474 = vrot.lane.b32.xlu0 %v221, 121
      %v475 = vpop.permute.xlu0 %474
      %v477 = vsel %vm473, %v475, 0.0
      %s478 = scalar_lea.vmem %s1, 32
      %v479 = vld [vmem:[%s478] sm:$0xf]
      %v480 = vpack.c.bf16 %v477, %v477
      %v482 = vsel %vm246, %v479, 0
      %v485 = vsel %vm250, %v480, 0
      %487 = vmatpush.bf16.msra.mxu0 0
      %488 = vmatpush.bf16.msra.mxu0 0
      %489 = vmatpush.bf16.msra.mxu0 0
      %490 = vmatpush.bf16.msra.mxu0 0
      %491 = vmatpush.bf16.msra.mxu0 0
      %492 = vmatpush.bf16.msra.mxu0 0
      %493 = vmatpush.bf16.msra.mxu0 0
      %494 = vmatpush.bf16.msra.mxu0 %v485
      %495 = vmatmul.bf16.gmra.mxu0 %v482
      %v496 = vpop.f32.mrf.mxu0
      %v497 = vadd.f32 0.0, %v496
      %v498 = vpop.f32.mrf.mxu0
      %499 = vdwg.mxu0
      %v500 = vadd.f32 %v469, %v497
      %vm501 = vmand %vm380, %vm348
      %v502 = vsel %vm501, 1, 0
      %v503 = vperm.slane %v502, 0
      %vm504 = vcmp.eq.s32.totalorder %v503, 1
      %505 = vrot.lane.b32.xlu0 %v221, 120
      %v506 = vpop.permute.xlu0 %505
      %v508 = vsel %vm504, %v506, 0.0
      %s509 = scalar_lea.vmem %s1, 36
      %v510 = vld [vmem:[%s509] sm:$0xf]
      %v511 = vpack.c.bf16 %v508, %v508
      %v513 = vsel %vm246, %v510, 0
      %v516 = vsel %vm250, %v511, 0
      %518 = vmatpush.bf16.msra.mxu0 0
      %519 = vmatpush.bf16.msra.mxu0 0
      %520 = vmatpush.bf16.msra.mxu0 0
      %521 = vmatpush.bf16.msra.mxu0 0
      %522 = vmatpush.bf16.msra.mxu0 0
      %523 = vmatpush.bf16.msra.mxu0 0
      %524 = vmatpush.bf16.msra.mxu0 0
      %525 = vmatpush.bf16.msra.mxu0 %v516
      %526 = vmatmul.bf16.gmra.mxu0 %v513
      %v527 = vpop.f32.mrf.mxu0
      %v528 = vadd.f32 0.0, %v527
      %v529 = vpop.f32.mrf.mxu0
      %530 = vdwg.mxu0
      %v531 = vadd.f32 %v500, %v528
      %v532 = vsel %vm225, 1, 0
      %v533 = vperm.slane %v532, 0
      %vm534 = vcmp.eq.s32.totalorder %v533, 1
      %v535 = vsel %vm534, %v506, 0.0
      %s536 = scalar_lea.vmem %s1, 40
      %v537 = vld [vmem:[%s536] sm:$0xf]
      %v538 = vpack.c.bf16 %v535, %v535
      %v540 = vsel %vm246, %v537, 0
      %v543 = vsel %vm250, %v538, 0
      %545 = vmatpush.bf16.msra.mxu0 0
      %546 = vmatpush.bf16.msra.mxu0 0
      %547 = vmatpush.bf16.msra.mxu0 0
      %548 = vmatpush.bf16.msra.mxu0 0
      %549 = vmatpush.bf16.msra.mxu0 0
      %550 = vmatpush.bf16.msra.mxu0 0
      %551 = vmatpush.bf16.msra.mxu0 0
      %552 = vmatpush.bf16.msra.mxu0 %v543
      %553 = vmatmul.bf16.gmra.mxu0 %v540
      %v554 = vpop.f32.mrf.mxu0
      %v555 = vadd.f32 0.0, %v554
      %v556 = vpop.f32.mrf.mxu0
      %557 = vdwg.mxu0
      %v558 = vadd.f32 %v531, %v555
      %v559 = vsel %vm233, 1, 0
      %v560 = vperm.slane %v559, 0
      %vm561 = vcmp.eq.s32.totalorder %v560, 1
      %562 = vrot.lane.b32.xlu0 %v221, 119
      %v563 = vpop.permute.xlu0 %562
      %v565 = vsel %vm561, %v563, 0.0
      %s566 = scalar_lea.vmem %s1, 44
      %v567 = vld [vmem:[%s566] sm:$0xf]
      %v568 = vpack.c.bf16 %v565, %v565
      %v570 = vsel %vm246, %v567, 0
      %v573 = vsel %vm250, %v568, 0
      %575 = vmatpush.bf16.msra.mxu0 0
      %576 = vmatpush.bf16.msra.mxu0 0
      %577 = vmatpush.bf16.msra.mxu0 0
      %578 = vmatpush.bf16.msra.mxu0 0
      %579 = vmatpush.bf16.msra.mxu0 0
      %580 = vmatpush.bf16.msra.mxu0 0
      %581 = vmatpush.bf16.msra.mxu0 0
      %582 = vmatpush.bf16.msra.mxu0 %v573
      %583 = vmatmul.bf16.gmra.mxu0 %v570
      %v584 = vpop.f32.mrf.mxu0
      %v585 = vadd.f32 0.0, %v584
      %v586 = vpop.f32.mrf.mxu0
      %587 = vdwg.mxu0
      %v588 = vadd.f32 %v558, %v585
      %s589 = scalar_lea.vmem %s1, 48
      %v590 = vld [vmem:[%s589] sm:$0xf]
      %v591 = vpack.c.bf16 %v221, %v221
      %593 = vrot.lane.b32.xlu0 %v591, 118
      %v594 = vpop.permute.xlu0 %593
      %v596 = vsel %vm246, %v590, 0
      %v599 = vsel %vm250, %v594, 0
      %601 = vmatpush.bf16.msra.mxu0 0
      %602 = vmatpush.bf16.msra.mxu0 0
      %603 = vmatpush.bf16.msra.mxu0 0
      %604 = vmatpush.bf16.msra.mxu0 0
      %605 = vmatpush.bf16.msra.mxu0 0
      %606 = vmatpush.bf16.msra.mxu0 0
      %607 = vmatpush.bf16.msra.mxu0 0
      %608 = vmatpush.bf16.msra.mxu0 %v599
      %609 = vmatmul.bf16.gmra.mxu0 %v596
      %v610 = vpop.f32.mrf.mxu0
      %v611 = vadd.f32 0.0, %v610
      %v612 = vpop.f32.mrf.mxu0
      %613 = vdwg.mxu0
      %v614 = vadd.f32 %v588, %v611
      %v615 = vsel %vm316, 1, 0
      %v616 = vperm.slane %v615, 0
      %vm617 = vcmp.eq.s32.totalorder %v616, 1
      %618 = vrot.lane.b32.xlu0 %v221, 117
      %v619 = vpop.permute.xlu0 %618
      %v621 = vsel %vm617, %v619, 0.0
      %s622 = scalar_lea.vmem %s1, 52
      %v623 = vld [vmem:[%s622] sm:$0xf]
      %v624 = vpack.c.bf16 %v621, %v621
      %v626 = vsel %vm246, %v623, 0
      %v629 = vsel %vm250, %v624, 0
      %631 = vmatpush.bf16.msra.mxu0 0
      %632 = vmatpush.bf16.msra.mxu0 0
      %633 = vmatpush.bf16.msra.mxu0 0
      %634 = vmatpush.bf16.msra.mxu0 0
      %635 = vmatpush.bf16.msra.mxu0 0
      %636 = vmatpush.bf16.msra.mxu0 0
      %637 = vmatpush.bf16.msra.mxu0 0
      %638 = vmatpush.bf16.msra.mxu0 %v629
      %639 = vmatmul.bf16.gmra.mxu0 %v626
      %v640 = vpop.f32.mrf.mxu0
      %v641 = vadd.f32 0.0, %v640
      %v642 = vpop.f32.mrf.mxu0
      %643 = vdwg.mxu0
      %v644 = vadd.f32 %v614, %v641
      %v645 = vsel %vm348, 1, 0
      %v646 = vperm.slane %v645, 0
      %vm647 = vcmp.eq.s32.totalorder %v646, 1
      %648 = vrot.lane.b32.xlu0 %v221, 116
      %v649 = vpop.permute.xlu0 %648
      %v651 = vsel %vm647, %v649, 0.0
      %s652 = scalar_lea.vmem %s1, 56
      %v653 = vld [vmem:[%s652] sm:$0xf]
      %v654 = vpack.c.bf16 %v651, %v651
      %v656 = vsel %vm246, %v653, 0
      %v659 = vsel %vm250, %v654, 0
      %661 = vmatpush.bf16.msra.mxu0 0
      %662 = vmatpush.bf16.msra.mxu0 0
      %663 = vmatpush.bf16.msra.mxu0 0
      %664 = vmatpush.bf16.msra.mxu0 0
      %665 = vmatpush.bf16.msra.mxu0 0
      %666 = vmatpush.bf16.msra.mxu0 0
      %667 = vmatpush.bf16.msra.mxu0 0
      %668 = vmatpush.bf16.msra.mxu0 %v659
      %669 = vmatmul.bf16.gmra.mxu0 %v656
      %v670 = vpop.f32.mrf.mxu0
      %v671 = vadd.f32 0.0, %v670
      %v672 = vpop.f32.mrf.mxu0
      %673 = vdwg.mxu0
      %v674 = vadd.f32 %v644, %v671
      %vm675 = vcmp.lt.s32.totalorder %v222, 3
      %vm676 = vmand %vm675, %vm225
      %v677 = vsel %vm676, 1, 0
      %v678 = vperm.slane %v677, 0
      %vm679 = vcmp.eq.s32.totalorder %v678, 1
      %v680 = vsel %vm679, %v649, 0.0
      %s681 = scalar_lea.vmem %s1, 60
      %v682 = vld [vmem:[%s681] sm:$0xf]
      %v683 = vpack.c.bf16 %v680, %v680
      %v685 = vsel %vm246, %v682, 0
      %v688 = vsel %vm250, %v683, 0
      %690 = vmatpush.bf16.msra.mxu0 0
      %691 = vmatpush.bf16.msra.mxu0 0
      %692 = vmatpush.bf16.msra.mxu0 0
      %693 = vmatpush.bf16.msra.mxu0 0
      %694 = vmatpush.bf16.msra.mxu0 0
      %695 = vmatpush.bf16.msra.mxu0 0
      %696 = vmatpush.bf16.msra.mxu0 0
      %697 = vmatpush.bf16.msra.mxu0 %v688
      %698 = vmatmul.bf16.gmra.mxu0 %v685
      %v699 = vpop.f32.mrf.mxu0
      %v700 = vadd.f32 0.0, %v699
      %v701 = vpop.f32.mrf.mxu0
      %702 = vdwg.mxu0
      %v703 = vadd.f32 %v674, %v700
      %vm704 = vmand %vm675, %vm233
      %v705 = vsel %vm704, 1, 0
      %v706 = vperm.slane %v705, 0
      %vm707 = vcmp.eq.s32.totalorder %v706, 1
      %708 = vrot.lane.b32.xlu0 %v221, 115
      %v709 = vpop.permute.xlu0 %708
      %v711 = vsel %vm707, %v709, 0.0
      %s712 = scalar_lea.vmem %s1, 64
      %v713 = vld [vmem:[%s712] sm:$0xf]
      %v714 = vpack.c.bf16 %v711, %v711
      %v716 = vsel %vm246, %v713, 0
      %v719 = vsel %vm250, %v714, 0
      %721 = vmatpush.bf16.msra.mxu0 0
      %722 = vmatpush.bf16.msra.mxu0 0
      %723 = vmatpush.bf16.msra.mxu0 0
      %724 = vmatpush.bf16.msra.mxu0 0
      %725 = vmatpush.bf16.msra.mxu0 0
      %726 = vmatpush.bf16.msra.mxu0 0
      %727 = vmatpush.bf16.msra.mxu0 0
      %728 = vmatpush.bf16.msra.mxu0 %v719
      %729 = vmatmul.bf16.gmra.mxu0 %v716
      %v730 = vpop.f32.mrf.mxu0
      %v731 = vadd.f32 0.0, %v730
      %v732 = vpop.f32.mrf.mxu0
      %733 = vdwg.mxu0
      %v734 = vadd.f32 %v703, %v731
      %v735 = vsel %vm675, 1, 0
      %v736 = vperm.slane %v735, 0
      %vm737 = vcmp.eq.s32.totalorder %v736, 1
      %738 = vrot.lane.b32.xlu0 %v221, 114
      %v739 = vpop.permute.xlu0 %738
      %v741 = vsel %vm737, %v739, 0.0
      %s742 = scalar_lea.vmem %s1, 68
      %v743 = vld [vmem:[%s742] sm:$0xf]
      %v744 = vpack.c.bf16 %v741, %v741
      %v746 = vsel %vm246, %v743, 0
      %v749 = vsel %vm250, %v744, 0
      %751 = vmatpush.bf16.msra.mxu0 0
      %752 = vmatpush.bf16.msra.mxu0 0
      %753 = vmatpush.bf16.msra.mxu0 0
      %754 = vmatpush.bf16.msra.mxu0 0
      %755 = vmatpush.bf16.msra.mxu0 0
      %756 = vmatpush.bf16.msra.mxu0 0
      %757 = vmatpush.bf16.msra.mxu0 0
      %758 = vmatpush.bf16.msra.mxu0 %v749
      %759 = vmatmul.bf16.gmra.mxu0 %v746
      %v760 = vpop.f32.mrf.mxu0
      %v761 = vadd.f32 0.0, %v760
      %v762 = vpop.f32.mrf.mxu0
      %763 = vdwg.mxu0
      %v764 = vadd.f32 %v734, %v761
      %vm765 = vmand %vm675, %vm316
      %v766 = vsel %vm765, 1, 0
      %v767 = vperm.slane %v766, 0
      %vm768 = vcmp.eq.s32.totalorder %v767, 1
      %769 = vrot.lane.b32.xlu0 %v221, 113
      %v770 = vpop.permute.xlu0 %769
      %v772 = vsel %vm768, %v770, 0.0
      %s773 = scalar_lea.vmem %s1, 72
      %v774 = vld [vmem:[%s773] sm:$0xf]
      %v775 = vpack.c.bf16 %v772, %v772
      %v777 = vsel %vm246, %v774, 0
      %v780 = vsel %vm250, %v775, 0
      %782 = vmatpush.bf16.msra.mxu0 0
      %783 = vmatpush.bf16.msra.mxu0 0
      %784 = vmatpush.bf16.msra.mxu0 0
      %785 = vmatpush.bf16.msra.mxu0 0
      %786 = vmatpush.bf16.msra.mxu0 0
      %787 = vmatpush.bf16.msra.mxu0 0
      %788 = vmatpush.bf16.msra.mxu0 0
      %789 = vmatpush.bf16.msra.mxu0 %v780
      %790 = vmatmul.bf16.gmra.mxu0 %v777
      %v791 = vpop.f32.mrf.mxu0
      %v792 = vadd.f32 0.0, %v791
      %v793 = vpop.f32.mrf.mxu0
      %794 = vdwg.mxu0
      %v795 = vadd.f32 %v764, %v792
      %vm796 = vmand %vm675, %vm348
      %v797 = vsel %vm796, 1, 0
      %v798 = vperm.slane %v797, 0
      %vm799 = vcmp.eq.s32.totalorder %v798, 1
      %800 = vrot.lane.b32.xlu0 %v221, 112
      %v801 = vpop.permute.xlu0 %800
      %v803 = vsel %vm799, %v801, 0.0
      %s804 = scalar_lea.vmem %s1, 76
      %v805 = vld [vmem:[%s804] sm:$0xf]
      %v806 = vpack.c.bf16 %v803, %v803
      %v808 = vsel %vm246, %v805, 0
      %v811 = vsel %vm250, %v806, 0
      %813 = vmatpush.bf16.msra.mxu0 0
      %814 = vmatpush.bf16.msra.mxu0 0
      %815 = vmatpush.bf16.msra.mxu0 0
      %816 = vmatpush.bf16.msra.mxu0 0
      %817 = vmatpush.bf16.msra.mxu0 0
      %818 = vmatpush.bf16.msra.mxu0 0
      %819 = vmatpush.bf16.msra.mxu0 0
      %820 = vmatpush.bf16.msra.mxu0 %v811
      %821 = vmatmul.bf16.gmra.mxu0 %v808
      %v822 = vpop.f32.mrf.mxu0
      %v823 = vadd.f32 0.0, %v822
      %v824 = vpop.f32.mrf.mxu0
      %825 = vdwg.mxu0
      %v826 = vadd.f32 %v795, %v823
      %vm827 = vcmp.lt.s32.totalorder %v222, 2
      %vm828 = vmand %vm827, %vm225
      %v829 = vsel %vm828, 1, 0
      %v830 = vperm.slane %v829, 0
      %vm831 = vcmp.eq.s32.totalorder %v830, 1
      %v832 = vsel %vm831, %v801, 0.0
      %s833 = scalar_lea.vmem %s1, 80
      %v834 = vld [vmem:[%s833] sm:$0xf]
      %v835 = vpack.c.bf16 %v832, %v832
      %v837 = vsel %vm246, %v834, 0
      %v840 = vsel %vm250, %v835, 0
      %842 = vmatpush.bf16.msra.mxu0 0
      %843 = vmatpush.bf16.msra.mxu0 0
      %844 = vmatpush.bf16.msra.mxu0 0
      %845 = vmatpush.bf16.msra.mxu0 0
      %846 = vmatpush.bf16.msra.mxu0 0
      %847 = vmatpush.bf16.msra.mxu0 0
      %848 = vmatpush.bf16.msra.mxu0 0
      %849 = vmatpush.bf16.msra.mxu0 %v840
      %850 = vmatmul.bf16.gmra.mxu0 %v837
      %v851 = vpop.f32.mrf.mxu0
      %v852 = vadd.f32 0.0, %v851
      %v853 = vpop.f32.mrf.mxu0
      %854 = vdwg.mxu0
      %v855 = vadd.f32 %v826, %v852
      %vm856 = vmand %vm827, %vm233
      %v857 = vsel %vm856, 1, 0
      %v858 = vperm.slane %v857, 0
      %vm859 = vcmp.eq.s32.totalorder %v858, 1
      %860 = vrot.lane.b32.xlu0 %v221, 111
      %v861 = vpop.permute.xlu0 %860
      %v863 = vsel %vm859, %v861, 0.0
      %s864 = scalar_lea.vmem %s1, 84
      %v865 = vld [vmem:[%s864] sm:$0xf]
      %v866 = vpack.c.bf16 %v863, %v863
      %v868 = vsel %vm246, %v865, 0
      %v871 = vsel %vm250, %v866, 0
      %873 = vmatpush.bf16.msra.mxu0 0
      %874 = vmatpush.bf16.msra.mxu0 0
      %875 = vmatpush.bf16.msra.mxu0 0
      %876 = vmatpush.bf16.msra.mxu0 0
      %877 = vmatpush.bf16.msra.mxu0 0
      %878 = vmatpush.bf16.msra.mxu0 0
      %879 = vmatpush.bf16.msra.mxu0 0
      %880 = vmatpush.bf16.msra.mxu0 %v871
      %881 = vmatmul.bf16.gmra.mxu0 %v868
      %v882 = vpop.f32.mrf.mxu0
      %v883 = vadd.f32 0.0, %v882
      %v884 = vpop.f32.mrf.mxu0
      %885 = vdwg.mxu0
      %v886 = vadd.f32 %v855, %v883
      %v887 = vsel %vm827, 1, 0
      %v888 = vperm.slane %v887, 0
      %vm889 = vcmp.eq.s32.totalorder %v888, 1
      %890 = vrot.lane.b32.xlu0 %v221, 110
      %v891 = vpop.permute.xlu0 %890
      %v893 = vsel %vm889, %v891, 0.0
      %s894 = scalar_lea.vmem %s1, 88
      %v895 = vld [vmem:[%s894] sm:$0xf]
      %v896 = vpack.c.bf16 %v893, %v893
      %v898 = vsel %vm246, %v895, 0
      %v901 = vsel %vm250, %v896, 0
      %903 = vmatpush.bf16.msra.mxu0 0
      %904 = vmatpush.bf16.msra.mxu0 0
      %905 = vmatpush.bf16.msra.mxu0 0
      %906 = vmatpush.bf16.msra.mxu0 0
      %907 = vmatpush.bf16.msra.mxu0 0
      %908 = vmatpush.bf16.msra.mxu0 0
      %909 = vmatpush.bf16.msra.mxu0 0
      %910 = vmatpush.bf16.msra.mxu0 %v901
      %911 = vmatmul.bf16.gmra.mxu0 %v898
      %v912 = vpop.f32.mrf.mxu0
      %v913 = vadd.f32 0.0, %v912
      %v914 = vpop.f32.mrf.mxu0
      %915 = vdwg.mxu0
      %v916 = vadd.f32 %v886, %v913
      %vm917 = vmand %vm827, %vm316
      %v918 = vsel %vm917, 1, 0
      %v919 = vperm.slane %v918, 0
      %vm920 = vcmp.eq.s32.totalorder %v919, 1
      %921 = vrot.lane.b32.xlu0 %v221, 109
      %v922 = vpop.permute.xlu0 %921
      %v924 = vsel %vm920, %v922, 0.0
      %s925 = scalar_lea.vmem %s1, 92
      %v926 = vld [vmem:[%s925] sm:$0xf]
      %v927 = vpack.c.bf16 %v924, %v924
      %v929 = vsel %vm246, %v926, 0
      %v932 = vsel %vm250, %v927, 0
      %934 = vmatpush.bf16.msra.mxu0 0
      %935 = vmatpush.bf16.msra.mxu0 0
      %936 = vmatpush.bf16.msra.mxu0 0
      %937 = vmatpush.bf16.msra.mxu0 0
      %938 = vmatpush.bf16.msra.mxu0 0
      %939 = vmatpush.bf16.msra.mxu0 0
      %940 = vmatpush.bf16.msra.mxu0 0
      %941 = vmatpush.bf16.msra.mxu0 %v932
      %942 = vmatmul.bf16.gmra.mxu0 %v929
      %v943 = vpop.f32.mrf.mxu0
      %v944 = vadd.f32 0.0, %v943
      %v945 = vpop.f32.mrf.mxu0
      %946 = vdwg.mxu0
      %v947 = vadd.f32 %v916, %v944
      %vm948 = vmand %vm827, %vm348
      %v949 = vsel %vm948, 1, 0
      %v950 = vperm.slane %v949, 0
      %vm951 = vcmp.eq.s32.totalorder %v950, 1
      %952 = vrot.lane.b32.xlu0 %v221, 108
      %v953 = vpop.permute.xlu0 %952
      %v955 = vsel %vm951, %v953, 0.0
      %s956 = scalar_lea.vmem %s1, 96
      %v957 = vld [vmem:[%s956] sm:$0xf]
      %v958 = vpack.c.bf16 %v955, %v955
      %v960 = vsel %vm246, %v957, 0
      %v963 = vsel %vm250, %v958, 0
      %965 = vmatpush.bf16.msra.mxu0 0
      %966 = vmatpush.bf16.msra.mxu0 0
      %967 = vmatpush.bf16.msra.mxu0 0
      %968 = vmatpush.bf16.msra.mxu0 0
      %969 = vmatpush.bf16.msra.mxu0 0
      %970 = vmatpush.bf16.msra.mxu0 0
      %971 = vmatpush.bf16.msra.mxu0 0
      %972 = vmatpush.bf16.msra.mxu0 %v963
      %973 = vmatmul.bf16.gmra.mxu0 %v960
      %v974 = vpop.f32.mrf.mxu0
      %v975 = vadd.f32 0.0, %v974
      %v976 = vpop.f32.mrf.mxu0
      %977 = vdwg.mxu0
      %v978 = vadd.f32 %v947, %v975
      %v979 = vld [vmem:[%s2] sm:$0xff]
      %981 = vset.pattern.permute.xlu0 0
      %982 = vperm.xlu0 %981, %v979
      %v983 = vpop.permute.xlu0 %982
      %v985 = vadd.f32 %v978, %v983
      %v986 = vmax.f32 %v985, 0.0
      %vm987 = vcmask 130048
      %988 = vst.msk [vmem:[%s219] sm:$0xff] %vm987, %v986
      %p989 = scmp.lt.s32.totalorder %s16, 1
      %s990 = scalar_select %p989, %s16, 1
      %s991 = smul.addr %s990, 8
      %s992 = scalar_lea.vmem %s5, %s991
      // Predicated region
      $region41: #{fpa_forward.14} parent=39 // pred_check
        %p993 = pneg %p144
      $region42: #{fpa_forward.14} parent=39 // pred_check_branch
        %995 = sbr.rel (%p993) target = $region44
      $region43: #{fpa_forward.14} parent=39 // pred_region
        _
      $region44: #{fpa_forward.14} parent=39 // pred_fallthru
        _
    $region40: #{fpa_forward.14} parent=5 // pred_fallthru
      _
    %p996 = scmp.le.s32.totalorder 2, %s11
    // Predicated region
    $region45: #{fpa_forward.14} parent=5 // pred_check
      %p997 = pneg %p996
    $region46: #{fpa_forward.14} parent=5 // pred_check_branch
      %999 = sbr.rel (%p997) target = $region48
    $region47: #{fpa_forward.14} parent=5 // pred_region
      %s1000 = ssub.s32 %s11, 2
      // Predicated region
      $region49: #{fpa_forward.14} parent=47 // pred_check
        %p1001 = pneg %p150
      $region50: #{fpa_forward.14} parent=47 // pred_check_branch
        %1003 = sbr.rel (%p1001) target = $region52
      $region51: #{fpa_forward.14} parent=47 // pred_region
        %p1004 = scmp.lt.s32.totalorder %s17, 1
        %s1005 = scalar_select %p1004, %s17, 1
        %s1006 = smul.addr %s1005, 8
        %s1007 = scalar_lea.vmem %s5, %s1006
      $region52: #{fpa_forward.14} parent=47 // pred_fallthru
        _
    $region48: #{fpa_forward.14} parent=5 // pred_fallthru
      _
  $region6: #{fpa_forward.14} parent=0 // loop_footer
    %s15 = sadd.s32 1, %s11
  $region7: #{fpa_forward.14} parent=0 // loop_footer_branch
    %10 = sbr.rel target = $region3
  $region8: #{fpa_forward.14} parent=0 // loop_exit
    _

// kernel: fpa_forward.11
$region0: #{fpa_forward.11}
  #allocation0 [shape = 'u32[]', space=smem, size = 0x4, offset = 0x4, fixed_abs, tag = 'smem constant byte address 0x4 - core index']
  #allocation1 [shape = 'u32[72,128]{1,0:T(1,128)}', space=vmem, size = 0x9000, scoped, tag = 'internal scratch']
  %s0 = inlined_call_operand.vmem [shape: f32[2,4,8,100], index: 0, kind: input, shape index: {}]
  %s1 = inlined_call_operand.vmem [shape: bf16[49,2,8], index: 1, kind: input, shape index: {}]
  %s2 = inlined_call_operand.vmem [shape: f32[2,1], index: 2, kind: input, shape index: {}]
  %s3 = inlined_call_operand.vmem [shape: s32[1,64], index: 3, kind: input, shape index: {}]
  %s4 = inlined_call_operand.vmem [shape: s32[1,64], index: 4, kind: input, shape index: {}]
  %s5 = inlined_call_operand.vmem [shape: f32[2,2,64], index: 5, kind: output, shape index: {}]
  %s6 = sld [smem:[#allocation0]]
  $region53: #{fpa_forward.11} parent=0
    _
  %s8 = ssub.s32 1, %s6
  %s9 = scalar_select 0, %s8, %s6
  loop: start=0, step=1, limit=4
  $region2: #{fpa_forward.11} parent=0 // loop_pre_header
    _
  $region3: #{fpa_forward.11} parent=0 // loop_header
    %s11 = sphi 0, %s15
    %p12 = scmp.ge.s32.totalorder %s11, 4
    %s21 = sphi 0, %s23
    %s24 = sphi 0, %s21
    %s25 = sphi 0, %s24
    %s41 = sphi 0, %s25
    %s45 = sphi 0, %s45
    %s47 = sphi 0, %s45
    %s48 = sphi 0, %s47
    %s62 = sphi 0, %s48
    %s66 = sphi 0, %s66
    %s68 = sphi 0, %s66
    %s69 = sphi 0, %s68
    %s83 = sphi 0, %s69
    %s87 = sphi 0, %s87
    %s89 = sphi 0, %s87
    %s90 = sphi 0, %s89
    %s104 = sphi 0, %s90
    %s108 = sphi 0, %s108
    %s110 = sphi 0, %s108
    %s111 = sphi 0, %s110
    %s125 = sphi 0, %s111
    %s131 = sphi 0, %s133
    %s134 = sphi 0, %s131
    %s135 = sphi 0, %s134
    %s151 = sphi 0, %s135
  $region4: #{fpa_forward.11} parent=0 // loop_header_branch
    %14 = sbr.rel (%p12) target = $region8
  $region5: #{fpa_forward.11} parent=0 // loop_body
    %s16 = ssub.s32 %s11, 1
    %s17 = ssub.s32 %s11, 2
    %s18 = sadd.s32 %s11, 1
    %s19 = ssub.s32 %s11, %s18
    %p20 = scmp.eq.s32.totalorder %s19, 0
    %s22 = sadd.s32 %s21, 1
    %s23 = scalar_select %p20, %s21, %s22
    %p26 = pneg %p20
    %p27 = scmp.eq.s32.totalorder %s11, 1
    %p28 = por %p26, %p27
    %p29 = scmp.ne.s32.totalorder %s21, %s24
    %p30 = scmp.eq.s32.totalorder %s11, 0
    %p31 = por %p29, %p30
    %p32 = scmp.ne.s32.totalorder %s21, %s24
    %p33 = scmp.eq.s32.totalorder %s16, 1
    %p34 = por %p32, %p33
    %p35 = scmp.ne.s32.totalorder %s24, %s25
    %p36 = scmp.eq.s32.totalorder %s16, 0
    %p37 = por %p35, %p36
    %p38 = scmp.ne.s32.totalorder %s24, %s25
    %p39 = scmp.eq.s32.totalorder %s17, 1
    %p40 = por %p38, %p39
    %p42 = scmp.ne.s32.totalorder %s25, %s41
    %p43 = scmp.eq.s32.totalorder %s17, 0
    %p44 = por %p42, %p43
    %s46 = sadd.s32 %s45, 1
    %p49 = scmp.eq.s32.totalorder %s11, 1
    %p50 = scmp.ne.s32.totalorder %s45, %s47
    %p51 = scmp.eq.s32.totalorder %s11, 0
    %p52 = por %p50, %p51
    %p53 = scmp.ne.s32.totalorder %s45, %s47
    %p54 = scmp.eq.s32.totalorder %s16, 1
    %p55 = por %p53, %p54
    %p56 = scmp.ne.s32.totalorder %s47, %s48
    %p57 = scmp.eq.s32.totalorder %s16, 0
    %p58 = por %p56, %p57
    %p59 = scmp.ne.s32.totalorder %s47, %s48
    %p60 = scmp.eq.s32.totalorder %s17, 1
    %p61 = por %p59, %p60
    %p63 = scmp.ne.s32.totalorder %s48, %s62
    %p64 = scmp.eq.s32.totalorder %s17, 0
    %p65 = por %p63, %p64
    %s67 = sadd.s32 %s66, 1
    %p70 = scmp.eq.s32.totalorder %s11, 1
    %p71 = scmp.ne.s32.totalorder %s66, %s68
    %p72 = scmp.eq.s32.totalorder %s11, 0
    %p73 = por %p71, %p72
    %p74 = scmp.ne.s32.totalorder %s66, %s68
    %p75 = scmp.eq.s32.totalorder %s16, 1
    %p76 = por %p74, %p75
    %p77 = scmp.ne.s32.totalorder %s68, %s69
    %p78 = scmp.eq.s32.totalorder %s16, 0
    %p79 = por %p77, %p78
    %p80 = scmp.ne.s32.totalorder %s68, %s69
    %p81 = scmp.eq.s32.totalorder %s17, 1
    %p82 = por %p80, %p81
    %p84 = scmp.ne.s32.totalorder %s69, %s83
    %p85 = scmp.eq.s32.totalorder %s17, 0
    %p86 = por %p84, %p85
    %s88 = sadd.s32 %s87, 1
    %p91 = scmp.eq.s32.totalorder %s11, 1
    %p92 = scmp.ne.s32.totalorder %s87, %s89
    %p93 = scmp.eq.s32.totalorder %s11, 0
    %p94 = por %p92, %p93
    %p95 = scmp.ne.s32.totalorder %s87, %s89
    %p96 = scmp.eq.s32.totalorder %s16, 1
    %p97 = por %p95, %p96
    %p98 = scmp.ne.s32.totalorder %s89, %s90
    %p99 = scmp.eq.s32.totalorder %s16, 0
    %p100 = por %p98, %p99
    %p101 = scmp.ne.s32.totalorder %s89, %s90
    %p102 = scmp.eq.s32.totalorder %s17, 1
    %p103 = por %p101, %p102
    %p105 = scmp.ne.s32.totalorder %s90, %s104
    %p106 = scmp.eq.s32.totalorder %s17, 0
    %p107 = por %p105, %p106
    %s109 = sadd.s32 %s108, 1
    %p112 = scmp.eq.s32.totalorder %s11, 1
    %p113 = scmp.ne.s32.totalorder %s108, %s110
    %p114 = scmp.eq.s32.totalorder %s11, 0
    %p115 = por %p113, %p114
    %p116 = scmp.ne.s32.totalorder %s108, %s110
    %p117 = scmp.eq.s32.totalorder %s16, 1
    %p118 = por %p116, %p117
    %p119 = scmp.ne.s32.totalorder %s110, %s111
    %p120 = scmp.eq.s32.totalorder %s16, 0
    %p121 = por %p119, %p120
    %p122 = scmp.ne.s32.totalorder %s110, %s111
    %p123 = scmp.eq.s32.totalorder %s17, 1
    %p124 = por %p122, %p123
    %p126 = scmp.ne.s32.totalorder %s111, %s125
    %p127 = scmp.eq.s32.totalorder %s17, 0
    %p128 = por %p126, %p127
    %s129 = ssub.s32 %s11, %s18
    %p130 = scmp.eq.s32.totalorder %s129, 0
    %s132 = sadd.s32 %s131, 1
    %s133 = scalar_select %p130, %s131, %s132
    %p136 = pneg %p130
    %p137 = scmp.eq.s32.totalorder %s11, 1
    %p138 = por %p136, %p137
    %p139 = scmp.ne.s32.totalorder %s131, %s134
    %p140 = scmp.eq.s32.totalorder %s11, 0
    %p141 = por %p139, %p140
    %p142 = scmp.ne.s32.totalorder %s131, %s134
    %p143 = scmp.eq.s32.totalorder %s16, 1
    %p144 = por %p142, %p143
    %p145 = scmp.ne.s32.totalorder %s134, %s135
    %p146 = scmp.eq.s32.totalorder %s16, 0
    %p147 = por %p145, %p146
    %p148 = scmp.ne.s32.totalorder %s134, %s135
    %p149 = scmp.eq.s32.totalorder %s17, 1
    %p150 = por %p148, %p149
    %p152 = scmp.ne.s32.totalorder %s135, %s151
    %p153 = scmp.eq.s32.totalorder %s17, 0
    %p154 = por %p152, %p153
    %p155 = scmp.le.s32.totalorder 1, %s11
    %p156 = scmp.lt.s32.totalorder %s11, 3
    %p157 = pnand %p155, %p156
    %p158 = pneg %p157
    // Predicated region
    $region9: #{fpa_forward.11} parent=5 // pred_check
      _
    $region10: #{fpa_forward.11} parent=5 // pred_check_branch
      %160 = sbr.rel (%p157) target = $region12
    $region11: #{fpa_forward.11} parent=5 // pred_region
      %s161 = ssub.s32 %s11, 1
      // Predicated region
      $region13: #{fpa_forward.11} parent=11 // pred_check
        %p162 = pneg %p58
      $region14: #{fpa_forward.11} parent=11 // pred_check_branch
        %164 = sbr.rel (%p162) target = $region16
      $region15: #{fpa_forward.11} parent=11 // pred_region
        _
      $region16: #{fpa_forward.11} parent=11 // pred_fallthru
        _
      // Predicated region
      $region17: #{fpa_forward.11} parent=11 // pred_check
        %p165 = pneg %p79
      $region18: #{fpa_forward.11} parent=11 // pred_check_branch
        %167 = sbr.rel (%p165) target = $region20
      $region19: #{fpa_forward.11} parent=11 // pred_region
        _
      $region20: #{fpa_forward.11} parent=11 // pred_fallthru
        _
      // Predicated region
      $region21: #{fpa_forward.11} parent=11 // pred_check
        %p168 = pneg %p100
      $region22: #{fpa_forward.11} parent=11 // pred_check_branch
        %170 = sbr.rel (%p168) target = $region24
      $region23: #{fpa_forward.11} parent=11 // pred_region
        _
      $region24: #{fpa_forward.11} parent=11 // pred_fallthru
        _
      // Predicated region
      $region25: #{fpa_forward.11} parent=11 // pred_check
        %p171 = pneg %p121
      $region26: #{fpa_forward.11} parent=11 // pred_check_branch
        %173 = sbr.rel (%p171) target = $region28
      $region27: #{fpa_forward.11} parent=11 // pred_region
        _
      $region28: #{fpa_forward.11} parent=11 // pred_fallthru
        _
    $region12: #{fpa_forward.11} parent=5 // pred_fallthru
      _
    %p174 = scmp.lt.s32.totalorder %s11, 2
    // Predicated region
    $region29: #{fpa_forward.11} parent=5 // pred_check
      %p175 = pneg %p174
    $region30: #{fpa_forward.11} parent=5 // pred_check_branch
      %177 = sbr.rel (%p175) target = $region32
    $region31: #{fpa_forward.11} parent=5 // pred_region
      // Predicated region
      $region33: #{fpa_forward.11} parent=31 // pred_check
        %p178 = pneg %p31
      $region34: #{fpa_forward.11} parent=31 // pred_check_branch
        %180 = sbr.rel (%p178) target = $region36
      $region35: #{fpa_forward.11} parent=31 // pred_region
        %p181 = scmp.lt.s32.totalorder %s11, 1
        %s182 = scalar_select %p181, %s11, 1
        %s183 = smul.addr %s182, 4
        %s184 = smul.addr %s183, 8
        %s185 = scalar_lea.vmem %s0, %s184
      $region36: #{fpa_forward.11} parent=31 // pred_fallthru
        _
    $region32: #{fpa_forward.11} parent=5 // pred_fallthru
      _
    %p186 = scmp.le.s32.totalorder 1, %s11
    %p187 = scmp.lt.s32.totalorder %s11, 3
    %p188 = pnand %p186, %p187
    %p189 = pneg %p188
    // Predicated region
    $region37: #{fpa_forward.11} parent=5 // pred_check
      _
    $region38: #{fpa_forward.11} parent=5 // pred_check_branch
      %191 = sbr.rel (%p188) target = $region40
    $region39: #{fpa_forward.11} parent=5 // pred_region
      %s192 = ssub.s32 %s11, 1
      %p193 = scmp.lt.s32.totalorder %s16, 1
      %s194 = scalar_select %p193, %s16, 1
      %s195 = smul.addr %s194, 4
      %s196 = smul.addr %s195, 8
      %s197 = scalar_lea.vmem %s0, %s196
      %p198 = pneg %p37
      %p199 = pneg %p34
      %p200 = pneg %p58
      %p201 = pneg %p55
      %p202 = pneg %p79
      %p203 = pneg %p76
      %p204 = pneg %p100
      %p205 = pneg %p97
      %p206 = pneg %p121
      %p207 = pneg %p118
      %p208 = pneg %p147
      %p209 = pneg %p144
      %p210 = scmp.lt.s32.totalorder %s16, 1
      %s211 = scalar_select %p210, %s16, 1
      %s212 = smul.addr %s211, 2
      %s213 = scalar_lea.vmem %s5, %s212
      %p214 = scmp.lt.s32.totalorder %s16, 1
      %s215 = scalar_select %p214, %s16, 1
      %s216 = smul.addr %s215, 4
      %s217 = smul.addr %s216, 8
      %s218 = scalar_lea.vmem %s0, %s217
      %p219 = scmp.lt.s32.totalorder %s16, 1
      %s220 = scalar_select %p219, %s16, 1
      %s221 = smul.addr %s220, 2
      %s222 = scalar_lea.vmem %s5, %s221
      %v224 = vld [vmem:[%s218] sm:$0xff]
      %s225 = scalar_lea.vmem %s218, 8
      %v226 = vld [vmem:[%s225] sm:$0xff]
      %s227 = scalar_lea.vmem %s218, 16
      %v228 = vld [vmem:[%s227] sm:$0xff]
      %s229 = scalar_lea.vmem %s218, 24
      %v230 = vld [vmem:[%s229] sm:$0xff]
      %v231 = vld [vmem:[%s3] sm:$0x1]
      %v232 = vld [vmem:[%s4] sm:$0x1]
      %vm233 = vcmp.ge.s32.totalorder %v231, 2
      %vm234 = vcmp.ge.s32.totalorder %v232, 2
      %vm235 = vmand %vm233, %vm234
      %v236 = vsel %vm235, 1, 0
      %v237 = vperm.slane %v236, 0
      %vm238 = vcmp.eq.s32.totalorder %v237, 1
      %v239 = vsel %vm238, %v230, 0.0
      %v240 = vld [vmem:[%s1] sm:$0x1]
      %v241 = vpack.c.bf16 %v239, %v239
      %vm242 = vcmp.ge.s32.totalorder %v232, 1
      %vm243 = vmand %vm233, %vm242
      %v244 = vsel %vm243, 1, 0
      %v245 = vperm.slane %v244, 0
      %vm246 = vcmp.eq.s32.totalorder %v245, 1
      %248 = vrot.lane.b32.xlu0 %v228, 127
      %v249 = vpop.permute.xlu0 %248
      %v251 = vsel %vm246, %v249, 0.0
      %s252 = scalar_lea.vmem %s1, 1
      %v253 = vld [vmem:[%s252] sm:$0x1]
      %v254 = vpack.c.bf16 %v251, %v251
      %vm255 = vcmask 64512
      %v257 = vsel %vm255, %v253, 0
      %vm259 = vcmask 1043456
      %v261 = vsel %vm259, %v254, 0
      %263 = vmatpush.bf16.msra.mxu0 0
      %264 = vmatpush.bf16.msra.mxu0 0
      %265 = vmatpush.bf16.msra.mxu0 0
      %266 = vmatpush.bf16.msra.mxu0 0
      %267 = vmatpush.bf16.msra.mxu0 0
      %268 = vmatpush.bf16.msra.mxu0 0
      %269 = vmatpush.bf16.msra.mxu0 0
      %270 = vmatpush.bf16.msra.mxu0 %v261
      %271 = vmatmul.bf16.gmra.mxu0 %v257
      %v272 = vpop.f32.mrf.mxu0
      %v273 = vadd.f32 0.0, %v272
      %v274 = vpop.f32.mrf.mxu0
      %275 = vdwg.mxu0
      %v277 = vsel %vm255, %v240, 0
      %v280 = vsel %vm259, %v241, 0
      %282 = vmatpush.bf16.msra.mxu0 0
      %283 = vmatpush.bf16.msra.mxu0 0
      %284 = vmatpush.bf16.msra.mxu0 0
      %285 = vmatpush.bf16.msra.mxu0 0
      %286 = vmatpush.bf16.msra.mxu0 0
      %287 = vmatpush.bf16.msra.mxu0 0
      %288 = vmatpush.bf16.msra.mxu0 0
      %289 = vmatpush.bf16.msra.mxu0 %v280
      %290 = vmatmul.bf16.gmra.mxu0 %v277
      %v291 = vpop.f32.mrf.mxu0
      %v292 = vadd.f32 %v273, %v291
      %v293 = vpop.f32.mrf.mxu0
      %294 = vdwg.mxu0
      %296 = vrot.lane.b32.xlu0 %v230, 127
      %v297 = vpop.permute.xlu0 %296
      %v299 = vsel %vm246, %v297, 0.0
      %s300 = scalar_lea.vmem %s1, 2
      %v301 = vld [vmem:[%s300] sm:$0x1]
      %v302 = vpack.c.bf16 %v299, %v299
      %v304 = vsel %vm255, %v301, 0
      %v307 = vsel %vm259, %v302, 0
      %309 = vmatpush.bf16.msra.mxu0 0
      %310 = vmatpush.bf16.msra.mxu0 0
      %311 = vmatpush.bf16.msra.mxu0 0
      %312 = vmatpush.bf16.msra.mxu0 0
      %313 = vmatpush.bf16.msra.mxu0 0
      %314 = vmatpush.bf16.msra.mxu0 0
      %315 = vmatpush.bf16.msra.mxu0 0
      %316 = vmatpush.bf16.msra.mxu0 %v307
      %317 = vmatmul.bf16.gmra.mxu0 %v304
      %v318 = vpop.f32.mrf.mxu0
      %v319 = vadd.f32 0.0, %v318
      %v320 = vpop.f32.mrf.mxu0
      %321 = vdwg.mxu0
      %v322 = vadd.f32 %v292, %v319
      %v323 = vsel %vm233, 1, 0
      %v324 = vperm.slane %v323, 0
      %vm325 = vcmp.eq.s32.totalorder %v324, 1
      %326 = vrot.lane.b32.xlu0 %v228, 126
      %v327 = vpop.permute.xlu0 %326
      %v329 = vsel %vm325, %v327, 0.0
      %s330 = scalar_lea.vmem %s1, 3
      %v331 = vld [vmem:[%s330] sm:$0x1]
      %v332 = vpack.c.bf16 %v329, %v329
      %v334 = vsel %vm255, %v331, 0
      %v337 = vsel %vm259, %v332, 0
      %339 = vmatpush.bf16.msra.mxu0 0
      %340 = vmatpush.bf16.msra.mxu0 0
      %341 = vmatpush.bf16.msra.mxu0 0
      %342 = vmatpush.bf16.msra.mxu0 0
      %343 = vmatpush.bf16.msra.mxu0 0
      %344 = vmatpush.bf16.msra.mxu0 0
      %345 = vmatpush.bf16.msra.mxu0 0
      %346 = vmatpush.bf16.msra.mxu0 %v337
      %347 = vmatmul.bf16.gmra.mxu0 %v334
      %v348 = vpop.f32.mrf.mxu0
      %v349 = vadd.f32 0.0, %v348
      %v350 = vpop.f32.mrf.mxu0
      %351 = vdwg.mxu0
      %v352 = vadd.f32 %v322, %v349
      %353 = vrot.lane.b32.xlu0 %v230, 126
      %v354 = vpop.permute.xlu0 %353
      %v356 = vsel %vm325, %v354, 0.0
      %s357 = scalar_lea.vmem %s1, 4
      %v358 = vld [vmem:[%s357] sm:$0x1]
      %v359 = vpack.c.bf16 %v356, %v356
      %v361 = vsel %vm255, %v358, 0
      %v364 = vsel %vm259, %v359, 0
      %366 = vmatpush.bf16.msra.mxu0 0
      %367 = vmatpush.bf16.msra.mxu0 0
      %368 = vmatpush.bf16.msra.mxu0 0
      %369 = vmatpush.bf16.msra.mxu0 0
      %370 = vmatpush.bf16.msra.mxu0 0
      %371 = vmatpush.bf16.msra.mxu0 0
      %372 = vmatpush.bf16.msra.mxu0 0
      %373 = vmatpush.bf16.msra.mxu0 %v364
      %374 = vmatmul.bf16.gmra.mxu0 %v361
      %v375 = vpop.f32.mrf.mxu0
      %v376 = vadd.f32 0.0, %v375
      %v377 = vpop.f32.mrf.mxu0
      %378 = vdwg.mxu0
      %v379 = vadd.f32 %v352, %v376
      %vm380 = vcmp.lt.s32.totalorder %v232, 7
      %vm381 = vmand %vm233, %vm380
      %v382 = vsel %vm381, 1, 0
      %v383 = vperm.slane %v382, 0
      %vm384 = vcmp.eq.s32.totalorder %v383, 1
      %385 = vrot.lane.b32.xlu0 %v228, 125
      %v386 = vpop.permute.xlu0 %385
      %v388 = vsel %vm384, %v386, 0.0
      %s389 = scalar_lea.vmem %s1, 5
      %v390 = vld [vmem:[%s389] sm:$0x1]
      %v391 = vpack.c.bf16 %v388, %v388
      %v393 = vsel %vm255, %v390, 0
      %v396 = vsel %vm259, %v391, 0
      %398 = vmatpush.bf16.msra.mxu0 0
      %399 = vmatpush.bf16.msra.mxu0 0
      %400 = vmatpush.bf16.msra.mxu0 0
      %401 = vmatpush.bf16.msra.mxu0 0
      %402 = vmatpush.bf16.msra.mxu0 0
      %403 = vmatpush.bf16.msra.mxu0 0
      %404 = vmatpush.bf16.msra.mxu0 0
      %405 = vmatpush.bf16.msra.mxu0 %v396
      %406 = vmatmul.bf16.gmra.mxu0 %v393
      %v407 = vpop.f32.mrf.mxu0
      %v408 = vadd.f32 0.0, %v407
      %v409 = vpop.f32.mrf.mxu0
      %410 = vdwg.mxu0
      %v411 = vadd.f32 %v379, %v408
      %412 = vrot.lane.b32.xlu0 %v230, 125
      %v413 = vpop.permute.xlu0 %412
      %v415 = vsel %vm384, %v413, 0.0
      %s416 = scalar_lea.vmem %s1, 6
      %v417 = vld [vmem:[%s416] sm:$0x1]
      %v418 = vpack.c.bf16 %v415, %v415
      %v420 = vsel %vm255, %v417, 0
      %v423 = vsel %vm259, %v418, 0
      %425 = vmatpush.bf16.msra.mxu0 0
      %426 = vmatpush.bf16.msra.mxu0 0
      %427 = vmatpush.bf16.msra.mxu0 0
      %428 = vmatpush.bf16.msra.mxu0 0
      %429 = vmatpush.bf16.msra.mxu0 0
      %430 = vmatpush.bf16.msra.mxu0 0
      %431 = vmatpush.bf16.msra.mxu0 0
      %432 = vmatpush.bf16.msra.mxu0 %v423
      %433 = vmatmul.bf16.gmra.mxu0 %v420
      %v434 = vpop.f32.mrf.mxu0
      %v435 = vadd.f32 0.0, %v434
      %v436 = vpop.f32.mrf.mxu0
      %437 = vdwg.mxu0
      %v438 = vadd.f32 %v411, %v435
      %vm439 = vcmp.ge.s32.totalorder %v231, 1
      %vm440 = vmand %vm439, %vm234
      %v441 = vsel %vm440, 1, 0
      %v442 = vperm.slane %v441, 0
      %vm443 = vcmp.eq.s32.totalorder %v442, 1
      %445 = vrot.lane.b32.xlu0 %v226, 120
      %v446 = vpop.permute.xlu0 %445
      %v448 = vsel %vm443, %v446, 0.0
      %s449 = scalar_lea.vmem %s1, 7
      %v450 = vld [vmem:[%s449] sm:$0x1]
      %v451 = vpack.c.bf16 %v448, %v448
      %v453 = vsel %vm255, %v450, 0
      %v456 = vsel %vm259, %v451, 0
      %458 = vmatpush.bf16.msra.mxu0 0
      %459 = vmatpush.bf16.msra.mxu0 0
      %460 = vmatpush.bf16.msra.mxu0 0
      %461 = vmatpush.bf16.msra.mxu0 0
      %462 = vmatpush.bf16.msra.mxu0 0
      %463 = vmatpush.bf16.msra.mxu0 0
      %464 = vmatpush.bf16.msra.mxu0 0
      %465 = vmatpush.bf16.msra.mxu0 %v456
      %466 = vmatmul.bf16.gmra.mxu0 %v453
      %v467 = vpop.f32.mrf.mxu0
      %v468 = vadd.f32 0.0, %v467
      %v469 = vpop.f32.mrf.mxu0
      %470 = vdwg.mxu0
      %v471 = vadd.f32 %v438, %v468
      %vm472 = vmand %vm439, %vm242
      %v473 = vsel %vm472, 1, 0
      %v474 = vperm.slane %v473, 0
      %vm475 = vcmp.eq.s32.totalorder %v474, 1
      %477 = vrot.lane.b32.xlu0 %v224, 119
      %v478 = vpop.permute.xlu0 %477
      %v480 = vsel %vm475, %v478, 0.0
      %s481 = scalar_lea.vmem %s1, 8
      %v482 = vld [vmem:[%s481] sm:$0x1]
      %v483 = vpack.c.bf16 %v480, %v480
      %v485 = vsel %vm255, %v482, 0
      %v488 = vsel %vm259, %v483, 0
      %490 = vmatpush.bf16.msra.mxu0 0
      %491 = vmatpush.bf16.msra.mxu0 0
      %492 = vmatpush.bf16.msra.mxu0 0
      %493 = vmatpush.bf16.msra.mxu0 0
      %494 = vmatpush.bf16.msra.mxu0 0
      %495 = vmatpush.bf16.msra.mxu0 0
      %496 = vmatpush.bf16.msra.mxu0 0
      %497 = vmatpush.bf16.msra.mxu0 %v488
      %498 = vmatmul.bf16.gmra.mxu0 %v485
      %v499 = vpop.f32.mrf.mxu0
      %v500 = vadd.f32 0.0, %v499
      %v501 = vpop.f32.mrf.mxu0
      %502 = vdwg.mxu0
      %v503 = vadd.f32 %v471, %v500
      %504 = vrot.lane.b32.xlu0 %v226, 119
      %v505 = vpop.permute.xlu0 %504
      %v507 = vsel %vm475, %v505, 0.0
      %s508 = scalar_lea.vmem %s1, 9
      %v509 = vld [vmem:[%s508] sm:$0x1]
      %v510 = vpack.c.bf16 %v507, %v507
      %v512 = vsel %vm255, %v509, 0
      %v515 = vsel %vm259, %v510, 0
      %517 = vmatpush.bf16.msra.mxu0 0
      %518 = vmatpush.bf16.msra.mxu0 0
      %519 = vmatpush.bf16.msra.mxu0 0
      %520 = vmatpush.bf16.msra.mxu0 0
      %521 = vmatpush.bf16.msra.mxu0 0
      %522 = vmatpush.bf16.msra.mxu0 0
      %523 = vmatpush.bf16.msra.mxu0 0
      %524 = vmatpush.bf16.msra.mxu0 %v515
      %525 = vmatmul.bf16.gmra.mxu0 %v512
      %v526 = vpop.f32.mrf.mxu0
      %v527 = vadd.f32 0.0, %v526
      %v528 = vpop.f32.mrf.mxu0
      %529 = vdwg.mxu0
      %v530 = vadd.f32 %v503, %v527
      %v531 = vsel %vm439, 1, 0
      %v532 = vperm.slane %v531, 0
      %vm533 = vcmp.eq.s32.totalorder %v532, 1
      %534 = vrot.lane.b32.xlu0 %v224, 118
      %v535 = vpop.permute.xlu0 %534
      %v537 = vsel %vm533, %v535, 0.0
      %s538 = scalar_lea.vmem %s1, 10
      %v539 = vld [vmem:[%s538] sm:$0x1]
      %v540 = vpack.c.bf16 %v537, %v537
      %v542 = vsel %vm255, %v539, 0
      %v545 = vsel %vm259, %v540, 0
      %547 = vmatpush.bf16.msra.mxu0 0
      %548 = vmatpush.bf16.msra.mxu0 0
      %549 = vmatpush.bf16.msra.mxu0 0
      %550 = vmatpush.bf16.msra.mxu0 0
      %551 = vmatpush.bf16.msra.mxu0 0
      %552 = vmatpush.bf16.msra.mxu0 0
      %553 = vmatpush.bf16.msra.mxu0 0
      %554 = vmatpush.bf16.msra.mxu0 %v545
      %555 = vmatmul.bf16.gmra.mxu0 %v542
      %v556 = vpop.f32.mrf.mxu0
      %v557 = vadd.f32 0.0, %v556
      %v558 = vpop.f32.mrf.mxu0
      %559 = vdwg.mxu0
      %v560 = vadd.f32 %v530, %v557
      %561 = vrot.lane.b32.xlu0 %v226, 118
      %v562 = vpop.permute.xlu0 %561
      %v564 = vsel %vm533, %v562, 0.0
      %s565 = scalar_lea.vmem %s1, 11
      %v566 = vld [vmem:[%s565] sm:$0x1]
      %v567 = vpack.c.bf16 %v564, %v564
      %v569 = vsel %vm255, %v566, 0
      %v572 = vsel %vm259, %v567, 0
      %574 = vmatpush.bf16.msra.mxu0 0
      %575 = vmatpush.bf16.msra.mxu0 0
      %576 = vmatpush.bf16.msra.mxu0 0
      %577 = vmatpush.bf16.msra.mxu0 0
      %578 = vmatpush.bf16.msra.mxu0 0
      %579 = vmatpush.bf16.msra.mxu0 0
      %580 = vmatpush.bf16.msra.mxu0 0
      %581 = vmatpush.bf16.msra.mxu0 %v572
      %582 = vmatmul.bf16.gmra.mxu0 %v569
      %v583 = vpop.f32.mrf.mxu0
      %v584 = vadd.f32 0.0, %v583
      %v585 = vpop.f32.mrf.mxu0
      %586 = vdwg.mxu0
      %v587 = vadd.f32 %v560, %v584
      %vm588 = vmand %vm439, %vm380
      %v589 = vsel %vm588, 1, 0
      %v590 = vperm.slane %v589, 0
      %vm591 = vcmp.eq.s32.totalorder %v590, 1
      %592 = vrot.lane.b32.xlu0 %v224, 117
      %v593 = vpop.permute.xlu0 %592
      %v595 = vsel %vm591, %v593, 0.0
      %s596 = scalar_lea.vmem %s1, 12
      %v597 = vld [vmem:[%s596] sm:$0x1]
      %v598 = vpack.c.bf16 %v595, %v595
      %v600 = vsel %vm255, %v597, 0
      %v603 = vsel %vm259, %v598, 0
      %605 = vmatpush.bf16.msra.mxu0 0
      %606 = vmatpush.bf16.msra.mxu0 0
      %607 = vmatpush.bf16.msra.mxu0 0
      %608 = vmatpush.bf16.msra.mxu0 0
      %609 = vmatpush.bf16.msra.mxu0 0
      %610 = vmatpush.bf16.msra.mxu0 0
      %611 = vmatpush.bf16.msra.mxu0 0
      %612 = vmatpush.bf16.msra.mxu0 %v603
      %613 = vmatmul.bf16.gmra.mxu0 %v600
      %v614 = vpop.f32.mrf.mxu0
      %v615 = vadd.f32 0.0, %v614
      %v616 = vpop.f32.mrf.mxu0
      %617 = vdwg.mxu0
      %v618 = vadd.f32 %v587, %v615
      %619 = vrot.lane.b32.xlu0 %v226, 117
      %v620 = vpop.permute.xlu0 %619
      %v622 = vsel %vm591, %v620, 0.0
      %s623 = scalar_lea.vmem %s1, 13
      %v624 = vld [vmem:[%s623] sm:$0x1]
      %v625 = vpack.c.bf16 %v622, %v622
      %v627 = vsel %vm255, %v624, 0
      %v630 = vsel %vm259, %v625, 0
      %632 = vmatpush.bf16.msra.mxu0 0
      %633 = vmatpush.bf16.msra.mxu0 0
      %634 = vmatpush.bf16.msra.mxu0 0
      %635 = vmatpush.bf16.msra.mxu0 0
      %636 = vmatpush.bf16.msra.mxu0 0
      %637 = vmatpush.bf16.msra.mxu0 0
      %638 = vmatpush.bf16.msra.mxu0 0
      %639 = vmatpush.bf16.msra.mxu0 %v630
      %640 = vmatmul.bf16.gmra.mxu0 %v627
      %v641 = vpop.f32.mrf.mxu0
      %v642 = vadd.f32 0.0, %v641
      %v643 = vpop.f32.mrf.mxu0
      %644 = vdwg.mxu0
      %v645 = vadd.f32 %v618, %v642
      %646 = vrot.lane.b32.xlu0 %v230, 120
      %v647 = vpop.permute.xlu0 %646
      %v649 = vsel %vm443, %v647, 0.0
      %s650 = scalar_lea.vmem %s1, 14
      %v651 = vld [vmem:[%s650] sm:$0x1]
      %v652 = vpack.c.bf16 %v649, %v649
      %v654 = vsel %vm255, %v651, 0
      %v657 = vsel %vm259, %v652, 0
      %659 = vmatpush.bf16.msra.mxu0 0
      %660 = vmatpush.bf16.msra.mxu0 0
      %661 = vmatpush.bf16.msra.mxu0 0
      %662 = vmatpush.bf16.msra.mxu0 0
      %663 = vmatpush.bf16.msra.mxu0 0
      %664 = vmatpush.bf16.msra.mxu0 0
      %665 = vmatpush.bf16.msra.mxu0 0
      %666 = vmatpush.bf16.msra.mxu0 %v657
      %667 = vmatmul.bf16.gmra.mxu0 %v654
      %v668 = vpop.f32.mrf.mxu0
      %v669 = vadd.f32 0.0, %v668
      %v670 = vpop.f32.mrf.mxu0
      %671 = vdwg.mxu0
      %v672 = vadd.f32 %v645, %v669
      %673 = vrot.lane.b32.xlu0 %v228, 119
      %v674 = vpop.permute.xlu0 %673
      %v676 = vsel %vm475, %v674, 0.0
      %s677 = scalar_lea.vmem %s1, 15
      %v678 = vld [vmem:[%s677] sm:$0x1]
      %v679 = vpack.c.bf16 %v676, %v676
      %v681 = vsel %vm255, %v678, 0
      %v684 = vsel %vm259, %v679, 0
      %686 = vmatpush.bf16.msra.mxu0 0
      %687 = vmatpush.bf16.msra.mxu0 0
      %688 = vmatpush.bf16.msra.mxu0 0
      %689 = vmatpush.bf16.msra.mxu0 0
      %690 = vmatpush.bf16.msra.mxu0 0
      %691 = vmatpush.bf16.msra.mxu0 0
      %692 = vmatpush.bf16.msra.mxu0 0
      %693 = vmatpush.bf16.msra.mxu0 %v684
      %694 = vmatmul.bf16.gmra.mxu0 %v681
      %v695 = vpop.f32.mrf.mxu0
      %v696 = vadd.f32 0.0, %v695
      %v697 = vpop.f32.mrf.mxu0
      %698 = vdwg.mxu0
      %v699 = vadd.f32 %v672, %v696
      %700 = vrot.lane.b32.xlu0 %v230, 119
      %v701 = vpop.permute.xlu0 %700
      %v703 = vsel %vm475, %v701, 0.0
      %s704 = scalar_lea.vmem %s1, 16
      %v705 = vld [vmem:[%s704] sm:$0x1]
      %v706 = vpack.c.bf16 %v703, %v703
      %v708 = vsel %vm255, %v705, 0
      %v711 = vsel %vm259, %v706, 0
      %713 = vmatpush.bf16.msra.mxu0 0
      %714 = vmatpush.bf16.msra.mxu0 0
      %715 = vmatpush.bf16.msra.mxu0 0
      %716 = vmatpush.bf16.msra.mxu0 0
      %717 = vmatpush.bf16.msra.mxu0 0
      %718 = vmatpush.bf16.msra.mxu0 0
      %719 = vmatpush.bf16.msra.mxu0 0
      %720 = vmatpush.bf16.msra.mxu0 %v711
      %721 = vmatmul.bf16.gmra.mxu0 %v708
      %v722 = vpop.f32.mrf.mxu0
      %v723 = vadd.f32 0.0, %v722
      %v724 = vpop.f32.mrf.mxu0
      %725 = vdwg.mxu0
      %v726 = vadd.f32 %v699, %v723
      %727 = vrot.lane.b32.xlu0 %v228, 118
      %v728 = vpop.permute.xlu0 %727
      %v730 = vsel %vm533, %v728, 0.0
      %s731 = scalar_lea.vmem %s1, 17
      %v732 = vld [vmem:[%s731] sm:$0x1]
      %v733 = vpack.c.bf16 %v730, %v730
      %v735 = vsel %vm255, %v732, 0
      %v738 = vsel %vm259, %v733, 0
      %740 = vmatpush.bf16.msra.mxu0 0
      %741 = vmatpush.bf16.msra.mxu0 0
      %742 = vmatpush.bf16.msra.mxu0 0
      %743 = vmatpush.bf16.msra.mxu0 0
      %744 = vmatpush.bf16.msra.mxu0 0
      %745 = vmatpush.bf16.msra.mxu0 0
      %746 = vmatpush.bf16.msra.mxu0 0
      %747 = vmatpush.bf16.msra.mxu0 %v738
      %748 = vmatmul.bf16.gmra.mxu0 %v735
      %v749 = vpop.f32.mrf.mxu0
      %v750 = vadd.f32 0.0, %v749
      %v751 = vpop.f32.mrf.mxu0
      %752 = vdwg.mxu0
      %v753 = vadd.f32 %v726, %v750
      %754 = vrot.lane.b32.xlu0 %v230, 118
      %v755 = vpop.permute.xlu0 %754
      %v757 = vsel %vm533, %v755, 0.0
      %s758 = scalar_lea.vmem %s1, 18
      %v759 = vld [vmem:[%s758] sm:$0x1]
      %v760 = vpack.c.bf16 %v757, %v757
      %v762 = vsel %vm255, %v759, 0
      %v765 = vsel %vm259, %v760, 0
      %767 = vmatpush.bf16.msra.mxu0 0
      %768 = vmatpush.bf16.msra.mxu0 0
      %769 = vmatpush.bf16.msra.mxu0 0
      %770 = vmatpush.bf16.msra.mxu0 0
      %771 = vmatpush.bf16.msra.mxu0 0
      %772 = vmatpush.bf16.msra.mxu0 0
      %773 = vmatpush.bf16.msra.mxu0 0
      %774 = vmatpush.bf16.msra.mxu0 %v765
      %775 = vmatmul.bf16.gmra.mxu0 %v762
      %v776 = vpop.f32.mrf.mxu0
      %v777 = vadd.f32 0.0, %v776
      %v778 = vpop.f32.mrf.mxu0
      %779 = vdwg.mxu0
      %v780 = vadd.f32 %v753, %v777
      %781 = vrot.lane.b32.xlu0 %v228, 117
      %v782 = vpop.permute.xlu0 %781
      %v784 = vsel %vm591, %v782, 0.0
      %s785 = scalar_lea.vmem %s1, 19
      %v786 = vld [vmem:[%s785] sm:$0x1]
      %v787 = vpack.c.bf16 %v784, %v784
      %v789 = vsel %vm255, %v786, 0
      %v792 = vsel %vm259, %v787, 0
      %794 = vmatpush.bf16.msra.mxu0 0
      %795 = vmatpush.bf16.msra.mxu0 0
      %796 = vmatpush.bf16.msra.mxu0 0
      %797 = vmatpush.bf16.msra.mxu0 0
      %798 = vmatpush.bf16.msra.mxu0 0
      %799 = vmatpush.bf16.msra.mxu0 0
      %800 = vmatpush.bf16.msra.mxu0 0
      %801 = vmatpush.bf16.msra.mxu0 %v792
      %802 = vmatmul.bf16.gmra.mxu0 %v789
      %v803 = vpop.f32.mrf.mxu0
      %v804 = vadd.f32 0.0, %v803
      %v805 = vpop.f32.mrf.mxu0
      %806 = vdwg.mxu0
      %v807 = vadd.f32 %v780, %v804
      %808 = vrot.lane.b32.xlu0 %v230, 117
      %v809 = vpop.permute.xlu0 %808
      %v811 = vsel %vm591, %v809, 0.0
      %s812 = scalar_lea.vmem %s1, 20
      %v813 = vld [vmem:[%s812] sm:$0x1]
      %v814 = vpack.c.bf16 %v811, %v811
      %v816 = vsel %vm255, %v813, 0
      %v819 = vsel %vm259, %v814, 0
      %821 = vmatpush.bf16.msra.mxu0 0
      %822 = vmatpush.bf16.msra.mxu0 0
      %823 = vmatpush.bf16.msra.mxu0 0
      %824 = vmatpush.bf16.msra.mxu0 0
      %825 = vmatpush.bf16.msra.mxu0 0
      %826 = vmatpush.bf16.msra.mxu0 0
      %827 = vmatpush.bf16.msra.mxu0 0
      %828 = vmatpush.bf16.msra.mxu0 %v819
      %829 = vmatmul.bf16.gmra.mxu0 %v816
      %v830 = vpop.f32.mrf.mxu0
      %v831 = vadd.f32 0.0, %v830
      %v832 = vpop.f32.mrf.mxu0
      %833 = vdwg.mxu0
      %v834 = vadd.f32 %v807, %v831
      %v835 = vsel %vm234, 1, 0
      %v836 = vperm.slane %v835, 0
      %vm837 = vcmp.eq.s32.totalorder %v836, 1
      %838 = vrot.lane.b32.xlu0 %v226, 112
      %v839 = vpop.permute.xlu0 %838
      %v841 = vsel %vm837, %v839, 0.0
      %s842 = scalar_lea.vmem %s1, 21
      %v843 = vld [vmem:[%s842] sm:$0x1]
      %v844 = vpack.c.bf16 %v841, %v841
      %v846 = vsel %vm255, %v843, 0
      %v849 = vsel %vm259, %v844, 0
      %851 = vmatpush.bf16.msra.mxu0 0
      %852 = vmatpush.bf16.msra.mxu0 0
      %853 = vmatpush.bf16.msra.mxu0 0
      %854 = vmatpush.bf16.msra.mxu0 0
      %855 = vmatpush.bf16.msra.mxu0 0
      %856 = vmatpush.bf16.msra.mxu0 0
      %857 = vmatpush.bf16.msra.mxu0 0
      %858 = vmatpush.bf16.msra.mxu0 %v849
      %859 = vmatmul.bf16.gmra.mxu0 %v846
      %v860 = vpop.f32.mrf.mxu0
      %v861 = vadd.f32 0.0, %v860
      %v862 = vpop.f32.mrf.mxu0
      %863 = vdwg.mxu0
      %v864 = vadd.f32 %v834, %v861
      %v865 = vsel %vm242, 1, 0
      %v866 = vperm.slane %v865, 0
      %vm867 = vcmp.eq.s32.totalorder %v866, 1
      %868 = vrot.lane.b32.xlu0 %v224, 111
      %v869 = vpop.permute.xlu0 %868
      %v871 = vsel %vm867, %v869, 0.0
      %s872 = scalar_lea.vmem %s1, 22
      %v873 = vld [vmem:[%s872] sm:$0x1]
      %v874 = vpack.c.bf16 %v871, %v871
      %v876 = vsel %vm255, %v873, 0
      %v879 = vsel %vm259, %v874, 0
      %881 = vmatpush.bf16.msra.mxu0 0
      %882 = vmatpush.bf16.msra.mxu0 0
      %883 = vmatpush.bf16.msra.mxu0 0
      %884 = vmatpush.bf16.msra.mxu0 0
      %885 = vmatpush.bf16.msra.mxu0 0
      %886 = vmatpush.bf16.msra.mxu0 0
      %887 = vmatpush.bf16.msra.mxu0 0
      %888 = vmatpush.bf16.msra.mxu0 %v879
      %889 = vmatmul.bf16.gmra.mxu0 %v876
      %v890 = vpop.f32.mrf.mxu0
      %v891 = vadd.f32 0.0, %v890
      %v892 = vpop.f32.mrf.mxu0
      %893 = vdwg.mxu0
      %v894 = vadd.f32 %v864, %v891
      %895 = vrot.lane.b32.xlu0 %v226, 111
      %v896 = vpop.permute.xlu0 %895
      %v898 = vsel %vm867, %v896, 0.0
      %s899 = scalar_lea.vmem %s1, 23
      %v900 = vld [vmem:[%s899] sm:$0x1]
      %v901 = vpack.c.bf16 %v898, %v898
      %v903 = vsel %vm255, %v900, 0
      %v906 = vsel %vm259, %v901, 0
      %908 = vmatpush.bf16.msra.mxu0 0
      %909 = vmatpush.bf16.msra.mxu0 0
      %910 = vmatpush.bf16.msra.mxu0 0
      %911 = vmatpush.bf16.msra.mxu0 0
      %912 = vmatpush.bf16.msra.mxu0 0
      %913 = vmatpush.bf16.msra.mxu0 0
      %914 = vmatpush.bf16.msra.mxu0 0
      %915 = vmatpush.bf16.msra.mxu0 %v906
      %916 = vmatmul.bf16.gmra.mxu0 %v903
      %v917 = vpop.f32.mrf.mxu0
      %v918 = vadd.f32 0.0, %v917
      %v919 = vpop.f32.mrf.mxu0
      %920 = vdwg.mxu0
      %v921 = vadd.f32 %v894, %v918
      %s922 = scalar_lea.vmem %s1, 24
      %v923 = vld [vmem:[%s922] sm:$0x1]
      %v924 = vpack.c.bf16 %v224, %v224
      %926 = vrot.lane.b32.xlu0 %v924, 110
      %v927 = vpop.permute.xlu0 %926
      %v929 = vsel %vm255, %v923, 0
      %v932 = vsel %vm259, %v927, 0
      %934 = vmatpush.bf16.msra.mxu0 0
      %935 = vmatpush.bf16.msra.mxu0 0
      %936 = vmatpush.bf16.msra.mxu0 0
      %937 = vmatpush.bf16.msra.mxu0 0
      %938 = vmatpush.bf16.msra.mxu0 0
      %939 = vmatpush.bf16.msra.mxu0 0
      %940 = vmatpush.bf16.msra.mxu0 0
      %941 = vmatpush.bf16.msra.mxu0 %v932
      %942 = vmatmul.bf16.gmra.mxu0 %v929
      %v943 = vpop.f32.mrf.mxu0
      %v944 = vadd.f32 0.0, %v943
      %v945 = vpop.f32.mrf.mxu0
      %946 = vdwg.mxu0
      %v947 = vadd.f32 %v921, %v944
      %s948 = scalar_lea.vmem %s1, 25
      %v949 = vld [vmem:[%s948] sm:$0x1]
      %v950 = vpack.c.bf16 %v226, %v226
      %952 = vrot.lane.b32.xlu0 %v950, 110
      %v953 = vpop.permute.xlu0 %952
      %v955 = vsel %vm255, %v949, 0
      %v958 = vsel %vm259, %v953, 0
      %960 = vmatpush.bf16.msra.mxu0 0
      %961 = vmatpush.bf16.msra.mxu0 0
      %962 = vmatpush.bf16.msra.mxu0 0
      %963 = vmatpush.bf16.msra.mxu0 0
      %964 = vmatpush.bf16.msra.mxu0 0
      %965 = vmatpush.bf16.msra.mxu0 0
      %966 = vmatpush.bf16.msra.mxu0 0
      %967 = vmatpush.bf16.msra.mxu0 %v958
      %968 = vmatmul.bf16.gmra.mxu0 %v955
      %v969 = vpop.f32.mrf.mxu0
      %v970 = vadd.f32 0.0, %v969
      %v971 = vpop.f32.mrf.mxu0
      %972 = vdwg.mxu0
      %v973 = vadd.f32 %v947, %v970
      %v974 = vsel %vm380, 1, 0
      %v975 = vperm.slane %v974, 0
      %vm976 = vcmp.eq.s32.totalorder %v975, 1
      %977 = vrot.lane.b32.xlu0 %v224, 109
      %v978 = vpop.permute.xlu0 %977
      %v980 = vsel %vm976, %v978, 0.0
      %s981 = scalar_lea.vmem %s1, 26
      %v982 = vld [vmem:[%s981] sm:$0x1]
      %v983 = vpack.c.bf16 %v980, %v980
      %v985 = vsel %vm255, %v982, 0
      %v988 = vsel %vm259, %v983, 0
      %990 = vmatpush.bf16.msra.mxu0 0
      %991 = vmatpush.bf16.msra.mxu0 0
      %992 = vmatpush.bf16.msra.mxu0 0
      %993 = vmatpush.bf16.msra.mxu0 0
      %994 = vmatpush.bf16.msra.mxu0 0
      %995 = vmatpush.bf16.msra.mxu0 0
      %996 = vmatpush.bf16.msra.mxu0 0
      %997 = vmatpush.bf16.msra.mxu0 %v988
      %998 = vmatmul.bf16.gmra.mxu0 %v985
      %v999 = vpop.f32.mrf.mxu0
      %v1000 = vadd.f32 0.0, %v999
      %v1001 = vpop.f32.mrf.mxu0
      %1002 = vdwg.mxu0
      %v1003 = vadd.f32 %v973, %v1000
      %1004 = vrot.lane.b32.xlu0 %v226, 109
      %v1005 = vpop.permute.xlu0 %1004
      %v1007 = vsel %vm976, %v1005, 0.0
      %s1008 = scalar_lea.vmem %s1, 27
      %v1009 = vld [vmem:[%s1008] sm:$0x1]
      %v1010 = vpack.c.bf16 %v1007, %v1007
      %v1012 = vsel %vm255, %v1009, 0
      %v1015 = vsel %vm259, %v1010, 0
      %1017 = vmatpush.bf16.msra.mxu0 0
      %1018 = vmatpush.bf16.msra.mxu0 0
      %1019 = vmatpush.bf16.msra.mxu0 0
      %1020 = vmatpush.bf16.msra.mxu0 0
      %1021 = vmatpush.bf16.msra.mxu0 0
      %1022 = vmatpush.bf16.msra.mxu0 0
      %1023 = vmatpush.bf16.msra.mxu0 0
      %1024 = vmatpush.bf16.msra.mxu0 %v1015
      %1025 = vmatmul.bf16.gmra.mxu0 %v1012
      %v1026 = vpop.f32.mrf.mxu0
      %v1027 = vadd.f32 0.0, %v1026
      %v1028 = vpop.f32.mrf.mxu0
      %1029 = vdwg.mxu0
      %v1030 = vadd.f32 %v1003, %v1027
      %1031 = vrot.lane.b32.xlu0 %v230, 112
      %v1032 = vpop.permute.xlu0 %1031
      %v1034 = vsel %vm837, %v1032, 0.0
      %s1035 = scalar_lea.vmem %s1, 28
      %v1036 = vld [vmem:[%s1035] sm:$0x1]
      %v1037 = vpack.c.bf16 %v1034, %v1034
      %v1039 = vsel %vm255, %v1036, 0
      %v1042 = vsel %vm259, %v1037, 0
      %1044 = vmatpush.bf16.msra.mxu0 0
      %1045 = vmatpush.bf16.msra.mxu0 0
      %1046 = vmatpush.bf16.msra.mxu0 0
      %1047 = vmatpush.bf16.msra.mxu0 0
      %1048 = vmatpush.bf16.msra.mxu0 0
      %1049 = vmatpush.bf16.msra.mxu0 0
      %1050 = vmatpush.bf16.msra.mxu0 0
      %1051 = vmatpush.bf16.msra.mxu0 %v1042
      %1052 = vmatmul.bf16.gmra.mxu0 %v1039
      %v1053 = vpop.f32.mrf.mxu0
      %v1054 = vadd.f32 0.0, %v1053
      %v1055 = vpop.f32.mrf.mxu0
      %1056 = vdwg.mxu0
      %v1057 = vadd.f32 %v1030, %v1054
      %1058 = vrot.lane.b32.xlu0 %v228, 111
      %v1059 = vpop.permute.xlu0 %1058
      %v1061 = vsel %vm867, %v1059, 0.0
      %s1062 = scalar_lea.vmem %s1, 29
      %v1063 = vld [vmem:[%s1062] sm:$0x1]
      %v1064 = vpack.c.bf16 %v1061, %v1061
      %v1066 = vsel %vm255, %v1063, 0
      %v1069 = vsel %vm259, %v1064, 0
      %1071 = vmatpush.bf16.msra.mxu0 0
      %1072 = vmatpush.bf16.msra.mxu0 0
      %1073 = vmatpush.bf16.msra.mxu0 0
      %1074 = vmatpush.bf16.msra.mxu0 0
      %1075 = vmatpush.bf16.msra.mxu0 0
      %1076 = vmatpush.bf16.msra.mxu0 0
      %1077 = vmatpush.bf16.msra.mxu0 0
      %1078 = vmatpush.bf16.msra.mxu0 %v1069
      %1079 = vmatmul.bf16.gmra.mxu0 %v1066
      %v1080 = vpop.f32.mrf.mxu0
      %v1081 = vadd.f32 0.0, %v1080
      %v1082 = vpop.f32.mrf.mxu0
      %1083 = vdwg.mxu0
      %v1084 = vadd.f32 %v1057, %v1081
      %1085 = vrot.lane.b32.xlu0 %v230, 111
      %v1086 = vpop.permute.xlu0 %1085
      %v1088 = vsel %vm867, %v1086, 0.0
      %s1089 = scalar_lea.vmem %s1, 30
      %v1090 = vld [vmem:[%s1089] sm:$0x1]
      %v1091 = vpack.c.bf16 %v1088, %v1088
      %v1093 = vsel %vm255, %v1090, 0
      %v1096 = vsel %vm259, %v1091, 0
      %1098 = vmatpush.bf16.msra.mxu0 0
      %1099 = vmatpush.bf16.msra.mxu0 0
      %1100 = vmatpush.bf16.msra.mxu0 0
      %1101 = vmatpush.bf16.msra.mxu0 0
      %1102 = vmatpush.bf16.msra.mxu0 0
      %1103 = vmatpush.bf16.msra.mxu0 0
      %1104 = vmatpush.bf16.msra.mxu0 0
      %1105 = vmatpush.bf16.msra.mxu0 %v1096
      %1106 = vmatmul.bf16.gmra.mxu0 %v1093
      %v1107 = vpop.f32.mrf.mxu0
      %v1108 = vadd.f32 0.0, %v1107
      %v1109 = vpop.f32.mrf.mxu0
      %1110 = vdwg.mxu0
      %v1111 = vadd.f32 %v1084, %v1108
      %s1112 = scalar_lea.vmem %s1, 31
      %v1113 = vld [vmem:[%s1112] sm:$0x1]
      %v1114 = vpack.c.bf16 %v228, %v228
      %1116 = vrot.lane.b32.xlu0 %v1114, 110
      %v1117 = vpop.permute.xlu0 %1116
      %v1119 = vsel %vm255, %v1113, 0
      %v1122 = vsel %vm259, %v1117, 0
      %1124 = vmatpush.bf16.msra.mxu0 0
      %1125 = vmatpush.bf16.msra.mxu0 0
      %1126 = vmatpush.bf16.msra.mxu0 0
      %1127 = vmatpush.bf16.msra.mxu0 0
      %1128 = vmatpush.bf16.msra.mxu0 0
      %1129 = vmatpush.bf16.msra.mxu0 0
      %1130 = vmatpush.bf16.msra.mxu0 0
      %1131 = vmatpush.bf16.msra.mxu0 %v1122
      %1132 = vmatmul.bf16.gmra.mxu0 %v1119
      %v1133 = vpop.f32.mrf.mxu0
      %v1134 = vadd.f32 0.0, %v1133
      %v1135 = vpop.f32.mrf.mxu0
      %1136 = vdwg.mxu0
      %v1137 = vadd.f32 %v1111, %v1134
      %s1138 = scalar_lea.vmem %s1, 32
      %v1139 = vld [vmem:[%s1138] sm:$0x1]
      %v1140 = vpack.c.bf16 %v230, %v230
      %1142 = vrot.lane.b32.xlu0 %v1140, 110
      %v1143 = vpop.permute.xlu0 %1142
      %v1145 = vsel %vm255, %v1139, 0
      %v1148 = vsel %vm259, %v1143, 0
      %1150 = vmatpush.bf16.msra.mxu0 0
      %1151 = vmatpush.bf16.msra.mxu0 0
      %1152 = vmatpush.bf16.msra.mxu0 0
      %1153 = vmatpush.bf16.msra.mxu0 0
      %1154 = vmatpush.bf16.msra.mxu0 0
      %1155 = vmatpush.bf16.msra.mxu0 0
      %1156 = vmatpush.bf16.msra.mxu0 0
      %1157 = vmatpush.bf16.msra.mxu0 %v1148
      %1158 = vmatmul.bf16.gmra.mxu0 %v1145
      %v1159 = vpop.f32.mrf.mxu0
      %v1160 = vadd.f32 0.0, %v1159
      %v1161 = vpop.f32.mrf.mxu0
      %1162 = vdwg.mxu0
      %v1163 = vadd.f32 %v1137, %v1160
      %1164 = vrot.lane.b32.xlu0 %v228, 109
      %v1165 = vpop.permute.xlu0 %1164
      %v1167 = vsel %vm976, %v1165, 0.0
      %s1168 = scalar_lea.vmem %s1, 33
      %v1169 = vld [vmem:[%s1168] sm:$0x1]
      %v1170 = vpack.c.bf16 %v1167, %v1167
      %v1172 = vsel %vm255, %v1169, 0
      %v1175 = vsel %vm259, %v1170, 0
      %1177 = vmatpush.bf16.msra.mxu0 0
      %1178 = vmatpush.bf16.msra.mxu0 0
      %1179 = vmatpush.bf16.msra.mxu0 0
      %1180 = vmatpush.bf16.msra.mxu0 0
      %1181 = vmatpush.bf16.msra.mxu0 0
      %1182 = vmatpush.bf16.msra.mxu0 0
      %1183 = vmatpush.bf16.msra.mxu0 0
      %1184 = vmatpush.bf16.msra.mxu0 %v1175
      %1185 = vmatmul.bf16.gmra.mxu0 %v1172
      %v1186 = vpop.f32.mrf.mxu0
      %v1187 = vadd.f32 0.0, %v1186
      %v1188 = vpop.f32.mrf.mxu0
      %1189 = vdwg.mxu0
      %v1190 = vadd.f32 %v1163, %v1187
      %1191 = vrot.lane.b32.xlu0 %v230, 109
      %v1192 = vpop.permute.xlu0 %1191
      %v1194 = vsel %vm976, %v1192, 0.0
      %s1195 = scalar_lea.vmem %s1, 34
      %v1196 = vld [vmem:[%s1195] sm:$0x1]
      %v1197 = vpack.c.bf16 %v1194, %v1194
      %v1199 = vsel %vm255, %v1196, 0
      %v1202 = vsel %vm259, %v1197, 0
      %1204 = vmatpush.bf16.msra.mxu0 0
      %1205 = vmatpush.bf16.msra.mxu0 0
      %1206 = vmatpush.bf16.msra.mxu0 0
      %1207 = vmatpush.bf16.msra.mxu0 0
      %1208 = vmatpush.bf16.msra.mxu0 0
      %1209 = vmatpush.bf16.msra.mxu0 0
      %1210 = vmatpush.bf16.msra.mxu0 0
      %1211 = vmatpush.bf16.msra.mxu0 %v1202
      %1212 = vmatmul.bf16.gmra.mxu0 %v1199
      %v1213 = vpop.f32.mrf.mxu0
      %v1214 = vadd.f32 0.0, %v1213
      %v1215 = vpop.f32.mrf.mxu0
      %1216 = vdwg.mxu0
      %v1217 = vadd.f32 %v1190, %v1214
      %vm1218 = vcmp.lt.s32.totalorder %v231, 7
      %vm1219 = vmand %vm1218, %vm234
      %v1220 = vsel %vm1219, 1, 0
      %v1221 = vperm.slane %v1220, 0
      %vm1222 = vcmp.eq.s32.totalorder %v1221, 1
      %1223 = vrot.lane.b32.xlu0 %v226, 104
      %v1224 = vpop.permute.xlu0 %1223
      %v1226 = vsel %vm1222, %v1224, 0.0
      %s1227 = scalar_lea.vmem %s1, 35
      %v1228 = vld [vmem:[%s1227] sm:$0x1]
      %v1229 = vpack.c.bf16 %v1226, %v1226
      %v1231 = vsel %vm255, %v1228, 0
      %v1234 = vsel %vm259, %v1229, 0
      %1236 = vmatpush.bf16.msra.mxu0 0
      %1237 = vmatpush.bf16.msra.mxu0 0
      %1238 = vmatpush.bf16.msra.mxu0 0
      %1239 = vmatpush.bf16.msra.mxu0 0
      %1240 = vmatpush.bf16.msra.mxu0 0
      %1241 = vmatpush.bf16.msra.mxu0 0
      %1242 = vmatpush.bf16.msra.mxu0 0
      %1243 = vmatpush.bf16.msra.mxu0 %v1234
      %1244 = vmatmul.bf16.gmra.mxu0 %v1231
      %v1245 = vpop.f32.mrf.mxu0
      %v1246 = vadd.f32 0.0, %v1245
      %v1247 = vpop.f32.mrf.mxu0
      %1248 = vdwg.mxu0
      %v1249 = vadd.f32 %v1217, %v1246
      %vm1250 = vmand %vm1218, %vm242
      %v1251 = vsel %vm1250, 1, 0
      %v1252 = vperm.slane %v1251, 0
      %vm1253 = vcmp.eq.s32.totalorder %v1252, 1
      %1254 = vrot.lane.b32.xlu0 %v224, 103
      %v1255 = vpop.permute.xlu0 %1254
      %v1257 = vsel %vm1253, %v1255, 0.0
      %s1258 = scalar_lea.vmem %s1, 36
      %v1259 = vld [vmem:[%s1258] sm:$0x1]
      %v1260 = vpack.c.bf16 %v1257, %v1257
      %v1262 = vsel %vm255, %v1259, 0
      %v1265 = vsel %vm259, %v1260, 0
      %1267 = vmatpush.bf16.msra.mxu0 0
      %1268 = vmatpush.bf16.msra.mxu0 0
      %1269 = vmatpush.bf16.msra.mxu0 0
      %1270 = vmatpush.bf16.msra.mxu0 0
      %1271 = vmatpush.bf16.msra.mxu0 0
      %1272 = vmatpush.bf16.msra.mxu0 0
      %1273 = vmatpush.bf16.msra.mxu0 0
      %1274 = vmatpush.bf16.msra.mxu0 %v1265
      %1275 = vmatmul.bf16.gmra.mxu0 %v1262
      %v1276 = vpop.f32.mrf.mxu0
      %v1277 = vadd.f32 0.0, %v1276
      %v1278 = vpop.f32.mrf.mxu0
      %1279 = vdwg.mxu0
      %v1280 = vadd.f32 %v1249, %v1277
      %1281 = vrot.lane.b32.xlu0 %v226, 103
      %v1282 = vpop.permute.xlu0 %1281
      %v1284 = vsel %vm1253, %v1282, 0.0
      %s1285 = scalar_lea.vmem %s1, 37
      %v1286 = vld [vmem:[%s1285] sm:$0x1]
      %v1287 = vpack.c.bf16 %v1284, %v1284
      %v1289 = vsel %vm255, %v1286, 0
      %v1292 = vsel %vm259, %v1287, 0
      %1294 = vmatpush.bf16.msra.mxu0 0
      %1295 = vmatpush.bf16.msra.mxu0 0
      %1296 = vmatpush.bf16.msra.mxu0 0
      %1297 = vmatpush.bf16.msra.mxu0 0
      %1298 = vmatpush.bf16.msra.mxu0 0
      %1299 = vmatpush.bf16.msra.mxu0 0
      %1300 = vmatpush.bf16.msra.mxu0 0
      %1301 = vmatpush.bf16.msra.mxu0 %v1292
      %1302 = vmatmul.bf16.gmra.mxu0 %v1289
      %v1303 = vpop.f32.mrf.mxu0
      %v1304 = vadd.f32 0.0, %v1303
      %v1305 = vpop.f32.mrf.mxu0
      %1306 = vdwg.mxu0
      %v1307 = vadd.f32 %v1280, %v1304
      %v1308 = vsel %vm1218, 1, 0
      %v1309 = vperm.slane %v1308, 0
      %vm1310 = vcmp.eq.s32.totalorder %v1309, 1
      %1311 = vrot.lane.b32.xlu0 %v224, 102
      %v1312 = vpop.permute.xlu0 %1311
      %v1314 = vsel %vm1310, %v1312, 0.0
      %s1315 = scalar_lea.vmem %s1, 38
      %v1316 = vld [vmem:[%s1315] sm:$0x1]
      %v1317 = vpack.c.bf16 %v1314, %v1314
      %v1319 = vsel %vm255, %v1316, 0
      %v1322 = vsel %vm259, %v1317, 0
      %1324 = vmatpush.bf16.msra.mxu0 0
      %1325 = vmatpush.bf16.msra.mxu0 0
      %1326 = vmatpush.bf16.msra.mxu0 0
      %1327 = vmatpush.bf16.msra.mxu0 0
      %1328 = vmatpush.bf16.msra.mxu0 0
      %1329 = vmatpush.bf16.msra.mxu0 0
      %1330 = vmatpush.bf16.msra.mxu0 0
      %1331 = vmatpush.bf16.msra.mxu0 %v1322
      %1332 = vmatmul.bf16.gmra.mxu0 %v1319
      %v1333 = vpop.f32.mrf.mxu0
      %v1334 = vadd.f32 0.0, %v1333
      %v1335 = vpop.f32.mrf.mxu0
      %1336 = vdwg.mxu0
      %v1337 = vadd.f32 %v1307, %v1334
      %1338 = vrot.lane.b32.xlu0 %v226, 102
      %v1339 = vpop.permute.xlu0 %1338
      %v1341 = vsel %vm1310, %v1339, 0.0
      %s1342 = scalar_lea.vmem %s1, 39
      %v1343 = vld [vmem:[%s1342] sm:$0x1]
      %v1344 = vpack.c.bf16 %v1341, %v1341
      %v1346 = vsel %vm255, %v1343, 0
      %v1349 = vsel %vm259, %v1344, 0
      %1351 = vmatpush.bf16.msra.mxu0 0
      %1352 = vmatpush.bf16.msra.mxu0 0
      %1353 = vmatpush.bf16.msra.mxu0 0
      %1354 = vmatpush.bf16.msra.mxu0 0
      %1355 = vmatpush.bf16.msra.mxu0 0
      %1356 = vmatpush.bf16.msra.mxu0 0
      %1357 = vmatpush.bf16.msra.mxu0 0
      %1358 = vmatpush.bf16.msra.mxu0 %v1349
      %1359 = vmatmul.bf16.gmra.mxu0 %v1346
      %v1360 = vpop.f32.mrf.mxu0
      %v1361 = vadd.f32 0.0, %v1360
      %v1362 = vpop.f32.mrf.mxu0
      %1363 = vdwg.mxu0
      %v1364 = vadd.f32 %v1337, %v1361
      %vm1365 = vmand %vm1218, %vm380
      %v1366 = vsel %vm1365, 1, 0
      %v1367 = vperm.slane %v1366, 0
      %vm1368 = vcmp.eq.s32.totalorder %v1367, 1
      %1369 = vrot.lane.b32.xlu0 %v224, 101
      %v1370 = vpop.permute.xlu0 %1369
      %v1372 = vsel %vm1368, %v1370, 0.0
      %s1373 = scalar_lea.vmem %s1, 40
      %v1374 = vld [vmem:[%s1373] sm:$0x1]
      %v1375 = vpack.c.bf16 %v1372, %v1372
      %v1377 = vsel %vm255, %v1374, 0
      %v1380 = vsel %vm259, %v1375, 0
      %1382 = vmatpush.bf16.msra.mxu0 0
      %1383 = vmatpush.bf16.msra.mxu0 0
      %1384 = vmatpush.bf16.msra.mxu0 0
      %1385 = vmatpush.bf16.msra.mxu0 0
      %1386 = vmatpush.bf16.msra.mxu0 0
      %1387 = vmatpush.bf16.msra.mxu0 0
      %1388 = vmatpush.bf16.msra.mxu0 0
      %1389 = vmatpush.bf16.msra.mxu0 %v1380
      %1390 = vmatmul.bf16.gmra.mxu0 %v1377
      %v1391 = vpop.f32.mrf.mxu0
      %v1392 = vadd.f32 0.0, %v1391
      %v1393 = vpop.f32.mrf.mxu0
      %1394 = vdwg.mxu0
      %v1395 = vadd.f32 %v1364, %v1392
      %1396 = vrot.lane.b32.xlu0 %v226, 101
      %v1397 = vpop.permute.xlu0 %1396
      %v1399 = vsel %vm1368, %v1397, 0.0
      %s1400 = scalar_lea.vmem %s1, 41
      %v1401 = vld [vmem:[%s1400] sm:$0x1]
      %v1402 = vpack.c.bf16 %v1399, %v1399
      %v1404 = vsel %vm255, %v1401, 0
      %v1407 = vsel %vm259, %v1402, 0
      %1409 = vmatpush.bf16.msra.mxu0 0
      %1410 = vmatpush.bf16.msra.mxu0 0
      %1411 = vmatpush.bf16.msra.mxu0 0
      %1412 = vmatpush.bf16.msra.mxu0 0
      %1413 = vmatpush.bf16.msra.mxu0 0
      %1414 = vmatpush.bf16.msra.mxu0 0
      %1415 = vmatpush.bf16.msra.mxu0 0
      %1416 = vmatpush.bf16.msra.mxu0 %v1407
      %1417 = vmatmul.bf16.gmra.mxu0 %v1404
      %v1418 = vpop.f32.mrf.mxu0
      %v1419 = vadd.f32 0.0, %v1418
      %v1420 = vpop.f32.mrf.mxu0
      %1421 = vdwg.mxu0
      %v1422 = vadd.f32 %v1395, %v1419
      %1423 = vrot.lane.b32.xlu0 %v230, 104
      %v1424 = vpop.permute.xlu0 %1423
      %v1426 = vsel %vm1222, %v1424, 0.0
      %s1427 = scalar_lea.vmem %s1, 42
      %v1428 = vld [vmem:[%s1427] sm:$0x1]
      %v1429 = vpack.c.bf16 %v1426, %v1426
      %v1431 = vsel %vm255, %v1428, 0
      %v1434 = vsel %vm259, %v1429, 0
      %1436 = vmatpush.bf16.msra.mxu0 0
      %1437 = vmatpush.bf16.msra.mxu0 0
      %1438 = vmatpush.bf16.msra.mxu0 0
      %1439 = vmatpush.bf16.msra.mxu0 0
      %1440 = vmatpush.bf16.msra.mxu0 0
      %1441 = vmatpush.bf16.msra.mxu0 0
      %1442 = vmatpush.bf16.msra.mxu0 0
      %1443 = vmatpush.bf16.msra.mxu0 %v1434
      %1444 = vmatmul.bf16.gmra.mxu0 %v1431
      %v1445 = vpop.f32.mrf.mxu0
      %v1446 = vadd.f32 0.0, %v1445
      %v1447 = vpop.f32.mrf.mxu0
      %1448 = vdwg.mxu0
      %v1449 = vadd.f32 %v1422, %v1446
      %1450 = vrot.lane.b32.xlu0 %v228, 103
      %v1451 = vpop.permute.xlu0 %1450
      %v1453 = vsel %vm1253, %v1451, 0.0
      %s1454 = scalar_lea.vmem %s1, 43
      %v1455 = vld [vmem:[%s1454] sm:$0x1]
      %v1456 = vpack.c.bf16 %v1453, %v1453
      %v1458 = vsel %vm255, %v1455, 0
      %v1461 = vsel %vm259, %v1456, 0
      %1463 = vmatpush.bf16.msra.mxu0 0
      %1464 = vmatpush.bf16.msra.mxu0 0
      %1465 = vmatpush.bf16.msra.mxu0 0
      %1466 = vmatpush.bf16.msra.mxu0 0
      %1467 = vmatpush.bf16.msra.mxu0 0
      %1468 = vmatpush.bf16.msra.mxu0 0
      %1469 = vmatpush.bf16.msra.mxu0 0
      %1470 = vmatpush.bf16.msra.mxu0 %v1461
      %1471 = vmatmul.bf16.gmra.mxu0 %v1458
      %v1472 = vpop.f32.mrf.mxu0
      %v1473 = vadd.f32 0.0, %v1472
      %v1474 = vpop.f32.mrf.mxu0
      %1475 = vdwg.mxu0
      %v1476 = vadd.f32 %v1449, %v1473
      %1477 = vrot.lane.b32.xlu0 %v230, 103
      %v1478 = vpop.permute.xlu0 %1477
      %v1480 = vsel %vm1253, %v1478, 0.0
      %s1481 = scalar_lea.vmem %s1, 44
      %v1482 = vld [vmem:[%s1481] sm:$0x1]
      %v1483 = vpack.c.bf16 %v1480, %v1480
      %v1485 = vsel %vm255, %v1482, 0
      %v1488 = vsel %vm259, %v1483, 0
      %1490 = vmatpush.bf16.msra.mxu0 0
      %1491 = vmatpush.bf16.msra.mxu0 0
      %1492 = vmatpush.bf16.msra.mxu0 0
      %1493 = vmatpush.bf16.msra.mxu0 0
      %1494 = vmatpush.bf16.msra.mxu0 0
      %1495 = vmatpush.bf16.msra.mxu0 0
      %1496 = vmatpush.bf16.msra.mxu0 0
      %1497 = vmatpush.bf16.msra.mxu0 %v1488
      %1498 = vmatmul.bf16.gmra.mxu0 %v1485
      %v1499 = vpop.f32.mrf.mxu0
      %v1500 = vadd.f32 0.0, %v1499
      %v1501 = vpop.f32.mrf.mxu0
      %1502 = vdwg.mxu0
      %v1503 = vadd.f32 %v1476, %v1500
      %1504 = vrot.lane.b32.xlu0 %v228, 102
      %v1505 = vpop.permute.xlu0 %1504
      %v1507 = vsel %vm1310, %v1505, 0.0
      %s1508 = scalar_lea.vmem %s1, 45
      %v1509 = vld [vmem:[%s1508] sm:$0x1]
      %v1510 = vpack.c.bf16 %v1507, %v1507
      %v1512 = vsel %vm255, %v1509, 0
      %v1515 = vsel %vm259, %v1510, 0
      %1517 = vmatpush.bf16.msra.mxu0 0
      %1518 = vmatpush.bf16.msra.mxu0 0
      %1519 = vmatpush.bf16.msra.mxu0 0
      %1520 = vmatpush.bf16.msra.mxu0 0
      %1521 = vmatpush.bf16.msra.mxu0 0
      %1522 = vmatpush.bf16.msra.mxu0 0
      %1523 = vmatpush.bf16.msra.mxu0 0
      %1524 = vmatpush.bf16.msra.mxu0 %v1515
      %1525 = vmatmul.bf16.gmra.mxu0 %v1512
      %v1526 = vpop.f32.mrf.mxu0
      %v1527 = vadd.f32 0.0, %v1526
      %v1528 = vpop.f32.mrf.mxu0
      %1529 = vdwg.mxu0
      %v1530 = vadd.f32 %v1503, %v1527
      %1531 = vrot.lane.b32.xlu0 %v230, 102
      %v1532 = vpop.permute.xlu0 %1531
      %v1534 = vsel %vm1310, %v1532, 0.0
      %s1535 = scalar_lea.vmem %s1, 46
      %v1536 = vld [vmem:[%s1535] sm:$0x1]
      %v1537 = vpack.c.bf16 %v1534, %v1534
      %v1539 = vsel %vm255, %v1536, 0
      %v1542 = vsel %vm259, %v1537, 0
      %1544 = vmatpush.bf16.msra.mxu0 0
      %1545 = vmatpush.bf16.msra.mxu0 0
      %1546 = vmatpush.bf16.msra.mxu0 0
      %1547 = vmatpush.bf16.msra.mxu0 0
      %1548 = vmatpush.bf16.msra.mxu0 0
      %1549 = vmatpush.bf16.msra.mxu0 0
      %1550 = vmatpush.bf16.msra.mxu0 0
      %1551 = vmatpush.bf16.msra.mxu0 %v1542
      %1552 = vmatmul.bf16.gmra.mxu0 %v1539
      %v1553 = vpop.f32.mrf.mxu0
      %v1554 = vadd.f32 0.0, %v1553
      %v1555 = vpop.f32.mrf.mxu0
      %1556 = vdwg.mxu0
      %v1557 = vadd.f32 %v1530, %v1554
      %1558 = vrot.lane.b32.xlu0 %v228, 101
      %v1559 = vpop.permute.xlu0 %1558
      %v1561 = vsel %vm1368, %v1559, 0.0
      %s1562 = scalar_lea.vmem %s1, 47
      %v1563 = vld [vmem:[%s1562] sm:$0x1]
      %v1564 = vpack.c.bf16 %v1561, %v1561
      %v1566 = vsel %vm255, %v1563, 0
      %v1569 = vsel %vm259, %v1564, 0
      %1571 = vmatpush.bf16.msra.mxu0 0
      %1572 = vmatpush.bf16.msra.mxu0 0
      %1573 = vmatpush.bf16.msra.mxu0 0
      %1574 = vmatpush.bf16.msra.mxu0 0
      %1575 = vmatpush.bf16.msra.mxu0 0
      %1576 = vmatpush.bf16.msra.mxu0 0
      %1577 = vmatpush.bf16.msra.mxu0 0
      %1578 = vmatpush.bf16.msra.mxu0 %v1569
      %1579 = vmatmul.bf16.gmra.mxu0 %v1566
      %v1580 = vpop.f32.mrf.mxu0
      %v1581 = vadd.f32 0.0, %v1580
      %v1582 = vpop.f32.mrf.mxu0
      %1583 = vdwg.mxu0
      %v1584 = vadd.f32 %v1557, %v1581
      %1585 = vrot.lane.b32.xlu0 %v230, 101
      %v1586 = vpop.permute.xlu0 %1585
      %v1588 = vsel %vm1368, %v1586, 0.0
      %s1589 = scalar_lea.vmem %s1, 48
      %v1590 = vld [vmem:[%s1589] sm:$0x1]
      %v1591 = vpack.c.bf16 %v1588, %v1588
      %v1593 = vsel %vm255, %v1590, 0
      %v1596 = vsel %vm259, %v1591, 0
      %1598 = vmatpush.bf16.msra.mxu0 0
      %1599 = vmatpush.bf16.msra.mxu0 0
      %1600 = vmatpush.bf16.msra.mxu0 0
      %1601 = vmatpush.bf16.msra.mxu0 0
      %1602 = vmatpush.bf16.msra.mxu0 0
      %1603 = vmatpush.bf16.msra.mxu0 0
      %1604 = vmatpush.bf16.msra.mxu0 0
      %1605 = vmatpush.bf16.msra.mxu0 %v1596
      %1606 = vmatmul.bf16.gmra.mxu0 %v1593
      %v1607 = vpop.f32.mrf.mxu0
      %v1608 = vadd.f32 0.0, %v1607
      %v1609 = vpop.f32.mrf.mxu0
      %1610 = vdwg.mxu0
      %v1611 = vadd.f32 %v1584, %v1608
      %v1612 = vld [vmem:[%s2] sm:$0x3]
      %1614 = vset.pattern.permute.xlu0 0
      %1615 = vperm.xlu0 %1614, %v1612
      %v1616 = vpop.permute.xlu0 %1615
      %v1618 = vadd.f32 %v1611, %v1616
      %v1619 = vmax.f32 %v1618, 0.0
      %vm1620 = vcmask 517120
      %1621 = vst.msk [vmem:[%s222] sm:$0x3] %vm1620, %v1619
      %p1622 = scmp.lt.s32.totalorder %s16, 1
      %s1623 = scalar_select %p1622, %s16, 1
      %s1624 = smul.addr %s1623, 2
      %s1625 = scalar_lea.vmem %s5, %s1624
      // Predicated region
      $region41: #{fpa_forward.11} parent=39 // pred_check
        %p1626 = pneg %p144
      $region42: #{fpa_forward.11} parent=39 // pred_check_branch
        %1628 = sbr.rel (%p1626) target = $region44
      $region43: #{fpa_forward.11} parent=39 // pred_region
        _
      $region44: #{fpa_forward.11} parent=39 // pred_fallthru
        _
    $region40: #{fpa_forward.11} parent=5 // pred_fallthru
      _
    %p1629 = scmp.le.s32.totalorder 2, %s11
    // Predicated region
    $region45: #{fpa_forward.11} parent=5 // pred_check
      %p1630 = pneg %p1629
    $region46: #{fpa_forward.11} parent=5 // pred_check_branch
      %1632 = sbr.rel (%p1630) target = $region48
    $region47: #{fpa_forward.11} parent=5 // pred_region
      %s1633 = ssub.s32 %s11, 2
      // Predicated region
      $region49: #{fpa_forward.11} parent=47 // pred_check
        %p1634 = pneg %p150
      $region50: #{fpa_forward.11} parent=47 // pred_check_branch
        %1636 = sbr.rel (%p1634) target = $region52
      $region51: #{fpa_forward.11} parent=47 // pred_region
        %p1637 = scmp.lt.s32.totalorder %s17, 1
        %s1638 = scalar_select %p1637, %s17, 1
        %s1639 = smul.addr %s1638, 2
        %s1640 = scalar_lea.vmem %s5, %s1639
      $region52: #{fpa_forward.11} parent=47 // pred_fallthru
        _
    $region48: #{fpa_forward.11} parent=5 // pred_fallthru
      _
  $region6: #{fpa_forward.11} parent=0 // loop_footer
    %s15 = sadd.s32 1, %s11
  $region7: #{fpa_forward.11} parent=0 // loop_footer_branch
    %10 = sbr.rel target = $region3
  $region8: #{fpa_forward.11} parent=0 // loop_exit
    _

// kernel: fpa_forward.16
$region0: #{fpa_forward.16}
  #allocation0 [shape = 'u32[]', space=smem, size = 0x4, offset = 0x4, fixed_abs, tag = 'smem constant byte address 0x4 - core index']
  #allocation1 [shape = 'u32[72,128]{1,0:T(1,128)}', space=vmem, size = 0x9000, scoped, tag = 'internal scratch']
  %s0 = inlined_call_operand.vmem [shape: bf16[8,4], index: 0, kind: input, shape index: {}]
  %s1 = inlined_call_operand.vmem [shape: f32[4,128], index: 1, kind: input, shape index: {}]
  %s2 = inlined_call_operand.vmem [shape: f32[8,128], index: 2, kind: input, shape index: {}]
  %s3 = inlined_call_operand.vmem [shape: bf16[16,8], index: 3, kind: input, shape index: {}]
  %s4 = inlined_call_operand.vmem [shape: f32[16,128], index: 4, kind: output, shape index: {}]
  %s5 = sld [smem:[#allocation0]]
  $region26: #{fpa_forward.16} parent=0
    _
  %s7 = ssub.s32 1, %s5
  %s8 = scalar_select 0, %s7, %s5
  // Predicated region
  $region2: #{fpa_forward.16} parent=0 // pred_check
    _
  $region3: #{fpa_forward.16} parent=0 // pred_check_branch
    %10 = sbr.rel (0) target = $region5
  $region4: #{fpa_forward.16} parent=0 // pred_region
    _
  $region5: #{fpa_forward.16} parent=0 // pred_fallthru
    _
  // Predicated region
  $region6: #{fpa_forward.16} parent=0 // pred_check
    _
  $region7: #{fpa_forward.16} parent=0 // pred_check_branch
    %12 = sbr.rel (0) target = $region9
  $region8: #{fpa_forward.16} parent=0 // pred_region
    _
  $region9: #{fpa_forward.16} parent=0 // pred_fallthru
    _
  // Predicated region
  $region10: #{fpa_forward.16} parent=0 // pred_check
    _
  $region11: #{fpa_forward.16} parent=0 // pred_check_branch
    %14 = sbr.rel (0) target = $region13
  $region12: #{fpa_forward.16} parent=0 // pred_region
    _
  $region13: #{fpa_forward.16} parent=0 // pred_fallthru
    _
  // Predicated region
  $region14: #{fpa_forward.16} parent=0 // pred_check
    _
  $region15: #{fpa_forward.16} parent=0 // pred_check_branch
    %16 = sbr.rel (0) target = $region17
  $region16: #{fpa_forward.16} parent=0 // pred_region
    _
  $region17: #{fpa_forward.16} parent=0 // pred_fallthru
    _
  %v18 = vld [vmem:[%s0] sm:$0xf]
  %v19 = vld [vmem:[%s1] sm:$0xf]
  %v20 = vpack.c.bf16 %v19, %v19
  %v21 = vld [vmem:[%s2] sm:$0xff]
  %vm22 = vcmask 31744
  %v24 = vsel %vm22, %v18, 0
  %vm26 = vcmask 1041408
  %v28 = vsel %vm26, %v20, 0
  %30 = vmatpush.bf16.msra.mxu0 0
  %31 = vmatpush.bf16.msra.mxu0 0
  %32 = vmatpush.bf16.msra.mxu0 0
  %33 = vmatpush.bf16.msra.mxu0 0
  %34 = vmatpush.bf16.msra.mxu0 0
  %35 = vmatpush.bf16.msra.mxu0 0
  %36 = vmatpush.bf16.msra.mxu0 0
  %37 = vmatpush.bf16.msra.mxu0 %v28
  %38 = vmatmul.bf16.gmra.mxu0 %v24
  %v39 = vpop.f32.mrf.mxu0
  %v40 = vadd.f32 %v21, %v39
  %v41 = vpop.f32.mrf.mxu0
  %42 = vdwg.mxu0
  %v43 = vld [vmem:[%s3] sm:$0xf]
  %v44 = vld [vmem:[%s3 + $0x4] sm:$0xf]
  %v45 = vpack.c.bf16 %v40, %v40
  %v48 = vunpack.c.l.b16 %v43
  %v49 = vunpack.c.l.b16 %v44
  %v50 = vpack.c.b16 %v49, %v48
  %vm51 = vcmask 64512
  %v53 = vsel %vm51, %v50, 0
  %vm55 = vcmask 1043456
  %v57 = vsel %vm55, %v45, 0
  %59 = vmatpush.bf16.msra.mxu0 0
  %60 = vmatpush.bf16.msra.mxu0 0
  %61 = vmatpush.bf16.msra.mxu0 0
  %62 = vmatpush.bf16.msra.mxu0 0
  %63 = vmatpush.bf16.msra.mxu0 0
  %64 = vmatpush.bf16.msra.mxu0 0
  %65 = vmatpush.bf16.msra.mxu0 0
  %66 = vmatpush.bf16.msra.mxu0 %v57
  %67 = vmatmul.bf16.gmra.mxu0 %v53
  %v68 = vpop.f32.mrf.mxu0
  %v69 = vadd.f32 0.0, %v68
  %v70 = vpop.f32.mrf.mxu0
  %v71 = vadd.f32 0.0, %v70
  %72 = vdwg.mxu0
  %73 = vst [vmem:[%s4] sm:$0xff] %v69
  %74 = vst [vmem:[%s4 + $0x8] sm:$0xff] %v71
  // Predicated region
  $region18: #{fpa_forward.16} parent=0 // pred_check
    _
  $region19: #{fpa_forward.16} parent=0 // pred_check_branch
    %76 = sbr.rel (0) target = $region21
  $region20: #{fpa_forward.16} parent=0 // pred_region
    _
  $region21: #{fpa_forward.16} parent=0 // pred_fallthru
    _
  // Predicated region
  $region22: #{fpa_forward.16} parent=0 // pred_check
    _
  $region23: #{fpa_forward.16} parent=0 // pred_check_branch
    %78 = sbr.rel (0) target = $region25
  $region24: #{fpa_forward.16} parent=0 // pred_region
    _
  $region25: #{fpa_forward.16} parent=0 // pred_fallthru
    _

// kernel: fpa_forward.9
$region0: #{fpa_forward.9}
  #allocation0 [shape = 'u32[]', space=smem, size = 0x4, offset = 0x4, fixed_abs, tag = 'smem constant byte address 0x4 - core index']
  #allocation1 [shape = 'u32[72,128]{1,0:T(1,128)}', space=vmem, size = 0x9000, scoped, tag = 'internal scratch']
  %s0 = inlined_call_operand.vmem [shape: f32[2,1,8,256], index: 0, kind: input, shape index: {}]
  %s1 = inlined_call_operand.vmem [shape: bf16[1,8,8], index: 1, kind: input, shape index: {}]
  %s2 = inlined_call_operand.vmem [shape: f32[8,1], index: 2, kind: input, shape index: {}]
  %s3 = inlined_call_operand.vmem [shape: s32[1,256], index: 3, kind: input, shape index: {}]
  %s4 = inlined_call_operand.vmem [shape: s32[1,256], index: 4, kind: input, shape index: {}]
  %s5 = inlined_call_operand.vmem [shape: f32[2,8,256], index: 5, kind: output, shape index: {}]
  %s6 = sld [smem:[#allocation0]]
  $region53: #{fpa_forward.9} parent=0
    _
  %s8 = ssub.s32 1, %s6
  %s9 = scalar_select 0, %s8, %s6
  loop: start=0, step=1, limit=4
  $region2: #{fpa_forward.9} parent=0 // loop_pre_header
    _
  $region3: #{fpa_forward.9} parent=0 // loop_header
    %s11 = sphi 0, %s15
    %p12 = scmp.ge.s32.totalorder %s11, 4
    %s21 = sphi 0, %s23
    %s24 = sphi 0, %s21
    %s25 = sphi 0, %s24
    %s41 = sphi 0, %s25
    %s45 = sphi 0, %s45
    %s47 = sphi 0, %s45
    %s48 = sphi 0, %s47
    %s62 = sphi 0, %s48
    %s66 = sphi 0, %s66
    %s68 = sphi 0, %s66
    %s69 = sphi 0, %s68
    %s83 = sphi 0, %s69
    %s87 = sphi 0, %s87
    %s89 = sphi 0, %s87
    %s90 = sphi 0, %s89
    %s104 = sphi 0, %s90
    %s108 = sphi 0, %s108
    %s110 = sphi 0, %s108
    %s111 = sphi 0, %s110
    %s125 = sphi 0, %s111
    %s131 = sphi 0, %s133
    %s134 = sphi 0, %s131
    %s135 = sphi 0, %s134
    %s151 = sphi 0, %s135
  $region4: #{fpa_forward.9} parent=0 // loop_header_branch
    %14 = sbr.rel (%p12) target = $region8
  $region5: #{fpa_forward.9} parent=0 // loop_body
    %s16 = ssub.s32 %s11, 1
    %s17 = ssub.s32 %s11, 2
    %s18 = sadd.s32 %s11, 1
    %s19 = ssub.s32 %s11, %s18
    %p20 = scmp.eq.s32.totalorder %s19, 0
    %s22 = sadd.s32 %s21, 1
    %s23 = scalar_select %p20, %s21, %s22
    %p26 = pneg %p20
    %p27 = scmp.eq.s32.totalorder %s11, 1
    %p28 = por %p26, %p27
    %p29 = scmp.ne.s32.totalorder %s21, %s24
    %p30 = scmp.eq.s32.totalorder %s11, 0
    %p31 = por %p29, %p30
    %p32 = scmp.ne.s32.totalorder %s21, %s24
    %p33 = scmp.eq.s32.totalorder %s16, 1
    %p34 = por %p32, %p33
    %p35 = scmp.ne.s32.totalorder %s24, %s25
    %p36 = scmp.eq.s32.totalorder %s16, 0
    %p37 = por %p35, %p36
    %p38 = scmp.ne.s32.totalorder %s24, %s25
    %p39 = scmp.eq.s32.totalorder %s17, 1
    %p40 = por %p38, %p39
    %p42 = scmp.ne.s32.totalorder %s25, %s41
    %p43 = scmp.eq.s32.totalorder %s17, 0
    %p44 = por %p42, %p43
    %s46 = sadd.s32 %s45, 1
    %p49 = scmp.eq.s32.totalorder %s11, 1
    %p50 = scmp.ne.s32.totalorder %s45, %s47
    %p51 = scmp.eq.s32.totalorder %s11, 0
    %p52 = por %p50, %p51
    %p53 = scmp.ne.s32.totalorder %s45, %s47
    %p54 = scmp.eq.s32.totalorder %s16, 1
    %p55 = por %p53, %p54
    %p56 = scmp.ne.s32.totalorder %s47, %s48
    %p57 = scmp.eq.s32.totalorder %s16, 0
    %p58 = por %p56, %p57
    %p59 = scmp.ne.s32.totalorder %s47, %s48
    %p60 = scmp.eq.s32.totalorder %s17, 1
    %p61 = por %p59, %p60
    %p63 = scmp.ne.s32.totalorder %s48, %s62
    %p64 = scmp.eq.s32.totalorder %s17, 0
    %p65 = por %p63, %p64
    %s67 = sadd.s32 %s66, 1
    %p70 = scmp.eq.s32.totalorder %s11, 1
    %p71 = scmp.ne.s32.totalorder %s66, %s68
    %p72 = scmp.eq.s32.totalorder %s11, 0
    %p73 = por %p71, %p72
    %p74 = scmp.ne.s32.totalorder %s66, %s68
    %p75 = scmp.eq.s32.totalorder %s16, 1
    %p76 = por %p74, %p75
    %p77 = scmp.ne.s32.totalorder %s68, %s69
    %p78 = scmp.eq.s32.totalorder %s16, 0
    %p79 = por %p77, %p78
    %p80 = scmp.ne.s32.totalorder %s68, %s69
    %p81 = scmp.eq.s32.totalorder %s17, 1
    %p82 = por %p80, %p81
    %p84 = scmp.ne.s32.totalorder %s69, %s83
    %p85 = scmp.eq.s32.totalorder %s17, 0
    %p86 = por %p84, %p85
    %s88 = sadd.s32 %s87, 1
    %p91 = scmp.eq.s32.totalorder %s11, 1
    %p92 = scmp.ne.s32.totalorder %s87, %s89
    %p93 = scmp.eq.s32.totalorder %s11, 0
    %p94 = por %p92, %p93
    %p95 = scmp.ne.s32.totalorder %s87, %s89
    %p96 = scmp.eq.s32.totalorder %s16, 1
    %p97 = por %p95, %p96
    %p98 = scmp.ne.s32.totalorder %s89, %s90
    %p99 = scmp.eq.s32.totalorder %s16, 0
    %p100 = por %p98, %p99
    %p101 = scmp.ne.s32.totalorder %s89, %s90
    %p102 = scmp.eq.s32.totalorder %s17, 1
    %p103 = por %p101, %p102
    %p105 = scmp.ne.s32.totalorder %s90, %s104
    %p106 = scmp.eq.s32.totalorder %s17, 0
    %p107 = por %p105, %p106
    %s109 = sadd.s32 %s108, 1
    %p112 = scmp.eq.s32.totalorder %s11, 1
    %p113 = scmp.ne.s32.totalorder %s108, %s110
    %p114 = scmp.eq.s32.totalorder %s11, 0
    %p115 = por %p113, %p114
    %p116 = scmp.ne.s32.totalorder %s108, %s110
    %p117 = scmp.eq.s32.totalorder %s16, 1
    %p118 = por %p116, %p117
    %p119 = scmp.ne.s32.totalorder %s110, %s111
    %p120 = scmp.eq.s32.totalorder %s16, 0
    %p121 = por %p119, %p120
    %p122 = scmp.ne.s32.totalorder %s110, %s111
    %p123 = scmp.eq.s32.totalorder %s17, 1
    %p124 = por %p122, %p123
    %p126 = scmp.ne.s32.totalorder %s111, %s125
    %p127 = scmp.eq.s32.totalorder %s17, 0
    %p128 = por %p126, %p127
    %s129 = ssub.s32 %s11, %s18
    %p130 = scmp.eq.s32.totalorder %s129, 0
    %s132 = sadd.s32 %s131, 1
    %s133 = scalar_select %p130, %s131, %s132
    %p136 = pneg %p130
    %p137 = scmp.eq.s32.totalorder %s11, 1
    %p138 = por %p136, %p137
    %p139 = scmp.ne.s32.totalorder %s131, %s134
    %p140 = scmp.eq.s32.totalorder %s11, 0
    %p141 = por %p139, %p140
    %p142 = scmp.ne.s32.totalorder %s131, %s134
    %p143 = scmp.eq.s32.totalorder %s16, 1
    %p144 = por %p142, %p143
    %p145 = scmp.ne.s32.totalorder %s134, %s135
    %p146 = scmp.eq.s32.totalorder %s16, 0
    %p147 = por %p145, %p146
    %p148 = scmp.ne.s32.totalorder %s134, %s135
    %p149 = scmp.eq.s32.totalorder %s17, 1
    %p150 = por %p148, %p149
    %p152 = scmp.ne.s32.totalorder %s135, %s151
    %p153 = scmp.eq.s32.totalorder %s17, 0
    %p154 = por %p152, %p153
    %p155 = scmp.le.s32.totalorder 1, %s11
    %p156 = scmp.lt.s32.totalorder %s11, 3
    %p157 = pnand %p155, %p156
    %p158 = pneg %p157
    // Predicated region
    $region9: #{fpa_forward.9} parent=5 // pred_check
      _
    $region10: #{fpa_forward.9} parent=5 // pred_check_branch
      %160 = sbr.rel (%p157) target = $region12
    $region11: #{fpa_forward.9} parent=5 // pred_region
      %s161 = ssub.s32 %s11, 1
      // Predicated region
      $region13: #{fpa_forward.9} parent=11 // pred_check
        %p162 = pneg %p58
      $region14: #{fpa_forward.9} parent=11 // pred_check_branch
        %164 = sbr.rel (%p162) target = $region16
      $region15: #{fpa_forward.9} parent=11 // pred_region
        _
      $region16: #{fpa_forward.9} parent=11 // pred_fallthru
        _
      // Predicated region
      $region17: #{fpa_forward.9} parent=11 // pred_check
        %p165 = pneg %p79
      $region18: #{fpa_forward.9} parent=11 // pred_check_branch
        %167 = sbr.rel (%p165) target = $region20
      $region19: #{fpa_forward.9} parent=11 // pred_region
        _
      $region20: #{fpa_forward.9} parent=11 // pred_fallthru
        _
      // Predicated region
      $region21: #{fpa_forward.9} parent=11 // pred_check
        %p168 = pneg %p100
      $region22: #{fpa_forward.9} parent=11 // pred_check_branch
        %170 = sbr.rel (%p168) target = $region24
      $region23: #{fpa_forward.9} parent=11 // pred_region
        _
      $region24: #{fpa_forward.9} parent=11 // pred_fallthru
        _
      // Predicated region
      $region25: #{fpa_forward.9} parent=11 // pred_check
        %p171 = pneg %p121
      $region26: #{fpa_forward.9} parent=11 // pred_check_branch
        %173 = sbr.rel (%p171) target = $region28
      $region27: #{fpa_forward.9} parent=11 // pred_region
        _
      $region28: #{fpa_forward.9} parent=11 // pred_fallthru
        _
    $region12: #{fpa_forward.9} parent=5 // pred_fallthru
      _
    %p174 = scmp.lt.s32.totalorder %s11, 2
    // Predicated region
    $region29: #{fpa_forward.9} parent=5 // pred_check
      %p175 = pneg %p174
    $region30: #{fpa_forward.9} parent=5 // pred_check_branch
      %177 = sbr.rel (%p175) target = $region32
    $region31: #{fpa_forward.9} parent=5 // pred_region
      // Predicated region
      $region33: #{fpa_forward.9} parent=31 // pred_check
        %p178 = pneg %p31
      $region34: #{fpa_forward.9} parent=31 // pred_check_branch
        %180 = sbr.rel (%p178) target = $region36
      $region35: #{fpa_forward.9} parent=31 // pred_region
        %p181 = scmp.lt.s32.totalorder %s11, 1
        %s182 = scalar_select %p181, %s11, 1
        %s183 = smul.addr %s182, 2
        %s184 = smul.addr %s183, 8
        %s185 = scalar_lea.vmem %s0, %s184
      $region36: #{fpa_forward.9} parent=31 // pred_fallthru
        _
    $region32: #{fpa_forward.9} parent=5 // pred_fallthru
      _
    %p186 = scmp.le.s32.totalorder 1, %s11
    %p187 = scmp.lt.s32.totalorder %s11, 3
    %p188 = pnand %p186, %p187
    %p189 = pneg %p188
    // Predicated region
    $region37: #{fpa_forward.9} parent=5 // pred_check
      _
    $region38: #{fpa_forward.9} parent=5 // pred_check_branch
      %191 = sbr.rel (%p188) target = $region40
    $region39: #{fpa_forward.9} parent=5 // pred_region
      %s192 = ssub.s32 %s11, 1
      %p193 = scmp.lt.s32.totalorder %s16, 1
      %s194 = scalar_select %p193, %s16, 1
      %s195 = smul.addr %s194, 2
      %s196 = smul.addr %s195, 8
      %s197 = scalar_lea.vmem %s0, %s196
      %p198 = pneg %p37
      %p199 = pneg %p34
      %p200 = pneg %p58
      %p201 = pneg %p55
      %p202 = pneg %p79
      %p203 = pneg %p76
      %p204 = pneg %p100
      %p205 = pneg %p97
      %p206 = pneg %p121
      %p207 = pneg %p118
      %p208 = pneg %p147
      %p209 = pneg %p144
      %p210 = scmp.lt.s32.totalorder %s16, 1
      %s211 = scalar_select %p210, %s16, 1
      %s212 = smul.addr %s211, 2
      %s213 = smul.addr %s212, 8
      %s214 = scalar_lea.vmem %s5, %s213
      %p215 = scmp.lt.s32.totalorder %s16, 1
      %s216 = scalar_select %p215, %s16, 1
      %s217 = smul.addr %s216, 2
      %s218 = smul.addr %s217, 8
      %s219 = scalar_lea.vmem %s0, %s218
      %p220 = scmp.lt.s32.totalorder %s16, 1
      %s221 = scalar_select %p220, %s16, 1
      %s222 = smul.addr %s221, 2
      %s223 = smul.addr %s222, 8
      %s224 = scalar_lea.vmem %s5, %s223
      %v226 = vld [vmem:[%s219] sm:$0xff]
      %v227 = vld [vmem:[%s219 + $0x8] sm:$0xff]
      %v228 = vld [vmem:[%s1] sm:$0xf]
      %v229 = vpack.c.bf16 %v226, %v226
      %v230 = vpack.c.bf16 %v227, %v227
      %v231 = vld [vmem:[%s2] sm:$0xff]
      %233 = vset.pattern.permute.xlu0 0
      %234 = vperm.xlu0 %233, %v231
      %v235 = vpop.permute.xlu0 %234
      %vm237 = vcmask 64512
      %v239 = vsel %vm237, %v228, 0
      %vm241 = vcmask 1043456
      %v243 = vsel %vm241, %v229, 0
      %v246 = vsel %vm241, %v230, 0
      %248 = vmatpush.bf16.msra.mxu0 0
      %249 = vmatpush.bf16.msra.mxu0 0
      %250 = vmatpush.bf16.msra.mxu0 0
      %251 = vmatpush.bf16.msra.mxu0 0
      %252 = vmatpush.bf16.msra.mxu0 0
      %253 = vmatpush.bf16.msra.mxu0 0
      %254 = vmatpush.bf16.msra.mxu0 0
      %255 = vmatpush.bf16.msra.mxu0 %v243
      %256 = vmatmul.bf16.gmra.mxu0 %v239
      %v257 = vpop.f32.mrf.mxu0
      %v258 = vadd.f32 %v235, %v257
      %v259 = vpop.f32.mrf.mxu0
      %260 = vdwg.mxu0
      %261 = vmatpush.bf16.msra.mxu0 0
      %262 = vmatpush.bf16.msra.mxu0 0
      %263 = vmatpush.bf16.msra.mxu0 0
      %264 = vmatpush.bf16.msra.mxu0 0
      %265 = vmatpush.bf16.msra.mxu0 0
      %266 = vmatpush.bf16.msra.mxu0 0
      %267 = vmatpush.bf16.msra.mxu0 0
      %268 = vmatpush.bf16.msra.mxu0 %v246
      %269 = vmatmul.bf16.gmra.mxu0 %v239
      %v270 = vpop.f32.mrf.mxu0
      %v271 = vadd.f32 %v235, %v270
      %v272 = vpop.f32.mrf.mxu0
      %273 = vdwg.mxu0
      %274 = vst [vmem:[%s224] sm:$0xff] %v258
      %275 = vst [vmem:[%s224 + $0x8] sm:$0xff] %v271
      %p276 = scmp.lt.s32.totalorder %s16, 1
      %s277 = scalar_select %p276, %s16, 1
      %s278 = smul.addr %s277, 2
      %s279 = smul.addr %s278, 8
      %s280 = scalar_lea.vmem %s5, %s279
      // Predicated region
      $region41: #{fpa_forward.9} parent=39 // pred_check
        %p281 = pneg %p144
      $region42: #{fpa_forward.9} parent=39 // pred_check_branch
        %283 = sbr.rel (%p281) target = $region44
      $region43: #{fpa_forward.9} parent=39 // pred_region
        _
      $region44: #{fpa_forward.9} parent=39 // pred_fallthru
        _
    $region40: #{fpa_forward.9} parent=5 // pred_fallthru
      _
    %p284 = scmp.le.s32.totalorder 2, %s11
    // Predicated region
    $region45: #{fpa_forward.9} parent=5 // pred_check
      %p285 = pneg %p284
    $region46: #{fpa_forward.9} parent=5 // pred_check_branch
      %287 = sbr.rel (%p285) target = $region48
    $region47: #{fpa_forward.9} parent=5 // pred_region
      %s288 = ssub.s32 %s11, 2
      // Predicated region
      $region49: #{fpa_forward.9} parent=47 // pred_check
        %p289 = pneg %p150
      $region50: #{fpa_forward.9} parent=47 // pred_check_branch
        %291 = sbr.rel (%p289) target = $region52
      $region51: #{fpa_forward.9} parent=47 // pred_region
        %p292 = scmp.lt.s32.totalorder %s17, 1
        %s293 = scalar_select %p292, %s17, 1
        %s294 = smul.addr %s293, 2
        %s295 = smul.addr %s294, 8
        %s296 = scalar_lea.vmem %s5, %s295
      $region52: #{fpa_forward.9} parent=47 // pred_fallthru
        _
    $region48: #{fpa_forward.9} parent=5 // pred_fallthru
      _
  $region6: #{fpa_forward.9} parent=0 // loop_footer
    %s15 = sadd.s32 1, %s11
  $region7: #{fpa_forward.9} parent=0 // loop_footer_branch
    %10 = sbr.rel target = $region3
  $region8: #{fpa_forward.9} parent=0 // loop_exit
    _

// kernel: fpa_forward.12
$region0: #{fpa_forward.12}
  #allocation0 [shape = 'u32[]', space=smem, size = 0x4, offset = 0x4, fixed_abs, tag = 'smem constant byte address 0x4 - core index']
  #allocation1 [shape = 'u32[72,128]{1,0:T(1,128)}', space=vmem, size = 0x9000, scoped, tag = 'internal scratch']
  %s0 = inlined_call_operand.vmem [shape: f32[2,1,2,118], index: 0, kind: input, shape index: {}]
  %s1 = inlined_call_operand.vmem [shape: bf16[49,8,2], index: 1, kind: input, shape index: {}]
  %s2 = inlined_call_operand.vmem [shape: f32[8,1], index: 2, kind: input, shape index: {}]
  %s3 = inlined_call_operand.vmem [shape: s32[1,64], index: 3, kind: input, shape index: {}]
  %s4 = inlined_call_operand.vmem [shape: s32[1,64], index: 4, kind: input, shape index: {}]
  %s5 = inlined_call_operand.vmem [shape: f32[2,8,64], index: 5, kind: output, shape index: {}]
  %s6 = sld [smem:[#allocation0]]
  $region53: #{fpa_forward.12} parent=0
    _
  %s8 = ssub.s32 1, %s6
  %s9 = scalar_select 0, %s8, %s6
  loop: start=0, step=1, limit=4
  $region2: #{fpa_forward.12} parent=0 // loop_pre_header
    _
  $region3: #{fpa_forward.12} parent=0 // loop_header
    %s11 = sphi 0, %s15
    %p12 = scmp.ge.s32.totalorder %s11, 4
    %s21 = sphi 0, %s23
    %s24 = sphi 0, %s21
    %s25 = sphi 0, %s24
    %s41 = sphi 0, %s25
    %s45 = sphi 0, %s45
    %s47 = sphi 0, %s45
    %s48 = sphi 0, %s47
    %s62 = sphi 0, %s48
    %s66 = sphi 0, %s66
    %s68 = sphi 0, %s66
    %s69 = sphi 0, %s68
    %s83 = sphi 0, %s69
    %s87 = sphi 0, %s87
    %s89 = sphi 0, %s87
    %s90 = sphi 0, %s89
    %s104 = sphi 0, %s90
    %s108 = sphi 0, %s108
    %s110 = sphi 0, %s108
    %s111 = sphi 0, %s110
    %s125 = sphi 0, %s111
    %s131 = sphi 0, %s133
    %s134 = sphi 0, %s131
    %s135 = sphi 0, %s134
    %s151 = sphi 0, %s135
  $region4: #{fpa_forward.12} parent=0 // loop_header_branch
    %14 = sbr.rel (%p12) target = $region8
  $region5: #{fpa_forward.12} parent=0 // loop_body
    %s16 = ssub.s32 %s11, 1
    %s17 = ssub.s32 %s11, 2
    %s18 = sadd.s32 %s11, 1
    %s19 = ssub.s32 %s11, %s18
    %p20 = scmp.eq.s32.totalorder %s19, 0
    %s22 = sadd.s32 %s21, 1
    %s23 = scalar_select %p20, %s21, %s22
    %p26 = pneg %p20
    %p27 = scmp.eq.s32.totalorder %s11, 1
    %p28 = por %p26, %p27
    %p29 = scmp.ne.s32.totalorder %s21, %s24
    %p30 = scmp.eq.s32.totalorder %s11, 0
    %p31 = por %p29, %p30
    %p32 = scmp.ne.s32.totalorder %s21, %s24
    %p33 = scmp.eq.s32.totalorder %s16, 1
    %p34 = por %p32, %p33
    %p35 = scmp.ne.s32.totalorder %s24, %s25
    %p36 = scmp.eq.s32.totalorder %s16, 0
    %p37 = por %p35, %p36
    %p38 = scmp.ne.s32.totalorder %s24, %s25
    %p39 = scmp.eq.s32.totalorder %s17, 1
    %p40 = por %p38, %p39
    %p42 = scmp.ne.s32.totalorder %s25, %s41
    %p43 = scmp.eq.s32.totalorder %s17, 0
    %p44 = por %p42, %p43
    %s46 = sadd.s32 %s45, 1
    %p49 = scmp.eq.s32.totalorder %s11, 1
    %p50 = scmp.ne.s32.totalorder %s45, %s47
    %p51 = scmp.eq.s32.totalorder %s11, 0
    %p52 = por %p50, %p51
    %p53 = scmp.ne.s32.totalorder %s45, %s47
    %p54 = scmp.eq.s32.totalorder %s16, 1
    %p55 = por %p53, %p54
    %p56 = scmp.ne.s32.totalorder %s47, %s48
    %p57 = scmp.eq.s32.totalorder %s16, 0
    %p58 = por %p56, %p57
    %p59 = scmp.ne.s32.totalorder %s47, %s48
    %p60 = scmp.eq.s32.totalorder %s17, 1
    %p61 = por %p59, %p60
    %p63 = scmp.ne.s32.totalorder %s48, %s62
    %p64 = scmp.eq.s32.totalorder %s17, 0
    %p65 = por %p63, %p64
    %s67 = sadd.s32 %s66, 1
    %p70 = scmp.eq.s32.totalorder %s11, 1
    %p71 = scmp.ne.s32.totalorder %s66, %s68
    %p72 = scmp.eq.s32.totalorder %s11, 0
    %p73 = por %p71, %p72
    %p74 = scmp.ne.s32.totalorder %s66, %s68
    %p75 = scmp.eq.s32.totalorder %s16, 1
    %p76 = por %p74, %p75
    %p77 = scmp.ne.s32.totalorder %s68, %s69
    %p78 = scmp.eq.s32.totalorder %s16, 0
    %p79 = por %p77, %p78
    %p80 = scmp.ne.s32.totalorder %s68, %s69
    %p81 = scmp.eq.s32.totalorder %s17, 1
    %p82 = por %p80, %p81
    %p84 = scmp.ne.s32.totalorder %s69, %s83
    %p85 = scmp.eq.s32.totalorder %s17, 0
    %p86 = por %p84, %p85
    %s88 = sadd.s32 %s87, 1
    %p91 = scmp.eq.s32.totalorder %s11, 1
    %p92 = scmp.ne.s32.totalorder %s87, %s89
    %p93 = scmp.eq.s32.totalorder %s11, 0
    %p94 = por %p92, %p93
    %p95 = scmp.ne.s32.totalorder %s87, %s89
    %p96 = scmp.eq.s32.totalorder %s16, 1
    %p97 = por %p95, %p96
    %p98 = scmp.ne.s32.totalorder %s89, %s90
    %p99 = scmp.eq.s32.totalorder %s16, 0
    %p100 = por %p98, %p99
    %p101 = scmp.ne.s32.totalorder %s89, %s90
    %p102 = scmp.eq.s32.totalorder %s17, 1
    %p103 = por %p101, %p102
    %p105 = scmp.ne.s32.totalorder %s90, %s104
    %p106 = scmp.eq.s32.totalorder %s17, 0
    %p107 = por %p105, %p106
    %s109 = sadd.s32 %s108, 1
    %p112 = scmp.eq.s32.totalorder %s11, 1
    %p113 = scmp.ne.s32.totalorder %s108, %s110
    %p114 = scmp.eq.s32.totalorder %s11, 0
    %p115 = por %p113, %p114
    %p116 = scmp.ne.s32.totalorder %s108, %s110
    %p117 = scmp.eq.s32.totalorder %s16, 1
    %p118 = por %p116, %p117
    %p119 = scmp.ne.s32.totalorder %s110, %s111
    %p120 = scmp.eq.s32.totalorder %s16, 0
    %p121 = por %p119, %p120
    %p122 = scmp.ne.s32.totalorder %s110, %s111
    %p123 = scmp.eq.s32.totalorder %s17, 1
    %p124 = por %p122, %p123
    %p126 = scmp.ne.s32.totalorder %s111, %s125
    %p127 = scmp.eq.s32.totalorder %s17, 0
    %p128 = por %p126, %p127
    %s129 = ssub.s32 %s11, %s18
    %p130 = scmp.eq.s32.totalorder %s129, 0
    %s132 = sadd.s32 %s131, 1
    %s133 = scalar_select %p130, %s131, %s132
    %p136 = pneg %p130
    %p137 = scmp.eq.s32.totalorder %s11, 1
    %p138 = por %p136, %p137
    %p139 = scmp.ne.s32.totalorder %s131, %s134
    %p140 = scmp.eq.s32.totalorder %s11, 0
    %p141 = por %p139, %p140
    %p142 = scmp.ne.s32.totalorder %s131, %s134
    %p143 = scmp.eq.s32.totalorder %s16, 1
    %p144 = por %p142, %p143
    %p145 = scmp.ne.s32.totalorder %s134, %s135
    %p146 = scmp.eq.s32.totalorder %s16, 0
    %p147 = por %p145, %p146
    %p148 = scmp.ne.s32.totalorder %s134, %s135
    %p149 = scmp.eq.s32.totalorder %s17, 1
    %p150 = por %p148, %p149
    %p152 = scmp.ne.s32.totalorder %s135, %s151
    %p153 = scmp.eq.s32.totalorder %s17, 0
    %p154 = por %p152, %p153
    %p155 = scmp.le.s32.totalorder 1, %s11
    %p156 = scmp.lt.s32.totalorder %s11, 3
    %p157 = pnand %p155, %p156
    %p158 = pneg %p157
    // Predicated region
    $region9: #{fpa_forward.12} parent=5 // pred_check
      _
    $region10: #{fpa_forward.12} parent=5 // pred_check_branch
      %160 = sbr.rel (%p157) target = $region12
    $region11: #{fpa_forward.12} parent=5 // pred_region
      %s161 = ssub.s32 %s11, 1
      // Predicated region
      $region13: #{fpa_forward.12} parent=11 // pred_check
        %p162 = pneg %p58
      $region14: #{fpa_forward.12} parent=11 // pred_check_branch
        %164 = sbr.rel (%p162) target = $region16
      $region15: #{fpa_forward.12} parent=11 // pred_region
        _
      $region16: #{fpa_forward.12} parent=11 // pred_fallthru
        _
      // Predicated region
      $region17: #{fpa_forward.12} parent=11 // pred_check
        %p165 = pneg %p79
      $region18: #{fpa_forward.12} parent=11 // pred_check_branch
        %167 = sbr.rel (%p165) target = $region20
      $region19: #{fpa_forward.12} parent=11 // pred_region
        _
      $region20: #{fpa_forward.12} parent=11 // pred_fallthru
        _
      // Predicated region
      $region21: #{fpa_forward.12} parent=11 // pred_check
        %p168 = pneg %p100
      $region22: #{fpa_forward.12} parent=11 // pred_check_branch
        %170 = sbr.rel (%p168) target = $region24
      $region23: #{fpa_forward.12} parent=11 // pred_region
        _
      $region24: #{fpa_forward.12} parent=11 // pred_fallthru
        _
      // Predicated region
      $region25: #{fpa_forward.12} parent=11 // pred_check
        %p171 = pneg %p121
      $region26: #{fpa_forward.12} parent=11 // pred_check_branch
        %173 = sbr.rel (%p171) target = $region28
      $region27: #{fpa_forward.12} parent=11 // pred_region
        _
      $region28: #{fpa_forward.12} parent=11 // pred_fallthru
        _
    $region12: #{fpa_forward.12} parent=5 // pred_fallthru
      _
    %p174 = scmp.lt.s32.totalorder %s11, 2
    // Predicated region
    $region29: #{fpa_forward.12} parent=5 // pred_check
      %p175 = pneg %p174
    $region30: #{fpa_forward.12} parent=5 // pred_check_branch
      %177 = sbr.rel (%p175) target = $region32
    $region31: #{fpa_forward.12} parent=5 // pred_region
      // Predicated region
      $region33: #{fpa_forward.12} parent=31 // pred_check
        %p178 = pneg %p31
      $region34: #{fpa_forward.12} parent=31 // pred_check_branch
        %180 = sbr.rel (%p178) target = $region36
      $region35: #{fpa_forward.12} parent=31 // pred_region
        %p181 = scmp.lt.s32.totalorder %s11, 1
        %s182 = scalar_select %p181, %s11, 1
        %s183 = smul.addr %s182, 2
        %s184 = scalar_lea.vmem %s0, %s183
      $region36: #{fpa_forward.12} parent=31 // pred_fallthru
        _
    $region32: #{fpa_forward.12} parent=5 // pred_fallthru
      _
    %p185 = scmp.le.s32.totalorder 1, %s11
    %p186 = scmp.lt.s32.totalorder %s11, 3
    %p187 = pnand %p185, %p186
    %p188 = pneg %p187
    // Predicated region
    $region37: #{fpa_forward.12} parent=5 // pred_check
      _
    $region38: #{fpa_forward.12} parent=5 // pred_check_branch
      %190 = sbr.rel (%p187) target = $region40
    $region39: #{fpa_forward.12} parent=5 // pred_region
      %s191 = ssub.s32 %s11, 1
      %p192 = scmp.lt.s32.totalorder %s16, 1
      %s193 = scalar_select %p192, %s16, 1
      %s194 = smul.addr %s193, 2
      %s195 = scalar_lea.vmem %s0, %s194
      %p196 = pneg %p37
      %p197 = pneg %p34
      %p198 = pneg %p58
      %p199 = pneg %p55
      %p200 = pneg %p79
      %p201 = pneg %p76
      %p202 = pneg %p100
      %p203 = pneg %p97
      %p204 = pneg %p121
      %p205 = pneg %p118
      %p206 = pneg %p147
      %p207 = pneg %p144
      %p208 = scmp.lt.s32.totalorder %s16, 1
      %s209 = scalar_select %p208, %s16, 1
      %s210 = smul.addr %s209, 8
      %s211 = scalar_lea.vmem %s5, %s210
      %p212 = scmp.lt.s32.totalorder %s16, 1
      %s213 = scalar_select %p212, %s16, 1
      %s214 = smul.addr %s213, 2
      %s215 = scalar_lea.vmem %s0, %s214
      %p216 = scmp.lt.s32.totalorder %s16, 1
      %s217 = scalar_select %p216, %s16, 1
      %s218 = smul.addr %s217, 8
      %s219 = scalar_lea.vmem %s5, %s218
      %v221 = vld [vmem:[%s215] sm:$0x3]
      %v222 = vld [vmem:[%s3] sm:$0x1]
      %v223 = vld [vmem:[%s4] sm:$0x1]
      %vm224 = vcmp.ge.s32.totalorder %v222, 3
      %vm225 = vcmp.ge.s32.totalorder %v223, 3
      %vm226 = vmand %vm224, %vm225
      %v227 = vsel %vm226, 1, 0
      %v228 = vperm.slane %v227, 0
      %vm229 = vcmp.eq.s32.totalorder %v228, 1
      %v230 = vsel %vm229, %v221, 0.0
      %v231 = vld [vmem:[%s1] sm:$0xf]
      %v232 = vpack.c.bf16 %v230, %v230
      %vm233 = vcmp.ge.s32.totalorder %v223, 2
      %vm234 = vmand %vm224, %vm233
      %v235 = vsel %vm234, 1, 0
      %v236 = vperm.slane %v235, 0
      %vm237 = vcmp.eq.s32.totalorder %v236, 1
      %239 = vrot.lane.b32.xlu0 %v221, 127
      %v240 = vpop.permute.xlu0 %239
      %v242 = vsel %vm237, %v240, 0.0
      %s243 = scalar_lea.vmem %s1, 4
      %v244 = vld [vmem:[%s243] sm:$0xf]
      %v245 = vpack.c.bf16 %v242, %v242
      %vm246 = vcmask 15360
      %v248 = vsel %vm246, %v244, 0
      %vm250 = vcmask 1040384
      %v252 = vsel %vm250, %v245, 0
      %254 = vmatpush.bf16.msra.mxu0 0
      %255 = vmatpush.bf16.msra.mxu0 0
      %256 = vmatpush.bf16.msra.mxu0 0
      %257 = vmatpush.bf16.msra.mxu0 0
      %258 = vmatpush.bf16.msra.mxu0 0
      %259 = vmatpush.bf16.msra.mxu0 0
      %260 = vmatpush.bf16.msra.mxu0 0
      %261 = vmatpush.bf16.msra.mxu0 %v252
      %262 = vmatmul.bf16.gmra.mxu0 %v248
      %v263 = vpop.f32.mrf.mxu0
      %v264 = vadd.f32 0.0, %v263
      %v265 = vpop.f32.mrf.mxu0
      %266 = vdwg.mxu0
      %v268 = vsel %vm246, %v231, 0
      %v271 = vsel %vm250, %v232, 0
      %273 = vmatpush.bf16.msra.mxu0 0
      %274 = vmatpush.bf16.msra.mxu0 0
      %275 = vmatpush.bf16.msra.mxu0 0
      %276 = vmatpush.bf16.msra.mxu0 0
      %277 = vmatpush.bf16.msra.mxu0 0
      %278 = vmatpush.bf16.msra.mxu0 0
      %279 = vmatpush.bf16.msra.mxu0 0
      %280 = vmatpush.bf16.msra.mxu0 %v271
      %281 = vmatmul.bf16.gmra.mxu0 %v268
      %v282 = vpop.f32.mrf.mxu0
      %v283 = vadd.f32 %v264, %v282
      %v284 = vpop.f32.mrf.mxu0
      %285 = vdwg.mxu0
      %vm286 = vcmp.ge.s32.totalorder %v223, 1
      %vm287 = vmand %vm224, %vm286
      %v288 = vsel %vm287, 1, 0
      %v289 = vperm.slane %v288, 0
      %vm290 = vcmp.eq.s32.totalorder %v289, 1
      %291 = vrot.lane.b32.xlu0 %v221, 126
      %v292 = vpop.permute.xlu0 %291
      %v294 = vsel %vm290, %v292, 0.0
      %s295 = scalar_lea.vmem %s1, 8
      %v296 = vld [vmem:[%s295] sm:$0xf]
      %v297 = vpack.c.bf16 %v294, %v294
      %v299 = vsel %vm246, %v296, 0
      %v302 = vsel %vm250, %v297, 0
      %304 = vmatpush.bf16.msra.mxu0 0
      %305 = vmatpush.bf16.msra.mxu0 0
      %306 = vmatpush.bf16.msra.mxu0 0
      %307 = vmatpush.bf16.msra.mxu0 0
      %308 = vmatpush.bf16.msra.mxu0 0
      %309 = vmatpush.bf16.msra.mxu0 0
      %310 = vmatpush.bf16.msra.mxu0 0
      %311 = vmatpush.bf16.msra.mxu0 %v302
      %312 = vmatmul.bf16.gmra.mxu0 %v299
      %v313 = vpop.f32.mrf.mxu0
      %v314 = vadd.f32 0.0, %v313
      %v315 = vpop.f32.mrf.mxu0
      %316 = vdwg.mxu0
      %v317 = vadd.f32 %v283, %v314
      %v318 = vsel %vm224, 1, 0
      %v319 = vperm.slane %v318, 0
      %vm320 = vcmp.eq.s32.totalorder %v319, 1
      %321 = vrot.lane.b32.xlu0 %v221, 125
      %v322 = vpop.permute.xlu0 %321
      %v324 = vsel %vm320, %v322, 0.0
      %s325 = scalar_lea.vmem %s1, 12
      %v326 = vld [vmem:[%s325] sm:$0xf]
      %v327 = vpack.c.bf16 %v324, %v324
      %v329 = vsel %vm246, %v326, 0
      %v332 = vsel %vm250, %v327, 0
      %334 = vmatpush.bf16.msra.mxu0 0
      %335 = vmatpush.bf16.msra.mxu0 0
      %336 = vmatpush.bf16.msra.mxu0 0
      %337 = vmatpush.bf16.msra.mxu0 0
      %338 = vmatpush.bf16.msra.mxu0 0
      %339 = vmatpush.bf16.msra.mxu0 0
      %340 = vmatpush.bf16.msra.mxu0 0
      %341 = vmatpush.bf16.msra.mxu0 %v332
      %342 = vmatmul.bf16.gmra.mxu0 %v329
      %v343 = vpop.f32.mrf.mxu0
      %v344 = vadd.f32 0.0, %v343
      %v345 = vpop.f32.mrf.mxu0
      %346 = vdwg.mxu0
      %v347 = vadd.f32 %v317, %v344
      %vm348 = vcmp.lt.s32.totalorder %v223, 7
      %vm349 = vmand %vm224, %vm348
      %v350 = vsel %vm349, 1, 0
      %v351 = vperm.slane %v350, 0
      %vm352 = vcmp.eq.s32.totalorder %v351, 1
      %353 = vrot.lane.b32.xlu0 %v221, 124
      %v354 = vpop.permute.xlu0 %353
      %v356 = vsel %vm352, %v354, 0.0
      %s357 = scalar_lea.vmem %s1, 16
      %v358 = vld [vmem:[%s357] sm:$0xf]
      %v359 = vpack.c.bf16 %v356, %v356
      %v361 = vsel %vm246, %v358, 0
      %v364 = vsel %vm250, %v359, 0
      %366 = vmatpush.bf16.msra.mxu0 0
      %367 = vmatpush.bf16.msra.mxu0 0
      %368 = vmatpush.bf16.msra.mxu0 0
      %369 = vmatpush.bf16.msra.mxu0 0
      %370 = vmatpush.bf16.msra.mxu0 0
      %371 = vmatpush.bf16.msra.mxu0 0
      %372 = vmatpush.bf16.msra.mxu0 0
      %373 = vmatpush.bf16.msra.mxu0 %v364
      %374 = vmatmul.bf16.gmra.mxu0 %v361
      %v375 = vpop.f32.mrf.mxu0
      %v376 = vadd.f32 0.0, %v375
      %v377 = vpop.f32.mrf.mxu0
      %378 = vdwg.mxu0
      %v379 = vadd.f32 %v347, %v376
      %vm380 = vcmp.lt.s32.totalorder %v223, 6
      %vm381 = vmand %vm224, %vm380
      %v382 = vsel %vm381, 1, 0
      %v383 = vperm.slane %v382, 0
      %vm384 = vcmp.eq.s32.totalorder %v383, 1
      %385 = vrot.lane.b32.xlu0 %v221, 123
      %v386 = vpop.permute.xlu0 %385
      %v388 = vsel %vm384, %v386, 0.0
      %s389 = scalar_lea.vmem %s1, 20
      %v390 = vld [vmem:[%s389] sm:$0xf]
      %v391 = vpack.c.bf16 %v388, %v388
      %v393 = vsel %vm246, %v390, 0
      %v396 = vsel %vm250, %v391, 0
      %398 = vmatpush.bf16.msra.mxu0 0
      %399 = vmatpush.bf16.msra.mxu0 0
      %400 = vmatpush.bf16.msra.mxu0 0
      %401 = vmatpush.bf16.msra.mxu0 0
      %402 = vmatpush.bf16.msra.mxu0 0
      %403 = vmatpush.bf16.msra.mxu0 0
      %404 = vmatpush.bf16.msra.mxu0 0
      %405 = vmatpush.bf16.msra.mxu0 %v396
      %406 = vmatmul.bf16.gmra.mxu0 %v393
      %v407 = vpop.f32.mrf.mxu0
      %v408 = vadd.f32 0.0, %v407
      %v409 = vpop.f32.mrf.mxu0
      %410 = vdwg.mxu0
      %v411 = vadd.f32 %v379, %v408
      %vm412 = vcmp.lt.s32.totalorder %v223, 5
      %vm413 = vmand %vm224, %vm412
      %v414 = vsel %vm413, 1, 0
      %v415 = vperm.slane %v414, 0
      %vm416 = vcmp.eq.s32.totalorder %v415, 1
      %417 = vrot.lane.b32.xlu0 %v221, 122
      %v418 = vpop.permute.xlu0 %417
      %v420 = vsel %vm416, %v418, 0.0
      %s421 = scalar_lea.vmem %s1, 24
      %v422 = vld [vmem:[%s421] sm:$0xf]
      %v423 = vpack.c.bf16 %v420, %v420
      %v425 = vsel %vm246, %v422, 0
      %v428 = vsel %vm250, %v423, 0
      %430 = vmatpush.bf16.msra.mxu0 0
      %431 = vmatpush.bf16.msra.mxu0 0
      %432 = vmatpush.bf16.msra.mxu0 0
      %433 = vmatpush.bf16.msra.mxu0 0
      %434 = vmatpush.bf16.msra.mxu0 0
      %435 = vmatpush.bf16.msra.mxu0 0
      %436 = vmatpush.bf16.msra.mxu0 0
      %437 = vmatpush.bf16.msra.mxu0 %v428
      %438 = vmatmul.bf16.gmra.mxu0 %v425
      %v439 = vpop.f32.mrf.mxu0
      %v440 = vadd.f32 0.0, %v439
      %v441 = vpop.f32.mrf.mxu0
      %442 = vdwg.mxu0
      %v443 = vadd.f32 %v411, %v440
      %vm444 = vcmp.ge.s32.totalorder %v222, 2
      %vm445 = vmand %vm444, %vm225
      %v446 = vsel %vm445, 1, 0
      %v447 = vperm.slane %v446, 0
      %vm448 = vcmp.eq.s32.totalorder %v447, 1
      %449 = vrot.lane.b32.xlu0 %v221, 120
      %v450 = vpop.permute.xlu0 %449
      %v452 = vsel %vm448, %v450, 0.0
      %s453 = scalar_lea.vmem %s1, 28
      %v454 = vld [vmem:[%s453] sm:$0xf]
      %v455 = vpack.c.bf16 %v452, %v452
      %v457 = vsel %vm246, %v454, 0
      %v460 = vsel %vm250, %v455, 0
      %462 = vmatpush.bf16.msra.mxu0 0
      %463 = vmatpush.bf16.msra.mxu0 0
      %464 = vmatpush.bf16.msra.mxu0 0
      %465 = vmatpush.bf16.msra.mxu0 0
      %466 = vmatpush.bf16.msra.mxu0 0
      %467 = vmatpush.bf16.msra.mxu0 0
      %468 = vmatpush.bf16.msra.mxu0 0
      %469 = vmatpush.bf16.msra.mxu0 %v460
      %470 = vmatmul.bf16.gmra.mxu0 %v457
      %v471 = vpop.f32.mrf.mxu0
      %v472 = vadd.f32 0.0, %v471
      %v473 = vpop.f32.mrf.mxu0
      %474 = vdwg.mxu0
      %v475 = vadd.f32 %v443, %v472
      %vm476 = vmand %vm444, %vm233
      %v477 = vsel %vm476, 1, 0
      %v478 = vperm.slane %v477, 0
      %vm479 = vcmp.eq.s32.totalorder %v478, 1
      %480 = vrot.lane.b32.xlu0 %v221, 119
      %v481 = vpop.permute.xlu0 %480
      %v483 = vsel %vm479, %v481, 0.0
      %s484 = scalar_lea.vmem %s1, 32
      %v485 = vld [vmem:[%s484] sm:$0xf]
      %v486 = vpack.c.bf16 %v483, %v483
      %v488 = vsel %vm246, %v485, 0
      %v491 = vsel %vm250, %v486, 0
      %493 = vmatpush.bf16.msra.mxu0 0
      %494 = vmatpush.bf16.msra.mxu0 0
      %495 = vmatpush.bf16.msra.mxu0 0
      %496 = vmatpush.bf16.msra.mxu0 0
      %497 = vmatpush.bf16.msra.mxu0 0
      %498 = vmatpush.bf16.msra.mxu0 0
      %499 = vmatpush.bf16.msra.mxu0 0
      %500 = vmatpush.bf16.msra.mxu0 %v491
      %501 = vmatmul.bf16.gmra.mxu0 %v488
      %v502 = vpop.f32.mrf.mxu0
      %v503 = vadd.f32 0.0, %v502
      %v504 = vpop.f32.mrf.mxu0
      %505 = vdwg.mxu0
      %v506 = vadd.f32 %v475, %v503
      %vm507 = vmand %vm444, %vm286
      %v508 = vsel %vm507, 1, 0
      %v509 = vperm.slane %v508, 0
      %vm510 = vcmp.eq.s32.totalorder %v509, 1
      %511 = vrot.lane.b32.xlu0 %v221, 118
      %v512 = vpop.permute.xlu0 %511
      %v514 = vsel %vm510, %v512, 0.0
      %s515 = scalar_lea.vmem %s1, 36
      %v516 = vld [vmem:[%s515] sm:$0xf]
      %v517 = vpack.c.bf16 %v514, %v514
      %v519 = vsel %vm246, %v516, 0
      %v522 = vsel %vm250, %v517, 0
      %524 = vmatpush.bf16.msra.mxu0 0
      %525 = vmatpush.bf16.msra.mxu0 0
      %526 = vmatpush.bf16.msra.mxu0 0
      %527 = vmatpush.bf16.msra.mxu0 0
      %528 = vmatpush.bf16.msra.mxu0 0
      %529 = vmatpush.bf16.msra.mxu0 0
      %530 = vmatpush.bf16.msra.mxu0 0
      %531 = vmatpush.bf16.msra.mxu0 %v522
      %532 = vmatmul.bf16.gmra.mxu0 %v519
      %v533 = vpop.f32.mrf.mxu0
      %v534 = vadd.f32 0.0, %v533
      %v535 = vpop.f32.mrf.mxu0
      %536 = vdwg.mxu0
      %v537 = vadd.f32 %v506, %v534
      %v538 = vsel %vm444, 1, 0
      %v539 = vperm.slane %v538, 0
      %vm540 = vcmp.eq.s32.totalorder %v539, 1
      %541 = vrot.lane.b32.xlu0 %v221, 117
      %v542 = vpop.permute.xlu0 %541
      %v544 = vsel %vm540, %v542, 0.0
      %s545 = scalar_lea.vmem %s1, 40
      %v546 = vld [vmem:[%s545] sm:$0xf]
      %v547 = vpack.c.bf16 %v544, %v544
      %v549 = vsel %vm246, %v546, 0
      %v552 = vsel %vm250, %v547, 0
      %554 = vmatpush.bf16.msra.mxu0 0
      %555 = vmatpush.bf16.msra.mxu0 0
      %556 = vmatpush.bf16.msra.mxu0 0
      %557 = vmatpush.bf16.msra.mxu0 0
      %558 = vmatpush.bf16.msra.mxu0 0
      %559 = vmatpush.bf16.msra.mxu0 0
      %560 = vmatpush.bf16.msra.mxu0 0
      %561 = vmatpush.bf16.msra.mxu0 %v552
      %562 = vmatmul.bf16.gmra.mxu0 %v549
      %v563 = vpop.f32.mrf.mxu0
      %v564 = vadd.f32 0.0, %v563
      %v565 = vpop.f32.mrf.mxu0
      %566 = vdwg.mxu0
      %v567 = vadd.f32 %v537, %v564
      %vm568 = vmand %vm444, %vm348
      %v569 = vsel %vm568, 1, 0
      %v570 = vperm.slane %v569, 0
      %vm571 = vcmp.eq.s32.totalorder %v570, 1
      %572 = vrot.lane.b32.xlu0 %v221, 116
      %v573 = vpop.permute.xlu0 %572
      %v575 = vsel %vm571, %v573, 0.0
      %s576 = scalar_lea.vmem %s1, 44
      %v577 = vld [vmem:[%s576] sm:$0xf]
      %v578 = vpack.c.bf16 %v575, %v575
      %v580 = vsel %vm246, %v577, 0
      %v583 = vsel %vm250, %v578, 0
      %585 = vmatpush.bf16.msra.mxu0 0
      %586 = vmatpush.bf16.msra.mxu0 0
      %587 = vmatpush.bf16.msra.mxu0 0
      %588 = vmatpush.bf16.msra.mxu0 0
      %589 = vmatpush.bf16.msra.mxu0 0
      %590 = vmatpush.bf16.msra.mxu0 0
      %591 = vmatpush.bf16.msra.mxu0 0
      %592 = vmatpush.bf16.msra.mxu0 %v583
      %593 = vmatmul.bf16.gmra.mxu0 %v580
      %v594 = vpop.f32.mrf.mxu0
      %v595 = vadd.f32 0.0, %v594
      %v596 = vpop.f32.mrf.mxu0
      %597 = vdwg.mxu0
      %v598 = vadd.f32 %v567, %v595
      %vm599 = vmand %vm444, %vm380
      %v600 = vsel %vm599, 1, 0
      %v601 = vperm.slane %v600, 0
      %vm602 = vcmp.eq.s32.totalorder %v601, 1
      %603 = vrot.lane.b32.xlu0 %v221, 115
      %v604 = vpop.permute.xlu0 %603
      %v606 = vsel %vm602, %v604, 0.0
      %s607 = scalar_lea.vmem %s1, 48
      %v608 = vld [vmem:[%s607] sm:$0xf]
      %v609 = vpack.c.bf16 %v606, %v606
      %v611 = vsel %vm246, %v608, 0
      %v614 = vsel %vm250, %v609, 0
      %616 = vmatpush.bf16.msra.mxu0 0
      %617 = vmatpush.bf16.msra.mxu0 0
      %618 = vmatpush.bf16.msra.mxu0 0
      %619 = vmatpush.bf16.msra.mxu0 0
      %620 = vmatpush.bf16.msra.mxu0 0
      %621 = vmatpush.bf16.msra.mxu0 0
      %622 = vmatpush.bf16.msra.mxu0 0
      %623 = vmatpush.bf16.msra.mxu0 %v614
      %624 = vmatmul.bf16.gmra.mxu0 %v611
      %v625 = vpop.f32.mrf.mxu0
      %v626 = vadd.f32 0.0, %v625
      %v627 = vpop.f32.mrf.mxu0
      %628 = vdwg.mxu0
      %v629 = vadd.f32 %v598, %v626
      %vm630 = vmand %vm444, %vm412
      %v631 = vsel %vm630, 1, 0
      %v632 = vperm.slane %v631, 0
      %vm633 = vcmp.eq.s32.totalorder %v632, 1
      %634 = vrot.lane.b32.xlu0 %v221, 114
      %v635 = vpop.permute.xlu0 %634
      %v637 = vsel %vm633, %v635, 0.0
      %s638 = scalar_lea.vmem %s1, 52
      %v639 = vld [vmem:[%s638] sm:$0xf]
      %v640 = vpack.c.bf16 %v637, %v637
      %v642 = vsel %vm246, %v639, 0
      %v645 = vsel %vm250, %v640, 0
      %647 = vmatpush.bf16.msra.mxu0 0
      %648 = vmatpush.bf16.msra.mxu0 0
      %649 = vmatpush.bf16.msra.mxu0 0
      %650 = vmatpush.bf16.msra.mxu0 0
      %651 = vmatpush.bf16.msra.mxu0 0
      %652 = vmatpush.bf16.msra.mxu0 0
      %653 = vmatpush.bf16.msra.mxu0 0
      %654 = vmatpush.bf16.msra.mxu0 %v645
      %655 = vmatmul.bf16.gmra.mxu0 %v642
      %v656 = vpop.f32.mrf.mxu0
      %v657 = vadd.f32 0.0, %v656
      %v658 = vpop.f32.mrf.mxu0
      %659 = vdwg.mxu0
      %v660 = vadd.f32 %v629, %v657
      %vm661 = vcmp.ge.s32.totalorder %v222, 1
      %vm662 = vmand %vm661, %vm225
      %v663 = vsel %vm662, 1, 0
      %v664 = vperm.slane %v663, 0
      %vm665 = vcmp.eq.s32.totalorder %v664, 1
      %666 = vrot.lane.b32.xlu0 %v221, 112
      %v667 = vpop.permute.xlu0 %666
      %v669 = vsel %vm665, %v667, 0.0
      %s670 = scalar_lea.vmem %s1, 56
      %v671 = vld [vmem:[%s670] sm:$0xf]
      %v672 = vpack.c.bf16 %v669, %v669
      %v674 = vsel %vm246, %v671, 0
      %v677 = vsel %vm250, %v672, 0
      %679 = vmatpush.bf16.msra.mxu0 0
      %680 = vmatpush.bf16.msra.mxu0 0
      %681 = vmatpush.bf16.msra.mxu0 0
      %682 = vmatpush.bf16.msra.mxu0 0
      %683 = vmatpush.bf16.msra.mxu0 0
      %684 = vmatpush.bf16.msra.mxu0 0
      %685 = vmatpush.bf16.msra.mxu0 0
      %686 = vmatpush.bf16.msra.mxu0 %v677
      %687 = vmatmul.bf16.gmra.mxu0 %v674
      %v688 = vpop.f32.mrf.mxu0
      %v689 = vadd.f32 0.0, %v688
      %v690 = vpop.f32.mrf.mxu0
      %691 = vdwg.mxu0
      %v692 = vadd.f32 %v660, %v689
      %vm693 = vmand %vm661, %vm233
      %v694 = vsel %vm693, 1, 0
      %v695 = vperm.slane %v694, 0
      %vm696 = vcmp.eq.s32.totalorder %v695, 1
      %697 = vrot.lane.b32.xlu0 %v221, 111
      %v698 = vpop.permute.xlu0 %697
      %v700 = vsel %vm696, %v698, 0.0
      %s701 = scalar_lea.vmem %s1, 60
      %v702 = vld [vmem:[%s701] sm:$0xf]
      %v703 = vpack.c.bf16 %v700, %v700
      %v705 = vsel %vm246, %v702, 0
      %v708 = vsel %vm250, %v703, 0
      %710 = vmatpush.bf16.msra.mxu0 0
      %711 = vmatpush.bf16.msra.mxu0 0
      %712 = vmatpush.bf16.msra.mxu0 0
      %713 = vmatpush.bf16.msra.mxu0 0
      %714 = vmatpush.bf16.msra.mxu0 0
      %715 = vmatpush.bf16.msra.mxu0 0
      %716 = vmatpush.bf16.msra.mxu0 0
      %717 = vmatpush.bf16.msra.mxu0 %v708
      %718 = vmatmul.bf16.gmra.mxu0 %v705
      %v719 = vpop.f32.mrf.mxu0
      %v720 = vadd.f32 0.0, %v719
      %v721 = vpop.f32.mrf.mxu0
      %722 = vdwg.mxu0
      %v723 = vadd.f32 %v692, %v720
      %vm724 = vmand %vm661, %vm286
      %v725 = vsel %vm724, 1, 0
      %v726 = vperm.slane %v725, 0
      %vm727 = vcmp.eq.s32.totalorder %v726, 1
      %728 = vrot.lane.b32.xlu0 %v221, 110
      %v729 = vpop.permute.xlu0 %728
      %v731 = vsel %vm727, %v729, 0.0
      %s732 = scalar_lea.vmem %s1, 64
      %v733 = vld [vmem:[%s732] sm:$0xf]
      %v734 = vpack.c.bf16 %v731, %v731
      %v736 = vsel %vm246, %v733, 0
      %v739 = vsel %vm250, %v734, 0
      %741 = vmatpush.bf16.msra.mxu0 0
      %742 = vmatpush.bf16.msra.mxu0 0
      %743 = vmatpush.bf16.msra.mxu0 0
      %744 = vmatpush.bf16.msra.mxu0 0
      %745 = vmatpush.bf16.msra.mxu0 0
      %746 = vmatpush.bf16.msra.mxu0 0
      %747 = vmatpush.bf16.msra.mxu0 0
      %748 = vmatpush.bf16.msra.mxu0 %v739
      %749 = vmatmul.bf16.gmra.mxu0 %v736
      %v750 = vpop.f32.mrf.mxu0
      %v751 = vadd.f32 0.0, %v750
      %v752 = vpop.f32.mrf.mxu0
      %753 = vdwg.mxu0
      %v754 = vadd.f32 %v723, %v751
      %v755 = vsel %vm661, 1, 0
      %v756 = vperm.slane %v755, 0
      %vm757 = vcmp.eq.s32.totalorder %v756, 1
      %758 = vrot.lane.b32.xlu0 %v221, 109
      %v759 = vpop.permute.xlu0 %758
      %v761 = vsel %vm757, %v759, 0.0
      %s762 = scalar_lea.vmem %s1, 68
      %v763 = vld [vmem:[%s762] sm:$0xf]
      %v764 = vpack.c.bf16 %v761, %v761
      %v766 = vsel %vm246, %v763, 0
      %v769 = vsel %vm250, %v764, 0
      %771 = vmatpush.bf16.msra.mxu0 0
      %772 = vmatpush.bf16.msra.mxu0 0
      %773 = vmatpush.bf16.msra.mxu0 0
      %774 = vmatpush.bf16.msra.mxu0 0
      %775 = vmatpush.bf16.msra.mxu0 0
      %776 = vmatpush.bf16.msra.mxu0 0
      %777 = vmatpush.bf16.msra.mxu0 0
      %778 = vmatpush.bf16.msra.mxu0 %v769
      %779 = vmatmul.bf16.gmra.mxu0 %v766
      %v780 = vpop.f32.mrf.mxu0
      %v781 = vadd.f32 0.0, %v780
      %v782 = vpop.f32.mrf.mxu0
      %783 = vdwg.mxu0
      %v784 = vadd.f32 %v754, %v781
      %vm785 = vmand %vm661, %vm348
      %v786 = vsel %vm785, 1, 0
      %v787 = vperm.slane %v786, 0
      %vm788 = vcmp.eq.s32.totalorder %v787, 1
      %789 = vrot.lane.b32.xlu0 %v221, 108
      %v790 = vpop.permute.xlu0 %789
      %v792 = vsel %vm788, %v790, 0.0
      %s793 = scalar_lea.vmem %s1, 72
      %v794 = vld [vmem:[%s793] sm:$0xf]
      %v795 = vpack.c.bf16 %v792, %v792
      %v797 = vsel %vm246, %v794, 0
      %v800 = vsel %vm250, %v795, 0
      %802 = vmatpush.bf16.msra.mxu0 0
      %803 = vmatpush.bf16.msra.mxu0 0
      %804 = vmatpush.bf16.msra.mxu0 0
      %805 = vmatpush.bf16.msra.mxu0 0
      %806 = vmatpush.bf16.msra.mxu0 0
      %807 = vmatpush.bf16.msra.mxu0 0
      %808 = vmatpush.bf16.msra.mxu0 0
      %809 = vmatpush.bf16.msra.mxu0 %v800
      %810 = vmatmul.bf16.gmra.mxu0 %v797
      %v811 = vpop.f32.mrf.mxu0
      %v812 = vadd.f32 0.0, %v811
      %v813 = vpop.f32.mrf.mxu0
      %814 = vdwg.mxu0
      %v815 = vadd.f32 %v784, %v812
      %vm816 = vmand %vm661, %vm380
      %v817 = vsel %vm816, 1, 0
      %v818 = vperm.slane %v817, 0
      %vm819 = vcmp.eq.s32.totalorder %v818, 1
      %820 = vrot.lane.b32.xlu0 %v221, 107
      %v821 = vpop.permute.xlu0 %820
      %v823 = vsel %vm819, %v821, 0.0
      %s824 = scalar_lea.vmem %s1, 76
      %v825 = vld [vmem:[%s824] sm:$0xf]
      %v826 = vpack.c.bf16 %v823, %v823
      %v828 = vsel %vm246, %v825, 0
      %v831 = vsel %vm250, %v826, 0
      %833 = vmatpush.bf16.msra.mxu0 0
      %834 = vmatpush.bf16.msra.mxu0 0
      %835 = vmatpush.bf16.msra.mxu0 0
      %836 = vmatpush.bf16.msra.mxu0 0
      %837 = vmatpush.bf16.msra.mxu0 0
      %838 = vmatpush.bf16.msra.mxu0 0
      %839 = vmatpush.bf16.msra.mxu0 0
      %840 = vmatpush.bf16.msra.mxu0 %v831
      %841 = vmatmul.bf16.gmra.mxu0 %v828
      %v842 = vpop.f32.mrf.mxu0
      %v843 = vadd.f32 0.0, %v842
      %v844 = vpop.f32.mrf.mxu0
      %845 = vdwg.mxu0
      %v846 = vadd.f32 %v815, %v843
      %vm847 = vmand %vm661, %vm412
      %v848 = vsel %vm847, 1, 0
      %v849 = vperm.slane %v848, 0
      %vm850 = vcmp.eq.s32.totalorder %v849, 1
      %851 = vrot.lane.b32.xlu0 %v221, 106
      %v852 = vpop.permute.xlu0 %851
      %v854 = vsel %vm850, %v852, 0.0
      %s855 = scalar_lea.vmem %s1, 80
      %v856 = vld [vmem:[%s855] sm:$0xf]
      %v857 = vpack.c.bf16 %v854, %v854
      %v859 = vsel %vm246, %v856, 0
      %v862 = vsel %vm250, %v857, 0
      %864 = vmatpush.bf16.msra.mxu0 0
      %865 = vmatpush.bf16.msra.mxu0 0
      %866 = vmatpush.bf16.msra.mxu0 0
      %867 = vmatpush.bf16.msra.mxu0 0
      %868 = vmatpush.bf16.msra.mxu0 0
      %869 = vmatpush.bf16.msra.mxu0 0
      %870 = vmatpush.bf16.msra.mxu0 0
      %871 = vmatpush.bf16.msra.mxu0 %v862
      %872 = vmatmul.bf16.gmra.mxu0 %v859
      %v873 = vpop.f32.mrf.mxu0
      %v874 = vadd.f32 0.0, %v873
      %v875 = vpop.f32.mrf.mxu0
      %876 = vdwg.mxu0
      %v877 = vadd.f32 %v846, %v874
      %v878 = vsel %vm225, 1, 0
      %v879 = vperm.slane %v878, 0
      %vm880 = vcmp.eq.s32.totalorder %v879, 1
      %881 = vrot.lane.b32.xlu0 %v221, 104
      %v882 = vpop.permute.xlu0 %881
      %v884 = vsel %vm880, %v882, 0.0
      %s885 = scalar_lea.vmem %s1, 84
      %v886 = vld [vmem:[%s885] sm:$0xf]
      %v887 = vpack.c.bf16 %v884, %v884
      %v889 = vsel %vm246, %v886, 0
      %v892 = vsel %vm250, %v887, 0
      %894 = vmatpush.bf16.msra.mxu0 0
      %895 = vmatpush.bf16.msra.mxu0 0
      %896 = vmatpush.bf16.msra.mxu0 0
      %897 = vmatpush.bf16.msra.mxu0 0
      %898 = vmatpush.bf16.msra.mxu0 0
      %899 = vmatpush.bf16.msra.mxu0 0
      %900 = vmatpush.bf16.msra.mxu0 0
      %901 = vmatpush.bf16.msra.mxu0 %v892
      %902 = vmatmul.bf16.gmra.mxu0 %v889
      %v903 = vpop.f32.mrf.mxu0
      %v904 = vadd.f32 0.0, %v903
      %v905 = vpop.f32.mrf.mxu0
      %906 = vdwg.mxu0
      %v907 = vadd.f32 %v877, %v904
      %v908 = vsel %vm233, 1, 0
      %v909 = vperm.slane %v908, 0
      %vm910 = vcmp.eq.s32.totalorder %v909, 1
      %911 = vrot.lane.b32.xlu0 %v221, 103
      %v912 = vpop.permute.xlu0 %911
      %v914 = vsel %vm910, %v912, 0.0
      %s915 = scalar_lea.vmem %s1, 88
      %v916 = vld [vmem:[%s915] sm:$0xf]
      %v917 = vpack.c.bf16 %v914, %v914
      %v919 = vsel %vm246, %v916, 0
      %v922 = vsel %vm250, %v917, 0
      %924 = vmatpush.bf16.msra.mxu0 0
      %925 = vmatpush.bf16.msra.mxu0 0
      %926 = vmatpush.bf16.msra.mxu0 0
      %927 = vmatpush.bf16.msra.mxu0 0
      %928 = vmatpush.bf16.msra.mxu0 0
      %929 = vmatpush.bf16.msra.mxu0 0
      %930 = vmatpush.bf16.msra.mxu0 0
      %931 = vmatpush.bf16.msra.mxu0 %v922
      %932 = vmatmul.bf16.gmra.mxu0 %v919
      %v933 = vpop.f32.mrf.mxu0
      %v934 = vadd.f32 0.0, %v933
      %v935 = vpop.f32.mrf.mxu0
      %936 = vdwg.mxu0
      %v937 = vadd.f32 %v907, %v934
      %v938 = vsel %vm286, 1, 0
      %v939 = vperm.slane %v938, 0
      %vm940 = vcmp.eq.s32.totalorder %v939, 1
      %941 = vrot.lane.b32.xlu0 %v221, 102
      %v942 = vpop.permute.xlu0 %941
      %v944 = vsel %vm940, %v942, 0.0
      %s945 = scalar_lea.vmem %s1, 92
      %v946 = vld [vmem:[%s945] sm:$0xf]
      %v947 = vpack.c.bf16 %v944, %v944
      %v949 = vsel %vm246, %v946, 0
      %v952 = vsel %vm250, %v947, 0
      %954 = vmatpush.bf16.msra.mxu0 0
      %955 = vmatpush.bf16.msra.mxu0 0
      %956 = vmatpush.bf16.msra.mxu0 0
      %957 = vmatpush.bf16.msra.mxu0 0
      %958 = vmatpush.bf16.msra.mxu0 0
      %959 = vmatpush.bf16.msra.mxu0 0
      %960 = vmatpush.bf16.msra.mxu0 0
      %961 = vmatpush.bf16.msra.mxu0 %v952
      %962 = vmatmul.bf16.gmra.mxu0 %v949
      %v963 = vpop.f32.mrf.mxu0
      %v964 = vadd.f32 0.0, %v963
      %v965 = vpop.f32.mrf.mxu0
      %966 = vdwg.mxu0
      %v967 = vadd.f32 %v937, %v964
      %s968 = scalar_lea.vmem %s1, 96
      %v969 = vld [vmem:[%s968] sm:$0xf]
      %v970 = vpack.c.bf16 %v221, %v221
      %972 = vrot.lane.b32.xlu0 %v970, 101
      %v973 = vpop.permute.xlu0 %972
      %v975 = vsel %vm246, %v969, 0
      %v978 = vsel %vm250, %v973, 0
      %980 = vmatpush.bf16.msra.mxu0 0
      %981 = vmatpush.bf16.msra.mxu0 0
      %982 = vmatpush.bf16.msra.mxu0 0
      %983 = vmatpush.bf16.msra.mxu0 0
      %984 = vmatpush.bf16.msra.mxu0 0
      %985 = vmatpush.bf16.msra.mxu0 0
      %986 = vmatpush.bf16.msra.mxu0 0
      %987 = vmatpush.bf16.msra.mxu0 %v978
      %988 = vmatmul.bf16.gmra.mxu0 %v975
      %v989 = vpop.f32.mrf.mxu0
      %v990 = vadd.f32 0.0, %v989
      %v991 = vpop.f32.mrf.mxu0
      %992 = vdwg.mxu0
      %v993 = vadd.f32 %v967, %v990
      %v994 = vsel %vm348, 1, 0
      %v995 = vperm.slane %v994, 0
      %vm996 = vcmp.eq.s32.totalorder %v995, 1
      %997 = vrot.lane.b32.xlu0 %v221, 100
      %v998 = vpop.permute.xlu0 %997
      %v1000 = vsel %vm996, %v998, 0.0
      %s1001 = scalar_lea.vmem %s1, 100
      %v1002 = vld [vmem:[%s1001] sm:$0xf]
      %v1003 = vpack.c.bf16 %v1000, %v1000
      %v1005 = vsel %vm246, %v1002, 0
      %v1008 = vsel %vm250, %v1003, 0
      %1010 = vmatpush.bf16.msra.mxu0 0
      %1011 = vmatpush.bf16.msra.mxu0 0
      %1012 = vmatpush.bf16.msra.mxu0 0
      %1013 = vmatpush.bf16.msra.mxu0 0
      %1014 = vmatpush.bf16.msra.mxu0 0
      %1015 = vmatpush.bf16.msra.mxu0 0
      %1016 = vmatpush.bf16.msra.mxu0 0
      %1017 = vmatpush.bf16.msra.mxu0 %v1008
      %1018 = vmatmul.bf16.gmra.mxu0 %v1005
      %v1019 = vpop.f32.mrf.mxu0
      %v1020 = vadd.f32 0.0, %v1019
      %v1021 = vpop.f32.mrf.mxu0
      %1022 = vdwg.mxu0
      %v1023 = vadd.f32 %v993, %v1020
      %v1024 = vsel %vm380, 1, 0
      %v1025 = vperm.slane %v1024, 0
      %vm1026 = vcmp.eq.s32.totalorder %v1025, 1
      %1027 = vrot.lane.b32.xlu0 %v221, 99
      %v1028 = vpop.permute.xlu0 %1027
      %v1030 = vsel %vm1026, %v1028, 0.0
      %s1031 = scalar_lea.vmem %s1, 104
      %v1032 = vld [vmem:[%s1031] sm:$0xf]
      %v1033 = vpack.c.bf16 %v1030, %v1030
      %v1035 = vsel %vm246, %v1032, 0
      %v1038 = vsel %vm250, %v1033, 0
      %1040 = vmatpush.bf16.msra.mxu0 0
      %1041 = vmatpush.bf16.msra.mxu0 0
      %1042 = vmatpush.bf16.msra.mxu0 0
      %1043 = vmatpush.bf16.msra.mxu0 0
      %1044 = vmatpush.bf16.msra.mxu0 0
      %1045 = vmatpush.bf16.msra.mxu0 0
      %1046 = vmatpush.bf16.msra.mxu0 0
      %1047 = vmatpush.bf16.msra.mxu0 %v1038
      %1048 = vmatmul.bf16.gmra.mxu0 %v1035
      %v1049 = vpop.f32.mrf.mxu0
      %v1050 = vadd.f32 0.0, %v1049
      %v1051 = vpop.f32.mrf.mxu0
      %1052 = vdwg.mxu0
      %v1053 = vadd.f32 %v1023, %v1050
      %v1054 = vsel %vm412, 1, 0
      %v1055 = vperm.slane %v1054, 0
      %vm1056 = vcmp.eq.s32.totalorder %v1055, 1
      %1057 = vrot.lane.b32.xlu0 %v221, 98
      %v1058 = vpop.permute.xlu0 %1057
      %v1060 = vsel %vm1056, %v1058, 0.0
      %s1061 = scalar_lea.vmem %s1, 108
      %v1062 = vld [vmem:[%s1061] sm:$0xf]
      %v1063 = vpack.c.bf16 %v1060, %v1060
      %v1065 = vsel %vm246, %v1062, 0
      %v1068 = vsel %vm250, %v1063, 0
      %1070 = vmatpush.bf16.msra.mxu0 0
      %1071 = vmatpush.bf16.msra.mxu0 0
      %1072 = vmatpush.bf16.msra.mxu0 0
      %1073 = vmatpush.bf16.msra.mxu0 0
      %1074 = vmatpush.bf16.msra.mxu0 0
      %1075 = vmatpush.bf16.msra.mxu0 0
      %1076 = vmatpush.bf16.msra.mxu0 0
      %1077 = vmatpush.bf16.msra.mxu0 %v1068
      %1078 = vmatmul.bf16.gmra.mxu0 %v1065
      %v1079 = vpop.f32.mrf.mxu0
      %v1080 = vadd.f32 0.0, %v1079
      %v1081 = vpop.f32.mrf.mxu0
      %1082 = vdwg.mxu0
      %v1083 = vadd.f32 %v1053, %v1080
      %vm1084 = vcmp.lt.s32.totalorder %v222, 7
      %vm1085 = vmand %vm1084, %vm225
      %v1086 = vsel %vm1085, 1, 0
      %v1087 = vperm.slane %v1086, 0
      %vm1088 = vcmp.eq.s32.totalorder %v1087, 1
      %1089 = vrot.lane.b32.xlu0 %v221, 96
      %v1090 = vpop.permute.xlu0 %1089
      %v1092 = vsel %vm1088, %v1090, 0.0
      %s1093 = scalar_lea.vmem %s1, 112
      %v1094 = vld [vmem:[%s1093] sm:$0xf]
      %v1095 = vpack.c.bf16 %v1092, %v1092
      %v1097 = vsel %vm246, %v1094, 0
      %v1100 = vsel %vm250, %v1095, 0
      %1102 = vmatpush.bf16.msra.mxu0 0
      %1103 = vmatpush.bf16.msra.mxu0 0
      %1104 = vmatpush.bf16.msra.mxu0 0
      %1105 = vmatpush.bf16.msra.mxu0 0
      %1106 = vmatpush.bf16.msra.mxu0 0
      %1107 = vmatpush.bf16.msra.mxu0 0
      %1108 = vmatpush.bf16.msra.mxu0 0
      %1109 = vmatpush.bf16.msra.mxu0 %v1100
      %1110 = vmatmul.bf16.gmra.mxu0 %v1097
      %v1111 = vpop.f32.mrf.mxu0
      %v1112 = vadd.f32 0.0, %v1111
      %v1113 = vpop.f32.mrf.mxu0
      %1114 = vdwg.mxu0
      %v1115 = vadd.f32 %v1083, %v1112
      %vm1116 = vmand %vm1084, %vm233
      %v1117 = vsel %vm1116, 1, 0
      %v1118 = vperm.slane %v1117, 0
      %vm1119 = vcmp.eq.s32.totalorder %v1118, 1
      %1120 = vrot.lane.b32.xlu0 %v221, 95
      %v1121 = vpop.permute.xlu0 %1120
      %v1123 = vsel %vm1119, %v1121, 0.0
      %s1124 = scalar_lea.vmem %s1, 116
      %v1125 = vld [vmem:[%s1124] sm:$0xf]
      %v1126 = vpack.c.bf16 %v1123, %v1123
      %v1128 = vsel %vm246, %v1125, 0
      %v1131 = vsel %vm250, %v1126, 0
      %1133 = vmatpush.bf16.msra.mxu0 0
      %1134 = vmatpush.bf16.msra.mxu0 0
      %1135 = vmatpush.bf16.msra.mxu0 0
      %1136 = vmatpush.bf16.msra.mxu0 0
      %1137 = vmatpush.bf16.msra.mxu0 0
      %1138 = vmatpush.bf16.msra.mxu0 0
      %1139 = vmatpush.bf16.msra.mxu0 0
      %1140 = vmatpush.bf16.msra.mxu0 %v1131
      %1141 = vmatmul.bf16.gmra.mxu0 %v1128
      %v1142 = vpop.f32.mrf.mxu0
      %v1143 = vadd.f32 0.0, %v1142
      %v1144 = vpop.f32.mrf.mxu0
      %1145 = vdwg.mxu0
      %v1146 = vadd.f32 %v1115, %v1143
      %vm1147 = vmand %vm1084, %vm286
      %v1148 = vsel %vm1147, 1, 0
      %v1149 = vperm.slane %v1148, 0
      %vm1150 = vcmp.eq.s32.totalorder %v1149, 1
      %1151 = vrot.lane.b32.xlu0 %v221, 94
      %v1152 = vpop.permute.xlu0 %1151
      %v1154 = vsel %vm1150, %v1152, 0.0
      %s1155 = scalar_lea.vmem %s1, 120
      %v1156 = vld [vmem:[%s1155] sm:$0xf]
      %v1157 = vpack.c.bf16 %v1154, %v1154
      %v1159 = vsel %vm246, %v1156, 0
      %v1162 = vsel %vm250, %v1157, 0
      %1164 = vmatpush.bf16.msra.mxu0 0
      %1165 = vmatpush.bf16.msra.mxu0 0
      %1166 = vmatpush.bf16.msra.mxu0 0
      %1167 = vmatpush.bf16.msra.mxu0 0
      %1168 = vmatpush.bf16.msra.mxu0 0
      %1169 = vmatpush.bf16.msra.mxu0 0
      %1170 = vmatpush.bf16.msra.mxu0 0
      %1171 = vmatpush.bf16.msra.mxu0 %v1162
      %1172 = vmatmul.bf16.gmra.mxu0 %v1159
      %v1173 = vpop.f32.mrf.mxu0
      %v1174 = vadd.f32 0.0, %v1173
      %v1175 = vpop.f32.mrf.mxu0
      %1176 = vdwg.mxu0
      %v1177 = vadd.f32 %v1146, %v1174
      %v1178 = vsel %vm1084, 1, 0
      %v1179 = vperm.slane %v1178, 0
      %vm1180 = vcmp.eq.s32.totalorder %v1179, 1
      %1181 = vrot.lane.b32.xlu0 %v221, 93
      %v1182 = vpop.permute.xlu0 %1181
      %v1184 = vsel %vm1180, %v1182, 0.0
      %s1185 = scalar_lea.vmem %s1, 124
      %v1186 = vld [vmem:[%s1185] sm:$0xf]
      %v1187 = vpack.c.bf16 %v1184, %v1184
      %v1189 = vsel %vm246, %v1186, 0
      %v1192 = vsel %vm250, %v1187, 0
      %1194 = vmatpush.bf16.msra.mxu0 0
      %1195 = vmatpush.bf16.msra.mxu0 0
      %1196 = vmatpush.bf16.msra.mxu0 0
      %1197 = vmatpush.bf16.msra.mxu0 0
      %1198 = vmatpush.bf16.msra.mxu0 0
      %1199 = vmatpush.bf16.msra.mxu0 0
      %1200 = vmatpush.bf16.msra.mxu0 0
      %1201 = vmatpush.bf16.msra.mxu0 %v1192
      %1202 = vmatmul.bf16.gmra.mxu0 %v1189
      %v1203 = vpop.f32.mrf.mxu0
      %v1204 = vadd.f32 0.0, %v1203
      %v1205 = vpop.f32.mrf.mxu0
      %1206 = vdwg.mxu0
      %v1207 = vadd.f32 %v1177, %v1204
      %vm1208 = vmand %vm1084, %vm348
      %v1209 = vsel %vm1208, 1, 0
      %v1210 = vperm.slane %v1209, 0
      %vm1211 = vcmp.eq.s32.totalorder %v1210, 1
      %1212 = vrot.lane.b32.xlu0 %v221, 92
      %v1213 = vpop.permute.xlu0 %1212
      %v1215 = vsel %vm1211, %v1213, 0.0
      %s1216 = scalar_lea.vmem %s1, 128
      %v1217 = vld [vmem:[%s1216] sm:$0xf]
      %v1218 = vpack.c.bf16 %v1215, %v1215
      %v1220 = vsel %vm246, %v1217, 0
      %v1223 = vsel %vm250, %v1218, 0
      %1225 = vmatpush.bf16.msra.mxu0 0
      %1226 = vmatpush.bf16.msra.mxu0 0
      %1227 = vmatpush.bf16.msra.mxu0 0
      %1228 = vmatpush.bf16.msra.mxu0 0
      %1229 = vmatpush.bf16.msra.mxu0 0
      %1230 = vmatpush.bf16.msra.mxu0 0
      %1231 = vmatpush.bf16.msra.mxu0 0
      %1232 = vmatpush.bf16.msra.mxu0 %v1223
      %1233 = vmatmul.bf16.gmra.mxu0 %v1220
      %v1234 = vpop.f32.mrf.mxu0
      %v1235 = vadd.f32 0.0, %v1234
      %v1236 = vpop.f32.mrf.mxu0
      %1237 = vdwg.mxu0
      %v1238 = vadd.f32 %v1207, %v1235
      %vm1239 = vmand %vm1084, %vm380
      %v1240 = vsel %vm1239, 1, 0
      %v1241 = vperm.slane %v1240, 0
      %vm1242 = vcmp.eq.s32.totalorder %v1241, 1
      %1243 = vrot.lane.b32.xlu0 %v221, 91
      %v1244 = vpop.permute.xlu0 %1243
      %v1246 = vsel %vm1242, %v1244, 0.0
      %s1247 = scalar_lea.vmem %s1, 132
      %v1248 = vld [vmem:[%s1247] sm:$0xf]
      %v1249 = vpack.c.bf16 %v1246, %v1246
      %v1251 = vsel %vm246, %v1248, 0
      %v1254 = vsel %vm250, %v1249, 0
      %1256 = vmatpush.bf16.msra.mxu0 0
      %1257 = vmatpush.bf16.msra.mxu0 0
      %1258 = vmatpush.bf16.msra.mxu0 0
      %1259 = vmatpush.bf16.msra.mxu0 0
      %1260 = vmatpush.bf16.msra.mxu0 0
      %1261 = vmatpush.bf16.msra.mxu0 0
      %1262 = vmatpush.bf16.msra.mxu0 0
      %1263 = vmatpush.bf16.msra.mxu0 %v1254
      %1264 = vmatmul.bf16.gmra.mxu0 %v1251
      %v1265 = vpop.f32.mrf.mxu0
      %v1266 = vadd.f32 0.0, %v1265
      %v1267 = vpop.f32.mrf.mxu0
      %1268 = vdwg.mxu0
      %v1269 = vadd.f32 %v1238, %v1266
      %vm1270 = vmand %vm1084, %vm412
      %v1271 = vsel %vm1270, 1, 0
      %v1272 = vperm.slane %v1271, 0
      %vm1273 = vcmp.eq.s32.totalorder %v1272, 1
      %1274 = vrot.lane.b32.xlu0 %v221, 90
      %v1275 = vpop.permute.xlu0 %1274
      %v1277 = vsel %vm1273, %v1275, 0.0
      %s1278 = scalar_lea.vmem %s1, 136
      %v1279 = vld [vmem:[%s1278] sm:$0xf]
      %v1280 = vpack.c.bf16 %v1277, %v1277
      %v1282 = vsel %vm246, %v1279, 0
      %v1285 = vsel %vm250, %v1280, 0
      %1287 = vmatpush.bf16.msra.mxu0 0
      %1288 = vmatpush.bf16.msra.mxu0 0
      %1289 = vmatpush.bf16.msra.mxu0 0
      %1290 = vmatpush.bf16.msra.mxu0 0
      %1291 = vmatpush.bf16.msra.mxu0 0
      %1292 = vmatpush.bf16.msra.mxu0 0
      %1293 = vmatpush.bf16.msra.mxu0 0
      %1294 = vmatpush.bf16.msra.mxu0 %v1285
      %1295 = vmatmul.bf16.gmra.mxu0 %v1282
      %v1296 = vpop.f32.mrf.mxu0
      %v1297 = vadd.f32 0.0, %v1296
      %v1298 = vpop.f32.mrf.mxu0
      %1299 = vdwg.mxu0
      %v1300 = vadd.f32 %v1269, %v1297
      %vm1301 = vcmp.lt.s32.totalorder %v222, 6
      %vm1302 = vmand %vm1301, %vm225
      %v1303 = vsel %vm1302, 1, 0
      %v1304 = vperm.slane %v1303, 0
      %vm1305 = vcmp.eq.s32.totalorder %v1304, 1
      %1306 = vrot.lane.b32.xlu0 %v221, 88
      %v1307 = vpop.permute.xlu0 %1306
      %v1309 = vsel %vm1305, %v1307, 0.0
      %s1310 = scalar_lea.vmem %s1, 140
      %v1311 = vld [vmem:[%s1310] sm:$0xf]
      %v1312 = vpack.c.bf16 %v1309, %v1309
      %v1314 = vsel %vm246, %v1311, 0
      %v1317 = vsel %vm250, %v1312, 0
      %1319 = vmatpush.bf16.msra.mxu0 0
      %1320 = vmatpush.bf16.msra.mxu0 0
      %1321 = vmatpush.bf16.msra.mxu0 0
      %1322 = vmatpush.bf16.msra.mxu0 0
      %1323 = vmatpush.bf16.msra.mxu0 0
      %1324 = vmatpush.bf16.msra.mxu0 0
      %1325 = vmatpush.bf16.msra.mxu0 0
      %1326 = vmatpush.bf16.msra.mxu0 %v1317
      %1327 = vmatmul.bf16.gmra.mxu0 %v1314
      %v1328 = vpop.f32.mrf.mxu0
      %v1329 = vadd.f32 0.0, %v1328
      %v1330 = vpop.f32.mrf.mxu0
      %1331 = vdwg.mxu0
      %v1332 = vadd.f32 %v1300, %v1329
      %vm1333 = vmand %vm1301, %vm233
      %v1334 = vsel %vm1333, 1, 0
      %v1335 = vperm.slane %v1334, 0
      %vm1336 = vcmp.eq.s32.totalorder %v1335, 1
      %1337 = vrot.lane.b32.xlu0 %v221, 87
      %v1338 = vpop.permute.xlu0 %1337
      %v1340 = vsel %vm1336, %v1338, 0.0
      %s1341 = scalar_lea.vmem %s1, 144
      %v1342 = vld [vmem:[%s1341] sm:$0xf]
      %v1343 = vpack.c.bf16 %v1340, %v1340
      %v1345 = vsel %vm246, %v1342, 0
      %v1348 = vsel %vm250, %v1343, 0
      %1350 = vmatpush.bf16.msra.mxu0 0
      %1351 = vmatpush.bf16.msra.mxu0 0
      %1352 = vmatpush.bf16.msra.mxu0 0
      %1353 = vmatpush.bf16.msra.mxu0 0
      %1354 = vmatpush.bf16.msra.mxu0 0
      %1355 = vmatpush.bf16.msra.mxu0 0
      %1356 = vmatpush.bf16.msra.mxu0 0
      %1357 = vmatpush.bf16.msra.mxu0 %v1348
      %1358 = vmatmul.bf16.gmra.mxu0 %v1345
      %v1359 = vpop.f32.mrf.mxu0
      %v1360 = vadd.f32 0.0, %v1359
      %v1361 = vpop.f32.mrf.mxu0
      %1362 = vdwg.mxu0
      %v1363 = vadd.f32 %v1332, %v1360
      %vm1364 = vmand %vm1301, %vm286
      %v1365 = vsel %vm1364, 1, 0
      %v1366 = vperm.slane %v1365, 0
      %vm1367 = vcmp.eq.s32.totalorder %v1366, 1
      %1368 = vrot.lane.b32.xlu0 %v221, 86
      %v1369 = vpop.permute.xlu0 %1368
      %v1371 = vsel %vm1367, %v1369, 0.0
      %s1372 = scalar_lea.vmem %s1, 148
      %v1373 = vld [vmem:[%s1372] sm:$0xf]
      %v1374 = vpack.c.bf16 %v1371, %v1371
      %v1376 = vsel %vm246, %v1373, 0
      %v1379 = vsel %vm250, %v1374, 0
      %1381 = vmatpush.bf16.msra.mxu0 0
      %1382 = vmatpush.bf16.msra.mxu0 0
      %1383 = vmatpush.bf16.msra.mxu0 0
      %1384 = vmatpush.bf16.msra.mxu0 0
      %1385 = vmatpush.bf16.msra.mxu0 0
      %1386 = vmatpush.bf16.msra.mxu0 0
      %1387 = vmatpush.bf16.msra.mxu0 0
      %1388 = vmatpush.bf16.msra.mxu0 %v1379
      %1389 = vmatmul.bf16.gmra.mxu0 %v1376
      %v1390 = vpop.f32.mrf.mxu0
      %v1391 = vadd.f32 0.0, %v1390
      %v1392 = vpop.f32.mrf.mxu0
      %1393 = vdwg.mxu0
      %v1394 = vadd.f32 %v1363, %v1391
      %v1395 = vsel %vm1301, 1, 0
      %v1396 = vperm.slane %v1395, 0
      %vm1397 = vcmp.eq.s32.totalorder %v1396, 1
      %1398 = vrot.lane.b32.xlu0 %v221, 85
      %v1399 = vpop.permute.xlu0 %1398
      %v1401 = vsel %vm1397, %v1399, 0.0
      %s1402 = scalar_lea.vmem %s1, 152
      %v1403 = vld [vmem:[%s1402] sm:$0xf]
      %v1404 = vpack.c.bf16 %v1401, %v1401
      %v1406 = vsel %vm246, %v1403, 0
      %v1409 = vsel %vm250, %v1404, 0
      %1411 = vmatpush.bf16.msra.mxu0 0
      %1412 = vmatpush.bf16.msra.mxu0 0
      %1413 = vmatpush.bf16.msra.mxu0 0
      %1414 = vmatpush.bf16.msra.mxu0 0
      %1415 = vmatpush.bf16.msra.mxu0 0
      %1416 = vmatpush.bf16.msra.mxu0 0
      %1417 = vmatpush.bf16.msra.mxu0 0
      %1418 = vmatpush.bf16.msra.mxu0 %v1409
      %1419 = vmatmul.bf16.gmra.mxu0 %v1406
      %v1420 = vpop.f32.mrf.mxu0
      %v1421 = vadd.f32 0.0, %v1420
      %v1422 = vpop.f32.mrf.mxu0
      %1423 = vdwg.mxu0
      %v1424 = vadd.f32 %v1394, %v1421
      %vm1425 = vmand %vm1301, %vm348
      %v1426 = vsel %vm1425, 1, 0
      %v1427 = vperm.slane %v1426, 0
      %vm1428 = vcmp.eq.s32.totalorder %v1427, 1
      %1429 = vrot.lane.b32.xlu0 %v221, 84
      %v1430 = vpop.permute.xlu0 %1429
      %v1432 = vsel %vm1428, %v1430, 0.0
      %s1433 = scalar_lea.vmem %s1, 156
      %v1434 = vld [vmem:[%s1433] sm:$0xf]
      %v1435 = vpack.c.bf16 %v1432, %v1432
      %v1437 = vsel %vm246, %v1434, 0
      %v1440 = vsel %vm250, %v1435, 0
      %1442 = vmatpush.bf16.msra.mxu0 0
      %1443 = vmatpush.bf16.msra.mxu0 0
      %1444 = vmatpush.bf16.msra.mxu0 0
      %1445 = vmatpush.bf16.msra.mxu0 0
      %1446 = vmatpush.bf16.msra.mxu0 0
      %1447 = vmatpush.bf16.msra.mxu0 0
      %1448 = vmatpush.bf16.msra.mxu0 0
      %1449 = vmatpush.bf16.msra.mxu0 %v1440
      %1450 = vmatmul.bf16.gmra.mxu0 %v1437
      %v1451 = vpop.f32.mrf.mxu0
      %v1452 = vadd.f32 0.0, %v1451
      %v1453 = vpop.f32.mrf.mxu0
      %1454 = vdwg.mxu0
      %v1455 = vadd.f32 %v1424, %v1452
      %vm1456 = vmand %vm1301, %vm380
      %v1457 = vsel %vm1456, 1, 0
      %v1458 = vperm.slane %v1457, 0
      %vm1459 = vcmp.eq.s32.totalorder %v1458, 1
      %1460 = vrot.lane.b32.xlu0 %v221, 83
      %v1461 = vpop.permute.xlu0 %1460
      %v1463 = vsel %vm1459, %v1461, 0.0
      %s1464 = scalar_lea.vmem %s1, 160
      %v1465 = vld [vmem:[%s1464] sm:$0xf]
      %v1466 = vpack.c.bf16 %v1463, %v1463
      %v1468 = vsel %vm246, %v1465, 0
      %v1471 = vsel %vm250, %v1466, 0
      %1473 = vmatpush.bf16.msra.mxu0 0
      %1474 = vmatpush.bf16.msra.mxu0 0
      %1475 = vmatpush.bf16.msra.mxu0 0
      %1476 = vmatpush.bf16.msra.mxu0 0
      %1477 = vmatpush.bf16.msra.mxu0 0
      %1478 = vmatpush.bf16.msra.mxu0 0
      %1479 = vmatpush.bf16.msra.mxu0 0
      %1480 = vmatpush.bf16.msra.mxu0 %v1471
      %1481 = vmatmul.bf16.gmra.mxu0 %v1468
      %v1482 = vpop.f32.mrf.mxu0
      %v1483 = vadd.f32 0.0, %v1482
      %v1484 = vpop.f32.mrf.mxu0
      %1485 = vdwg.mxu0
      %v1486 = vadd.f32 %v1455, %v1483
      %vm1487 = vmand %vm1301, %vm412
      %v1488 = vsel %vm1487, 1, 0
      %v1489 = vperm.slane %v1488, 0
      %vm1490 = vcmp.eq.s32.totalorder %v1489, 1
      %1491 = vrot.lane.b32.xlu0 %v221, 82
      %v1492 = vpop.permute.xlu0 %1491
      %v1494 = vsel %vm1490, %v1492, 0.0
      %s1495 = scalar_lea.vmem %s1, 164
      %v1496 = vld [vmem:[%s1495] sm:$0xf]
      %v1497 = vpack.c.bf16 %v1494, %v1494
      %v1499 = vsel %vm246, %v1496, 0
      %v1502 = vsel %vm250, %v1497, 0
      %1504 = vmatpush.bf16.msra.mxu0 0
      %1505 = vmatpush.bf16.msra.mxu0 0
      %1506 = vmatpush.bf16.msra.mxu0 0
      %1507 = vmatpush.bf16.msra.mxu0 0
      %1508 = vmatpush.bf16.msra.mxu0 0
      %1509 = vmatpush.bf16.msra.mxu0 0
      %1510 = vmatpush.bf16.msra.mxu0 0
      %1511 = vmatpush.bf16.msra.mxu0 %v1502
      %1512 = vmatmul.bf16.gmra.mxu0 %v1499
      %v1513 = vpop.f32.mrf.mxu0
      %v1514 = vadd.f32 0.0, %v1513
      %v1515 = vpop.f32.mrf.mxu0
      %1516 = vdwg.mxu0
      %v1517 = vadd.f32 %v1486, %v1514
      %vm1518 = vcmp.lt.s32.totalorder %v222, 5
      %vm1519 = vmand %vm1518, %vm225
      %v1520 = vsel %vm1519, 1, 0
      %v1521 = vperm.slane %v1520, 0
      %vm1522 = vcmp.eq.s32.totalorder %v1521, 1
      %1523 = vrot.lane.b32.xlu0 %v221, 80
      %v1524 = vpop.permute.xlu0 %1523
      %v1526 = vsel %vm1522, %v1524, 0.0
      %s1527 = scalar_lea.vmem %s1, 168
      %v1528 = vld [vmem:[%s1527] sm:$0xf]
      %v1529 = vpack.c.bf16 %v1526, %v1526
      %v1531 = vsel %vm246, %v1528, 0
      %v1534 = vsel %vm250, %v1529, 0
      %1536 = vmatpush.bf16.msra.mxu0 0
      %1537 = vmatpush.bf16.msra.mxu0 0
      %1538 = vmatpush.bf16.msra.mxu0 0
      %1539 = vmatpush.bf16.msra.mxu0 0
      %1540 = vmatpush.bf16.msra.mxu0 0
      %1541 = vmatpush.bf16.msra.mxu0 0
      %1542 = vmatpush.bf16.msra.mxu0 0
      %1543 = vmatpush.bf16.msra.mxu0 %v1534
      %1544 = vmatmul.bf16.gmra.mxu0 %v1531
      %v1545 = vpop.f32.mrf.mxu0
      %v1546 = vadd.f32 0.0, %v1545
      %v1547 = vpop.f32.mrf.mxu0
      %1548 = vdwg.mxu0
      %v1549 = vadd.f32 %v1517, %v1546
      %vm1550 = vmand %vm1518, %vm233
      %v1551 = vsel %vm1550, 1, 0
      %v1552 = vperm.slane %v1551, 0
      %vm1553 = vcmp.eq.s32.totalorder %v1552, 1
      %1554 = vrot.lane.b32.xlu0 %v221, 79
      %v1555 = vpop.permute.xlu0 %1554
      %v1557 = vsel %vm1553, %v1555, 0.0
      %s1558 = scalar_lea.vmem %s1, 172
      %v1559 = vld [vmem:[%s1558] sm:$0xf]
      %v1560 = vpack.c.bf16 %v1557, %v1557
      %v1562 = vsel %vm246, %v1559, 0
      %v1565 = vsel %vm250, %v1560, 0
      %1567 = vmatpush.bf16.msra.mxu0 0
      %1568 = vmatpush.bf16.msra.mxu0 0
      %1569 = vmatpush.bf16.msra.mxu0 0
      %1570 = vmatpush.bf16.msra.mxu0 0
      %1571 = vmatpush.bf16.msra.mxu0 0
      %1572 = vmatpush.bf16.msra.mxu0 0
      %1573 = vmatpush.bf16.msra.mxu0 0
      %1574 = vmatpush.bf16.msra.mxu0 %v1565
      %1575 = vmatmul.bf16.gmra.mxu0 %v1562
      %v1576 = vpop.f32.mrf.mxu0
      %v1577 = vadd.f32 0.0, %v1576
      %v1578 = vpop.f32.mrf.mxu0
      %1579 = vdwg.mxu0
      %v1580 = vadd.f32 %v1549, %v1577
      %vm1581 = vmand %vm1518, %vm286
      %v1582 = vsel %vm1581, 1, 0
      %v1583 = vperm.slane %v1582, 0
      %vm1584 = vcmp.eq.s32.totalorder %v1583, 1
      %1585 = vrot.lane.b32.xlu0 %v221, 78
      %v1586 = vpop.permute.xlu0 %1585
      %v1588 = vsel %vm1584, %v1586, 0.0
      %s1589 = scalar_lea.vmem %s1, 176
      %v1590 = vld [vmem:[%s1589] sm:$0xf]
      %v1591 = vpack.c.bf16 %v1588, %v1588
      %v1593 = vsel %vm246, %v1590, 0
      %v1596 = vsel %vm250, %v1591, 0
      %1598 = vmatpush.bf16.msra.mxu0 0
      %1599 = vmatpush.bf16.msra.mxu0 0
      %1600 = vmatpush.bf16.msra.mxu0 0
      %1601 = vmatpush.bf16.msra.mxu0 0
      %1602 = vmatpush.bf16.msra.mxu0 0
      %1603 = vmatpush.bf16.msra.mxu0 0
      %1604 = vmatpush.bf16.msra.mxu0 0
      %1605 = vmatpush.bf16.msra.mxu0 %v1596
      %1606 = vmatmul.bf16.gmra.mxu0 %v1593
      %v1607 = vpop.f32.mrf.mxu0
      %v1608 = vadd.f32 0.0, %v1607
      %v1609 = vpop.f32.mrf.mxu0
      %1610 = vdwg.mxu0
      %v1611 = vadd.f32 %v1580, %v1608
      %v1612 = vsel %vm1518, 1, 0
      %v1613 = vperm.slane %v1612, 0
      %vm1614 = vcmp.eq.s32.totalorder %v1613, 1
      %1615 = vrot.lane.b32.xlu0 %v221, 77
      %v1616 = vpop.permute.xlu0 %1615
      %v1618 = vsel %vm1614, %v1616, 0.0
      %s1619 = scalar_lea.vmem %s1, 180
      %v1620 = vld [vmem:[%s1619] sm:$0xf]
      %v1621 = vpack.c.bf16 %v1618, %v1618
      %v1623 = vsel %vm246, %v1620, 0
      %v1626 = vsel %vm250, %v1621, 0
      %1628 = vmatpush.bf16.msra.mxu0 0
      %1629 = vmatpush.bf16.msra.mxu0 0
      %1630 = vmatpush.bf16.msra.mxu0 0
      %1631 = vmatpush.bf16.msra.mxu0 0
      %1632 = vmatpush.bf16.msra.mxu0 0
      %1633 = vmatpush.bf16.msra.mxu0 0
      %1634 = vmatpush.bf16.msra.mxu0 0
      %1635 = vmatpush.bf16.msra.mxu0 %v1626
      %1636 = vmatmul.bf16.gmra.mxu0 %v1623
      %v1637 = vpop.f32.mrf.mxu0
      %v1638 = vadd.f32 0.0, %v1637
      %v1639 = vpop.f32.mrf.mxu0
      %1640 = vdwg.mxu0
      %v1641 = vadd.f32 %v1611, %v1638
      %vm1642 = vmand %vm1518, %vm348
      %v1643 = vsel %vm1642, 1, 0
      %v1644 = vperm.slane %v1643, 0
      %vm1645 = vcmp.eq.s32.totalorder %v1644, 1
      %1646 = vrot.lane.b32.xlu0 %v221, 76
      %v1647 = vpop.permute.xlu0 %1646
      %v1649 = vsel %vm1645, %v1647, 0.0
      %s1650 = scalar_lea.vmem %s1, 184
      %v1651 = vld [vmem:[%s1650] sm:$0xf]
      %v1652 = vpack.c.bf16 %v1649, %v1649
      %v1654 = vsel %vm246, %v1651, 0
      %v1657 = vsel %vm250, %v1652, 0
      %1659 = vmatpush.bf16.msra.mxu0 0
      %1660 = vmatpush.bf16.msra.mxu0 0
      %1661 = vmatpush.bf16.msra.mxu0 0
      %1662 = vmatpush.bf16.msra.mxu0 0
      %1663 = vmatpush.bf16.msra.mxu0 0
      %1664 = vmatpush.bf16.msra.mxu0 0
      %1665 = vmatpush.bf16.msra.mxu0 0
      %1666 = vmatpush.bf16.msra.mxu0 %v1657
      %1667 = vmatmul.bf16.gmra.mxu0 %v1654
      %v1668 = vpop.f32.mrf.mxu0
      %v1669 = vadd.f32 0.0, %v1668
      %v1670 = vpop.f32.mrf.mxu0
      %1671 = vdwg.mxu0
      %v1672 = vadd.f32 %v1641, %v1669
      %vm1673 = vmand %vm1518, %vm380
      %v1674 = vsel %vm1673, 1, 0
      %v1675 = vperm.slane %v1674, 0
      %vm1676 = vcmp.eq.s32.totalorder %v1675, 1
      %1677 = vrot.lane.b32.xlu0 %v221, 75
      %v1678 = vpop.permute.xlu0 %1677
      %v1680 = vsel %vm1676, %v1678, 0.0
      %s1681 = scalar_lea.vmem %s1, 188
      %v1682 = vld [vmem:[%s1681] sm:$0xf]
      %v1683 = vpack.c.bf16 %v1680, %v1680
      %v1685 = vsel %vm246, %v1682, 0
      %v1688 = vsel %vm250, %v1683, 0
      %1690 = vmatpush.bf16.msra.mxu0 0
      %1691 = vmatpush.bf16.msra.mxu0 0
      %1692 = vmatpush.bf16.msra.mxu0 0
      %1693 = vmatpush.bf16.msra.mxu0 0
      %1694 = vmatpush.bf16.msra.mxu0 0
      %1695 = vmatpush.bf16.msra.mxu0 0
      %1696 = vmatpush.bf16.msra.mxu0 0
      %1697 = vmatpush.bf16.msra.mxu0 %v1688
      %1698 = vmatmul.bf16.gmra.mxu0 %v1685
      %v1699 = vpop.f32.mrf.mxu0
      %v1700 = vadd.f32 0.0, %v1699
      %v1701 = vpop.f32.mrf.mxu0
      %1702 = vdwg.mxu0
      %v1703 = vadd.f32 %v1672, %v1700
      %vm1704 = vmand %vm1518, %vm412
      %v1705 = vsel %vm1704, 1, 0
      %v1706 = vperm.slane %v1705, 0
      %vm1707 = vcmp.eq.s32.totalorder %v1706, 1
      %1708 = vrot.lane.b32.xlu0 %v221, 74
      %v1709 = vpop.permute.xlu0 %1708
      %v1711 = vsel %vm1707, %v1709, 0.0
      %s1712 = scalar_lea.vmem %s1, 192
      %v1713 = vld [vmem:[%s1712] sm:$0xf]
      %v1714 = vpack.c.bf16 %v1711, %v1711
      %v1716 = vsel %vm246, %v1713, 0
      %v1719 = vsel %vm250, %v1714, 0
      %1721 = vmatpush.bf16.msra.mxu0 0
      %1722 = vmatpush.bf16.msra.mxu0 0
      %1723 = vmatpush.bf16.msra.mxu0 0
      %1724 = vmatpush.bf16.msra.mxu0 0
      %1725 = vmatpush.bf16.msra.mxu0 0
      %1726 = vmatpush.bf16.msra.mxu0 0
      %1727 = vmatpush.bf16.msra.mxu0 0
      %1728 = vmatpush.bf16.msra.mxu0 %v1719
      %1729 = vmatmul.bf16.gmra.mxu0 %v1716
      %v1730 = vpop.f32.mrf.mxu0
      %v1731 = vadd.f32 0.0, %v1730
      %v1732 = vpop.f32.mrf.mxu0
      %1733 = vdwg.mxu0
      %v1734 = vadd.f32 %v1703, %v1731
      %v1735 = vld [vmem:[%s2] sm:$0xff]
      %1737 = vset.pattern.permute.xlu0 0
      %1738 = vperm.xlu0 %1737, %v1735
      %v1739 = vpop.permute.xlu0 %1738
      %v1741 = vadd.f32 %v1734, %v1739
      %v1742 = vmax.f32 %v1741, 0.0
      %vm1743 = vcmask 523264
      %1744 = vst.msk [vmem:[%s219] sm:$0xff] %vm1743, %v1742
      %p1745 = scmp.lt.s32.totalorder %s16, 1
      %s1746 = scalar_select %p1745, %s16, 1
      %s1747 = smul.addr %s1746, 8
      %s1748 = scalar_lea.vmem %s5, %s1747
      // Predicated region
      $region41: #{fpa_forward.12} parent=39 // pred_check
        %p1749 = pneg %p144
      $region42: #{fpa_forward.12} parent=39 // pred_check_branch
        %1751 = sbr.rel (%p1749) target = $region44
      $region43: #{fpa_forward.12} parent=39 // pred_region
        _
      $region44: #{fpa_forward.12} parent=39 // pred_fallthru
        _
    $region40: #{fpa_forward.12} parent=5 // pred_fallthru
      _
    %p1752 = scmp.le.s32.totalorder 2, %s11
    // Predicated region
    $region45: #{fpa_forward.12} parent=5 // pred_check
      %p1753 = pneg %p1752
    $region46: #{fpa_forward.12} parent=5 // pred_check_branch
      %1755 = sbr.rel (%p1753) target = $region48
    $region47: #{fpa_forward.12} parent=5 // pred_region
      %s1756 = ssub.s32 %s11, 2
      // Predicated region
      $region49: #{fpa_forward.12} parent=47 // pred_check
        %p1757 = pneg %p150
      $region50: #{fpa_forward.12} parent=47 // pred_check_branch
        %1759 = sbr.rel (%p1757) target = $region52
      $region51: #{fpa_forward.12} parent=47 // pred_region
        %p1760 = scmp.lt.s32.totalorder %s17, 1
        %s1761 = scalar_select %p1760, %s17, 1
        %s1762 = smul.addr %s1761, 8
        %s1763 = scalar_lea.vmem %s5, %s1762
      $region52: #{fpa_forward.12} parent=47 // pred_fallthru
        _
    $region48: #{fpa_forward.12} parent=5 // pred_fallthru
      _
  $region6: #{fpa_forward.12} parent=0 // loop_footer
    %s15 = sadd.s32 1, %s11
  $region7: #{fpa_forward.12} parent=0 // loop_footer_branch
    %10 = sbr.rel target = $region3
  $region8: #{fpa_forward.12} parent=0 // loop_exit
    _

// kernel: fpa_forward.10
$region0: #{fpa_forward.10}
  #allocation0 [shape = 'u32[]', space=smem, size = 0x4, offset = 0x4, fixed_abs, tag = 'smem constant byte address 0x4 - core index']
  #allocation1 [shape = 'u32[72,128]{1,0:T(1,128)}', space=vmem, size = 0x9000, scoped, tag = 'internal scratch']
  %s0 = inlined_call_operand.vmem [shape: f32[2,8,256], index: 0, kind: input, shape index: {}]
  %s1 = inlined_call_operand.vmem [shape: bf16[8,8], index: 1, kind: input, shape index: {}]
  %s2 = inlined_call_operand.vmem [shape: f32[8,1], index: 2, kind: input, shape index: {}]
  %s3 = inlined_call_operand.vmem [shape: f32[2,8,1], index: 3, kind: output, shape index: {}]
  %s4 = sld [smem:[#allocation0]]
  $region45: #{fpa_forward.10} parent=0
    _
  %s6 = ssub.s32 1, %s4
  %s7 = scalar_select 0, %s6, %s4
  loop: start=0, step=1, limit=4
  $region2: #{fpa_forward.10} parent=0 // loop_pre_header
    _
  $region3: #{fpa_forward.10} parent=0 // loop_header
    %s9 = sphi 0, %s13
    %p10 = scmp.ge.s32.totalorder %s9, 4
    %s19 = sphi 0, %s21
    %s22 = sphi 0, %s19
    %s23 = sphi 0, %s22
    %s39 = sphi 0, %s23
    %s43 = sphi 0, %s43
    %s45 = sphi 0, %s43
    %s46 = sphi 0, %s45
    %s60 = sphi 0, %s46
    %s64 = sphi 0, %s64
    %s66 = sphi 0, %s64
    %s67 = sphi 0, %s66
    %s81 = sphi 0, %s67
    %s87 = sphi 0, %s89
    %s90 = sphi 0, %s87
    %s91 = sphi 0, %s90
    %s107 = sphi 0, %s91
  $region4: #{fpa_forward.10} parent=0 // loop_header_branch
    %12 = sbr.rel (%p10) target = $region8
  $region5: #{fpa_forward.10} parent=0 // loop_body
    %s14 = ssub.s32 %s9, 1
    %s15 = ssub.s32 %s9, 2
    %s16 = sadd.s32 %s9, 1
    %s17 = ssub.s32 %s9, %s16
    %p18 = scmp.eq.s32.totalorder %s17, 0
    %s20 = sadd.s32 %s19, 1
    %s21 = scalar_select %p18, %s19, %s20
    %p24 = pneg %p18
    %p25 = scmp.eq.s32.totalorder %s9, 1
    %p26 = por %p24, %p25
    %p27 = scmp.ne.s32.totalorder %s19, %s22
    %p28 = scmp.eq.s32.totalorder %s9, 0
    %p29 = por %p27, %p28
    %p30 = scmp.ne.s32.totalorder %s19, %s22
    %p31 = scmp.eq.s32.totalorder %s14, 1
    %p32 = por %p30, %p31
    %p33 = scmp.ne.s32.totalorder %s22, %s23
    %p34 = scmp.eq.s32.totalorder %s14, 0
    %p35 = por %p33, %p34
    %p36 = scmp.ne.s32.totalorder %s22, %s23
    %p37 = scmp.eq.s32.totalorder %s15, 1
    %p38 = por %p36, %p37
    %p40 = scmp.ne.s32.totalorder %s23, %s39
    %p41 = scmp.eq.s32.totalorder %s15, 0
    %p42 = por %p40, %p41
    %s44 = sadd.s32 %s43, 1
    %p47 = scmp.eq.s32.totalorder %s9, 1
    %p48 = scmp.ne.s32.totalorder %s43, %s45
    %p49 = scmp.eq.s32.totalorder %s9, 0
    %p50 = por %p48, %p49
    %p51 = scmp.ne.s32.totalorder %s43, %s45
    %p52 = scmp.eq.s32.totalorder %s14, 1
    %p53 = por %p51, %p52
    %p54 = scmp.ne.s32.totalorder %s45, %s46
    %p55 = scmp.eq.s32.totalorder %s14, 0
    %p56 = por %p54, %p55
    %p57 = scmp.ne.s32.totalorder %s45, %s46
    %p58 = scmp.eq.s32.totalorder %s15, 1
    %p59 = por %p57, %p58
    %p61 = scmp.ne.s32.totalorder %s46, %s60
    %p62 = scmp.eq.s32.totalorder %s15, 0
    %p63 = por %p61, %p62
    %s65 = sadd.s32 %s64, 1
    %p68 = scmp.eq.s32.totalorder %s9, 1
    %p69 = scmp.ne.s32.totalorder %s64, %s66
    %p70 = scmp.eq.s32.totalorder %s9, 0
    %p71 = por %p69, %p70
    %p72 = scmp.ne.s32.totalorder %s64, %s66
    %p73 = scmp.eq.s32.totalorder %s14, 1
    %p74 = por %p72, %p73
    %p75 = scmp.ne.s32.totalorder %s66, %s67
    %p76 = scmp.eq.s32.totalorder %s14, 0
    %p77 = por %p75, %p76
    %p78 = scmp.ne.s32.totalorder %s66, %s67
    %p79 = scmp.eq.s32.totalorder %s15, 1
    %p80 = por %p78, %p79
    %p82 = scmp.ne.s32.totalorder %s67, %s81
    %p83 = scmp.eq.s32.totalorder %s15, 0
    %p84 = por %p82, %p83
    %s85 = ssub.s32 %s9, %s16
    %p86 = scmp.eq.s32.totalorder %s85, 0
    %s88 = sadd.s32 %s87, 1
    %s89 = scalar_select %p86, %s87, %s88
    %p92 = pneg %p86
    %p93 = scmp.eq.s32.totalorder %s9, 1
    %p94 = por %p92, %p93
    %p95 = scmp.ne.s32.totalorder %s87, %s90
    %p96 = scmp.eq.s32.totalorder %s9, 0
    %p97 = por %p95, %p96
    %p98 = scmp.ne.s32.totalorder %s87, %s90
    %p99 = scmp.eq.s32.totalorder %s14, 1
    %p100 = por %p98, %p99
    %p101 = scmp.ne.s32.totalorder %s90, %s91
    %p102 = scmp.eq.s32.totalorder %s14, 0
    %p103 = por %p101, %p102
    %p104 = scmp.ne.s32.totalorder %s90, %s91
    %p105 = scmp.eq.s32.totalorder %s15, 1
    %p106 = por %p104, %p105
    %p108 = scmp.ne.s32.totalorder %s91, %s107
    %p109 = scmp.eq.s32.totalorder %s15, 0
    %p110 = por %p108, %p109
    %p111 = scmp.le.s32.totalorder 1, %s9
    %p112 = scmp.lt.s32.totalorder %s9, 3
    %p113 = pnand %p111, %p112
    %p114 = pneg %p113
    // Predicated region
    $region9: #{fpa_forward.10} parent=5 // pred_check
      _
    $region10: #{fpa_forward.10} parent=5 // pred_check_branch
      %116 = sbr.rel (%p113) target = $region12
    $region11: #{fpa_forward.10} parent=5 // pred_region
      %s117 = ssub.s32 %s9, 1
      // Predicated region
      $region13: #{fpa_forward.10} parent=11 // pred_check
        %p118 = pneg %p56
      $region14: #{fpa_forward.10} parent=11 // pred_check_branch
        %120 = sbr.rel (%p118) target = $region16
      $region15: #{fpa_forward.10} parent=11 // pred_region
        _
      $region16: #{fpa_forward.10} parent=11 // pred_fallthru
        _
      // Predicated region
      $region17: #{fpa_forward.10} parent=11 // pred_check
        %p121 = pneg %p77
      $region18: #{fpa_forward.10} parent=11 // pred_check_branch
        %123 = sbr.rel (%p121) target = $region20
      $region19: #{fpa_forward.10} parent=11 // pred_region
        _
      $region20: #{fpa_forward.10} parent=11 // pred_fallthru
        _
    $region12: #{fpa_forward.10} parent=5 // pred_fallthru
      _
    %p124 = scmp.lt.s32.totalorder %s9, 2
    // Predicated region
    $region21: #{fpa_forward.10} parent=5 // pred_check
      %p125 = pneg %p124
    $region22: #{fpa_forward.10} parent=5 // pred_check_branch
      %127 = sbr.rel (%p125) target = $region24
    $region23: #{fpa_forward.10} parent=5 // pred_region
      // Predicated region
      $region25: #{fpa_forward.10} parent=23 // pred_check
        %p128 = pneg %p29
      $region26: #{fpa_forward.10} parent=23 // pred_check_branch
        %130 = sbr.rel (%p128) target = $region28
      $region27: #{fpa_forward.10} parent=23 // pred_region
        %p131 = scmp.lt.s32.totalorder %s9, 1
        %s132 = scalar_select %p131, %s9, 1
        %s133 = smul.addr %s132, 2
        %s134 = smul.addr %s133, 8
        %s135 = scalar_lea.vmem %s0, %s134
      $region28: #{fpa_forward.10} parent=23 // pred_fallthru
        _
    $region24: #{fpa_forward.10} parent=5 // pred_fallthru
      _
    %p136 = scmp.le.s32.totalorder 1, %s9
    %p137 = scmp.lt.s32.totalorder %s9, 3
    %p138 = pnand %p136, %p137
    %p139 = pneg %p138
    // Predicated region
    $region29: #{fpa_forward.10} parent=5 // pred_check
      _
    $region30: #{fpa_forward.10} parent=5 // pred_check_branch
      %141 = sbr.rel (%p138) target = $region32
    $region31: #{fpa_forward.10} parent=5 // pred_region
      %s142 = ssub.s32 %s9, 1
      %p143 = scmp.lt.s32.totalorder %s14, 1
      %s144 = scalar_select %p143, %s14, 1
      %s145 = smul.addr %s144, 2
      %s146 = smul.addr %s145, 8
      %s147 = scalar_lea.vmem %s0, %s146
      %p148 = pneg %p35
      %p149 = pneg %p32
      %p150 = pneg %p56
      %p151 = pneg %p53
      %p152 = pneg %p77
      %p153 = pneg %p74
      %p154 = pneg %p103
      %p155 = pneg %p100
      %p156 = scmp.lt.s32.totalorder %s14, 1
      %s157 = scalar_select %p156, %s14, 1
      %s158 = smul.addr %s157, 8
      %s159 = scalar_lea.vmem %s3, %s158
      %p160 = scmp.lt.s32.totalorder %s14, 1
      %s161 = scalar_select %p160, %s14, 1
      %s162 = smul.addr %s161, 2
      %s163 = smul.addr %s162, 8
      %s164 = scalar_lea.vmem %s0, %s163
      %p165 = scmp.lt.s32.totalorder %s14, 1
      %s166 = scalar_select %p165, %s14, 1
      %s167 = smul.addr %s166, 8
      %s168 = scalar_lea.vmem %s3, %s167
      %v170 = vld [vmem:[%s164] sm:$0xff]
      %v171 = vld [vmem:[%s164 + $0x8] sm:$0xff]
      %v172 = vadd.f32 %v170, %v171
      %173 = vadd.xlane.f32.xlu0 %v172
      %v174 = vpop.xlane.xlu0 %173
      %v175 = vmul.f32 %v174, 0.00390625
      %v176 = vld [vmem:[%s1] sm:$0xf]
      %v177 = vpack.c.bf16 %v175, %v175
      %v178 = vld [vmem:[%s2] sm:$0xff]
      %vm179 = vcmask 64512
      %v181 = vsel %vm179, %v176, 0
      %vm183 = vcmask 1043456
      %v185 = vsel %vm183, %v177, 0
      %187 = vmatpush.bf16.msra.mxu0 0
      %188 = vmatpush.bf16.msra.mxu0 0
      %189 = vmatpush.bf16.msra.mxu0 0
      %190 = vmatpush.bf16.msra.mxu0 0
      %191 = vmatpush.bf16.msra.mxu0 0
      %192 = vmatpush.bf16.msra.mxu0 0
      %193 = vmatpush.bf16.msra.mxu0 0
      %194 = vmatpush.bf16.msra.mxu0 %v185
      %195 = vmatmul.bf16.gmra.mxu0 %v181
      %v196 = vpop.f32.mrf.mxu0
      %v197 = vadd.f32 %v178, %v196
      %v198 = vpop.f32.mrf.mxu0
      %199 = vdwg.mxu0
      %vm200 = vcmask 7168
      %201 = vst.msk [vmem:[%s168] sm:$0xff] %vm200, %v197
      %p202 = scmp.lt.s32.totalorder %s14, 1
      %s203 = scalar_select %p202, %s14, 1
      %s204 = smul.addr %s203, 8
      %s205 = scalar_lea.vmem %s3, %s204
      // Predicated region
      $region33: #{fpa_forward.10} parent=31 // pred_check
        %p206 = pneg %p100
      $region34: #{fpa_forward.10} parent=31 // pred_check_branch
        %208 = sbr.rel (%p206) target = $region36
      $region35: #{fpa_forward.10} parent=31 // pred_region
        _
      $region36: #{fpa_forward.10} parent=31 // pred_fallthru
        _
    $region32: #{fpa_forward.10} parent=5 // pred_fallthru
      _
    %p209 = scmp.le.s32.totalorder 2, %s9
    // Predicated region
    $region37: #{fpa_forward.10} parent=5 // pred_check
      %p210 = pneg %p209
    $region38: #{fpa_forward.10} parent=5 // pred_check_branch
      %212 = sbr.rel (%p210) target = $region40
    $region39: #{fpa_forward.10} parent=5 // pred_region
      %s213 = ssub.s32 %s9, 2
      // Predicated region
      $region41: #{fpa_forward.10} parent=39 // pred_check
        %p214 = pneg %p106
      $region42: #{fpa_forward.10} parent=39 // pred_check_branch
        %216 = sbr.rel (%p214) target = $region44
      $region43: #{fpa_forward.10} parent=39 // pred_region
        %p217 = scmp.lt.s32.totalorder %s15, 1
        %s218 = scalar_select %p217, %s15, 1
        %s219 = smul.addr %s218, 8
        %s220 = scalar_lea.vmem %s3, %s219
      $region44: #{fpa_forward.10} parent=39 // pred_fallthru
        _
    $region40: #{fpa_forward.10} parent=5 // pred_fallthru
      _
  $region6: #{fpa_forward.10} parent=0 // loop_footer
    %s13 = sadd.s32 1, %s9
  $region7: #{fpa_forward.10} parent=0 // loop_footer_branch
    %8 = sbr.rel target = $region3
  $region8: #{fpa_forward.10} parent=0 // loop_exit
    _

// kernel: fpa_forward.17
$region0: #{fpa_forward.17}
  #allocation0 [shape = 'u32[]', space=smem, size = 0x4, offset = 0x4, fixed_abs, tag = 'smem constant byte address 0x4 - core index']
  #allocation1 [shape = 'u32[72,128]{1,0:T(1,128)}', space=vmem, size = 0x9000, scoped, tag = 'internal scratch']
  %s0 = inlined_call_operand.vmem [shape: bf16[16,8], index: 0, kind: input, shape index: {}]
  %s1 = inlined_call_operand.vmem [shape: f32[8,256], index: 1, kind: input, shape index: {}]
  %s2 = inlined_call_operand.vmem [shape: f32[16,256], index: 2, kind: input, shape index: {}]
  %s3 = inlined_call_operand.vmem [shape: f32[1,256], index: 3, kind: input, shape index: {}]
  %s4 = inlined_call_operand.vmem [shape: f32[16,256], index: 4, kind: output, shape index: {}]
  %s5 = sld [smem:[#allocation0]]
  $region26: #{fpa_forward.17} parent=0
    _
  %s7 = ssub.s32 1, %s5
  %s8 = scalar_select 0, %s7, %s5
  // Predicated region
  $region2: #{fpa_forward.17} parent=0 // pred_check
    _
  $region3: #{fpa_forward.17} parent=0 // pred_check_branch
    %10 = sbr.rel (0) target = $region5
  $region4: #{fpa_forward.17} parent=0 // pred_region
    _
  $region5: #{fpa_forward.17} parent=0 // pred_fallthru
    _
  // Predicated region
  $region6: #{fpa_forward.17} parent=0 // pred_check
    _
  $region7: #{fpa_forward.17} parent=0 // pred_check_branch
    %12 = sbr.rel (0) target = $region9
  $region8: #{fpa_forward.17} parent=0 // pred_region
    _
  $region9: #{fpa_forward.17} parent=0 // pred_fallthru
    _
  // Predicated region
  $region10: #{fpa_forward.17} parent=0 // pred_check
    _
  $region11: #{fpa_forward.17} parent=0 // pred_check_branch
    %14 = sbr.rel (0) target = $region13
  $region12: #{fpa_forward.17} parent=0 // pred_region
    _
  $region13: #{fpa_forward.17} parent=0 // pred_fallthru
    _
  // Predicated region
  $region14: #{fpa_forward.17} parent=0 // pred_check
    _
  $region15: #{fpa_forward.17} parent=0 // pred_check_branch
    %16 = sbr.rel (0) target = $region17
  $region16: #{fpa_forward.17} parent=0 // pred_region
    _
  $region17: #{fpa_forward.17} parent=0 // pred_fallthru
    _
  %v18 = vld [vmem:[%s0] sm:$0xf]
  %v19 = vld [vmem:[%s0 + $0x4] sm:$0xf]
  %v20 = vld [vmem:[%s1] sm:$0xff]
  %v21 = vld [vmem:[%s1 + $0x8] sm:$0xff]
  %v22 = vpack.c.bf16 %v20, %v20
  %v23 = vpack.c.bf16 %v21, %v21
  %v26 = vunpack.c.l.b16 %v18
  %v27 = vunpack.c.l.b16 %v19
  %v28 = vpack.c.b16 %v27, %v26
  %vm29 = vcmask 64512
  %v31 = vsel %vm29, %v28, 0
  %vm33 = vcmask 1043456
  %v35 = vsel %vm33, %v22, 0
  %v38 = vsel %vm33, %v23, 0
  %40 = vmatpush.bf16.msra.mxu0 0
  %41 = vmatpush.bf16.msra.mxu0 0
  %42 = vmatpush.bf16.msra.mxu0 0
  %43 = vmatpush.bf16.msra.mxu0 0
  %44 = vmatpush.bf16.msra.mxu0 0
  %45 = vmatpush.bf16.msra.mxu0 0
  %46 = vmatpush.bf16.msra.mxu0 0
  %47 = vmatpush.bf16.msra.mxu0 %v35
  %48 = vmatmul.bf16.gmra.mxu0 %v31
  %v49 = vpop.f32.mrf.mxu0
  %v50 = vadd.f32 0.0, %v49
  %v51 = vpop.f32.mrf.mxu0
  %v52 = vadd.f32 0.0, %v51
  %53 = vdwg.mxu0
  %54 = vmatpush.bf16.msra.mxu0 0
  %55 = vmatpush.bf16.msra.mxu0 0
  %56 = vmatpush.bf16.msra.mxu0 0
  %57 = vmatpush.bf16.msra.mxu0 0
  %58 = vmatpush.bf16.msra.mxu0 0
  %59 = vmatpush.bf16.msra.mxu0 0
  %60 = vmatpush.bf16.msra.mxu0 0
  %61 = vmatpush.bf16.msra.mxu0 %v38
  %62 = vmatmul.bf16.gmra.mxu0 %v31
  %v63 = vpop.f32.mrf.mxu0
  %v64 = vadd.f32 0.0, %v63
  %v65 = vpop.f32.mrf.mxu0
  %v66 = vadd.f32 0.0, %v65
  %67 = vdwg.mxu0
  %v68 = vld [vmem:[%s2] sm:$0xff]
  %v69 = vld [vmem:[%s2 + $0x8] sm:$0xff]
  %v70 = vld [vmem:[%s2 + $0x10] sm:$0xff]
  %v71 = vld [vmem:[%s2 + $0x18] sm:$0xff]
  %v72 = vmul.f32 %v68, %v50
  %v73 = vmul.f32 %v69, %v64
  %v74 = vmul.f32 %v70, %v52
  %v75 = vmul.f32 %v71, %v66
  %v76 = vld [vmem:[%s3] sm:$0x3]
  %v78 = vperm.slane %v76, 0
  %v79 = vperm.slane %v76, 1
  %v82 = vadd.f32 %v72, %v78
  %v83 = vadd.f32 %v73, %v79
  %v84 = vadd.f32 %v74, %v78
  %v85 = vadd.f32 %v75, %v79
  %86 = vst [vmem:[%s4] sm:$0xff] %v82
  %87 = vst [vmem:[%s4 + $0x8] sm:$0xff] %v83
  %88 = vst [vmem:[%s4 + $0x10] sm:$0xff] %v84
  %89 = vst [vmem:[%s4 + $0x18] sm:$0xff] %v85
  // Predicated region
  $region18: #{fpa_forward.17} parent=0 // pred_check
    _
  $region19: #{fpa_forward.17} parent=0 // pred_check_branch
    %91 = sbr.rel (0) target = $region21
  $region20: #{fpa_forward.17} parent=0 // pred_region
    _
  $region21: #{fpa_forward.17} parent=0 // pred_fallthru
    _
  // Predicated region
  $region22: #{fpa_forward.17} parent=0 // pred_check
    _
  $region23: #{fpa_forward.17} parent=0 // pred_check_branch
    %93 = sbr.rel (0) target = $region25
  $region24: #{fpa_forward.17} parent=0 // pred_region
    _
  $region25: #{fpa_forward.17} parent=0 // pred_fallthru
    _

</llo_original>
